<compile_context>
chip_gen: v6e
topology: v6e:2x2x1
jax: 0.10.0
libtpu: 0.0.40
codegen_flags: <defaults>
</compile_context>

<pallas_src>
import functools

import jax
import jax.numpy as jnp
from jax.experimental import pallas as pl
from jax.experimental.pallas import tpu as pltpu

NEG_INF = -1e30  # additive mask value (exp() underflows to exactly 0)


# ----------------------------- kernel (one grid step = one (batch, layer)) -----------------------------

def _decoder_layer_kernel(
    # activations / masks (per-batch blocks, resident across the layer axis)
    x_ref, mem_ref, sbias_ref, cbias_ref,
    # per-layer weights (streamed: block = one layer)
    s_wq, s_wk, s_wv, s_bq, s_bk, s_bv, s_wo, s_bo,
    c_wq, c_wk, c_wv, c_bq, c_bk, c_bv, c_wo, c_bo,
    ln1_g, ln1_b, ln2_g, ln2_b, ln3_g, ln3_b,
    w1, b1, w2, b2,
    # final norm (shared)
    norm_g, norm_b,
    # output
    o_ref,
    # VMEM carry of the residual stream
    x_scr,
    *, nhead, num_layers, has_norm,
):
    f32, bf16 = jnp.float32, jnp.bfloat16
    T, D = x_ref.shape
    S = mem_ref.shape[0]
    H = nhead
    dh = D // H
    l = pl.program_id(1)

    @pl.when(l == 0)
    def _init():
        x_scr[...] = x_ref[...].astype(f32)

    def layernorm(y, g, b):                       # y [M,D] f32, g/b refs [1,D]
        mean = jnp.mean(y, axis=-1, keepdims=True)
        c = y - mean
        var = jnp.mean(c * c, axis=-1, keepdims=True)
        return c * jax.lax.rsqrt(var + 1e-5) * g[...] + b[...]

    def project(h_bf, w, b):                      # bf16 GEMM, f32 accumulate
        return jnp.dot(h_bf, w[...], preferred_element_type=f32) + b[...]

    def attention(q, k, v, bias, skv):
        # q [T,D] f32 (scale already folded into Wq), k/v [skv,D] f32, bias [T,skv] f32.
        # All heads at once via batched einsums (no per-head loop, no concat).
        qh = q.reshape(T, H, dh).astype(bf16)
        kh = k.reshape(skv, H, dh).astype(bf16)
        vh = v.reshape(skv, H, dh).astype(bf16)
        s = jnp.einsum("qhd,khd->hqk", qh, kh, preferred_element_type=f32)   # [H,T,skv]
        s = s + bias[None, :, :]
        s = s - jnp.max(s, axis=-1, keepdims=True)
        p = jnp.exp(s)
        p = p * pl.reciprocal(jnp.sum(p, axis=-1, keepdims=True), approx=True)
        o = jnp.einsum("hqk,khd->qhd", p.astype(bf16), vh,
                       preferred_element_type=f32)                           # [T,H,dh]
        return o.reshape(T, D)

    x2 = x_scr[...]                               # [T,D] f32 residual stream
    mem_bf = mem_ref[...]                         # [S,D] bf16

    # ---- self attention (post-norm; dropout = identity) ----
    xb = x2.astype(bf16)
    sa = attention(project(xb, s_wq, s_bq), project(xb, s_wk, s_bk),
                   project(xb, s_wv, s_bv), sbias_ref[...], T)
    sa = project(sa.astype(bf16), s_wo, s_bo)
    x2 = layernorm(x2 + sa, ln1_g, ln1_b)

    # ---- cross attention (Q from tgt, K/V from encoder memory) ----
    xb = x2.astype(bf16)
    ca = attention(project(xb, c_wq, c_bq), project(mem_bf, c_wk, c_bk),
                   project(mem_bf, c_wv, c_bv), cbias_ref[...], S)
    ca = project(ca.astype(bf16), c_wo, c_bo)
    x2 = layernorm(x2 + ca, ln2_g, ln2_b)

    # ---- feed forward (ReLU) ----
    xb = x2.astype(bf16)
    hid = jnp.maximum(project(xb, w1, b1), 0.0)
    ff = project(hid.astype(bf16), w2, b2)
    x2 = layernorm(x2 + ff, ln3_g, ln3_b)

    x_scr[...] = x2

    @pl.when(l == num_layers - 1)
    def _finalize():
        out = layernorm(x2, norm_g, norm_b) if has_norm else x2
        o_ref[...] = out.astype(o_ref.dtype)


# ----------------------------- sizing helpers -----------------------------

def _tile_bytes(r, c, itemsize):
    return (-(-r // 8) * 8) * (-(-c // 128) * 128) * itemsize


def _vmem_limit_bytes(T, S, D, FF, H):
    # double-buffered per-layer bf16 weights
    w = 2 * (8 * _tile_bytes(D, D, 2) + _tile_bytes(D, FF, 2) + _tile_bytes(FF, D, 2))
    vecs = 2 * (16 * _tile_bytes(1, D, 4) + _tile_bytes(1, FF, 4))
    acts = (2 * _tile_bytes(T, D, 4) + _tile_bytes(S, D, 2)
            + _tile_bytes(T, T, 4) + _tile_bytes(T, S, 4) + _tile_bytes(T, D, 4))
    inter = 3 * H * _tile_bytes(T, max(T, S), 4) + 2 * _tile_bytes(T, FF, 4) + 8 * _tile_bytes(T, D, 4)
    est = w + vecs + acts + inter
    return int(min(max(2 * est, 16 << 20), 64 << 20))   # budget against v7x 64 MiB physical


def _cost_estimate(B, T, S, D, FF, L, H):
    per_layer = 2 * (4 * T * D * D                      # self q,k,v,o projections
                     + 2 * T * T * D                    # self attn qk^T + pv
                     + 2 * T * D * D + 2 * S * D * D    # cross q,o + k,v projections
                     + 2 * T * S * D                    # cross attn
                     + 2 * T * D * FF)                  # ffn
    flops = B * L * per_layer
    transcendentals = B * L * H * (T * T + T * S + 2 * T)
    w_bytes = L * ((8 * D * D + 2 * D * FF) * 2 + (16 * D + FF) * 4)
    act_bytes = B * (2 * T * D * 4 + S * D * 2 + T * T * 4 + T * S * 4)
    return pl.CostEstimate(flops=flops, transcendentals=transcendentals,
                           bytes_accessed=B * w_bytes + act_bytes)


# ----------------------------- wrapper (plain JAX) -----------------------------

_LAYER_KEYS = (
    "s_wq", "s_wk", "s_wv", "s_bq", "s_bk", "s_bv", "s_wo", "s_bo",
    "c_wq", "c_wk", "c_wv", "c_bq", "c_bk", "c_bv", "c_wo", "c_bo",
    "ln1_g", "ln1_b", "ln2_g", "ln2_b", "ln3_g", "ln3_b",
    "w1", "b1", "w2", "b2",
)


def transformer_decoder(tgt, memory, height, prepared, nhead,
                        tgt_mask=None, memory_mask=None,
                        tgt_key_padding_mask=None, memory_key_padding_mask=None):
    """TransformerDecoder.forward (arm=None path). tgt [T,B,D], memory [S,B,D] -> [T,B,D]."""
    del height  # only consumed by the AttentionRefinementModule, which is None here
    T, B, D = tgt.shape
    S = memory.shape[0]
    L = prepared["num_layers"]
    FF = prepared["w1"].shape[-1]
    has_norm = prepared["has_norm"]

    # batch-major activations; memory is a pure GEMM operand -> bf16
    x = jnp.transpose(tgt, (1, 0, 2))                               # [B,T,D]
    mem = jnp.transpose(memory, (1, 0, 2)).astype(jnp.bfloat16)     # [B,S,D]

    # compact per-batch additive biases (broadcast across heads inside the kernel), f32
    sbias = jnp.zeros((B, T, T), jnp.float32)
    if tgt_mask is not None:
        sbias = sbias + tgt_mask[None, :, :].astype(jnp.float32)
    if tgt_key_padding_mask is not None:
        sbias = sbias + jnp.where(tgt_key_padding_mask, NEG_INF, 0.0)[:, None, :]
    cbias = jnp.zeros((B, T, S), jnp.float32)
    if memory_mask is not None:
        cbias = cbias + memory_mask[None, :, :].astype(jnp.float32)
    if memory_key_padding_mask is not None:
        cbias = cbias + jnp.where(memory_key_padding_mask, NEG_INF, 0.0)[:, None, :]

    layer_args = [prepared[k] for k in _LAYER_KEYS]

    def act_spec(a):   # per-batch block, resident across the layer axis
        return pl.BlockSpec((None,) + a.shape[1:], lambda b, l: (b, 0, 0))

    def lay_spec(a):   # per-layer block, streamed/double-buffered along the layer axis
        return pl.BlockSpec((None,) + a.shape[1:], lambda b, l: (l, 0, 0))

    norm_spec = pl.BlockSpec((1, D), lambda b, l: (0, 0))

    in_specs = ([act_spec(a) for a in (x, mem, sbias, cbias)]
                + [lay_spec(a) for a in layer_args]
                + [norm_spec, norm_spec])

    out = pl.pallas_call(
        functools.partial(_decoder_layer_kernel, nhead=nhead, num_layers=L, has_norm=has_norm),
        grid=(B, L),
        out_shape=jax.ShapeDtypeStruct((B, T, D), tgt.dtype),
        in_specs=in_specs,
        out_specs=pl.BlockSpec((None, T, D), lambda b, l: (b, 0, 0)),
        scratch_shapes=[pltpu.VMEM((T, D), jnp.float32)],
        compiler_params=pltpu.CompilerParams(
            dimension_semantics=("parallel", "arbitrary"),
            vmem_limit_bytes=_vmem_limit_bytes(T, S, D, FF, nhead)),
        cost_estimate=_cost_estimate(B, T, S, D, FF, L, nhead),
    )(x, mem, sbias, cbias, *layer_args, prepared["norm_g"], prepared["norm_b"])

    return jnp.transpose(out, (1, 0, 2))     # back to [T,B,D]


# ----------------------------- params -----------------------------

def init_params(key, num_layers, d_model, nhead, dim_ff):
    """Per-layer f32 params (PyTorch-module-like container)."""
    def dense(k, fi, fo):
        return 0.02 * jax.random.normal(k, (fi, fo), jnp.float32)

    ks = jax.random.split(key, 10)
    zD = jnp.zeros((d_model,), jnp.float32)
    layer = dict(
        s_wq=dense(ks[0], d_model, d_model), s_bq=zD,
        s_wk=dense(ks[1], d_model, d_model), s_bk=zD,
        s_wv=dense(ks[2], d_model, d_model), s_bv=zD,
        s_wo=dense(ks[3], d_model, d_model), s_bo=zD,
        c_wq=dense(ks[4], d_model, d_model), c_bq=zD,
        c_wk=dense(ks[5], d_model, d_model), c_bk=zD,
        c_wv=dense(ks[6], d_model, d_model), c_bv=zD,
        c_wo=dense(ks[7], d_model, d_model), c_bo=zD,
        w1=dense(ks[8], d_model, dim_ff), b1=jnp.zeros((dim_ff,), jnp.float32),
        w2=dense(ks[9], dim_ff, d_model), b2=zD,
        ln1_g=jnp.ones((d_model,), jnp.float32), ln1_b=zD,
        ln2_g=jnp.ones((d_model,), jnp.float32), ln2_b=zD,
        ln3_g=jnp.ones((d_model,), jnp.float32), ln3_b=zD,
    )
    # _get_clones = deepcopy -> every layer starts with identical weights
    layers = [layer for _ in range(num_layers)]
    norm = (jnp.ones((d_model,), jnp.float32), jnp.zeros((d_model,), jnp.float32))
    return dict(layers=layers, norm=norm)


def prepare_params(params, nhead, weight_dtype=jnp.bfloat16):
    """Stack per-layer params once (outside the per-call path), fold 1/sqrt(dh) into the
    Q projections, cast weight matrices to bf16; vectors/LN params stay f32."""
    layers = params["layers"]
    L = len(layers)
    D = layers[0]["s_wq"].shape[0]
    scale = float(D // nhead) ** -0.5

    def stack_mat(key, fold=1.0):
        return (jnp.stack([lp[key] for lp in layers], 0) * fold).astype(weight_dtype)

    def stack_vec(key, fold=1.0):
        return (jnp.stack([lp[key] for lp in layers], 0)[:, None, :] * fold).astype(jnp.float32)

    p = {}
    for k in ("s_wk", "s_wv", "s_wo", "c_wk", "c_wv", "c_wo", "w1", "w2"):
        p[k] = stack_mat(k)
    p["s_wq"] = stack_mat("s_wq", scale)      # 1/sqrt(dh) folded into Q projection
    p["c_wq"] = stack_mat("c_wq", scale)
    for k in ("s_bk", "s_bv", "s_bo", "c_bk", "c_bv", "c_bo", "b1", "b2",
              "ln1_g", "ln1_b", "ln2_g", "ln2_b", "ln3_g", "ln3_b"):
        p[k] = stack_vec(k)
    p["s_bq"] = stack_vec("s_bq", scale)
    p["c_bq"] = stack_vec("c_bq", scale)

    norm = params.get("norm")
    p["has_norm"] = norm is not None
    if norm is not None:
        p["norm_g"] = norm[0].reshape(1, D).astype(jnp.float32)
        p["norm_b"] = norm[1].reshape(1, D).astype(jnp.float32)
    else:
        p["norm_g"] = jnp.ones((1, D), jnp.float32)
        p["norm_b"] = jnp.zeros((1, D), jnp.float32)
    p["num_layers"] = L
    return p


# ----------------------------- main -----------------------------

if __name__ == "__main__":
    B, T, grid_h, grid_w, D, H, FF, L = 2, 8, 4, 4, 32, 4, 64, 3
    S = grid_h * grid_w

    key = jax.random.PRNGKey(0)
    k_tgt, k_mem, k_par = jax.random.split(key, 3)
    tgt = jax.random.normal(k_tgt, (T, B, D), jnp.float32)       # [T, B, D]
    memory = jax.random.normal(k_mem, (S, B, D), jnp.float32)    # [S, B, D]
    params = prepare_params(init_params(k_par, L, D, H, FF), H)

    # float causal mask (like nn.Transformer.generate_square_subsequent_mask)
    causal = jnp.where(jnp.tril(jnp.ones((T, T), bool)), 0.0, NEG_INF).astype(jnp.float32)
    tgt_kpm = jnp.zeros((B, T), bool).at[1, T - 2:].set(True)    # pad last 2 tgt tokens of batch 1
    mem_kpm = jnp.zeros((B, S), bool).at[1, S - 4:].set(True)    # pad last 4 memory cells of batch 1

    out = transformer_decoder(
        tgt, memory, grid_h, params, H,
        tgt_mask=causal,
        memory_mask=None,
        tgt_key_padding_mask=tgt_kpm,
        memory_key_padding_mask=mem_kpm,
    )
    out = jax.block_until_ready(out)

    assert out.shape == (T, B, D), out.shape
    assert bool(jnp.all(jnp.isfinite(out)))
    print("KERNEL_OK")
</pallas_src>

<mosaic_0001>
module attributes {stable_mosaic.version = 11 : i64} {
  func.func @_decoder_layer_kernel(%arg0: i32, %arg1: i32, %arg2: memref<1x8x32xf32, #tpu.memory_space<vmem>>, %arg3: memref<1x16x32xbf16, #tpu.memory_space<vmem>>, %arg4: memref<1x8x8xf32, #tpu.memory_space<vmem>>, %arg5: memref<1x8x16xf32, #tpu.memory_space<vmem>>, %arg6: memref<1x32x32xbf16, #tpu.memory_space<vmem>>, %arg7: memref<1x32x32xbf16, #tpu.memory_space<vmem>>, %arg8: memref<1x32x32xbf16, #tpu.memory_space<vmem>>, %arg9: memref<1x1x32xf32, #tpu.memory_space<vmem>>, %arg10: memref<1x1x32xf32, #tpu.memory_space<vmem>>, %arg11: memref<1x1x32xf32, #tpu.memory_space<vmem>>, %arg12: memref<1x32x32xbf16, #tpu.memory_space<vmem>>, %arg13: memref<1x1x32xf32, #tpu.memory_space<vmem>>, %arg14: memref<1x32x32xbf16, #tpu.memory_space<vmem>>, %arg15: memref<1x32x32xbf16, #tpu.memory_space<vmem>>, %arg16: memref<1x32x32xbf16, #tpu.memory_space<vmem>>, %arg17: memref<1x1x32xf32, #tpu.memory_space<vmem>>, %arg18: memref<1x1x32xf32, #tpu.memory_space<vmem>>, %arg19: memref<1x1x32xf32, #tpu.memory_space<vmem>>, %arg20: memref<1x32x32xbf16, #tpu.memory_space<vmem>>, %arg21: memref<1x1x32xf32, #tpu.memory_space<vmem>>, %arg22: memref<1x1x32xf32, #tpu.memory_space<vmem>>, %arg23: memref<1x1x32xf32, #tpu.memory_space<vmem>>, %arg24: memref<1x1x32xf32, #tpu.memory_space<vmem>>, %arg25: memref<1x1x32xf32, #tpu.memory_space<vmem>>, %arg26: memref<1x1x32xf32, #tpu.memory_space<vmem>>, %arg27: memref<1x1x32xf32, #tpu.memory_space<vmem>>, %arg28: memref<1x32x64xbf16, #tpu.memory_space<vmem>>, %arg29: memref<1x1x64xf32, #tpu.memory_space<vmem>>, %arg30: memref<1x64x32xbf16, #tpu.memory_space<vmem>>, %arg31: memref<1x1x32xf32, #tpu.memory_space<vmem>>, %arg32: memref<1x32xf32, #tpu.memory_space<vmem>>, %arg33: memref<1x32xf32, #tpu.memory_space<vmem>>, %arg34: memref<1x8x32xf32, #tpu.memory_space<vmem>>, %arg35: memref<8x32xf32, #tpu.memory_space<vmem>>) attributes {dimension_semantics = [#tpu.dimension_semantics<parallel>, #tpu.dimension_semantics<arbitrary>], iteration_bounds = array<i64: 2, 3>, scalar_prefetch = 0 : i64, scratch_operands = 1 : i64, tpu.core_type = #tpu.core_type<tc>, window_params = [{transform_indices = @transform_0, window_bounds = array<i64: 1, 8, 32>}, {transform_indices = @transform_1, window_bounds = array<i64: 1, 16, 32>}, {transform_indices = @transform_2, window_bounds = array<i64: 1, 8, 8>}, {transform_indices = @transform_3, window_bounds = array<i64: 1, 8, 16>}, {transform_indices = @transform_4, window_bounds = array<i64: 1, 32, 32>}, {transform_indices = @transform_5, window_bounds = array<i64: 1, 32, 32>}, {transform_indices = @transform_6, window_bounds = array<i64: 1, 32, 32>}, {transform_indices = @transform_7, window_bounds = array<i64: 1, 1, 32>}, {transform_indices = @transform_8, window_bounds = array<i64: 1, 1, 32>}, {transform_indices = @transform_9, window_bounds = array<i64: 1, 1, 32>}, {transform_indices = @transform_10, window_bounds = array<i64: 1, 32, 32>}, {transform_indices = @transform_11, window_bounds = array<i64: 1, 1, 32>}, {transform_indices = @transform_12, window_bounds = array<i64: 1, 32, 32>}, {transform_indices = @transform_13, window_bounds = array<i64: 1, 32, 32>}, {transform_indices = @transform_14, window_bounds = array<i64: 1, 32, 32>}, {transform_indices = @transform_15, window_bounds = array<i64: 1, 1, 32>}, {transform_indices = @transform_16, window_bounds = array<i64: 1, 1, 32>}, {transform_indices = @transform_17, window_bounds = array<i64: 1, 1, 32>}, {transform_indices = @transform_18, window_bounds = array<i64: 1, 32, 32>}, {transform_indices = @transform_19, window_bounds = array<i64: 1, 1, 32>}, {transform_indices = @transform_20, window_bounds = array<i64: 1, 1, 32>}, {transform_indices = @transform_21, window_bounds = array<i64: 1, 1, 32>}, {transform_indices = @transform_22, window_bounds = array<i64: 1, 1, 32>}, {transform_indices = @transform_23, window_bounds = array<i64: 1, 1, 32>}, {transform_indices = @transform_24, window_bounds = array<i64: 1, 1, 32>}, {transform_indices = @transform_25, window_bounds = array<i64: 1, 1, 32>}, {transform_indices = @transform_26, window_bounds = array<i64: 1, 32, 64>}, {transform_indices = @transform_27, window_bounds = array<i64: 1, 1, 64>}, {transform_indices = @transform_28, window_bounds = array<i64: 1, 64, 32>}, {transform_indices = @transform_29, window_bounds = array<i64: 1, 1, 32>}, {pipeline_mode = #tpu.pipeline_mode<synchronous>, transform_indices = @transform_30, window_bounds = array<i64: 1, 32>}, {pipeline_mode = #tpu.pipeline_mode<synchronous>, transform_indices = @transform_31, window_bounds = array<i64: 1, 32>}, {transform_indices = @transform_32, window_bounds = array<i64: 1, 8, 32>}]} {
    %c0_i32 = arith.constant 0 : i32
    %0 = arith.cmpi eq, %arg1, %c0_i32 : i32
    %1 = arith.extui %0 : i1 to i32
    %c0_i32_0 = arith.constant 0 : i32
    %2 = arith.cmpi ne, %1, %c0_i32_0 : i32
    scf.if %2 {
      %c0_125 = arith.constant 0 : index
      %c0_126 = arith.constant 0 : index
      %c0_127 = arith.constant 0 : index
      %215 = vector.load %arg2[%c0_125, %c0_126, %c0_127] : memref<1x8x32xf32, #tpu.memory_space<vmem>>, vector<1x8x32xf32>
      %216 = vector.shape_cast %215 : vector<1x8x32xf32> to vector<8x32xf32>
      %c0_128 = arith.constant 0 : index
      %c0_129 = arith.constant 0 : index
      %217 = vector.load %arg35[%c0_128, %c0_129] : memref<8x32xf32, #tpu.memory_space<vmem>>, vector<8x32xf32>
      tpu.vector_store %arg35[%c0_128, %c0_129], %216 {strides = array<i32>} : memref<8x32xf32, #tpu.memory_space<vmem>>, vector<8x32xf32>,
    } else {
    }
    %c0 = arith.constant 0 : index
    %c0_1 = arith.constant 0 : index
    %3 = vector.load %arg35[%c0, %c0_1] : memref<8x32xf32, #tpu.memory_space<vmem>>, vector<8x32xf32>
    %c0_2 = arith.constant 0 : index
    %c0_3 = arith.constant 0 : index
    %c0_4 = arith.constant 0 : index
    %4 = vector.load %arg3[%c0_2, %c0_3, %c0_4] : memref<1x16x32xbf16, #tpu.memory_space<vmem>>, vector<1x16x32xbf16>
    %5 = vector.shape_cast %4 : vector<1x16x32xbf16> to vector<16x32xbf16>
    %6 = arith.truncf %3 : vector<8x32xf32> to vector<8x32xbf16>
    %c0_5 = arith.constant 0 : index
    %c0_6 = arith.constant 0 : index
    %c0_7 = arith.constant 0 : index
    %7 = vector.load %arg6[%c0_5, %c0_6, %c0_7] : memref<1x32x32xbf16, #tpu.memory_space<vmem>>, vector<1x32x32xbf16>
    %8 = vector.shape_cast %7 : vector<1x32x32xbf16> to vector<32x32xbf16>
    %cst = arith.constant dense<0.000000e+00> : vector<8x32xf32>
    %9 = tpu.matmul %6, %8, %cst {dimension_numbers = #tpu.dot_dimension_numbers<[1], [0], [0], [1], [0, 0, 1, 1], [], []>} : vector<8x32xbf16>, vector<32x32xbf16>, vector<8x32xf32> -> vector<8x32xf32>
    %c0_8 = arith.constant 0 : index
    %c0_9 = arith.constant 0 : index
    %c0_10 = arith.constant 0 : index
    %10 = vector.load %arg9[%c0_8, %c0_9, %c0_10] : memref<1x1x32xf32, #tpu.memory_space<vmem>>, vector<1x1x32xf32>
    %11 = vector.shape_cast %10 : vector<1x1x32xf32> to vector<1x32xf32>
    %12 = vector.broadcast %11 : vector<1x32xf32> to vector<8x32xf32>
    %13 = arith.addf %9, %12 : vector<8x32xf32>
    %c0_11 = arith.constant 0 : index
    %c0_12 = arith.constant 0 : index
    %c0_13 = arith.constant 0 : index
    %14 = vector.load %arg7[%c0_11, %c0_12, %c0_13] : memref<1x32x32xbf16, #tpu.memory_space<vmem>>, vector<1x32x32xbf16>
    %15 = vector.shape_cast %14 : vector<1x32x32xbf16> to vector<32x32xbf16>
    %cst_14 = arith.constant dense<0.000000e+00> : vector<8x32xf32>
    %16 = tpu.matmul %6, %15, %cst_14 {dimension_numbers = #tpu.dot_dimension_numbers<[1], [0], [0], [1], [0, 0, 1, 1], [], []>} : vector<8x32xbf16>, vector<32x32xbf16>, vector<8x32xf32> -> vector<8x32xf32>
    %c0_15 = arith.constant 0 : index
    %c0_16 = arith.constant 0 : index
    %c0_17 = arith.constant 0 : index
    %17 = vector.load %arg10[%c0_15, %c0_16, %c0_17] : memref<1x1x32xf32, #tpu.memory_space<vmem>>, vector<1x1x32xf32>
    %18 = vector.shape_cast %17 : vector<1x1x32xf32> to vector<1x32xf32>
    %19 = vector.broadcast %18 : vector<1x32xf32> to vector<8x32xf32>
    %20 = arith.addf %16, %19 : vector<8x32xf32>
    %c0_18 = arith.constant 0 : index
    %c0_19 = arith.constant 0 : index
    %c0_20 = arith.constant 0 : index
    %21 = vector.load %arg8[%c0_18, %c0_19, %c0_20] : memref<1x32x32xbf16, #tpu.memory_space<vmem>>, vector<1x32x32xbf16>
    %22 = vector.shape_cast %21 : vector<1x32x32xbf16> to vector<32x32xbf16>
    %cst_21 = arith.constant dense<0.000000e+00> : vector<8x32xf32>
    %23 = tpu.matmul %6, %22, %cst_21 {dimension_numbers = #tpu.dot_dimension_numbers<[1], [0], [0], [1], [0, 0, 1, 1], [], []>} : vector<8x32xbf16>, vector<32x32xbf16>, vector<8x32xf32> -> vector<8x32xf32>
    %c0_22 = arith.constant 0 : index
    %c0_23 = arith.constant 0 : index
    %c0_24 = arith.constant 0 : index
    %24 = vector.load %arg11[%c0_22, %c0_23, %c0_24] : memref<1x1x32xf32, #tpu.memory_space<vmem>>, vector<1x1x32xf32>
    %25 = vector.shape_cast %24 : vector<1x1x32xf32> to vector<1x32xf32>
    %26 = vector.broadcast %25 : vector<1x32xf32> to vector<8x32xf32>
    %27 = arith.addf %23, %26 : vector<8x32xf32>
    %c0_25 = arith.constant 0 : index
    %c0_26 = arith.constant 0 : index
    %c0_27 = arith.constant 0 : index
    %28 = vector.load %arg4[%c0_25, %c0_26, %c0_27] : memref<1x8x8xf32, #tpu.memory_space<vmem>>, vector<1x8x8xf32>
    %29 = vector.shape_cast %28 : vector<1x8x8xf32> to vector<8x8xf32>
    %30 = vector.shape_cast %13 : vector<8x32xf32> to vector<8x4x8xf32>
    %31 = arith.truncf %30 : vector<8x4x8xf32> to vector<8x4x8xbf16>
    %32 = vector.shape_cast %20 : vector<8x32xf32> to vector<8x4x8xf32>
    %33 = arith.truncf %32 : vector<8x4x8xf32> to vector<8x4x8xbf16>
    %34 = vector.shape_cast %27 : vector<8x32xf32> to vector<8x4x8xf32>
    %35 = arith.truncf %34 : vector<8x4x8xf32> to vector<8x4x8xbf16>
    "tpu.trace_start"() <{level = 10 : i32, message = "qhd,khd->hqk"}> : () -> ()
    %cst_28 = arith.constant dense<0.000000e+00> : vector<4x8x8xf32>
    %36 = tpu.matmul %31, %33, %cst_28 {dimension_numbers = #tpu.dot_dimension_numbers<[2], [2], [0], [0], [0, 1, 0, 0, 1, 0], [1], [1]>} : vector<8x4x8xbf16>, vector<8x4x8xbf16>, vector<4x8x8xf32> -> vector<4x8x8xf32>
    "tpu.trace_stop"() : () -> ()
    %37 = vector.shape_cast %29 : vector<8x8xf32> to vector<1x8x8xf32>
    %38 = vector.broadcast %37 : vector<1x8x8xf32> to vector<4x8x8xf32>
    %39 = arith.addf %36, %38 : vector<4x8x8xf32>
    %cst_29 = arith.constant dense<0xFF800000> : vector<4x8xf32>
    %40 = vector.multi_reduction <maximumf>, %39, %cst_29 [2] : vector<4x8x8xf32> to vector<4x8xf32>
    %41 = vector.shape_cast %40 : vector<4x8xf32> to vector<4x8x1xf32>
    %42 = vector.broadcast %41 : vector<4x8x1xf32> to vector<4x8x8xf32>
    %43 = arith.subf %39, %42 : vector<4x8x8xf32>
    %44 = math.exp %43 : vector<4x8x8xf32>
    %cst_30 = arith.constant dense<0.000000e+00> : vector<4x8xf32>
    %45 = vector.multi_reduction <add>, %44, %cst_30 [2] : vector<4x8x8xf32> to vector<4x8xf32>
    %46 = vector.shape_cast %45 : vector<4x8xf32> to vector<4x8x1xf32>
    %47 = tpu.reciprocal %46 {approx = true} : vector<4x8x1xf32> -> vector<4x8x1xf32>
    %48 = vector.broadcast %47 : vector<4x8x1xf32> to vector<4x8x8xf32>
    %49 = arith.mulf %44, %48 : vector<4x8x8xf32>
    %50 = arith.truncf %49 : vector<4x8x8xf32> to vector<4x8x8xbf16>
    "tpu.trace_start"() <{level = 10 : i32, message = "hqk,khd->qhd"}> : () -> ()
    %cst_31 = arith.constant dense<0.000000e+00> : vector<4x8x8xf32>
    %51 = tpu.matmul %35, %50, %cst_31 {dimension_numbers = #tpu.dot_dimension_numbers<[0], [2], [2], [1], [0, 1, 0, 2, 1, 1], [1], [0]>} : vector<8x4x8xbf16>, vector<4x8x8xbf16>, vector<4x8x8xf32> -> vector<4x8x8xf32>
    %52 = tpu.transpose %51, [2, 0, 1] : vector<4x8x8xf32> -> vector<8x4x8xf32>
    "tpu.trace_stop"() : () -> ()
    %53 = vector.shape_cast %52 : vector<8x4x8xf32> to vector<8x32xf32>
    %54 = arith.truncf %53 : vector<8x32xf32> to vector<8x32xbf16>
    %c0_32 = arith.constant 0 : index
    %c0_33 = arith.constant 0 : index
    %c0_34 = arith.constant 0 : index
    %55 = vector.load %arg12[%c0_32, %c0_33, %c0_34] : memref<1x32x32xbf16, #tpu.memory_space<vmem>>, vector<1x32x32xbf16>
    %56 = vector.shape_cast %55 : vector<1x32x32xbf16> to vector<32x32xbf16>
    %cst_35 = arith.constant dense<0.000000e+00> : vector<8x32xf32>
    %57 = tpu.matmul %54, %56, %cst_35 {dimension_numbers = #tpu.dot_dimension_numbers<[1], [0], [0], [1], [0, 0, 1, 1], [], []>} : vector<8x32xbf16>, vector<32x32xbf16>, vector<8x32xf32> -> vector<8x32xf32>
    %c0_36 = arith.constant 0 : index
    %c0_37 = arith.constant 0 : index
    %c0_38 = arith.constant 0 : index
    %58 = vector.load %arg13[%c0_36, %c0_37, %c0_38] : memref<1x1x32xf32, #tpu.memory_space<vmem>>, vector<1x1x32xf32>
    %59 = vector.shape_cast %58 : vector<1x1x32xf32> to vector<1x32xf32>
    %60 = vector.broadcast %59 : vector<1x32xf32> to vector<8x32xf32>
    %61 = arith.addf %57, %60 : vector<8x32xf32>
    %62 = arith.addf %3, %61 : vector<8x32xf32>
    %cst_39 = arith.constant dense<0.000000e+00> : vector<8xf32>
    %63 = vector.multi_reduction <add>, %62, %cst_39 [1] : vector<8x32xf32> to vector<8xf32>
    %64 = vector.shape_cast %63 : vector<8xf32> to vector<8x1xf32>
    %cst_40 = arith.constant 3.200000e+01 : f32
    %65 = vector.broadcast %cst_40 : f32 to vector<8x1xf32>
    %66 = arith.divf %64, %65 : vector<8x1xf32>
    %67 = vector.broadcast %66 : vector<8x1xf32> to vector<8x32xf32>
    %68 = arith.subf %62, %67 : vector<8x32xf32>
    %69 = arith.mulf %68, %68 : vector<8x32xf32>
    %cst_41 = arith.constant dense<0.000000e+00> : vector<8xf32>
    %70 = vector.multi_reduction <add>, %69, %cst_41 [1] : vector<8x32xf32> to vector<8xf32>
    %71 = vector.shape_cast %70 : vector<8xf32> to vector<8x1xf32>
    %cst_42 = arith.constant 3.200000e+01 : f32
    %72 = vector.broadcast %cst_42 : f32 to vector<8x1xf32>
    %73 = arith.divf %71, %72 : vector<8x1xf32>
    %cst_43 = arith.constant 9.99999974E-6 : f32
    %74 = vector.broadcast %cst_43 : f32 to vector<8x1xf32>
    %75 = arith.addf %73, %74 : vector<8x1xf32>
    %76 = math.rsqrt %75 : vector<8x1xf32>
    %77 = vector.broadcast %76 : vector<8x1xf32> to vector<8x32xf32>
    %78 = arith.mulf %68, %77 : vector<8x32xf32>
    %c0_44 = arith.constant 0 : index
    %c0_45 = arith.constant 0 : index
    %c0_46 = arith.constant 0 : index
    %79 = vector.load %arg22[%c0_44, %c0_45, %c0_46] : memref<1x1x32xf32, #tpu.memory_space<vmem>>, vector<1x1x32xf32>
    %80 = vector.shape_cast %79 : vector<1x1x32xf32> to vector<1x32xf32>
    %81 = vector.broadcast %80 : vector<1x32xf32> to vector<8x32xf32>
    %82 = arith.mulf %78, %81 : vector<8x32xf32>
    %c0_47 = arith.constant 0 : index
    %c0_48 = arith.constant 0 : index
    %c0_49 = arith.constant 0 : index
    %83 = vector.load %arg23[%c0_47, %c0_48, %c0_49] : memref<1x1x32xf32, #tpu.memory_space<vmem>>, vector<1x1x32xf32>
    %84 = vector.shape_cast %83 : vector<1x1x32xf32> to vector<1x32xf32>
    %85 = vector.broadcast %84 : vector<1x32xf32> to vector<8x32xf32>
    %86 = arith.addf %82, %85 : vector<8x32xf32>
    %87 = arith.truncf %86 : vector<8x32xf32> to vector<8x32xbf16>
    %c0_50 = arith.constant 0 : index
    %c0_51 = arith.constant 0 : index
    %c0_52 = arith.constant 0 : index
    %88 = vector.load %arg14[%c0_50, %c0_51, %c0_52] : memref<1x32x32xbf16, #tpu.memory_space<vmem>>, vector<1x32x32xbf16>
    %89 = vector.shape_cast %88 : vector<1x32x32xbf16> to vector<32x32xbf16>
    %cst_53 = arith.constant dense<0.000000e+00> : vector<8x32xf32>
    %90 = tpu.matmul %87, %89, %cst_53 {dimension_numbers = #tpu.dot_dimension_numbers<[1], [0], [0], [1], [0, 0, 1, 1], [], []>} : vector<8x32xbf16>, vector<32x32xbf16>, vector<8x32xf32> -> vector<8x32xf32>
    %c0_54 = arith.constant 0 : index
    %c0_55 = arith.constant 0 : index
    %c0_56 = arith.constant 0 : index
    %91 = vector.load %arg17[%c0_54, %c0_55, %c0_56] : memref<1x1x32xf32, #tpu.memory_space<vmem>>, vector<1x1x32xf32>
    %92 = vector.shape_cast %91 : vector<1x1x32xf32> to vector<1x32xf32>
    %93 = vector.broadcast %92 : vector<1x32xf32> to vector<8x32xf32>
    %94 = arith.addf %90, %93 : vector<8x32xf32>
    %c0_57 = arith.constant 0 : index
    %c0_58 = arith.constant 0 : index
    %c0_59 = arith.constant 0 : index
    %95 = vector.load %arg15[%c0_57, %c0_58, %c0_59] : memref<1x32x32xbf16, #tpu.memory_space<vmem>>, vector<1x32x32xbf16>
    %96 = vector.shape_cast %95 : vector<1x32x32xbf16> to vector<32x32xbf16>
    %cst_60 = arith.constant dense<0.000000e+00> : vector<16x32xf32>
    %97 = tpu.matmul %5, %96, %cst_60 {dimension_numbers = #tpu.dot_dimension_numbers<[1], [0], [0], [1], [0, 0, 1, 1], [], []>} : vector<16x32xbf16>, vector<32x32xbf16>, vector<16x32xf32> -> vector<16x32xf32>
    %c0_61 = arith.constant 0 : index
    %c0_62 = arith.constant 0 : index
    %c0_63 = arith.constant 0 : index
    %98 = vector.load %arg18[%c0_61, %c0_62, %c0_63] : memref<1x1x32xf32, #tpu.memory_space<vmem>>, vector<1x1x32xf32>
    %99 = vector.shape_cast %98 : vector<1x1x32xf32> to vector<1x32xf32>
    %100 = vector.broadcast %99 : vector<1x32xf32> to vector<16x32xf32>
    %101 = arith.addf %97, %100 : vector<16x32xf32>
    %c0_64 = arith.constant 0 : index
    %c0_65 = arith.constant 0 : index
    %c0_66 = arith.constant 0 : index
    %102 = vector.load %arg16[%c0_64, %c0_65, %c0_66] : memref<1x32x32xbf16, #tpu.memory_space<vmem>>, vector<1x32x32xbf16>
    %103 = vector.shape_cast %102 : vector<1x32x32xbf16> to vector<32x32xbf16>
    %cst_67 = arith.constant dense<0.000000e+00> : vector<16x32xf32>
    %104 = tpu.matmul %5, %103, %cst_67 {dimension_numbers = #tpu.dot_dimension_numbers<[1], [0], [0], [1], [0, 0, 1, 1], [], []>} : vector<16x32xbf16>, vector<32x32xbf16>, vector<16x32xf32> -> vector<16x32xf32>
    %c0_68 = arith.constant 0 : index
    %c0_69 = arith.constant 0 : index
    %c0_70 = arith.constant 0 : index
    %105 = vector.load %arg19[%c0_68, %c0_69, %c0_70] : memref<1x1x32xf32, #tpu.memory_space<vmem>>, vector<1x1x32xf32>
    %106 = vector.shape_cast %105 : vector<1x1x32xf32> to vector<1x32xf32>
    %107 = vector.broadcast %106 : vector<1x32xf32> to vector<16x32xf32>
    %108 = arith.addf %104, %107 : vector<16x32xf32>
    %c0_71 = arith.constant 0 : index
    %c0_72 = arith.constant 0 : index
    %c0_73 = arith.constant 0 : index
    %109 = vector.load %arg5[%c0_71, %c0_72, %c0_73] : memref<1x8x16xf32, #tpu.memory_space<vmem>>, vector<1x8x16xf32>
    %110 = vector.shape_cast %109 : vector<1x8x16xf32> to vector<8x16xf32>
    %111 = vector.shape_cast %94 : vector<8x32xf32> to vector<8x4x8xf32>
    %112 = arith.truncf %111 : vector<8x4x8xf32> to vector<8x4x8xbf16>
    %113 = vector.shape_cast %101 : vector<16x32xf32> to vector<16x4x8xf32>
    %114 = arith.truncf %113 : vector<16x4x8xf32> to vector<16x4x8xbf16>
    %115 = vector.shape_cast %108 : vector<16x32xf32> to vector<16x4x8xf32>
    %116 = arith.truncf %115 : vector<16x4x8xf32> to vector<16x4x8xbf16>
    "tpu.trace_start"() <{level = 10 : i32, message = "qhd,khd->hqk"}> : () -> ()
    %cst_74 = arith.constant dense<0.000000e+00> : vector<4x8x16xf32>
    %117 = tpu.matmul %112, %114, %cst_74 {dimension_numbers = #tpu.dot_dimension_numbers<[2], [2], [0], [0], [0, 1, 0, 0, 1, 0], [1], [1]>} : vector<8x4x8xbf16>, vector<16x4x8xbf16>, vector<4x8x16xf32> -> vector<4x8x16xf32>
    "tpu.trace_stop"() : () -> ()
    %118 = vector.shape_cast %110 : vector<8x16xf32> to vector<1x8x16xf32>
    %119 = vector.broadcast %118 : vector<1x8x16xf32> to vector<4x8x16xf32>
    %120 = arith.addf %117, %119 : vector<4x8x16xf32>
    %cst_75 = arith.constant dense<0xFF800000> : vector<4x8xf32>
    %121 = vector.multi_reduction <maximumf>, %120, %cst_75 [2] : vector<4x8x16xf32> to vector<4x8xf32>
    %122 = vector.shape_cast %121 : vector<4x8xf32> to vector<4x8x1xf32>
    %123 = vector.broadcast %122 : vector<4x8x1xf32> to vector<4x8x16xf32>
    %124 = arith.subf %120, %123 : vector<4x8x16xf32>
    %125 = math.exp %124 : vector<4x8x16xf32>
    %cst_76 = arith.constant dense<0.000000e+00> : vector<4x8xf32>
    %126 = vector.multi_reduction <add>, %125, %cst_76 [2] : vector<4x8x16xf32> to vector<4x8xf32>
    %127 = vector.shape_cast %126 : vector<4x8xf32> to vector<4x8x1xf32>
    %128 = tpu.reciprocal %127 {approx = true} : vector<4x8x1xf32> -> vector<4x8x1xf32>
    %129 = vector.broadcast %128 : vector<4x8x1xf32> to vector<4x8x16xf32>
    %130 = arith.mulf %125, %129 : vector<4x8x16xf32>
    %131 = arith.truncf %130 : vector<4x8x16xf32> to vector<4x8x16xbf16>
    "tpu.trace_start"() <{level = 10 : i32, message = "hqk,khd->qhd"}> : () -> ()
    %cst_77 = arith.constant dense<0.000000e+00> : vector<4x8x8xf32>
    %132 = tpu.matmul %116, %131, %cst_77 {dimension_numbers = #tpu.dot_dimension_numbers<[0], [2], [2], [1], [0, 1, 0, 2, 1, 1], [1], [0]>} : vector<16x4x8xbf16>, vector<4x8x16xbf16>, vector<4x8x8xf32> -> vector<4x8x8xf32>
    %133 = tpu.transpose %132, [2, 0, 1] : vector<4x8x8xf32> -> vector<8x4x8xf32>
    "tpu.trace_stop"() : () -> ()
    %134 = vector.shape_cast %133 : vector<8x4x8xf32> to vector<8x32xf32>
    %135 = arith.truncf %134 : vector<8x32xf32> to vector<8x32xbf16>
    %c0_78 = arith.constant 0 : index
    %c0_79 = arith.constant 0 : index
    %c0_80 = arith.constant 0 : index
    %136 = vector.load %arg20[%c0_78, %c0_79, %c0_80] : memref<1x32x32xbf16, #tpu.memory_space<vmem>>, vector<1x32x32xbf16>
    %137 = vector.shape_cast %136 : vector<1x32x32xbf16> to vector<32x32xbf16>
    %cst_81 = arith.constant dense<0.000000e+00> : vector<8x32xf32>
    %138 = tpu.matmul %135, %137, %cst_81 {dimension_numbers = #tpu.dot_dimension_numbers<[1], [0], [0], [1], [0, 0, 1, 1], [], []>} : vector<8x32xbf16>, vector<32x32xbf16>, vector<8x32xf32> -> vector<8x32xf32>
    %c0_82 = arith.constant 0 : index
    %c0_83 = arith.constant 0 : index
    %c0_84 = arith.constant 0 : index
    %139 = vector.load %arg21[%c0_82, %c0_83, %c0_84] : memref<1x1x32xf32, #tpu.memory_space<vmem>>, vector<1x1x32xf32>
    %140 = vector.shape_cast %139 : vector<1x1x32xf32> to vector<1x32xf32>
    %141 = vector.broadcast %140 : vector<1x32xf32> to vector<8x32xf32>
    %142 = arith.addf %138, %141 : vector<8x32xf32>
    %143 = arith.addf %86, %142 : vector<8x32xf32>
    %cst_85 = arith.constant dense<0.000000e+00> : vector<8xf32>
    %144 = vector.multi_reduction <add>, %143, %cst_85 [1] : vector<8x32xf32> to vector<8xf32>
    %145 = vector.shape_cast %144 : vector<8xf32> to vector<8x1xf32>
    %cst_86 = arith.constant 3.200000e+01 : f32
    %146 = vector.broadcast %cst_86 : f32 to vector<8x1xf32>
    %147 = arith.divf %145, %146 : vector<8x1xf32>
    %148 = vector.broadcast %147 : vector<8x1xf32> to vector<8x32xf32>
    %149 = arith.subf %143, %148 : vector<8x32xf32>
    %150 = arith.mulf %149, %149 : vector<8x32xf32>
    %cst_87 = arith.constant dense<0.000000e+00> : vector<8xf32>
    %151 = vector.multi_reduction <add>, %150, %cst_87 [1] : vector<8x32xf32> to vector<8xf32>
    %152 = vector.shape_cast %151 : vector<8xf32> to vector<8x1xf32>
    %cst_88 = arith.constant 3.200000e+01 : f32
    %153 = vector.broadcast %cst_88 : f32 to vector<8x1xf32>
    %154 = arith.divf %152, %153 : vector<8x1xf32>
    %cst_89 = arith.constant 9.99999974E-6 : f32
    %155 = vector.broadcast %cst_89 : f32 to vector<8x1xf32>
    %156 = arith.addf %154, %155 : vector<8x1xf32>
    %157 = math.rsqrt %156 : vector<8x1xf32>
    %158 = vector.broadcast %157 : vector<8x1xf32> to vector<8x32xf32>
    %159 = arith.mulf %149, %158 : vector<8x32xf32>
    %c0_90 = arith.constant 0 : index
    %c0_91 = arith.constant 0 : index
    %c0_92 = arith.constant 0 : index
    %160 = vector.load %arg24[%c0_90, %c0_91, %c0_92] : memref<1x1x32xf32, #tpu.memory_space<vmem>>, vector<1x1x32xf32>
    %161 = vector.shape_cast %160 : vector<1x1x32xf32> to vector<1x32xf32>
    %162 = vector.broadcast %161 : vector<1x32xf32> to vector<8x32xf32>
    %163 = arith.mulf %159, %162 : vector<8x32xf32>
    %c0_93 = arith.constant 0 : index
    %c0_94 = arith.constant 0 : index
    %c0_95 = arith.constant 0 : index
    %164 = vector.load %arg25[%c0_93, %c0_94, %c0_95] : memref<1x1x32xf32, #tpu.memory_space<vmem>>, vector<1x1x32xf32>
    %165 = vector.shape_cast %164 : vector<1x1x32xf32> to vector<1x32xf32>
    %166 = vector.broadcast %165 : vector<1x32xf32> to vector<8x32xf32>
    %167 = arith.addf %163, %166 : vector<8x32xf32>
    %168 = arith.truncf %167 : vector<8x32xf32> to vector<8x32xbf16>
    %c0_96 = arith.constant 0 : index
    %c0_97 = arith.constant 0 : index
    %c0_98 = arith.constant 0 : index
    %169 = vector.load %arg28[%c0_96, %c0_97, %c0_98] : memref<1x32x64xbf16, #tpu.memory_space<vmem>>, vector<1x32x64xbf16>
    %170 = vector.shape_cast %169 : vector<1x32x64xbf16> to vector<32x64xbf16>
    %cst_99 = arith.constant dense<0.000000e+00> : vector<8x64xf32>
    %171 = tpu.matmul %168, %170, %cst_99 {dimension_numbers = #tpu.dot_dimension_numbers<[1], [0], [0], [1], [0, 0, 1, 1], [], []>} : vector<8x32xbf16>, vector<32x64xbf16>, vector<8x64xf32> -> vector<8x64xf32>
    %c0_100 = arith.constant 0 : index
    %c0_101 = arith.constant 0 : index
    %c0_102 = arith.constant 0 : index
    %172 = vector.load %arg29[%c0_100, %c0_101, %c0_102] : memref<1x1x64xf32, #tpu.memory_space<vmem>>, vector<1x1x64xf32>
    %173 = vector.shape_cast %172 : vector<1x1x64xf32> to vector<1x64xf32>
    %174 = vector.broadcast %173 : vector<1x64xf32> to vector<8x64xf32>
    %175 = arith.addf %171, %174 : vector<8x64xf32>
    %cst_103 = arith.constant 0.000000e+00 : f32
    %176 = vector.broadcast %cst_103 : f32 to vector<8x64xf32>
    %177 = arith.maximumf %175, %176 : vector<8x64xf32>
    %178 = arith.truncf %177 : vector<8x64xf32> to vector<8x64xbf16>
    %c0_104 = arith.constant 0 : index
    %c0_105 = arith.constant 0 : index
    %c0_106 = arith.constant 0 : index
    %179 = vector.load %arg30[%c0_104, %c0_105, %c0_106] : memref<1x64x32xbf16, #tpu.memory_space<vmem>>, vector<1x64x32xbf16>
    %180 = vector.shape_cast %179 : vector<1x64x32xbf16> to vector<64x32xbf16>
    %cst_107 = arith.constant dense<0.000000e+00> : vector<8x32xf32>
    %181 = tpu.matmul %178, %180, %cst_107 {dimension_numbers = #tpu.dot_dimension_numbers<[1], [0], [0], [1], [0, 0, 1, 1], [], []>} : vector<8x64xbf16>, vector<64x32xbf16>, vector<8x32xf32> -> vector<8x32xf32>
    %c0_108 = arith.constant 0 : index
    %c0_109 = arith.constant 0 : index
    %c0_110 = arith.constant 0 : index
    %182 = vector.load %arg31[%c0_108, %c0_109, %c0_110] : memref<1x1x32xf32, #tpu.memory_space<vmem>>, vector<1x1x32xf32>
    %183 = vector.shape_cast %182 : vector<1x1x32xf32> to vector<1x32xf32>
    %184 = vector.broadcast %183 : vector<1x32xf32> to vector<8x32xf32>
    %185 = arith.addf %181, %184 : vector<8x32xf32>
    %186 = arith.addf %167, %185 : vector<8x32xf32>
    %cst_111 = arith.constant dense<0.000000e+00> : vector<8xf32>
    %187 = vector.multi_reduction <add>, %186, %cst_111 [1] : vector<8x32xf32> to vector<8xf32>
    %188 = vector.shape_cast %187 : vector<8xf32> to vector<8x1xf32>
    %cst_112 = arith.constant 3.200000e+01 : f32
    %189 = vector.broadcast %cst_112 : f32 to vector<8x1xf32>
    %190 = arith.divf %188, %189 : vector<8x1xf32>
    %191 = vector.broadcast %190 : vector<8x1xf32> to vector<8x32xf32>
    %192 = arith.subf %186, %191 : vector<8x32xf32>
    %193 = arith.mulf %192, %192 : vector<8x32xf32>
    %cst_113 = arith.constant dense<0.000000e+00> : vector<8xf32>
    %194 = vector.multi_reduction <add>, %193, %cst_113 [1] : vector<8x32xf32> to vector<8xf32>
    %195 = vector.shape_cast %194 : vector<8xf32> to vector<8x1xf32>
    %cst_114 = arith.constant 3.200000e+01 : f32
    %196 = vector.broadcast %cst_114 : f32 to vector<8x1xf32>
    %197 = arith.divf %195, %196 : vector<8x1xf32>
    %cst_115 = arith.constant 9.99999974E-6 : f32
    %198 = vector.broadcast %cst_115 : f32 to vector<8x1xf32>
    %199 = arith.addf %197, %198 : vector<8x1xf32>
    %200 = math.rsqrt %199 : vector<8x1xf32>
    %201 = vector.broadcast %200 : vector<8x1xf32> to vector<8x32xf32>
    %202 = arith.mulf %192, %201 : vector<8x32xf32>
    %c0_116 = arith.constant 0 : index
    %c0_117 = arith.constant 0 : index
    %c0_118 = arith.constant 0 : index
    %203 = vector.load %arg26[%c0_116, %c0_117, %c0_118] : memref<1x1x32xf32, #tpu.memory_space<vmem>>, vector<1x1x32xf32>
    %204 = vector.shape_cast %203 : vector<1x1x32xf32> to vector<1x32xf32>
    %205 = vector.broadcast %204 : vector<1x32xf32> to vector<8x32xf32>
    %206 = arith.mulf %202, %205 : vector<8x32xf32>
    %c0_119 = arith.constant 0 : index
    %c0_120 = arith.constant 0 : index
    %c0_121 = arith.constant 0 : index
    %207 = vector.load %arg27[%c0_119, %c0_120, %c0_121] : memref<1x1x32xf32, #tpu.memory_space<vmem>>, vector<1x1x32xf32>
    %208 = vector.shape_cast %207 : vector<1x1x32xf32> to vector<1x32xf32>
    %209 = vector.broadcast %208 : vector<1x32xf32> to vector<8x32xf32>
    %210 = arith.addf %206, %209 : vector<8x32xf32>
    %c0_122 = arith.constant 0 : index
    %c0_123 = arith.constant 0 : index
    %211 = vector.load %arg35[%c0_122, %c0_123] : memref<8x32xf32, #tpu.memory_space<vmem>>, vector<8x32xf32>
    tpu.vector_store %arg35[%c0_122, %c0_123], %210 {strides = array<i32>} : memref<8x32xf32, #tpu.memory_space<vmem>>, vector<8x32xf32>,
    %c2_i32 = arith.constant 2 : i32
    %212 = arith.cmpi eq, %arg1, %c2_i32 : i32
    %213 = arith.extui %212 : i1 to i32
    %c0_i32_124 = arith.constant 0 : i32
    %214 = arith.cmpi ne, %213, %c0_i32_124 : i32
    scf.if %214 {
      %cst_125 = arith.constant dense<0.000000e+00> : vector<8xf32>
      %215 = vector.multi_reduction <add>, %210, %cst_125 [1] : vector<8x32xf32> to vector<8xf32>
      %216 = vector.shape_cast %215 : vector<8xf32> to vector<8x1xf32>
      %cst_126 = arith.constant 3.200000e+01 : f32
      %217 = vector.broadcast %cst_126 : f32 to vector<8x1xf32>
      %218 = arith.divf %216, %217 : vector<8x1xf32>
      %219 = vector.broadcast %218 : vector<8x1xf32> to vector<8x32xf32>
      %220 = arith.subf %210, %219 : vector<8x32xf32>
      %221 = arith.mulf %220, %220 : vector<8x32xf32>
      %cst_127 = arith.constant dense<0.000000e+00> : vector<8xf32>
      %222 = vector.multi_reduction <add>, %221, %cst_127 [1] : vector<8x32xf32> to vector<8xf32>
      %223 = vector.shape_cast %222 : vector<8xf32> to vector<8x1xf32>
      %cst_128 = arith.constant 3.200000e+01 : f32
      %224 = vector.broadcast %cst_128 : f32 to vector<8x1xf32>
      %225 = arith.divf %223, %224 : vector<8x1xf32>
      %cst_129 = arith.constant 9.99999974E-6 : f32
      %226 = vector.broadcast %cst_129 : f32 to vector<8x1xf32>
      %227 = arith.addf %225, %226 : vector<8x1xf32>
      %228 = math.rsqrt %227 : vector<8x1xf32>
      %229 = vector.broadcast %228 : vector<8x1xf32> to vector<8x32xf32>
      %230 = arith.mulf %220, %229 : vector<8x32xf32>
      %c0_130 = arith.constant 0 : index
      %c0_131 = arith.constant 0 : index
      %231 = vector.load %arg32[%c0_130, %c0_131] : memref<1x32xf32, #tpu.memory_space<vmem>>, vector<1x32xf32>
      %232 = vector.broadcast %231 : vector<1x32xf32> to vector<8x32xf32>
      %233 = arith.mulf %230, %232 : vector<8x32xf32>
      %c0_132 = arith.constant 0 : index
      %c0_133 = arith.constant 0 : index
      %234 = vector.load %arg33[%c0_132, %c0_133] : memref<1x32xf32, #tpu.memory_space<vmem>>, vector<1x32xf32>
      %235 = vector.broadcast %234 : vector<1x32xf32> to vector<8x32xf32>
      %236 = arith.addf %233, %235 : vector<8x32xf32>
      %c0_134 = arith.constant 0 : index
      %c0_135 = arith.constant 0 : index
      %c0_136 = arith.constant 0 : index
      %237 = vector.load %arg34[%c0_134, %c0_135, %c0_136] : memref<1x8x32xf32, #tpu.memory_space<vmem>>, vector<1x8x32xf32>
      %238 = vector.shape_cast %237 : vector<1x8x32xf32> to vector<8x32xf32>
      %239 = vector.shape_cast %236 : vector<8x32xf32> to vector<1x8x32xf32>
      tpu.vector_store %arg34[%c0_134, %c0_135, %c0_136], %239 {strides = array<i32>} : memref<1x8x32xf32, #tpu.memory_space<vmem>>, vector<1x8x32xf32>,
    } else {
    }
    return
  }
  func.func @transform_0(%arg0: i32, %arg1: i32) -> (i32, i32, i32) {
    %c0_i32 = arith.constant 0 : i32
    %c0_i32_0 = arith.constant 0 : i32
    %c0_i32_1 = arith.constant 0 : i32
    return %arg0, %c0_i32, %c0_i32_0 : i32, i32, i32
  }
  func.func @transform_1(%arg0: i32, %arg1: i32) -> (i32, i32, i32) {
    %c0_i32 = arith.constant 0 : i32
    %c0_i32_0 = arith.constant 0 : i32
    %c0_i32_1 = arith.constant 0 : i32
    return %arg0, %c0_i32, %c0_i32_0 : i32, i32, i32
  }
  func.func @transform_2(%arg0: i32, %arg1: i32) -> (i32, i32, i32) {
    %c0_i32 = arith.constant 0 : i32
    %c0_i32_0 = arith.constant 0 : i32
    %c0_i32_1 = arith.constant 0 : i32
    return %arg0, %c0_i32, %c0_i32_0 : i32, i32, i32
  }
  func.func @transform_3(%arg0: i32, %arg1: i32) -> (i32, i32, i32) {
    %c0_i32 = arith.constant 0 : i32
    %c0_i32_0 = arith.constant 0 : i32
    %c0_i32_1 = arith.constant 0 : i32
    return %arg0, %c0_i32, %c0_i32_0 : i32, i32, i32
  }
  func.func @transform_4(%arg0: i32, %arg1: i32) -> (i32, i32, i32) {
    %c0_i32 = arith.constant 0 : i32
    %c0_i32_0 = arith.constant 0 : i32
    %c0_i32_1 = arith.constant 0 : i32
    return %arg1, %c0_i32, %c0_i32_0 : i32, i32, i32
  }
  func.func @transform_5(%arg0: i32, %arg1: i32) -> (i32, i32, i32) {
    %c0_i32 = arith.constant 0 : i32
    %c0_i32_0 = arith.constant 0 : i32
    %c0_i32_1 = arith.constant 0 : i32
    return %arg1, %c0_i32, %c0_i32_0 : i32, i32, i32
  }
  func.func @transform_6(%arg0: i32, %arg1: i32) -> (i32, i32, i32) {
    %c0_i32 = arith.constant 0 : i32
    %c0_i32_0 = arith.constant 0 : i32
    %c0_i32_1 = arith.constant 0 : i32
    return %arg1, %c0_i32, %c0_i32_0 : i32, i32, i32
  }
  func.func @transform_7(%arg0: i32, %arg1: i32) -> (i32, i32, i32) {
    %c0_i32 = arith.constant 0 : i32
    %c0_i32_0 = arith.constant 0 : i32
    %c0_i32_1 = arith.constant 0 : i32
    return %arg1, %c0_i32, %c0_i32_0 : i32, i32, i32
  }
  func.func @transform_8(%arg0: i32, %arg1: i32) -> (i32, i32, i32) {
    %c0_i32 = arith.constant 0 : i32
    %c0_i32_0 = arith.constant 0 : i32
    %c0_i32_1 = arith.constant 0 : i32
    return %arg1, %c0_i32, %c0_i32_0 : i32, i32, i32
  }
  func.func @transform_9(%arg0: i32, %arg1: i32) -> (i32, i32, i32) {
    %c0_i32 = arith.constant 0 : i32
    %c0_i32_0 = arith.constant 0 : i32
    %c0_i32_1 = arith.constant 0 : i32
    return %arg1, %c0_i32, %c0_i32_0 : i32, i32, i32
  }
  func.func @transform_10(%arg0: i32, %arg1: i32) -> (i32, i32, i32) {
    %c0_i32 = arith.constant 0 : i32
    %c0_i32_0 = arith.constant 0 : i32
    %c0_i32_1 = arith.constant 0 : i32
    return %arg1, %c0_i32, %c0_i32_0 : i32, i32, i32
  }
  func.func @transform_11(%arg0: i32, %arg1: i32) -> (i32, i32, i32) {
    %c0_i32 = arith.constant 0 : i32
    %c0_i32_0 = arith.constant 0 : i32
    %c0_i32_1 = arith.constant 0 : i32
    return %arg1, %c0_i32, %c0_i32_0 : i32, i32, i32
  }
  func.func @transform_12(%arg0: i32, %arg1: i32) -> (i32, i32, i32) {
    %c0_i32 = arith.constant 0 : i32
    %c0_i32_0 = arith.constant 0 : i32
    %c0_i32_1 = arith.constant 0 : i32
    return %arg1, %c0_i32, %c0_i32_0 : i32, i32, i32
  }
  func.func @transform_13(%arg0: i32, %arg1: i32) -> (i32, i32, i32) {
    %c0_i32 = arith.constant 0 : i32
    %c0_i32_0 = arith.constant 0 : i32
    %c0_i32_1 = arith.constant 0 : i32
    return %arg1, %c0_i32, %c0_i32_0 : i32, i32, i32
  }
  func.func @transform_14(%arg0: i32, %arg1: i32) -> (i32, i32, i32) {
    %c0_i32 = arith.constant 0 : i32
    %c0_i32_0 = arith.constant 0 : i32
    %c0_i32_1 = arith.constant 0 : i32
    return %arg1, %c0_i32, %c0_i32_0 : i32, i32, i32
  }
  func.func @transform_15(%arg0: i32, %arg1: i32) -> (i32, i32, i32) {
    %c0_i32 = arith.constant 0 : i32
    %c0_i32_0 = arith.constant 0 : i32
    %c0_i32_1 = arith.constant 0 : i32
    return %arg1, %c0_i32, %c0_i32_0 : i32, i32, i32
  }
  func.func @transform_16(%arg0: i32, %arg1: i32) -> (i32, i32, i32) {
    %c0_i32 = arith.constant 0 : i32
    %c0_i32_0 = arith.constant 0 : i32
    %c0_i32_1 = arith.constant 0 : i32
    return %arg1, %c0_i32, %c0_i32_0 : i32, i32, i32
  }
  func.func @transform_17(%arg0: i32, %arg1: i32) -> (i32, i32, i32) {
    %c0_i32 = arith.constant 0 : i32
    %c0_i32_0 = arith.constant 0 : i32
    %c0_i32_1 = arith.constant 0 : i32
    return %arg1, %c0_i32, %c0_i32_0 : i32, i32, i32
  }
  func.func @transform_18(%arg0: i32, %arg1: i32) -> (i32, i32, i32) {
    %c0_i32 = arith.constant 0 : i32
    %c0_i32_0 = arith.constant 0 : i32
    %c0_i32_1 = arith.constant 0 : i32
    return %arg1, %c0_i32, %c0_i32_0 : i32, i32, i32
  }
  func.func @transform_19(%arg0: i32, %arg1: i32) -> (i32, i32, i32) {
    %c0_i32 = arith.constant 0 : i32
    %c0_i32_0 = arith.constant 0 : i32
    %c0_i32_1 = arith.constant 0 : i32
    return %arg1, %c0_i32, %c0_i32_0 : i32, i32, i32
  }
  func.func @transform_20(%arg0: i32, %arg1: i32) -> (i32, i32, i32) {
    %c0_i32 = arith.constant 0 : i32
    %c0_i32_0 = arith.constant 0 : i32
    %c0_i32_1 = arith.constant 0 : i32
    return %arg1, %c0_i32, %c0_i32_0 : i32, i32, i32
  }
  func.func @transform_21(%arg0: i32, %arg1: i32) -> (i32, i32, i32) {
    %c0_i32 = arith.constant 0 : i32
    %c0_i32_0 = arith.constant 0 : i32
    %c0_i32_1 = arith.constant 0 : i32
    return %arg1, %c0_i32, %c0_i32_0 : i32, i32, i32
  }
  func.func @transform_22(%arg0: i32, %arg1: i32) -> (i32, i32, i32) {
    %c0_i32 = arith.constant 0 : i32
    %c0_i32_0 = arith.constant 0 : i32
    %c0_i32_1 = arith.constant 0 : i32
    return %arg1, %c0_i32, %c0_i32_0 : i32, i32, i32
  }
  func.func @transform_23(%arg0: i32, %arg1: i32) -> (i32, i32, i32) {
    %c0_i32 = arith.constant 0 : i32
    %c0_i32_0 = arith.constant 0 : i32
    %c0_i32_1 = arith.constant 0 : i32
    return %arg1, %c0_i32, %c0_i32_0 : i32, i32, i32
  }
  func.func @transform_24(%arg0: i32, %arg1: i32) -> (i32, i32, i32) {
    %c0_i32 = arith.constant 0 : i32
    %c0_i32_0 = arith.constant 0 : i32
    %c0_i32_1 = arith.constant 0 : i32
    return %arg1, %c0_i32, %c0_i32_0 : i32, i32, i32
  }
  func.func @transform_25(%arg0: i32, %arg1: i32) -> (i32, i32, i32) {
    %c0_i32 = arith.constant 0 : i32
    %c0_i32_0 = arith.constant 0 : i32
    %c0_i32_1 = arith.constant 0 : i32
    return %arg1, %c0_i32, %c0_i32_0 : i32, i32, i32
  }
  func.func @transform_26(%arg0: i32, %arg1: i32) -> (i32, i32, i32) {
    %c0_i32 = arith.constant 0 : i32
    %c0_i32_0 = arith.constant 0 : i32
    %c0_i32_1 = arith.constant 0 : i32
    return %arg1, %c0_i32, %c0_i32_0 : i32, i32, i32
  }
  func.func @transform_27(%arg0: i32, %arg1: i32) -> (i32, i32, i32) {
    %c0_i32 = arith.constant 0 : i32
    %c0_i32_0 = arith.constant 0 : i32
    %c0_i32_1 = arith.constant 0 : i32
    return %arg1, %c0_i32, %c0_i32_0 : i32, i32, i32
  }
  func.func @transform_28(%arg0: i32, %arg1: i32) -> (i32, i32, i32) {
    %c0_i32 = arith.constant 0 : i32
    %c0_i32_0 = arith.constant 0 : i32
    %c0_i32_1 = arith.constant 0 : i32
    return %arg1, %c0_i32, %c0_i32_0 : i32, i32, i32
  }
  func.func @transform_29(%arg0: i32, %arg1: i32) -> (i32, i32, i32) {
    %c0_i32 = arith.constant 0 : i32
    %c0_i32_0 = arith.constant 0 : i32
    %c0_i32_1 = arith.constant 0 : i32
    return %arg1, %c0_i32, %c0_i32_0 : i32, i32, i32
  }
  func.func @transform_30(%arg0: i32, %arg1: i32) -> (i32, i32) {
    %c0_i32 = arith.constant 0 : i32
    %c0_i32_0 = arith.constant 0 : i32
    %c0_i32_1 = arith.constant 0 : i32
    return %c0_i32, %c0_i32_0 : i32, i32
  }
  func.func @transform_31(%arg0: i32, %arg1: i32) -> (i32, i32) {
    %c0_i32 = arith.constant 0 : i32
    %c0_i32_0 = arith.constant 0 : i32
    %c0_i32_1 = arith.constant 0 : i32
    return %c0_i32, %c0_i32_0 : i32, i32
  }
  func.func @transform_32(%arg0: i32, %arg1: i32) -> (i32, i32, i32) {
    %c0_i32 = arith.constant 0 : i32
    %c0_i32_0 = arith.constant 0 : i32
    %c0_i32_1 = arith.constant 0 : i32
    return %arg0, %c0_i32, %c0_i32_0 : i32, i32, i32
  }
}

</mosaic_0001>

<llo_original>
// kernel: tpu_custom_call.1
$region0: #{tpu_custom_call.1}
  #allocation0 [shape = 'u32[]', space=smem, size = 0x4, offset = 0x4, fixed_abs, tag = 'smem constant byte address 0x4 - core index']
  #allocation1 [shape = 'u32[144,128]{1,0:T(1,128)}', space=vmem, size = 0x12000, scoped, tag = 'internal scratch']
  #allocation2 [shape = 'f32[8,32]{1,0:T(8,128)}', space=vmem, size = 0x1000, scoped, tag = 'scratch operand']
  %s0 = inlined_call_operand.smem [shape: u32[33], index: -1, kind: input, shape index: {}]
  %s1 = sld [smem:[%s0]]
  %s2 = scalar_lea.smem %s0, 1
  %s3 = sld [smem:[%s2]]
  %s4 = scalar_lea.smem %s0, 2
  %s5 = sld [smem:[%s4]]
  %s6 = scalar_lea.smem %s0, 3
  %s7 = sld [smem:[%s6]]
  %s8 = scalar_lea.smem %s0, 4
  %s9 = sld [smem:[%s8]]
  %s10 = scalar_lea.smem %s0, 5
  %s11 = sld [smem:[%s10]]
  %s12 = scalar_lea.smem %s0, 6
  %s13 = sld [smem:[%s12]]
  %s14 = scalar_lea.smem %s0, 7
  %s15 = sld [smem:[%s14]]
  %s16 = scalar_lea.smem %s0, 8
  %s17 = sld [smem:[%s16]]
  %s18 = scalar_lea.smem %s0, 9
  %s19 = sld [smem:[%s18]]
  %s20 = scalar_lea.smem %s0, 10
  %s21 = sld [smem:[%s20]]
  %s22 = scalar_lea.smem %s0, 11
  %s23 = sld [smem:[%s22]]
  %s24 = scalar_lea.smem %s0, 12
  %s25 = sld [smem:[%s24]]
  %s26 = scalar_lea.smem %s0, 13
  %s27 = sld [smem:[%s26]]
  %s28 = scalar_lea.smem %s0, 14
  %s29 = sld [smem:[%s28]]
  %s30 = scalar_lea.smem %s0, 15
  %s31 = sld [smem:[%s30]]
  %s32 = scalar_lea.smem %s0, 16
  %s33 = sld [smem:[%s32]]
  %s34 = scalar_lea.smem %s0, 17
  %s35 = sld [smem:[%s34]]
  %s36 = scalar_lea.smem %s0, 18
  %s37 = sld [smem:[%s36]]
  %s38 = scalar_lea.smem %s0, 19
  %s39 = sld [smem:[%s38]]
  %s40 = scalar_lea.smem %s0, 20
  %s41 = sld [smem:[%s40]]
  %s42 = scalar_lea.smem %s0, 21
  %s43 = sld [smem:[%s42]]
  %s44 = scalar_lea.smem %s0, 22
  %s45 = sld [smem:[%s44]]
  %s46 = scalar_lea.smem %s0, 23
  %s47 = sld [smem:[%s46]]
  %s48 = scalar_lea.smem %s0, 24
  %s49 = sld [smem:[%s48]]
  %s50 = scalar_lea.smem %s0, 25
  %s51 = sld [smem:[%s50]]
  %s52 = scalar_lea.smem %s0, 26
  %s53 = sld [smem:[%s52]]
  %s54 = scalar_lea.smem %s0, 27
  %s55 = sld [smem:[%s54]]
  %s56 = scalar_lea.smem %s0, 28
  %s57 = sld [smem:[%s56]]
  %s58 = scalar_lea.smem %s0, 29
  %s59 = sld [smem:[%s58]]
  %s60 = scalar_lea.smem %s0, 30
  %s61 = sld [smem:[%s60]]
  %s62 = scalar_lea.smem %s0, 31
  %s63 = sld [smem:[%s62]]
  %s64 = scalar_lea.smem %s0, 32
  %s65 = sld [smem:[%s64]]
  %s66 = sld [smem:[#allocation0]]
  $region269: #{tpu_custom_call.1} parent=0
    _
  %s68 = ssub.s32 1, %s66
  %s69 = scalar_select 0, %s68, %s66
  $region1: #{tpu_custom_call.1} parent=0
    #allocation3 [shape = 'u8[8192]{0}', space=vmem, size = 0x2000, scoped, tag = 'input window, operand 0']
    #allocation4 [shape = 's32[2]{0}', space=sflag, size = 0x8, scoped, tag = 'scoped memory for tpu_custom_call.1']
    #allocation5 [shape = 's32[2]{0}', space=sflag, size = 0x8, scoped, tag = 'scoped memory for tpu_custom_call.1']
    #allocation6 [shape = 'u8[8192]{0}', space=vmem, size = 0x2000, scoped, tag = 'input window, operand 1']
    #allocation7 [shape = 's32[2]{0}', space=sflag, size = 0x8, scoped, tag = 'scoped memory for tpu_custom_call.1']
    #allocation8 [shape = 'u8[8192]{0}', space=vmem, size = 0x2000, scoped, tag = 'input window, operand 2']
    #allocation9 [shape = 'u8[8192]{0}', space=vmem, size = 0x2000, scoped, tag = 'input window, operand 3']
    #allocation10 [shape = 's32[2]{0}', space=sflag, size = 0x8, scoped, tag = 'scoped memory for tpu_custom_call.1']
    #allocation11 [shape = 'u8[1024]{0}', space=vmem, size = 0x400, scoped, tag = 'input window, operand 8']
    #allocation12 [shape = 'u8[1024]{0}', space=vmem, size = 0x400, scoped, tag = 'input window, operand 9']
    #allocation13 [shape = 's32[2]{0}', space=sflag, size = 0x8, scoped, tag = 'scoped memory for tpu_custom_call.1']
    #allocation14 [shape = 'u8[16384]{0}', space=vmem, size = 0x4000, scoped, tag = 'input window, operand 10']
    #allocation15 [shape = 'u8[1024]{0}', space=vmem, size = 0x400, scoped, tag = 'input window, operand 11']
    #allocation16 [shape = 's32[2]{0}', space=sflag, size = 0x8, scoped, tag = 'scoped memory for tpu_custom_call.1']
    #allocation17 [shape = 'u8[16384]{0}', space=vmem, size = 0x4000, scoped, tag = 'input window, operand 12']
    #allocation18 [shape = 'u8[16384]{0}', space=vmem, size = 0x4000, scoped, tag = 'input window, operand 13']
    #allocation19 [shape = 's32[2]{0}', space=sflag, size = 0x8, scoped, tag = 'scoped memory for tpu_custom_call.1']
    #allocation20 [shape = 'u8[16384]{0}', space=vmem, size = 0x4000, scoped, tag = 'input window, operand 14']
    #allocation21 [shape = 'u8[1024]{0}', space=vmem, size = 0x400, scoped, tag = 'input window, operand 15']
    #allocation22 [shape = 's32[2]{0}', space=sflag, size = 0x8, scoped, tag = 'scoped memory for tpu_custom_call.1']
    #allocation23 [shape = 'u8[1024]{0}', space=vmem, size = 0x400, scoped, tag = 'input window, operand 16']
    #allocation24 [shape = 'u8[1024]{0}', space=vmem, size = 0x400, scoped, tag = 'input window, operand 17']
    #allocation25 [shape = 's32[2]{0}', space=sflag, size = 0x8, scoped, tag = 'scoped memory for tpu_custom_call.1']
    #allocation26 [shape = 'u8[16384]{0}', space=vmem, size = 0x4000, scoped, tag = 'input window, operand 18']
    #allocation27 [shape = 'u8[1024]{0}', space=vmem, size = 0x400, scoped, tag = 'input window, operand 19']
    #allocation28 [shape = 's32[2]{0}', space=sflag, size = 0x8, scoped, tag = 'scoped memory for tpu_custom_call.1']
    #allocation29 [shape = 'u8[1024]{0}', space=vmem, size = 0x400, scoped, tag = 'input window, operand 20']
    #allocation30 [shape = 'u8[1024]{0}', space=vmem, size = 0x400, scoped, tag = 'input window, operand 21']
    #allocation31 [shape = 's32[2]{0}', space=sflag, size = 0x8, scoped, tag = 'scoped memory for tpu_custom_call.1']
    #allocation32 [shape = 'u8[1024]{0}', space=vmem, size = 0x400, scoped, tag = 'input window, operand 22']
    #allocation33 [shape = 'u8[1024]{0}', space=vmem, size = 0x400, scoped, tag = 'input window, operand 23']
    #allocation34 [shape = 's32[2]{0}', space=sflag, size = 0x8, scoped, tag = 'scoped memory for tpu_custom_call.1']
    #allocation35 [shape = 'u8[1024]{0}', space=vmem, size = 0x400, scoped, tag = 'input window, operand 24']
    #allocation36 [shape = 'u8[1024]{0}', space=vmem, size = 0x400, scoped, tag = 'input window, operand 25']
    #allocation37 [shape = 's32[2]{0}', space=sflag, size = 0x8, scoped, tag = 'scoped memory for tpu_custom_call.1']
    #allocation38 [shape = 'u8[16384]{0}', space=vmem, size = 0x4000, scoped, tag = 'input window, operand 26']
    #allocation39 [shape = 'u8[1024]{0}', space=vmem, size = 0x400, scoped, tag = 'input window, operand 27']
    #allocation40 [shape = 's32[2]{0}', space=sflag, size = 0x8, scoped, tag = 'scoped memory for tpu_custom_call.1']
    #allocation41 [shape = 'u8[1024]{0}', space=vmem, size = 0x400, scoped, tag = 'input window, operand 29']
    #allocation42 [shape = 'u8[8192]{0}', space=vmem, size = 0x2000, scoped, tag = 'output window, operand 0']
    %70 = vsyncpa [#allocation4], 0
    %s71 = scalar_lea.sflag [#allocation4], 1
    %72 = vsyncpa %s71, 0
    %73 = vsyncpa [#allocation7], 0
    %s74 = scalar_lea.sflag [#allocation7], 1
    %75 = vsyncpa %s74, 0
    %76 = vsyncpa [#allocation10], 0
    %s77 = scalar_lea.sflag [#allocation10], 1
    %78 = vsyncpa %s77, 0
    %79 = vsyncpa [#allocation13], 0
    %s80 = scalar_lea.sflag [#allocation13], 1
    %81 = vsyncpa %s80, 0
    %82 = vsyncpa [#allocation16], 0
    %s83 = scalar_lea.sflag [#allocation16], 1
    %84 = vsyncpa %s83, 0
    %85 = vsyncpa [#allocation19], 0
    %s86 = scalar_lea.sflag [#allocation19], 1
    %87 = vsyncpa %s86, 0
    %88 = vsyncpa [#allocation22], 0
    %s89 = scalar_lea.sflag [#allocation22], 1
    %90 = vsyncpa %s89, 0
    %91 = vsyncpa [#allocation25], 0
    %s92 = scalar_lea.sflag [#allocation25], 1
    %93 = vsyncpa %s92, 0
    %94 = vsyncpa [#allocation28], 0
    %s95 = scalar_lea.sflag [#allocation28], 1
    %96 = vsyncpa %s95, 0
    %97 = vsyncpa [#allocation31], 0
    %s98 = scalar_lea.sflag [#allocation31], 1
    %99 = vsyncpa %s98, 0
    %100 = vsyncpa [#allocation34], 0
    %s101 = scalar_lea.sflag [#allocation34], 1
    %102 = vsyncpa %s101, 0
    %103 = vsyncpa [#allocation37], 0
    %s104 = scalar_lea.sflag [#allocation37], 1
    %105 = vsyncpa %s104, 0
    %106 = vsyncpa [#allocation40], 0
    %s107 = scalar_lea.sflag [#allocation40], 1
    %108 = vsyncpa %s107, 0
    %109 = vsyncpa [#allocation5], 0
    %s110 = scalar_lea.sflag [#allocation5], 1
    %111 = vsyncpa %s110, 0
    loop: start=0, step=1, limit=8
    $region2: #{tpu_custom_call.1} parent=1 // loop_pre_header
      _
    $region3: #{tpu_custom_call.1} parent=1 // loop_header
      %s113 = sphi 0, %s117
      %p114 = scmp.ge.s32.totalorder %s113, 8
      %s120 = sphi 0, %s132
      %s121 = sphi 0, %s128
      %s122 = sphi 0, %s120
      %s123 = sphi 0, %s121
      %s124 = sphi 0, %s122
      %s125 = sphi 0, %s123
      %s135 = sphi 0, %s137
      %s138 = sphi 0, %s135
      %s139 = sphi 0, %s138
      %s155 = sphi 0, %s139
      %s161 = sphi 0, %s163
      %s164 = sphi 0, %s161
      %s165 = sphi 0, %s164
      %s181 = sphi 0, %s165
      %s187 = sphi 0, %s189
      %s190 = sphi 0, %s187
      %s191 = sphi 0, %s190
      %s207 = sphi 0, %s191
      %s213 = sphi 0, %s215
      %s216 = sphi 0, %s213
      %s217 = sphi 0, %s216
      %s233 = sphi 0, %s217
      %s239 = sphi 0, %s241
      %s242 = sphi 0, %s239
      %s243 = sphi 0, %s242
      %s259 = sphi 0, %s243
      %s265 = sphi 0, %s267
      %s268 = sphi 0, %s265
      %s269 = sphi 0, %s268
      %s285 = sphi 0, %s269
      %s291 = sphi 0, %s293
      %s294 = sphi 0, %s291
      %s295 = sphi 0, %s294
      %s311 = sphi 0, %s295
      %s317 = sphi 0, %s319
      %s320 = sphi 0, %s317
      %s321 = sphi 0, %s320
      %s337 = sphi 0, %s321
      %s343 = sphi 0, %s345
      %s346 = sphi 0, %s343
      %s347 = sphi 0, %s346
      %s363 = sphi 0, %s347
      %s369 = sphi 0, %s371
      %s372 = sphi 0, %s369
      %s373 = sphi 0, %s372
      %s389 = sphi 0, %s373
      %s395 = sphi 0, %s397
      %s398 = sphi 0, %s395
      %s399 = sphi 0, %s398
      %s415 = sphi 0, %s399
      %s421 = sphi 0, %s423
      %s424 = sphi 0, %s421
      %s425 = sphi 0, %s424
      %s441 = sphi 0, %s425
      %s447 = sphi 0, %s449
      %s450 = sphi 0, %s447
      %s451 = sphi 0, %s450
      %s467 = sphi 0, %s451
      %s473 = sphi 0, %s475
      %s476 = sphi 0, %s473
      %s477 = sphi 0, %s476
      %s493 = sphi 0, %s477
      %s499 = sphi 0, %s501
      %s502 = sphi 0, %s499
      %s503 = sphi 0, %s502
      %s519 = sphi 0, %s503
      %s525 = sphi 0, %s527
      %s528 = sphi 0, %s525
      %s529 = sphi 0, %s528
      %s545 = sphi 0, %s529
      %s551 = sphi 0, %s553
      %s554 = sphi 0, %s551
      %s555 = sphi 0, %s554
      %s571 = sphi 0, %s555
      %s577 = sphi 0, %s579
      %s580 = sphi 0, %s577
      %s581 = sphi 0, %s580
      %s597 = sphi 0, %s581
      %s603 = sphi 0, %s605
      %s606 = sphi 0, %s603
      %s607 = sphi 0, %s606
      %s623 = sphi 0, %s607
      %s629 = sphi 0, %s631
      %s632 = sphi 0, %s629
      %s633 = sphi 0, %s632
      %s649 = sphi 0, %s633
      %s655 = sphi 0, %s657
      %s658 = sphi 0, %s655
      %s659 = sphi 0, %s658
      %s675 = sphi 0, %s659
      %s681 = sphi 0, %s683
      %s684 = sphi 0, %s681
      %s685 = sphi 0, %s684
      %s701 = sphi 0, %s685
      %s707 = sphi 0, %s709
      %s710 = sphi 0, %s707
      %s711 = sphi 0, %s710
      %s727 = sphi 0, %s711
      %s733 = sphi 0, %s735
      %s736 = sphi 0, %s733
      %s737 = sphi 0, %s736
      %s753 = sphi 0, %s737
      %s759 = sphi 0, %s761
      %s762 = sphi 0, %s759
      %s763 = sphi 0, %s762
      %s779 = sphi 0, %s763
      %s785 = sphi 0, %s787
      %s788 = sphi 0, %s785
      %s789 = sphi 0, %s788
      %s805 = sphi 0, %s789
      %s811 = sphi 0, %s813
      %s814 = sphi 0, %s811
      %s815 = sphi 0, %s814
      %s831 = sphi 0, %s815
      %s837 = sphi 0, %s839
      %s840 = sphi 0, %s837
      %s841 = sphi 0, %s840
      %s857 = sphi 0, %s841
      %s863 = sphi 0, %s865
      %s866 = sphi 0, %s863
      %s867 = sphi 0, %s866
      %s883 = sphi 0, %s867
      %s889 = sphi 0, %s891
      %s892 = sphi 0, %s889
      %s893 = sphi 0, %s892
      %s909 = sphi 0, %s893
      %s913 = sphi 0, %s913
      %s915 = sphi 0, %s913
      %s916 = sphi 0, %s915
      %s930 = sphi 0, %s916
      %s934 = sphi 0, %s934
      %s936 = sphi 0, %s934
      %s937 = sphi 0, %s936
      %s951 = sphi 0, %s937
      %s957 = sphi 0, %s959
      %s960 = sphi 0, %s957
      %s961 = sphi 0, %s960
      %s977 = sphi 0, %s961
    $region4: #{tpu_custom_call.1} parent=1 // loop_header_branch
      %116 = sbr.rel (%p114) target = $region8
    $region5: #{tpu_custom_call.1} parent=1 // loop_body
      %s118 = ssub.s32 %s113, 1
      %s119 = ssub.s32 %s113, 2
      %s126 = sadd.s32 1, %s121
      %p127 = scmp.ge.s32.totalorder %s126, 3
      %s128 = scalar_select %p127, 0, %s126
      %s129 = sadd.s32 1, %s120
      %s130 = scalar_select %p127, %s129, %s120
      %p131 = scmp.ge.s32.totalorder %s130, 2
      %s132 = scalar_select %p131, 0, %s130
      %s133 = ssub.s32 %s120, %s132
      %p134 = scmp.eq.s32.totalorder %s133, 0
      %s136 = sadd.s32 %s135, 1
      %s137 = scalar_select %p134, %s135, %s136
      %p140 = pneg %p134
      %p141 = scmp.eq.s32.totalorder %s113, 5
      %p142 = por %p140, %p141
      %p143 = scmp.ne.s32.totalorder %s135, %s138
      %p144 = scmp.eq.s32.totalorder %s113, 0
      %p145 = por %p143, %p144
      %p146 = scmp.ne.s32.totalorder %s135, %s138
      %p147 = scmp.eq.s32.totalorder %s118, 5
      %p148 = por %p146, %p147
      %p149 = scmp.ne.s32.totalorder %s138, %s139
      %p150 = scmp.eq.s32.totalorder %s118, 0
      %p151 = por %p149, %p150
      %p152 = scmp.ne.s32.totalorder %s138, %s139
      %p153 = scmp.eq.s32.totalorder %s119, 5
      %p154 = por %p152, %p153
      %p156 = scmp.ne.s32.totalorder %s139, %s155
      %p157 = scmp.eq.s32.totalorder %s119, 0
      %p158 = por %p156, %p157
      %s159 = ssub.s32 %s120, %s132
      %p160 = scmp.eq.s32.totalorder %s159, 0
      %s162 = sadd.s32 %s161, 1
      %s163 = scalar_select %p160, %s161, %s162
      %p166 = pneg %p160
      %p167 = scmp.eq.s32.totalorder %s113, 5
      %p168 = por %p166, %p167
      %p169 = scmp.ne.s32.totalorder %s161, %s164
      %p170 = scmp.eq.s32.totalorder %s113, 0
      %p171 = por %p169, %p170
      %p172 = scmp.ne.s32.totalorder %s161, %s164
      %p173 = scmp.eq.s32.totalorder %s118, 5
      %p174 = por %p172, %p173
      %p175 = scmp.ne.s32.totalorder %s164, %s165
      %p176 = scmp.eq.s32.totalorder %s118, 0
      %p177 = por %p175, %p176
      %p178 = scmp.ne.s32.totalorder %s164, %s165
      %p179 = scmp.eq.s32.totalorder %s119, 5
      %p180 = por %p178, %p179
      %p182 = scmp.ne.s32.totalorder %s165, %s181
      %p183 = scmp.eq.s32.totalorder %s119, 0
      %p184 = por %p182, %p183
      %s185 = ssub.s32 %s120, %s132
      %p186 = scmp.eq.s32.totalorder %s185, 0
      %s188 = sadd.s32 %s187, 1
      %s189 = scalar_select %p186, %s187, %s188
      %p192 = pneg %p186
      %p193 = scmp.eq.s32.totalorder %s113, 5
      %p194 = por %p192, %p193
      %p195 = scmp.ne.s32.totalorder %s187, %s190
      %p196 = scmp.eq.s32.totalorder %s113, 0
      %p197 = por %p195, %p196
      %p198 = scmp.ne.s32.totalorder %s187, %s190
      %p199 = scmp.eq.s32.totalorder %s118, 5
      %p200 = por %p198, %p199
      %p201 = scmp.ne.s32.totalorder %s190, %s191
      %p202 = scmp.eq.s32.totalorder %s118, 0
      %p203 = por %p201, %p202
      %p204 = scmp.ne.s32.totalorder %s190, %s191
      %p205 = scmp.eq.s32.totalorder %s119, 5
      %p206 = por %p204, %p205
      %p208 = scmp.ne.s32.totalorder %s191, %s207
      %p209 = scmp.eq.s32.totalorder %s119, 0
      %p210 = por %p208, %p209
      %s211 = ssub.s32 %s120, %s132
      %p212 = scmp.eq.s32.totalorder %s211, 0
      %s214 = sadd.s32 %s213, 1
      %s215 = scalar_select %p212, %s213, %s214
      %p218 = pneg %p212
      %p219 = scmp.eq.s32.totalorder %s113, 5
      %p220 = por %p218, %p219
      %p221 = scmp.ne.s32.totalorder %s213, %s216
      %p222 = scmp.eq.s32.totalorder %s113, 0
      %p223 = por %p221, %p222
      %p224 = scmp.ne.s32.totalorder %s213, %s216
      %p225 = scmp.eq.s32.totalorder %s118, 5
      %p226 = por %p224, %p225
      %p227 = scmp.ne.s32.totalorder %s216, %s217
      %p228 = scmp.eq.s32.totalorder %s118, 0
      %p229 = por %p227, %p228
      %p230 = scmp.ne.s32.totalorder %s216, %s217
      %p231 = scmp.eq.s32.totalorder %s119, 5
      %p232 = por %p230, %p231
      %p234 = scmp.ne.s32.totalorder %s217, %s233
      %p235 = scmp.eq.s32.totalorder %s119, 0
      %p236 = por %p234, %p235
      %s237 = ssub.s32 %s121, %s128
      %p238 = scmp.eq.s32.totalorder %s237, 0
      %s240 = sadd.s32 %s239, 1
      %s241 = scalar_select %p238, %s239, %s240
      %p244 = pneg %p238
      %p245 = scmp.eq.s32.totalorder %s113, 5
      %p246 = por %p244, %p245
      %p247 = scmp.ne.s32.totalorder %s239, %s242
      %p248 = scmp.eq.s32.totalorder %s113, 0
      %p249 = por %p247, %p248
      %p250 = scmp.ne.s32.totalorder %s239, %s242
      %p251 = scmp.eq.s32.totalorder %s118, 5
      %p252 = por %p250, %p251
      %p253 = scmp.ne.s32.totalorder %s242, %s243
      %p254 = scmp.eq.s32.totalorder %s118, 0
      %p255 = por %p253, %p254
      %p256 = scmp.ne.s32.totalorder %s242, %s243
      %p257 = scmp.eq.s32.totalorder %s119, 5
      %p258 = por %p256, %p257
      %p260 = scmp.ne.s32.totalorder %s243, %s259
      %p261 = scmp.eq.s32.totalorder %s119, 0
      %p262 = por %p260, %p261
      %s263 = ssub.s32 %s121, %s128
      %p264 = scmp.eq.s32.totalorder %s263, 0
      %s266 = sadd.s32 %s265, 1
      %s267 = scalar_select %p264, %s265, %s266
      %p270 = pneg %p264
      %p271 = scmp.eq.s32.totalorder %s113, 5
      %p272 = por %p270, %p271
      %p273 = scmp.ne.s32.totalorder %s265, %s268
      %p274 = scmp.eq.s32.totalorder %s113, 0
      %p275 = por %p273, %p274
      %p276 = scmp.ne.s32.totalorder %s265, %s268
      %p277 = scmp.eq.s32.totalorder %s118, 5
      %p278 = por %p276, %p277
      %p279 = scmp.ne.s32.totalorder %s268, %s269
      %p280 = scmp.eq.s32.totalorder %s118, 0
      %p281 = por %p279, %p280
      %p282 = scmp.ne.s32.totalorder %s268, %s269
      %p283 = scmp.eq.s32.totalorder %s119, 5
      %p284 = por %p282, %p283
      %p286 = scmp.ne.s32.totalorder %s269, %s285
      %p287 = scmp.eq.s32.totalorder %s119, 0
      %p288 = por %p286, %p287
      %s289 = ssub.s32 %s121, %s128
      %p290 = scmp.eq.s32.totalorder %s289, 0
      %s292 = sadd.s32 %s291, 1
      %s293 = scalar_select %p290, %s291, %s292
      %p296 = pneg %p290
      %p297 = scmp.eq.s32.totalorder %s113, 5
      %p298 = por %p296, %p297
      %p299 = scmp.ne.s32.totalorder %s291, %s294
      %p300 = scmp.eq.s32.totalorder %s113, 0
      %p301 = por %p299, %p300
      %p302 = scmp.ne.s32.totalorder %s291, %s294
      %p303 = scmp.eq.s32.totalorder %s118, 5
      %p304 = por %p302, %p303
      %p305 = scmp.ne.s32.totalorder %s294, %s295
      %p306 = scmp.eq.s32.totalorder %s118, 0
      %p307 = por %p305, %p306
      %p308 = scmp.ne.s32.totalorder %s294, %s295
      %p309 = scmp.eq.s32.totalorder %s119, 5
      %p310 = por %p308, %p309
      %p312 = scmp.ne.s32.totalorder %s295, %s311
      %p313 = scmp.eq.s32.totalorder %s119, 0
      %p314 = por %p312, %p313
      %s315 = ssub.s32 %s121, %s128
      %p316 = scmp.eq.s32.totalorder %s315, 0
      %s318 = sadd.s32 %s317, 1
      %s319 = scalar_select %p316, %s317, %s318
      %p322 = pneg %p316
      %p323 = scmp.eq.s32.totalorder %s113, 5
      %p324 = por %p322, %p323
      %p325 = scmp.ne.s32.totalorder %s317, %s320
      %p326 = scmp.eq.s32.totalorder %s113, 0
      %p327 = por %p325, %p326
      %p328 = scmp.ne.s32.totalorder %s317, %s320
      %p329 = scmp.eq.s32.totalorder %s118, 5
      %p330 = por %p328, %p329
      %p331 = scmp.ne.s32.totalorder %s320, %s321
      %p332 = scmp.eq.s32.totalorder %s118, 0
      %p333 = por %p331, %p332
      %p334 = scmp.ne.s32.totalorder %s320, %s321
      %p335 = scmp.eq.s32.totalorder %s119, 5
      %p336 = por %p334, %p335
      %p338 = scmp.ne.s32.totalorder %s321, %s337
      %p339 = scmp.eq.s32.totalorder %s119, 0
      %p340 = por %p338, %p339
      %s341 = ssub.s32 %s121, %s128
      %p342 = scmp.eq.s32.totalorder %s341, 0
      %s344 = sadd.s32 %s343, 1
      %s345 = scalar_select %p342, %s343, %s344
      %p348 = pneg %p342
      %p349 = scmp.eq.s32.totalorder %s113, 5
      %p350 = por %p348, %p349
      %p351 = scmp.ne.s32.totalorder %s343, %s346
      %p352 = scmp.eq.s32.totalorder %s113, 0
      %p353 = por %p351, %p352
      %p354 = scmp.ne.s32.totalorder %s343, %s346
      %p355 = scmp.eq.s32.totalorder %s118, 5
      %p356 = por %p354, %p355
      %p357 = scmp.ne.s32.totalorder %s346, %s347
      %p358 = scmp.eq.s32.totalorder %s118, 0
      %p359 = por %p357, %p358
      %p360 = scmp.ne.s32.totalorder %s346, %s347
      %p361 = scmp.eq.s32.totalorder %s119, 5
      %p362 = por %p360, %p361
      %p364 = scmp.ne.s32.totalorder %s347, %s363
      %p365 = scmp.eq.s32.totalorder %s119, 0
      %p366 = por %p364, %p365
      %s367 = ssub.s32 %s121, %s128
      %p368 = scmp.eq.s32.totalorder %s367, 0
      %s370 = sadd.s32 %s369, 1
      %s371 = scalar_select %p368, %s369, %s370
      %p374 = pneg %p368
      %p375 = scmp.eq.s32.totalorder %s113, 5
      %p376 = por %p374, %p375
      %p377 = scmp.ne.s32.totalorder %s369, %s372
      %p378 = scmp.eq.s32.totalorder %s113, 0
      %p379 = por %p377, %p378
      %p380 = scmp.ne.s32.totalorder %s369, %s372
      %p381 = scmp.eq.s32.totalorder %s118, 5
      %p382 = por %p380, %p381
      %p383 = scmp.ne.s32.totalorder %s372, %s373
      %p384 = scmp.eq.s32.totalorder %s118, 0
      %p385 = por %p383, %p384
      %p386 = scmp.ne.s32.totalorder %s372, %s373
      %p387 = scmp.eq.s32.totalorder %s119, 5
      %p388 = por %p386, %p387
      %p390 = scmp.ne.s32.totalorder %s373, %s389
      %p391 = scmp.eq.s32.totalorder %s119, 0
      %p392 = por %p390, %p391
      %s393 = ssub.s32 %s121, %s128
      %p394 = scmp.eq.s32.totalorder %s393, 0
      %s396 = sadd.s32 %s395, 1
      %s397 = scalar_select %p394, %s395, %s396
      %p400 = pneg %p394
      %p401 = scmp.eq.s32.totalorder %s113, 5
      %p402 = por %p400, %p401
      %p403 = scmp.ne.s32.totalorder %s395, %s398
      %p404 = scmp.eq.s32.totalorder %s113, 0
      %p405 = por %p403, %p404
      %p406 = scmp.ne.s32.totalorder %s395, %s398
      %p407 = scmp.eq.s32.totalorder %s118, 5
      %p408 = por %p406, %p407
      %p409 = scmp.ne.s32.totalorder %s398, %s399
      %p410 = scmp.eq.s32.totalorder %s118, 0
      %p411 = por %p409, %p410
      %p412 = scmp.ne.s32.totalorder %s398, %s399
      %p413 = scmp.eq.s32.totalorder %s119, 5
      %p414 = por %p412, %p413
      %p416 = scmp.ne.s32.totalorder %s399, %s415
      %p417 = scmp.eq.s32.totalorder %s119, 0
      %p418 = por %p416, %p417
      %s419 = ssub.s32 %s121, %s128
      %p420 = scmp.eq.s32.totalorder %s419, 0
      %s422 = sadd.s32 %s421, 1
      %s423 = scalar_select %p420, %s421, %s422
      %p426 = pneg %p420
      %p427 = scmp.eq.s32.totalorder %s113, 5
      %p428 = por %p426, %p427
      %p429 = scmp.ne.s32.totalorder %s421, %s424
      %p430 = scmp.eq.s32.totalorder %s113, 0
      %p431 = por %p429, %p430
      %p432 = scmp.ne.s32.totalorder %s421, %s424
      %p433 = scmp.eq.s32.totalorder %s118, 5
      %p434 = por %p432, %p433
      %p435 = scmp.ne.s32.totalorder %s424, %s425
      %p436 = scmp.eq.s32.totalorder %s118, 0
      %p437 = por %p435, %p436
      %p438 = scmp.ne.s32.totalorder %s424, %s425
      %p439 = scmp.eq.s32.totalorder %s119, 5
      %p440 = por %p438, %p439
      %p442 = scmp.ne.s32.totalorder %s425, %s441
      %p443 = scmp.eq.s32.totalorder %s119, 0
      %p444 = por %p442, %p443
      %s445 = ssub.s32 %s121, %s128
      %p446 = scmp.eq.s32.totalorder %s445, 0
      %s448 = sadd.s32 %s447, 1
      %s449 = scalar_select %p446, %s447, %s448
      %p452 = pneg %p446
      %p453 = scmp.eq.s32.totalorder %s113, 5
      %p454 = por %p452, %p453
      %p455 = scmp.ne.s32.totalorder %s447, %s450
      %p456 = scmp.eq.s32.totalorder %s113, 0
      %p457 = por %p455, %p456
      %p458 = scmp.ne.s32.totalorder %s447, %s450
      %p459 = scmp.eq.s32.totalorder %s118, 5
      %p460 = por %p458, %p459
      %p461 = scmp.ne.s32.totalorder %s450, %s451
      %p462 = scmp.eq.s32.totalorder %s118, 0
      %p463 = por %p461, %p462
      %p464 = scmp.ne.s32.totalorder %s450, %s451
      %p465 = scmp.eq.s32.totalorder %s119, 5
      %p466 = por %p464, %p465
      %p468 = scmp.ne.s32.totalorder %s451, %s467
      %p469 = scmp.eq.s32.totalorder %s119, 0
      %p470 = por %p468, %p469
      %s471 = ssub.s32 %s121, %s128
      %p472 = scmp.eq.s32.totalorder %s471, 0
      %s474 = sadd.s32 %s473, 1
      %s475 = scalar_select %p472, %s473, %s474
      %p478 = pneg %p472
      %p479 = scmp.eq.s32.totalorder %s113, 5
      %p480 = por %p478, %p479
      %p481 = scmp.ne.s32.totalorder %s473, %s476
      %p482 = scmp.eq.s32.totalorder %s113, 0
      %p483 = por %p481, %p482
      %p484 = scmp.ne.s32.totalorder %s473, %s476
      %p485 = scmp.eq.s32.totalorder %s118, 5
      %p486 = por %p484, %p485
      %p487 = scmp.ne.s32.totalorder %s476, %s477
      %p488 = scmp.eq.s32.totalorder %s118, 0
      %p489 = por %p487, %p488
      %p490 = scmp.ne.s32.totalorder %s476, %s477
      %p491 = scmp.eq.s32.totalorder %s119, 5
      %p492 = por %p490, %p491
      %p494 = scmp.ne.s32.totalorder %s477, %s493
      %p495 = scmp.eq.s32.totalorder %s119, 0
      %p496 = por %p494, %p495
      %s497 = ssub.s32 %s121, %s128
      %p498 = scmp.eq.s32.totalorder %s497, 0
      %s500 = sadd.s32 %s499, 1
      %s501 = scalar_select %p498, %s499, %s500
      %p504 = pneg %p498
      %p505 = scmp.eq.s32.totalorder %s113, 5
      %p506 = por %p504, %p505
      %p507 = scmp.ne.s32.totalorder %s499, %s502
      %p508 = scmp.eq.s32.totalorder %s113, 0
      %p509 = por %p507, %p508
      %p510 = scmp.ne.s32.totalorder %s499, %s502
      %p511 = scmp.eq.s32.totalorder %s118, 5
      %p512 = por %p510, %p511
      %p513 = scmp.ne.s32.totalorder %s502, %s503
      %p514 = scmp.eq.s32.totalorder %s118, 0
      %p515 = por %p513, %p514
      %p516 = scmp.ne.s32.totalorder %s502, %s503
      %p517 = scmp.eq.s32.totalorder %s119, 5
      %p518 = por %p516, %p517
      %p520 = scmp.ne.s32.totalorder %s503, %s519
      %p521 = scmp.eq.s32.totalorder %s119, 0
      %p522 = por %p520, %p521
      %s523 = ssub.s32 %s121, %s128
      %p524 = scmp.eq.s32.totalorder %s523, 0
      %s526 = sadd.s32 %s525, 1
      %s527 = scalar_select %p524, %s525, %s526
      %p530 = pneg %p524
      %p531 = scmp.eq.s32.totalorder %s113, 5
      %p532 = por %p530, %p531
      %p533 = scmp.ne.s32.totalorder %s525, %s528
      %p534 = scmp.eq.s32.totalorder %s113, 0
      %p535 = por %p533, %p534
      %p536 = scmp.ne.s32.totalorder %s525, %s528
      %p537 = scmp.eq.s32.totalorder %s118, 5
      %p538 = por %p536, %p537
      %p539 = scmp.ne.s32.totalorder %s528, %s529
      %p540 = scmp.eq.s32.totalorder %s118, 0
      %p541 = por %p539, %p540
      %p542 = scmp.ne.s32.totalorder %s528, %s529
      %p543 = scmp.eq.s32.totalorder %s119, 5
      %p544 = por %p542, %p543
      %p546 = scmp.ne.s32.totalorder %s529, %s545
      %p547 = scmp.eq.s32.totalorder %s119, 0
      %p548 = por %p546, %p547
      %s549 = ssub.s32 %s121, %s128
      %p550 = scmp.eq.s32.totalorder %s549, 0
      %s552 = sadd.s32 %s551, 1
      %s553 = scalar_select %p550, %s551, %s552
      %p556 = pneg %p550
      %p557 = scmp.eq.s32.totalorder %s113, 5
      %p558 = por %p556, %p557
      %p559 = scmp.ne.s32.totalorder %s551, %s554
      %p560 = scmp.eq.s32.totalorder %s113, 0
      %p561 = por %p559, %p560
      %p562 = scmp.ne.s32.totalorder %s551, %s554
      %p563 = scmp.eq.s32.totalorder %s118, 5
      %p564 = por %p562, %p563
      %p565 = scmp.ne.s32.totalorder %s554, %s555
      %p566 = scmp.eq.s32.totalorder %s118, 0
      %p567 = por %p565, %p566
      %p568 = scmp.ne.s32.totalorder %s554, %s555
      %p569 = scmp.eq.s32.totalorder %s119, 5
      %p570 = por %p568, %p569
      %p572 = scmp.ne.s32.totalorder %s555, %s571
      %p573 = scmp.eq.s32.totalorder %s119, 0
      %p574 = por %p572, %p573
      %s575 = ssub.s32 %s121, %s128
      %p576 = scmp.eq.s32.totalorder %s575, 0
      %s578 = sadd.s32 %s577, 1
      %s579 = scalar_select %p576, %s577, %s578
      %p582 = pneg %p576
      %p583 = scmp.eq.s32.totalorder %s113, 5
      %p584 = por %p582, %p583
      %p585 = scmp.ne.s32.totalorder %s577, %s580
      %p586 = scmp.eq.s32.totalorder %s113, 0
      %p587 = por %p585, %p586
      %p588 = scmp.ne.s32.totalorder %s577, %s580
      %p589 = scmp.eq.s32.totalorder %s118, 5
      %p590 = por %p588, %p589
      %p591 = scmp.ne.s32.totalorder %s580, %s581
      %p592 = scmp.eq.s32.totalorder %s118, 0
      %p593 = por %p591, %p592
      %p594 = scmp.ne.s32.totalorder %s580, %s581
      %p595 = scmp.eq.s32.totalorder %s119, 5
      %p596 = por %p594, %p595
      %p598 = scmp.ne.s32.totalorder %s581, %s597
      %p599 = scmp.eq.s32.totalorder %s119, 0
      %p600 = por %p598, %p599
      %s601 = ssub.s32 %s121, %s128
      %p602 = scmp.eq.s32.totalorder %s601, 0
      %s604 = sadd.s32 %s603, 1
      %s605 = scalar_select %p602, %s603, %s604
      %p608 = pneg %p602
      %p609 = scmp.eq.s32.totalorder %s113, 5
      %p610 = por %p608, %p609
      %p611 = scmp.ne.s32.totalorder %s603, %s606
      %p612 = scmp.eq.s32.totalorder %s113, 0
      %p613 = por %p611, %p612
      %p614 = scmp.ne.s32.totalorder %s603, %s606
      %p615 = scmp.eq.s32.totalorder %s118, 5
      %p616 = por %p614, %p615
      %p617 = scmp.ne.s32.totalorder %s606, %s607
      %p618 = scmp.eq.s32.totalorder %s118, 0
      %p619 = por %p617, %p618
      %p620 = scmp.ne.s32.totalorder %s606, %s607
      %p621 = scmp.eq.s32.totalorder %s119, 5
      %p622 = por %p620, %p621
      %p624 = scmp.ne.s32.totalorder %s607, %s623
      %p625 = scmp.eq.s32.totalorder %s119, 0
      %p626 = por %p624, %p625
      %s627 = ssub.s32 %s121, %s128
      %p628 = scmp.eq.s32.totalorder %s627, 0
      %s630 = sadd.s32 %s629, 1
      %s631 = scalar_select %p628, %s629, %s630
      %p634 = pneg %p628
      %p635 = scmp.eq.s32.totalorder %s113, 5
      %p636 = por %p634, %p635
      %p637 = scmp.ne.s32.totalorder %s629, %s632
      %p638 = scmp.eq.s32.totalorder %s113, 0
      %p639 = por %p637, %p638
      %p640 = scmp.ne.s32.totalorder %s629, %s632
      %p641 = scmp.eq.s32.totalorder %s118, 5
      %p642 = por %p640, %p641
      %p643 = scmp.ne.s32.totalorder %s632, %s633
      %p644 = scmp.eq.s32.totalorder %s118, 0
      %p645 = por %p643, %p644
      %p646 = scmp.ne.s32.totalorder %s632, %s633
      %p647 = scmp.eq.s32.totalorder %s119, 5
      %p648 = por %p646, %p647
      %p650 = scmp.ne.s32.totalorder %s633, %s649
      %p651 = scmp.eq.s32.totalorder %s119, 0
      %p652 = por %p650, %p651
      %s653 = ssub.s32 %s121, %s128
      %p654 = scmp.eq.s32.totalorder %s653, 0
      %s656 = sadd.s32 %s655, 1
      %s657 = scalar_select %p654, %s655, %s656
      %p660 = pneg %p654
      %p661 = scmp.eq.s32.totalorder %s113, 5
      %p662 = por %p660, %p661
      %p663 = scmp.ne.s32.totalorder %s655, %s658
      %p664 = scmp.eq.s32.totalorder %s113, 0
      %p665 = por %p663, %p664
      %p666 = scmp.ne.s32.totalorder %s655, %s658
      %p667 = scmp.eq.s32.totalorder %s118, 5
      %p668 = por %p666, %p667
      %p669 = scmp.ne.s32.totalorder %s658, %s659
      %p670 = scmp.eq.s32.totalorder %s118, 0
      %p671 = por %p669, %p670
      %p672 = scmp.ne.s32.totalorder %s658, %s659
      %p673 = scmp.eq.s32.totalorder %s119, 5
      %p674 = por %p672, %p673
      %p676 = scmp.ne.s32.totalorder %s659, %s675
      %p677 = scmp.eq.s32.totalorder %s119, 0
      %p678 = por %p676, %p677
      %s679 = ssub.s32 %s121, %s128
      %p680 = scmp.eq.s32.totalorder %s679, 0
      %s682 = sadd.s32 %s681, 1
      %s683 = scalar_select %p680, %s681, %s682
      %p686 = pneg %p680
      %p687 = scmp.eq.s32.totalorder %s113, 5
      %p688 = por %p686, %p687
      %p689 = scmp.ne.s32.totalorder %s681, %s684
      %p690 = scmp.eq.s32.totalorder %s113, 0
      %p691 = por %p689, %p690
      %p692 = scmp.ne.s32.totalorder %s681, %s684
      %p693 = scmp.eq.s32.totalorder %s118, 5
      %p694 = por %p692, %p693
      %p695 = scmp.ne.s32.totalorder %s684, %s685
      %p696 = scmp.eq.s32.totalorder %s118, 0
      %p697 = por %p695, %p696
      %p698 = scmp.ne.s32.totalorder %s684, %s685
      %p699 = scmp.eq.s32.totalorder %s119, 5
      %p700 = por %p698, %p699
      %p702 = scmp.ne.s32.totalorder %s685, %s701
      %p703 = scmp.eq.s32.totalorder %s119, 0
      %p704 = por %p702, %p703
      %s705 = ssub.s32 %s121, %s128
      %p706 = scmp.eq.s32.totalorder %s705, 0
      %s708 = sadd.s32 %s707, 1
      %s709 = scalar_select %p706, %s707, %s708
      %p712 = pneg %p706
      %p713 = scmp.eq.s32.totalorder %s113, 5
      %p714 = por %p712, %p713
      %p715 = scmp.ne.s32.totalorder %s707, %s710
      %p716 = scmp.eq.s32.totalorder %s113, 0
      %p717 = por %p715, %p716
      %p718 = scmp.ne.s32.totalorder %s707, %s710
      %p719 = scmp.eq.s32.totalorder %s118, 5
      %p720 = por %p718, %p719
      %p721 = scmp.ne.s32.totalorder %s710, %s711
      %p722 = scmp.eq.s32.totalorder %s118, 0
      %p723 = por %p721, %p722
      %p724 = scmp.ne.s32.totalorder %s710, %s711
      %p725 = scmp.eq.s32.totalorder %s119, 5
      %p726 = por %p724, %p725
      %p728 = scmp.ne.s32.totalorder %s711, %s727
      %p729 = scmp.eq.s32.totalorder %s119, 0
      %p730 = por %p728, %p729
      %s731 = ssub.s32 %s121, %s128
      %p732 = scmp.eq.s32.totalorder %s731, 0
      %s734 = sadd.s32 %s733, 1
      %s735 = scalar_select %p732, %s733, %s734
      %p738 = pneg %p732
      %p739 = scmp.eq.s32.totalorder %s113, 5
      %p740 = por %p738, %p739
      %p741 = scmp.ne.s32.totalorder %s733, %s736
      %p742 = scmp.eq.s32.totalorder %s113, 0
      %p743 = por %p741, %p742
      %p744 = scmp.ne.s32.totalorder %s733, %s736
      %p745 = scmp.eq.s32.totalorder %s118, 5
      %p746 = por %p744, %p745
      %p747 = scmp.ne.s32.totalorder %s736, %s737
      %p748 = scmp.eq.s32.totalorder %s118, 0
      %p749 = por %p747, %p748
      %p750 = scmp.ne.s32.totalorder %s736, %s737
      %p751 = scmp.eq.s32.totalorder %s119, 5
      %p752 = por %p750, %p751
      %p754 = scmp.ne.s32.totalorder %s737, %s753
      %p755 = scmp.eq.s32.totalorder %s119, 0
      %p756 = por %p754, %p755
      %s757 = ssub.s32 %s121, %s128
      %p758 = scmp.eq.s32.totalorder %s757, 0
      %s760 = sadd.s32 %s759, 1
      %s761 = scalar_select %p758, %s759, %s760
      %p764 = pneg %p758
      %p765 = scmp.eq.s32.totalorder %s113, 5
      %p766 = por %p764, %p765
      %p767 = scmp.ne.s32.totalorder %s759, %s762
      %p768 = scmp.eq.s32.totalorder %s113, 0
      %p769 = por %p767, %p768
      %p770 = scmp.ne.s32.totalorder %s759, %s762
      %p771 = scmp.eq.s32.totalorder %s118, 5
      %p772 = por %p770, %p771
      %p773 = scmp.ne.s32.totalorder %s762, %s763
      %p774 = scmp.eq.s32.totalorder %s118, 0
      %p775 = por %p773, %p774
      %p776 = scmp.ne.s32.totalorder %s762, %s763
      %p777 = scmp.eq.s32.totalorder %s119, 5
      %p778 = por %p776, %p777
      %p780 = scmp.ne.s32.totalorder %s763, %s779
      %p781 = scmp.eq.s32.totalorder %s119, 0
      %p782 = por %p780, %p781
      %s783 = ssub.s32 %s121, %s128
      %p784 = scmp.eq.s32.totalorder %s783, 0
      %s786 = sadd.s32 %s785, 1
      %s787 = scalar_select %p784, %s785, %s786
      %p790 = pneg %p784
      %p791 = scmp.eq.s32.totalorder %s113, 5
      %p792 = por %p790, %p791
      %p793 = scmp.ne.s32.totalorder %s785, %s788
      %p794 = scmp.eq.s32.totalorder %s113, 0
      %p795 = por %p793, %p794
      %p796 = scmp.ne.s32.totalorder %s785, %s788
      %p797 = scmp.eq.s32.totalorder %s118, 5
      %p798 = por %p796, %p797
      %p799 = scmp.ne.s32.totalorder %s788, %s789
      %p800 = scmp.eq.s32.totalorder %s118, 0
      %p801 = por %p799, %p800
      %p802 = scmp.ne.s32.totalorder %s788, %s789
      %p803 = scmp.eq.s32.totalorder %s119, 5
      %p804 = por %p802, %p803
      %p806 = scmp.ne.s32.totalorder %s789, %s805
      %p807 = scmp.eq.s32.totalorder %s119, 0
      %p808 = por %p806, %p807
      %s809 = ssub.s32 %s121, %s128
      %p810 = scmp.eq.s32.totalorder %s809, 0
      %s812 = sadd.s32 %s811, 1
      %s813 = scalar_select %p810, %s811, %s812
      %p816 = pneg %p810
      %p817 = scmp.eq.s32.totalorder %s113, 5
      %p818 = por %p816, %p817
      %p819 = scmp.ne.s32.totalorder %s811, %s814
      %p820 = scmp.eq.s32.totalorder %s113, 0
      %p821 = por %p819, %p820
      %p822 = scmp.ne.s32.totalorder %s811, %s814
      %p823 = scmp.eq.s32.totalorder %s118, 5
      %p824 = por %p822, %p823
      %p825 = scmp.ne.s32.totalorder %s814, %s815
      %p826 = scmp.eq.s32.totalorder %s118, 0
      %p827 = por %p825, %p826
      %p828 = scmp.ne.s32.totalorder %s814, %s815
      %p829 = scmp.eq.s32.totalorder %s119, 5
      %p830 = por %p828, %p829
      %p832 = scmp.ne.s32.totalorder %s815, %s831
      %p833 = scmp.eq.s32.totalorder %s119, 0
      %p834 = por %p832, %p833
      %s835 = ssub.s32 %s121, %s128
      %p836 = scmp.eq.s32.totalorder %s835, 0
      %s838 = sadd.s32 %s837, 1
      %s839 = scalar_select %p836, %s837, %s838
      %p842 = pneg %p836
      %p843 = scmp.eq.s32.totalorder %s113, 5
      %p844 = por %p842, %p843
      %p845 = scmp.ne.s32.totalorder %s837, %s840
      %p846 = scmp.eq.s32.totalorder %s113, 0
      %p847 = por %p845, %p846
      %p848 = scmp.ne.s32.totalorder %s837, %s840
      %p849 = scmp.eq.s32.totalorder %s118, 5
      %p850 = por %p848, %p849
      %p851 = scmp.ne.s32.totalorder %s840, %s841
      %p852 = scmp.eq.s32.totalorder %s118, 0
      %p853 = por %p851, %p852
      %p854 = scmp.ne.s32.totalorder %s840, %s841
      %p855 = scmp.eq.s32.totalorder %s119, 5
      %p856 = por %p854, %p855
      %p858 = scmp.ne.s32.totalorder %s841, %s857
      %p859 = scmp.eq.s32.totalorder %s119, 0
      %p860 = por %p858, %p859
      %s861 = ssub.s32 %s121, %s128
      %p862 = scmp.eq.s32.totalorder %s861, 0
      %s864 = sadd.s32 %s863, 1
      %s865 = scalar_select %p862, %s863, %s864
      %p868 = pneg %p862
      %p869 = scmp.eq.s32.totalorder %s113, 5
      %p870 = por %p868, %p869
      %p871 = scmp.ne.s32.totalorder %s863, %s866
      %p872 = scmp.eq.s32.totalorder %s113, 0
      %p873 = por %p871, %p872
      %p874 = scmp.ne.s32.totalorder %s863, %s866
      %p875 = scmp.eq.s32.totalorder %s118, 5
      %p876 = por %p874, %p875
      %p877 = scmp.ne.s32.totalorder %s866, %s867
      %p878 = scmp.eq.s32.totalorder %s118, 0
      %p879 = por %p877, %p878
      %p880 = scmp.ne.s32.totalorder %s866, %s867
      %p881 = scmp.eq.s32.totalorder %s119, 5
      %p882 = por %p880, %p881
      %p884 = scmp.ne.s32.totalorder %s867, %s883
      %p885 = scmp.eq.s32.totalorder %s119, 0
      %p886 = por %p884, %p885
      %s887 = ssub.s32 %s121, %s128
      %p888 = scmp.eq.s32.totalorder %s887, 0
      %s890 = sadd.s32 %s889, 1
      %s891 = scalar_select %p888, %s889, %s890
      %p894 = pneg %p888
      %p895 = scmp.eq.s32.totalorder %s113, 5
      %p896 = por %p894, %p895
      %p897 = scmp.ne.s32.totalorder %s889, %s892
      %p898 = scmp.eq.s32.totalorder %s113, 0
      %p899 = por %p897, %p898
      %p900 = scmp.ne.s32.totalorder %s889, %s892
      %p901 = scmp.eq.s32.totalorder %s118, 5
      %p902 = por %p900, %p901
      %p903 = scmp.ne.s32.totalorder %s892, %s893
      %p904 = scmp.eq.s32.totalorder %s118, 0
      %p905 = por %p903, %p904
      %p906 = scmp.ne.s32.totalorder %s892, %s893
      %p907 = scmp.eq.s32.totalorder %s119, 5
      %p908 = por %p906, %p907
      %p910 = scmp.ne.s32.totalorder %s893, %s909
      %p911 = scmp.eq.s32.totalorder %s119, 0
      %p912 = por %p910, %p911
      %s914 = sadd.s32 %s913, 1
      %p917 = scmp.eq.s32.totalorder %s113, 5
      %p918 = scmp.ne.s32.totalorder %s913, %s915
      %p919 = scmp.eq.s32.totalorder %s113, 0
      %p920 = por %p918, %p919
      %p921 = scmp.ne.s32.totalorder %s913, %s915
      %p922 = scmp.eq.s32.totalorder %s118, 5
      %p923 = por %p921, %p922
      %p924 = scmp.ne.s32.totalorder %s915, %s916
      %p925 = scmp.eq.s32.totalorder %s118, 0
      %p926 = por %p924, %p925
      %p927 = scmp.ne.s32.totalorder %s915, %s916
      %p928 = scmp.eq.s32.totalorder %s119, 5
      %p929 = por %p927, %p928
      %p931 = scmp.ne.s32.totalorder %s916, %s930
      %p932 = scmp.eq.s32.totalorder %s119, 0
      %p933 = por %p931, %p932
      %s935 = sadd.s32 %s934, 1
      %p938 = scmp.eq.s32.totalorder %s113, 5
      %p939 = scmp.ne.s32.totalorder %s934, %s936
      %p940 = scmp.eq.s32.totalorder %s113, 0
      %p941 = por %p939, %p940
      %p942 = scmp.ne.s32.totalorder %s934, %s936
      %p943 = scmp.eq.s32.totalorder %s118, 5
      %p944 = por %p942, %p943
      %p945 = scmp.ne.s32.totalorder %s936, %s937
      %p946 = scmp.eq.s32.totalorder %s118, 0
      %p947 = por %p945, %p946
      %p948 = scmp.ne.s32.totalorder %s936, %s937
      %p949 = scmp.eq.s32.totalorder %s119, 5
      %p950 = por %p948, %p949
      %p952 = scmp.ne.s32.totalorder %s937, %s951
      %p953 = scmp.eq.s32.totalorder %s119, 0
      %p954 = por %p952, %p953
      %s955 = ssub.s32 %s120, %s132
      %p956 = scmp.eq.s32.totalorder %s955, 0
      %s958 = sadd.s32 %s957, 1
      %s959 = scalar_select %p956, %s957, %s958
      %p962 = pneg %p956
      %p963 = scmp.eq.s32.totalorder %s113, 5
      %p964 = por %p962, %p963
      %p965 = scmp.ne.s32.totalorder %s957, %s960
      %p966 = scmp.eq.s32.totalorder %s113, 0
      %p967 = por %p965, %p966
      %p968 = scmp.ne.s32.totalorder %s957, %s960
      %p969 = scmp.eq.s32.totalorder %s118, 5
      %p970 = por %p968, %p969
      %p971 = scmp.ne.s32.totalorder %s960, %s961
      %p972 = scmp.eq.s32.totalorder %s118, 0
      %p973 = por %p971, %p972
      %p974 = scmp.ne.s32.totalorder %s960, %s961
      %p975 = scmp.eq.s32.totalorder %s119, 5
      %p976 = por %p974, %p975
      %p978 = scmp.ne.s32.totalorder %s961, %s977
      %p979 = scmp.eq.s32.totalorder %s119, 0
      %p980 = por %p978, %p979
      %p981 = scmp.le.s32.totalorder 1, %s113
      %p982 = scmp.lt.s32.totalorder %s113, 7
      %p983 = pnand %p981, %p982
      %p984 = pneg %p983
      // Predicated region
      $region9: #{tpu_custom_call.1} parent=5 // pred_check
        _
      $region10: #{tpu_custom_call.1} parent=5 // pred_check_branch
        %986 = sbr.rel (%p983) target = $region12
      $region11: #{tpu_custom_call.1} parent=5 // pred_region
        %s987 = ssub.s32 %s113, 1
        // Predicated region
        $region13: #{tpu_custom_call.1} parent=11 // pred_check
          %p988 = pneg %p926
        $region14: #{tpu_custom_call.1} parent=11 // pred_check_branch
          %990 = sbr.rel (%p988) target = $region16
        $region15: #{tpu_custom_call.1} parent=11 // pred_region
          _
        $region16: #{tpu_custom_call.1} parent=11 // pred_fallthru
          _
        // Predicated region
        $region17: #{tpu_custom_call.1} parent=11 // pred_check
          %p991 = pneg %p947
        $region18: #{tpu_custom_call.1} parent=11 // pred_check_branch
          %993 = sbr.rel (%p991) target = $region20
        $region19: #{tpu_custom_call.1} parent=11 // pred_region
          _
        $region20: #{tpu_custom_call.1} parent=11 // pred_fallthru
          _
      $region12: #{tpu_custom_call.1} parent=5 // pred_fallthru
        _
      %p994 = scmp.lt.s32.totalorder %s113, 6
      // Predicated region
      $region21: #{tpu_custom_call.1} parent=5 // pred_check
        %p995 = pneg %p994
      $region22: #{tpu_custom_call.1} parent=5 // pred_check_branch
        %997 = sbr.rel (%p995) target = $region24
      $region23: #{tpu_custom_call.1} parent=5 // pred_region
        // Predicated region
        $region25: #{tpu_custom_call.1} parent=23 // pred_check
          %p998 = pneg %p145
        $region26: #{tpu_custom_call.1} parent=23 // pred_check_branch
          %1000 = sbr.rel (%p998) target = $region28
        $region27: #{tpu_custom_call.1} parent=23 // pred_region
          %s1001 = sand.u32 %s135, 1
          %s1002 = scalar_lea.sflag [#allocation4], %s1001
          %s1003 = sand.u32 %s135, 1
          %s1004 = smul.addr %s1003, 8
          %s1005 = scalar_lea.vmem [#allocation3], %s1004
          %s1007 = ssub.s32 128, 128
          %1008 = vsyncadd %s1002, %s1007
          %s1009 = smul.addr %s120, 128
          %s1010 = scalar_lea.hbm %s1, %s1009
          %s1012 = sshll.u32 %s1005, 4
          %s1013 = int_to_ptr.vmem [resolvable:$true] %s1012
          %1015 = dma.hbm_to_vmem [thread:$0]  %s1010, 128, %s1013, %s1002
        $region28: #{tpu_custom_call.1} parent=23 // pred_fallthru
          _
        // Predicated region
        $region29: #{tpu_custom_call.1} parent=23 // pred_check
          %p1016 = pneg %p171
        $region30: #{tpu_custom_call.1} parent=23 // pred_check_branch
          %1018 = sbr.rel (%p1016) target = $region32
        $region31: #{tpu_custom_call.1} parent=23 // pred_region
          %s1019 = sand.u32 %s113, 1
          %s1020 = scalar_lea.sflag [#allocation7], %s1019
          %s1021 = sand.u32 %s161, 1
          %s1022 = smul.addr %s1021, 8
          %s1023 = scalar_lea.vmem [#allocation6], %s1022
          %s1025 = ssub.s32 128, 128
          %1026 = vsyncadd %s1020, %s1025
          %s1027 = smul.addr %s120, 2
          %s1028 = smul.addr %s1027, 64
          %s1029 = scalar_lea.hbm %s3, %s1028
          %s1030 = sshll.u32 %s1023, 4
          %s1031 = int_to_ptr.vmem [resolvable:$true] %s1030
          %1036 = dma.hbm_to_vmem [thread:$0]  %s1029, 128, %s1031, %s1020, 64, 64, 4
        $region32: #{tpu_custom_call.1} parent=23 // pred_fallthru
          _
        // Predicated region
        $region33: #{tpu_custom_call.1} parent=23 // pred_check
          %p1037 = pneg %p197
        $region34: #{tpu_custom_call.1} parent=23 // pred_check_branch
          %1039 = sbr.rel (%p1037) target = $region36
        $region35: #{tpu_custom_call.1} parent=23 // pred_region
          %s1040 = sand.u32 %s113, 1
          %s1041 = scalar_lea.sflag [#allocation7], %s1040
          %s1042 = sand.u32 %s187, 1
          %s1043 = smul.addr %s1042, 8
          %s1044 = scalar_lea.vmem [#allocation8], %s1043
          %s1046 = ssub.s32 128, 128
          %1047 = vsyncadd %s1041, %s1046
          %s1048 = smul.addr %s120, 128
          %s1049 = scalar_lea.hbm %s5, %s1048
          %s1051 = sshll.u32 %s1044, 4
          %s1052 = int_to_ptr.vmem [resolvable:$true] %s1051
          %1054 = dma.hbm_to_vmem [thread:$0]  %s1049, 128, %s1052, %s1041
        $region36: #{tpu_custom_call.1} parent=23 // pred_fallthru
          _
        // Predicated region
        $region37: #{tpu_custom_call.1} parent=23 // pred_check
          %p1055 = pneg %p223
        $region38: #{tpu_custom_call.1} parent=23 // pred_check_branch
          %1057 = sbr.rel (%p1055) target = $region40
        $region39: #{tpu_custom_call.1} parent=23 // pred_region
          %s1058 = sand.u32 %s113, 1
          %s1059 = scalar_lea.sflag [#allocation10], %s1058
          %s1060 = sand.u32 %s213, 1
          %s1061 = smul.addr %s1060, 8
          %s1062 = scalar_lea.vmem [#allocation9], %s1061
          %s1064 = ssub.s32 128, 128
          %1065 = vsyncadd %s1059, %s1064
          %s1066 = smul.addr %s120, 128
          %s1067 = scalar_lea.hbm %s7, %s1066
          %s1069 = sshll.u32 %s1062, 4
          %s1070 = int_to_ptr.vmem [resolvable:$true] %s1069
          %1072 = dma.hbm_to_vmem [thread:$0]  %s1067, 128, %s1070, %s1059
        $region40: #{tpu_custom_call.1} parent=23 // pred_fallthru
          _
        // Predicated region
        $region41: #{tpu_custom_call.1} parent=23 // pred_check
          %p1073 = pneg %p249
        $region42: #{tpu_custom_call.1} parent=23 // pred_check_branch
          %1075 = sbr.rel (%p1073) target = $region44
        $region43: #{tpu_custom_call.1} parent=23 // pred_region
          %p1076 = scmp.lt.s32.totalorder %s121, 2
          %s1077 = scalar_select %p1076, %s121, 2
          %s1078 = smul.addr %s1077, 4
          %s1079 = smul.addr %s1078, 4
          %s1080 = scalar_lea.vmem %s9, %s1079
        $region44: #{tpu_custom_call.1} parent=23 // pred_fallthru
          _
        // Predicated region
        $region45: #{tpu_custom_call.1} parent=23 // pred_check
          %p1081 = pneg %p275
        $region46: #{tpu_custom_call.1} parent=23 // pred_check_branch
          %1083 = sbr.rel (%p1081) target = $region48
        $region47: #{tpu_custom_call.1} parent=23 // pred_region
          %p1084 = scmp.lt.s32.totalorder %s121, 2
          %s1085 = scalar_select %p1084, %s121, 2
          %s1086 = smul.addr %s1085, 4
          %s1087 = smul.addr %s1086, 4
          %s1088 = scalar_lea.vmem %s11, %s1087
        $region48: #{tpu_custom_call.1} parent=23 // pred_fallthru
          _
        // Predicated region
        $region49: #{tpu_custom_call.1} parent=23 // pred_check
          %p1089 = pneg %p301
        $region50: #{tpu_custom_call.1} parent=23 // pred_check_branch
          %1091 = sbr.rel (%p1089) target = $region52
        $region51: #{tpu_custom_call.1} parent=23 // pred_region
          %p1092 = scmp.lt.s32.totalorder %s121, 2
          %s1093 = scalar_select %p1092, %s121, 2
          %s1094 = smul.addr %s1093, 4
          %s1095 = smul.addr %s1094, 4
          %s1096 = scalar_lea.vmem %s13, %s1095
        $region52: #{tpu_custom_call.1} parent=23 // pred_fallthru
          _
        // Predicated region
        $region53: #{tpu_custom_call.1} parent=23 // pred_check
          %p1097 = pneg %p327
        $region54: #{tpu_custom_call.1} parent=23 // pred_check_branch
          %1099 = sbr.rel (%p1097) target = $region56
        $region55: #{tpu_custom_call.1} parent=23 // pred_region
          %p1100 = scmp.lt.s32.totalorder %s121, 2
          %s1101 = scalar_select %p1100, %s121, 2
          %s1102 = scalar_lea.vmem %s15, %s1101
        $region56: #{tpu_custom_call.1} parent=23 // pred_fallthru
          _
        // Predicated region
        $region57: #{tpu_custom_call.1} parent=23 // pred_check
          %p1103 = pneg %p353
        $region58: #{tpu_custom_call.1} parent=23 // pred_check_branch
          %1105 = sbr.rel (%p1103) target = $region60
        $region59: #{tpu_custom_call.1} parent=23 // pred_region
          %s1106 = sand.u32 %s113, 1
          %s1107 = scalar_lea.sflag [#allocation10], %s1106
          %s1108 = sand.u32 %s343, 1
          %s1109 = scalar_lea.vmem [#allocation11], %s1108
          %s1111 = ssub.s32 16, 16
          %1112 = vsyncadd %s1107, %s1111
          %s1113 = smul.addr %s121, 16
          %s1114 = scalar_lea.hbm %s17, %s1113
          %s1116 = sshll.u32 %s1109, 4
          %s1117 = int_to_ptr.vmem [resolvable:$true] %s1116
          %1119 = dma.hbm_to_vmem [thread:$0]  %s1114, 16, %s1117, %s1107
        $region60: #{tpu_custom_call.1} parent=23 // pred_fallthru
          _
        // Predicated region
        $region61: #{tpu_custom_call.1} parent=23 // pred_check
          %p1120 = pneg %p379
        $region62: #{tpu_custom_call.1} parent=23 // pred_check_branch
          %1122 = sbr.rel (%p1120) target = $region64
        $region63: #{tpu_custom_call.1} parent=23 // pred_region
          %s1123 = sand.u32 %s113, 1
          %s1124 = scalar_lea.sflag [#allocation13], %s1123
          %s1125 = sand.u32 %s369, 1
          %s1126 = scalar_lea.vmem [#allocation12], %s1125
          %s1128 = ssub.s32 16, 16
          %1129 = vsyncadd %s1124, %s1128
          %s1130 = smul.addr %s121, 16
          %s1131 = scalar_lea.hbm %s19, %s1130
          %s1133 = sshll.u32 %s1126, 4
          %s1134 = int_to_ptr.vmem [resolvable:$true] %s1133
          %1136 = dma.hbm_to_vmem [thread:$0]  %s1131, 16, %s1134, %s1124
        $region64: #{tpu_custom_call.1} parent=23 // pred_fallthru
          _
        // Predicated region
        $region65: #{tpu_custom_call.1} parent=23 // pred_check
          %p1137 = pneg %p405
        $region66: #{tpu_custom_call.1} parent=23 // pred_check_branch
          %1139 = sbr.rel (%p1137) target = $region68
        $region67: #{tpu_custom_call.1} parent=23 // pred_region
          %s1140 = sand.u32 %s113, 1
          %s1141 = scalar_lea.sflag [#allocation13], %s1140
          %s1142 = sand.u32 %s395, 1
          %s1143 = smul.addr %s1142, 16
          %s1144 = scalar_lea.vmem [#allocation14], %s1143
          %s1146 = ssub.s32 256, 256
          %1147 = vsyncadd %s1141, %s1146
          %s1148 = smul.addr %s121, 4
          %s1149 = smul.addr %s1148, 64
          %s1150 = scalar_lea.hbm %s21, %s1149
          %s1151 = sshll.u32 %s1144, 4
          %s1152 = int_to_ptr.vmem [resolvable:$true] %s1151
          %1157 = dma.hbm_to_vmem [thread:$0]  %s1150, 256, %s1152, %s1141, 64, 64, 4
        $region68: #{tpu_custom_call.1} parent=23 // pred_fallthru
          _
        // Predicated region
        $region69: #{tpu_custom_call.1} parent=23 // pred_check
          %p1158 = pneg %p431
        $region70: #{tpu_custom_call.1} parent=23 // pred_check_branch
          %1160 = sbr.rel (%p1158) target = $region72
        $region71: #{tpu_custom_call.1} parent=23 // pred_region
          %s1161 = sand.u32 %s113, 1
          %s1162 = scalar_lea.sflag [#allocation16], %s1161
          %s1163 = sand.u32 %s421, 1
          %s1164 = scalar_lea.vmem [#allocation15], %s1163
          %s1166 = ssub.s32 16, 16
          %1167 = vsyncadd %s1162, %s1166
          %s1168 = smul.addr %s121, 16
          %s1169 = scalar_lea.hbm %s23, %s1168
          %s1171 = sshll.u32 %s1164, 4
          %s1172 = int_to_ptr.vmem [resolvable:$true] %s1171
          %1174 = dma.hbm_to_vmem [thread:$0]  %s1169, 16, %s1172, %s1162
        $region72: #{tpu_custom_call.1} parent=23 // pred_fallthru
          _
        // Predicated region
        $region73: #{tpu_custom_call.1} parent=23 // pred_check
          %p1175 = pneg %p457
        $region74: #{tpu_custom_call.1} parent=23 // pred_check_branch
          %1177 = sbr.rel (%p1175) target = $region76
        $region75: #{tpu_custom_call.1} parent=23 // pred_region
          %s1178 = sand.u32 %s113, 1
          %s1179 = scalar_lea.sflag [#allocation16], %s1178
          %s1180 = sand.u32 %s447, 1
          %s1181 = smul.addr %s1180, 16
          %s1182 = scalar_lea.vmem [#allocation17], %s1181
          %s1184 = ssub.s32 256, 256
          %1185 = vsyncadd %s1179, %s1184
          %s1186 = smul.addr %s121, 4
          %s1187 = smul.addr %s1186, 64
          %s1188 = scalar_lea.hbm %s25, %s1187
          %s1189 = sshll.u32 %s1182, 4
          %s1190 = int_to_ptr.vmem [resolvable:$true] %s1189
          %1195 = dma.hbm_to_vmem [thread:$0]  %s1188, 256, %s1190, %s1179, 64, 64, 4
        $region76: #{tpu_custom_call.1} parent=23 // pred_fallthru
          _
        // Predicated region
        $region77: #{tpu_custom_call.1} parent=23 // pred_check
          %p1196 = pneg %p483
        $region78: #{tpu_custom_call.1} parent=23 // pred_check_branch
          %1198 = sbr.rel (%p1196) target = $region80
        $region79: #{tpu_custom_call.1} parent=23 // pred_region
          %s1199 = sand.u32 %s113, 1
          %s1200 = scalar_lea.sflag [#allocation19], %s1199
          %s1201 = sand.u32 %s473, 1
          %s1202 = smul.addr %s1201, 16
          %s1203 = scalar_lea.vmem [#allocation18], %s1202
          %s1205 = ssub.s32 256, 256
          %1206 = vsyncadd %s1200, %s1205
          %s1207 = smul.addr %s121, 4
          %s1208 = smul.addr %s1207, 64
          %s1209 = scalar_lea.hbm %s27, %s1208
          %s1210 = sshll.u32 %s1203, 4
          %s1211 = int_to_ptr.vmem [resolvable:$true] %s1210
          %1216 = dma.hbm_to_vmem [thread:$0]  %s1209, 256, %s1211, %s1200, 64, 64, 4
        $region80: #{tpu_custom_call.1} parent=23 // pred_fallthru
          _
        // Predicated region
        $region81: #{tpu_custom_call.1} parent=23 // pred_check
          %p1217 = pneg %p509
        $region82: #{tpu_custom_call.1} parent=23 // pred_check_branch
          %1219 = sbr.rel (%p1217) target = $region84
        $region83: #{tpu_custom_call.1} parent=23 // pred_region
          %s1220 = sand.u32 %s113, 1
          %s1221 = scalar_lea.sflag [#allocation19], %s1220
          %s1222 = sand.u32 %s499, 1
          %s1223 = smul.addr %s1222, 16
          %s1224 = scalar_lea.vmem [#allocation20], %s1223
          %s1226 = ssub.s32 256, 256
          %1227 = vsyncadd %s1221, %s1226
          %s1228 = smul.addr %s121, 4
          %s1229 = smul.addr %s1228, 64
          %s1230 = scalar_lea.hbm %s29, %s1229
          %s1231 = sshll.u32 %s1224, 4
          %s1232 = int_to_ptr.vmem [resolvable:$true] %s1231
          %1237 = dma.hbm_to_vmem [thread:$0]  %s1230, 256, %s1232, %s1221, 64, 64, 4
        $region84: #{tpu_custom_call.1} parent=23 // pred_fallthru
          _
        // Predicated region
        $region85: #{tpu_custom_call.1} parent=23 // pred_check
          %p1238 = pneg %p535
        $region86: #{tpu_custom_call.1} parent=23 // pred_check_branch
          %1240 = sbr.rel (%p1238) target = $region88
        $region87: #{tpu_custom_call.1} parent=23 // pred_region
          %s1241 = sand.u32 %s113, 1
          %s1242 = scalar_lea.sflag [#allocation22], %s1241
          %s1243 = sand.u32 %s525, 1
          %s1244 = scalar_lea.vmem [#allocation21], %s1243
          %s1246 = ssub.s32 16, 16
          %1247 = vsyncadd %s1242, %s1246
          %s1248 = smul.addr %s121, 16
          %s1249 = scalar_lea.hbm %s31, %s1248
          %s1251 = sshll.u32 %s1244, 4
          %s1252 = int_to_ptr.vmem [resolvable:$true] %s1251
          %1254 = dma.hbm_to_vmem [thread:$0]  %s1249, 16, %s1252, %s1242
        $region88: #{tpu_custom_call.1} parent=23 // pred_fallthru
          _
        // Predicated region
        $region89: #{tpu_custom_call.1} parent=23 // pred_check
          %p1255 = pneg %p561
        $region90: #{tpu_custom_call.1} parent=23 // pred_check_branch
          %1257 = sbr.rel (%p1255) target = $region92
        $region91: #{tpu_custom_call.1} parent=23 // pred_region
          %s1258 = sand.u32 %s113, 1
          %s1259 = scalar_lea.sflag [#allocation22], %s1258
          %s1260 = sand.u32 %s551, 1
          %s1261 = scalar_lea.vmem [#allocation23], %s1260
          %s1263 = ssub.s32 16, 16
          %1264 = vsyncadd %s1259, %s1263
          %s1265 = smul.addr %s121, 16
          %s1266 = scalar_lea.hbm %s33, %s1265
          %s1268 = sshll.u32 %s1261, 4
          %s1269 = int_to_ptr.vmem [resolvable:$true] %s1268
          %1271 = dma.hbm_to_vmem [thread:$0]  %s1266, 16, %s1269, %s1259
        $region92: #{tpu_custom_call.1} parent=23 // pred_fallthru
          _
        // Predicated region
        $region93: #{tpu_custom_call.1} parent=23 // pred_check
          %p1272 = pneg %p587
        $region94: #{tpu_custom_call.1} parent=23 // pred_check_branch
          %1274 = sbr.rel (%p1272) target = $region96
        $region95: #{tpu_custom_call.1} parent=23 // pred_region
          %s1275 = sand.u32 %s113, 1
          %s1276 = scalar_lea.sflag [#allocation25], %s1275
          %s1277 = sand.u32 %s577, 1
          %s1278 = scalar_lea.vmem [#allocation24], %s1277
          %s1280 = ssub.s32 16, 16
          %1281 = vsyncadd %s1276, %s1280
          %s1282 = smul.addr %s121, 16
          %s1283 = scalar_lea.hbm %s35, %s1282
          %s1285 = sshll.u32 %s1278, 4
          %s1286 = int_to_ptr.vmem [resolvable:$true] %s1285
          %1288 = dma.hbm_to_vmem [thread:$0]  %s1283, 16, %s1286, %s1276
        $region96: #{tpu_custom_call.1} parent=23 // pred_fallthru
          _
        // Predicated region
        $region97: #{tpu_custom_call.1} parent=23 // pred_check
          %p1289 = pneg %p613
        $region98: #{tpu_custom_call.1} parent=23 // pred_check_branch
          %1291 = sbr.rel (%p1289) target = $region100
        $region99: #{tpu_custom_call.1} parent=23 // pred_region
          %s1292 = sand.u32 %s113, 1
          %s1293 = scalar_lea.sflag [#allocation25], %s1292
          %s1294 = sand.u32 %s603, 1
          %s1295 = smul.addr %s1294, 16
          %s1296 = scalar_lea.vmem [#allocation26], %s1295
          %s1298 = ssub.s32 256, 256
          %1299 = vsyncadd %s1293, %s1298
          %s1300 = smul.addr %s121, 4
          %s1301 = smul.addr %s1300, 64
          %s1302 = scalar_lea.hbm %s37, %s1301
          %s1303 = sshll.u32 %s1296, 4
          %s1304 = int_to_ptr.vmem [resolvable:$true] %s1303
          %1309 = dma.hbm_to_vmem [thread:$0]  %s1302, 256, %s1304, %s1293, 64, 64, 4
        $region100: #{tpu_custom_call.1} parent=23 // pred_fallthru
          _
        // Predicated region
        $region101: #{tpu_custom_call.1} parent=23 // pred_check
          %p1310 = pneg %p639
        $region102: #{tpu_custom_call.1} parent=23 // pred_check_branch
          %1312 = sbr.rel (%p1310) target = $region104
        $region103: #{tpu_custom_call.1} parent=23 // pred_region
          %s1313 = sand.u32 %s113, 1
          %s1314 = scalar_lea.sflag [#allocation28], %s1313
          %s1315 = sand.u32 %s629, 1
          %s1316 = scalar_lea.vmem [#allocation27], %s1315
          %s1318 = ssub.s32 16, 16
          %1319 = vsyncadd %s1314, %s1318
          %s1320 = smul.addr %s121, 16
          %s1321 = scalar_lea.hbm %s39, %s1320
          %s1323 = sshll.u32 %s1316, 4
          %s1324 = int_to_ptr.vmem [resolvable:$true] %s1323
          %1326 = dma.hbm_to_vmem [thread:$0]  %s1321, 16, %s1324, %s1314
        $region104: #{tpu_custom_call.1} parent=23 // pred_fallthru
          _
        // Predicated region
        $region105: #{tpu_custom_call.1} parent=23 // pred_check
          %p1327 = pneg %p665
        $region106: #{tpu_custom_call.1} parent=23 // pred_check_branch
          %1329 = sbr.rel (%p1327) target = $region108
        $region107: #{tpu_custom_call.1} parent=23 // pred_region
          %s1330 = sand.u32 %s113, 1
          %s1331 = scalar_lea.sflag [#allocation28], %s1330
          %s1332 = sand.u32 %s655, 1
          %s1333 = scalar_lea.vmem [#allocation29], %s1332
          %s1335 = ssub.s32 16, 16
          %1336 = vsyncadd %s1331, %s1335
          %s1337 = smul.addr %s121, 16
          %s1338 = scalar_lea.hbm %s41, %s1337
          %s1340 = sshll.u32 %s1333, 4
          %s1341 = int_to_ptr.vmem [resolvable:$true] %s1340
          %1343 = dma.hbm_to_vmem [thread:$0]  %s1338, 16, %s1341, %s1331
        $region108: #{tpu_custom_call.1} parent=23 // pred_fallthru
          _
        // Predicated region
        $region109: #{tpu_custom_call.1} parent=23 // pred_check
          %p1344 = pneg %p691
        $region110: #{tpu_custom_call.1} parent=23 // pred_check_branch
          %1346 = sbr.rel (%p1344) target = $region112
        $region111: #{tpu_custom_call.1} parent=23 // pred_region
          %s1347 = sand.u32 %s113, 1
          %s1348 = scalar_lea.sflag [#allocation31], %s1347
          %s1349 = sand.u32 %s681, 1
          %s1350 = scalar_lea.vmem [#allocation30], %s1349
          %s1352 = ssub.s32 16, 16
          %1353 = vsyncadd %s1348, %s1352
          %s1354 = smul.addr %s121, 16
          %s1355 = scalar_lea.hbm %s43, %s1354
          %s1357 = sshll.u32 %s1350, 4
          %s1358 = int_to_ptr.vmem [resolvable:$true] %s1357
          %1360 = dma.hbm_to_vmem [thread:$0]  %s1355, 16, %s1358, %s1348
        $region112: #{tpu_custom_call.1} parent=23 // pred_fallthru
          _
        // Predicated region
        $region113: #{tpu_custom_call.1} parent=23 // pred_check
          %p1361 = pneg %p717
        $region114: #{tpu_custom_call.1} parent=23 // pred_check_branch
          %1363 = sbr.rel (%p1361) target = $region116
        $region115: #{tpu_custom_call.1} parent=23 // pred_region
          %s1364 = sand.u32 %s113, 1
          %s1365 = scalar_lea.sflag [#allocation31], %s1364
          %s1366 = sand.u32 %s707, 1
          %s1367 = scalar_lea.vmem [#allocation32], %s1366
          %s1369 = ssub.s32 16, 16
          %1370 = vsyncadd %s1365, %s1369
          %s1371 = smul.addr %s121, 16
          %s1372 = scalar_lea.hbm %s45, %s1371
          %s1374 = sshll.u32 %s1367, 4
          %s1375 = int_to_ptr.vmem [resolvable:$true] %s1374
          %1377 = dma.hbm_to_vmem [thread:$0]  %s1372, 16, %s1375, %s1365
        $region116: #{tpu_custom_call.1} parent=23 // pred_fallthru
          _
        // Predicated region
        $region117: #{tpu_custom_call.1} parent=23 // pred_check
          %p1378 = pneg %p743
        $region118: #{tpu_custom_call.1} parent=23 // pred_check_branch
          %1380 = sbr.rel (%p1378) target = $region120
        $region119: #{tpu_custom_call.1} parent=23 // pred_region
          %s1381 = sand.u32 %s113, 1
          %s1382 = scalar_lea.sflag [#allocation34], %s1381
          %s1383 = sand.u32 %s733, 1
          %s1384 = scalar_lea.vmem [#allocation33], %s1383
          %s1386 = ssub.s32 16, 16
          %1387 = vsyncadd %s1382, %s1386
          %s1388 = smul.addr %s121, 16
          %s1389 = scalar_lea.hbm %s47, %s1388
          %s1391 = sshll.u32 %s1384, 4
          %s1392 = int_to_ptr.vmem [resolvable:$true] %s1391
          %1394 = dma.hbm_to_vmem [thread:$0]  %s1389, 16, %s1392, %s1382
        $region120: #{tpu_custom_call.1} parent=23 // pred_fallthru
          _
        // Predicated region
        $region121: #{tpu_custom_call.1} parent=23 // pred_check
          %p1395 = pneg %p769
        $region122: #{tpu_custom_call.1} parent=23 // pred_check_branch
          %1397 = sbr.rel (%p1395) target = $region124
        $region123: #{tpu_custom_call.1} parent=23 // pred_region
          %s1398 = sand.u32 %s113, 1
          %s1399 = scalar_lea.sflag [#allocation34], %s1398
          %s1400 = sand.u32 %s759, 1
          %s1401 = scalar_lea.vmem [#allocation35], %s1400
          %s1403 = ssub.s32 16, 16
          %1404 = vsyncadd %s1399, %s1403
          %s1405 = smul.addr %s121, 16
          %s1406 = scalar_lea.hbm %s49, %s1405
          %s1408 = sshll.u32 %s1401, 4
          %s1409 = int_to_ptr.vmem [resolvable:$true] %s1408
          %1411 = dma.hbm_to_vmem [thread:$0]  %s1406, 16, %s1409, %s1399
        $region124: #{tpu_custom_call.1} parent=23 // pred_fallthru
          _
        // Predicated region
        $region125: #{tpu_custom_call.1} parent=23 // pred_check
          %p1412 = pneg %p795
        $region126: #{tpu_custom_call.1} parent=23 // pred_check_branch
          %1414 = sbr.rel (%p1412) target = $region128
        $region127: #{tpu_custom_call.1} parent=23 // pred_region
          %s1415 = sand.u32 %s113, 1
          %s1416 = scalar_lea.sflag [#allocation37], %s1415
          %s1417 = sand.u32 %s785, 1
          %s1418 = scalar_lea.vmem [#allocation36], %s1417
          %s1420 = ssub.s32 16, 16
          %1421 = vsyncadd %s1416, %s1420
          %s1422 = smul.addr %s121, 16
          %s1423 = scalar_lea.hbm %s51, %s1422
          %s1425 = sshll.u32 %s1418, 4
          %s1426 = int_to_ptr.vmem [resolvable:$true] %s1425
          %1428 = dma.hbm_to_vmem [thread:$0]  %s1423, 16, %s1426, %s1416
        $region128: #{tpu_custom_call.1} parent=23 // pred_fallthru
          _
        // Predicated region
        $region129: #{tpu_custom_call.1} parent=23 // pred_check
          %p1429 = pneg %p821
        $region130: #{tpu_custom_call.1} parent=23 // pred_check_branch
          %1431 = sbr.rel (%p1429) target = $region132
        $region131: #{tpu_custom_call.1} parent=23 // pred_region
          %s1432 = sand.u32 %s113, 1
          %s1433 = scalar_lea.sflag [#allocation37], %s1432
          %s1434 = sand.u32 %s811, 1
          %s1435 = smul.addr %s1434, 16
          %s1436 = scalar_lea.vmem [#allocation38], %s1435
          %s1438 = ssub.s32 256, 256
          %1439 = vsyncadd %s1433, %s1438
          %s1440 = smul.addr %s121, 4
          %s1441 = smul.addr %s1440, 64
          %s1442 = scalar_lea.hbm %s53, %s1441
          %s1443 = sshll.u32 %s1436, 4
          %s1444 = int_to_ptr.vmem [resolvable:$true] %s1443
          %1449 = dma.hbm_to_vmem [thread:$0]  %s1442, 256, %s1444, %s1433, 64, 64, 4
        $region132: #{tpu_custom_call.1} parent=23 // pred_fallthru
          _
        // Predicated region
        $region133: #{tpu_custom_call.1} parent=23 // pred_check
          %p1450 = pneg %p847
        $region134: #{tpu_custom_call.1} parent=23 // pred_check_branch
          %1452 = sbr.rel (%p1450) target = $region136
        $region135: #{tpu_custom_call.1} parent=23 // pred_region
          %s1453 = sand.u32 %s113, 1
          %s1454 = scalar_lea.sflag [#allocation40], %s1453
          %s1455 = sand.u32 %s837, 1
          %s1456 = scalar_lea.vmem [#allocation39], %s1455
          %s1458 = ssub.s32 16, 16
          %1459 = vsyncadd %s1454, %s1458
          %s1460 = smul.addr %s121, 16
          %s1461 = scalar_lea.hbm %s55, %s1460
          %s1463 = sshll.u32 %s1456, 4
          %s1464 = int_to_ptr.vmem [resolvable:$true] %s1463
          %1466 = dma.hbm_to_vmem [thread:$0]  %s1461, 16, %s1464, %s1454
        $region136: #{tpu_custom_call.1} parent=23 // pred_fallthru
          _
        // Predicated region
        $region137: #{tpu_custom_call.1} parent=23 // pred_check
          %p1467 = pneg %p873
        $region138: #{tpu_custom_call.1} parent=23 // pred_check_branch
          %1469 = sbr.rel (%p1467) target = $region140
        $region139: #{tpu_custom_call.1} parent=23 // pred_region
          %p1470 = scmp.lt.s32.totalorder %s121, 2
          %s1471 = scalar_select %p1470, %s121, 2
          %s1472 = smul.addr %s1471, 8
          %s1473 = smul.addr %s1472, 4
          %s1474 = scalar_lea.vmem %s57, %s1473
        $region140: #{tpu_custom_call.1} parent=23 // pred_fallthru
          _
        // Predicated region
        $region141: #{tpu_custom_call.1} parent=23 // pred_check
          %p1475 = pneg %p899
        $region142: #{tpu_custom_call.1} parent=23 // pred_check_branch
          %1477 = sbr.rel (%p1475) target = $region144
        $region143: #{tpu_custom_call.1} parent=23 // pred_region
          %s1478 = sand.u32 %s113, 1
          %s1479 = scalar_lea.sflag [#allocation40], %s1478
          %s1480 = sand.u32 %s889, 1
          %s1481 = scalar_lea.vmem [#allocation41], %s1480
          %s1483 = ssub.s32 16, 16
          %1484 = vsyncadd %s1479, %s1483
          %s1485 = smul.addr %s121, 16
          %s1486 = scalar_lea.hbm %s59, %s1485
          %s1488 = sshll.u32 %s1481, 4
          %s1489 = int_to_ptr.vmem [resolvable:$true] %s1488
          %1491 = dma.hbm_to_vmem [thread:$0]  %s1486, 16, %s1489, %s1479
        $region144: #{tpu_custom_call.1} parent=23 // pred_fallthru
          _
      $region24: #{tpu_custom_call.1} parent=5 // pred_fallthru
        _
      %p1492 = scmp.le.s32.totalorder 1, %s113
      %p1493 = scmp.lt.s32.totalorder %s113, 7
      %p1494 = pnand %p1492, %p1493
      %p1495 = pneg %p1494
      // Predicated region
      $region145: #{tpu_custom_call.1} parent=5 // pred_check
        _
      $region146: #{tpu_custom_call.1} parent=5 // pred_check_branch
        %1497 = sbr.rel (%p1494) target = $region148
      $region147: #{tpu_custom_call.1} parent=5 // pred_region
        %s1498 = ssub.s32 %s113, 1
        %s1499 = sand.u32 %s138, 1
        %s1500 = scalar_lea.sflag [#allocation4], %s1499
        %s1501 = sand.u32 %s138, 1
        %s1502 = smul.addr %s1501, 8
        %s1503 = scalar_lea.vmem [#allocation3], %s1502
        // Predicated region
        $region149: #{tpu_custom_call.1} parent=147 // pred_check
          %p1504 = pneg %p151
        $region150: #{tpu_custom_call.1} parent=147 // pred_check_branch
          %1506 = sbr.rel (%p1504) target = $region152
        $region151: #{tpu_custom_call.1} parent=147 // pred_region
          %1507 = dma.done %s1500, 128
        $region152: #{tpu_custom_call.1} parent=147 // pred_fallthru
          _
        %s1508 = sand.u32 %s118, 1
        %s1509 = scalar_lea.sflag [#allocation7], %s1508
        %s1510 = sand.u32 %s164, 1
        %s1511 = smul.addr %s1510, 8
        %s1512 = scalar_lea.vmem [#allocation6], %s1511
        // Predicated region
        $region153: #{tpu_custom_call.1} parent=147 // pred_check
          %p1513 = pneg %p177
        $region154: #{tpu_custom_call.1} parent=147 // pred_check_branch
          %1515 = sbr.rel (%p1513) target = $region156
        $region155: #{tpu_custom_call.1} parent=147 // pred_region
          %1516 = dma.done %s1509, 128
        $region156: #{tpu_custom_call.1} parent=147 // pred_fallthru
          _
        %s1517 = sand.u32 %s118, 1
        %s1518 = scalar_lea.sflag [#allocation7], %s1517
        %s1519 = sand.u32 %s190, 1
        %s1520 = smul.addr %s1519, 8
        %s1521 = scalar_lea.vmem [#allocation8], %s1520
        // Predicated region
        $region157: #{tpu_custom_call.1} parent=147 // pred_check
          %p1522 = pneg %p203
        $region158: #{tpu_custom_call.1} parent=147 // pred_check_branch
          %1524 = sbr.rel (%p1522) target = $region160
        $region159: #{tpu_custom_call.1} parent=147 // pred_region
          %1525 = dma.done %s1518, 128
        $region160: #{tpu_custom_call.1} parent=147 // pred_fallthru
          _
        %s1526 = sand.u32 %s118, 1
        %s1527 = scalar_lea.sflag [#allocation10], %s1526
        %s1528 = sand.u32 %s216, 1
        %s1529 = smul.addr %s1528, 8
        %s1530 = scalar_lea.vmem [#allocation9], %s1529
        // Predicated region
        $region161: #{tpu_custom_call.1} parent=147 // pred_check
          %p1531 = pneg %p229
        $region162: #{tpu_custom_call.1} parent=147 // pred_check_branch
          %1533 = sbr.rel (%p1531) target = $region164
        $region163: #{tpu_custom_call.1} parent=147 // pred_region
          %1534 = dma.done %s1527, 128
        $region164: #{tpu_custom_call.1} parent=147 // pred_fallthru
          _
        %s1535 = sand.u32 %s118, 1
        %s1536 = scalar_lea.sflag [#allocation10], %s1535
        %s1537 = sand.u32 %s346, 1
        %s1538 = scalar_lea.vmem [#allocation11], %s1537
        // Predicated region
        $region165: #{tpu_custom_call.1} parent=147 // pred_check
          %p1539 = pneg %p359
        $region166: #{tpu_custom_call.1} parent=147 // pred_check_branch
          %1541 = sbr.rel (%p1539) target = $region168
        $region167: #{tpu_custom_call.1} parent=147 // pred_region
          %1542 = dma.done %s1536, 16
        $region168: #{tpu_custom_call.1} parent=147 // pred_fallthru
          _
        %s1543 = sand.u32 %s118, 1
        %s1544 = scalar_lea.sflag [#allocation13], %s1543
        %s1545 = sand.u32 %s372, 1
        %s1546 = scalar_lea.vmem [#allocation12], %s1545
        // Predicated region
        $region169: #{tpu_custom_call.1} parent=147 // pred_check
          %p1547 = pneg %p385
        $region170: #{tpu_custom_call.1} parent=147 // pred_check_branch
          %1549 = sbr.rel (%p1547) target = $region172
        $region171: #{tpu_custom_call.1} parent=147 // pred_region
          %1550 = dma.done %s1544, 16
        $region172: #{tpu_custom_call.1} parent=147 // pred_fallthru
          _
        %s1551 = sand.u32 %s118, 1
        %s1552 = scalar_lea.sflag [#allocation13], %s1551
        %s1553 = sand.u32 %s398, 1
        %s1554 = smul.addr %s1553, 16
        %s1555 = scalar_lea.vmem [#allocation14], %s1554
        // Predicated region
        $region173: #{tpu_custom_call.1} parent=147 // pred_check
          %p1556 = pneg %p411
        $region174: #{tpu_custom_call.1} parent=147 // pred_check_branch
          %1558 = sbr.rel (%p1556) target = $region176
        $region175: #{tpu_custom_call.1} parent=147 // pred_region
          %1559 = dma.done %s1552, 256
        $region176: #{tpu_custom_call.1} parent=147 // pred_fallthru
          _
        %s1560 = sand.u32 %s118, 1
        %s1561 = scalar_lea.sflag [#allocation16], %s1560
        %s1562 = sand.u32 %s424, 1
        %s1563 = scalar_lea.vmem [#allocation15], %s1562
        // Predicated region
        $region177: #{tpu_custom_call.1} parent=147 // pred_check
          %p1564 = pneg %p437
        $region178: #{tpu_custom_call.1} parent=147 // pred_check_branch
          %1566 = sbr.rel (%p1564) target = $region180
        $region179: #{tpu_custom_call.1} parent=147 // pred_region
          %1567 = dma.done %s1561, 16
        $region180: #{tpu_custom_call.1} parent=147 // pred_fallthru
          _
        %s1568 = sand.u32 %s118, 1
        %s1569 = scalar_lea.sflag [#allocation16], %s1568
        %s1570 = sand.u32 %s450, 1
        %s1571 = smul.addr %s1570, 16
        %s1572 = scalar_lea.vmem [#allocation17], %s1571
        // Predicated region
        $region181: #{tpu_custom_call.1} parent=147 // pred_check
          %p1573 = pneg %p463
        $region182: #{tpu_custom_call.1} parent=147 // pred_check_branch
          %1575 = sbr.rel (%p1573) target = $region184
        $region183: #{tpu_custom_call.1} parent=147 // pred_region
          %1576 = dma.done %s1569, 256
        $region184: #{tpu_custom_call.1} parent=147 // pred_fallthru
          _
        %s1577 = sand.u32 %s118, 1
        %s1578 = scalar_lea.sflag [#allocation19], %s1577
        %s1579 = sand.u32 %s476, 1
        %s1580 = smul.addr %s1579, 16
        %s1581 = scalar_lea.vmem [#allocation18], %s1580
        // Predicated region
        $region185: #{tpu_custom_call.1} parent=147 // pred_check
          %p1582 = pneg %p489
        $region186: #{tpu_custom_call.1} parent=147 // pred_check_branch
          %1584 = sbr.rel (%p1582) target = $region188
        $region187: #{tpu_custom_call.1} parent=147 // pred_region
          %1585 = dma.done %s1578, 256
        $region188: #{tpu_custom_call.1} parent=147 // pred_fallthru
          _
        %s1586 = sand.u32 %s118, 1
        %s1587 = scalar_lea.sflag [#allocation19], %s1586
        %s1588 = sand.u32 %s502, 1
        %s1589 = smul.addr %s1588, 16
        %s1590 = scalar_lea.vmem [#allocation20], %s1589
        // Predicated region
        $region189: #{tpu_custom_call.1} parent=147 // pred_check
          %p1591 = pneg %p515
        $region190: #{tpu_custom_call.1} parent=147 // pred_check_branch
          %1593 = sbr.rel (%p1591) target = $region192
        $region191: #{tpu_custom_call.1} parent=147 // pred_region
          %1594 = dma.done %s1587, 256
        $region192: #{tpu_custom_call.1} parent=147 // pred_fallthru
          _
        %s1595 = sand.u32 %s118, 1
        %s1596 = scalar_lea.sflag [#allocation22], %s1595
        %s1597 = sand.u32 %s528, 1
        %s1598 = scalar_lea.vmem [#allocation21], %s1597
        // Predicated region
        $region193: #{tpu_custom_call.1} parent=147 // pred_check
          %p1599 = pneg %p541
        $region194: #{tpu_custom_call.1} parent=147 // pred_check_branch
          %1601 = sbr.rel (%p1599) target = $region196
        $region195: #{tpu_custom_call.1} parent=147 // pred_region
          %1602 = dma.done %s1596, 16
        $region196: #{tpu_custom_call.1} parent=147 // pred_fallthru
          _
        %s1603 = sand.u32 %s118, 1
        %s1604 = scalar_lea.sflag [#allocation22], %s1603
        %s1605 = sand.u32 %s554, 1
        %s1606 = scalar_lea.vmem [#allocation23], %s1605
        // Predicated region
        $region197: #{tpu_custom_call.1} parent=147 // pred_check
          %p1607 = pneg %p567
        $region198: #{tpu_custom_call.1} parent=147 // pred_check_branch
          %1609 = sbr.rel (%p1607) target = $region200
        $region199: #{tpu_custom_call.1} parent=147 // pred_region
          %1610 = dma.done %s1604, 16
        $region200: #{tpu_custom_call.1} parent=147 // pred_fallthru
          _
        %s1611 = sand.u32 %s118, 1
        %s1612 = scalar_lea.sflag [#allocation25], %s1611
        %s1613 = sand.u32 %s580, 1
        %s1614 = scalar_lea.vmem [#allocation24], %s1613
        // Predicated region
        $region201: #{tpu_custom_call.1} parent=147 // pred_check
          %p1615 = pneg %p593
        $region202: #{tpu_custom_call.1} parent=147 // pred_check_branch
          %1617 = sbr.rel (%p1615) target = $region204
        $region203: #{tpu_custom_call.1} parent=147 // pred_region
          %1618 = dma.done %s1612, 16
        $region204: #{tpu_custom_call.1} parent=147 // pred_fallthru
          _
        %s1619 = sand.u32 %s118, 1
        %s1620 = scalar_lea.sflag [#allocation25], %s1619
        %s1621 = sand.u32 %s606, 1
        %s1622 = smul.addr %s1621, 16
        %s1623 = scalar_lea.vmem [#allocation26], %s1622
        // Predicated region
        $region205: #{tpu_custom_call.1} parent=147 // pred_check
          %p1624 = pneg %p619
        $region206: #{tpu_custom_call.1} parent=147 // pred_check_branch
          %1626 = sbr.rel (%p1624) target = $region208
        $region207: #{tpu_custom_call.1} parent=147 // pred_region
          %1627 = dma.done %s1620, 256
        $region208: #{tpu_custom_call.1} parent=147 // pred_fallthru
          _
        %s1628 = sand.u32 %s118, 1
        %s1629 = scalar_lea.sflag [#allocation28], %s1628
        %s1630 = sand.u32 %s632, 1
        %s1631 = scalar_lea.vmem [#allocation27], %s1630
        // Predicated region
        $region209: #{tpu_custom_call.1} parent=147 // pred_check
          %p1632 = pneg %p645
        $region210: #{tpu_custom_call.1} parent=147 // pred_check_branch
          %1634 = sbr.rel (%p1632) target = $region212
        $region211: #{tpu_custom_call.1} parent=147 // pred_region
          %1635 = dma.done %s1629, 16
        $region212: #{tpu_custom_call.1} parent=147 // pred_fallthru
          _
        %s1636 = sand.u32 %s118, 1
        %s1637 = scalar_lea.sflag [#allocation28], %s1636
        %s1638 = sand.u32 %s658, 1
        %s1639 = scalar_lea.vmem [#allocation29], %s1638
        // Predicated region
        $region213: #{tpu_custom_call.1} parent=147 // pred_check
          %p1640 = pneg %p671
        $region214: #{tpu_custom_call.1} parent=147 // pred_check_branch
          %1642 = sbr.rel (%p1640) target = $region216
        $region215: #{tpu_custom_call.1} parent=147 // pred_region
          %1643 = dma.done %s1637, 16
        $region216: #{tpu_custom_call.1} parent=147 // pred_fallthru
          _
        %s1644 = sand.u32 %s118, 1
        %s1645 = scalar_lea.sflag [#allocation31], %s1644
        %s1646 = sand.u32 %s684, 1
        %s1647 = scalar_lea.vmem [#allocation30], %s1646
        // Predicated region
        $region217: #{tpu_custom_call.1} parent=147 // pred_check
          %p1648 = pneg %p697
        $region218: #{tpu_custom_call.1} parent=147 // pred_check_branch
          %1650 = sbr.rel (%p1648) target = $region220
        $region219: #{tpu_custom_call.1} parent=147 // pred_region
          %1651 = dma.done %s1645, 16
        $region220: #{tpu_custom_call.1} parent=147 // pred_fallthru
          _
        %s1652 = sand.u32 %s118, 1
        %s1653 = scalar_lea.sflag [#allocation31], %s1652
        %s1654 = sand.u32 %s710, 1
        %s1655 = scalar_lea.vmem [#allocation32], %s1654
        // Predicated region
        $region221: #{tpu_custom_call.1} parent=147 // pred_check
          %p1656 = pneg %p723
        $region222: #{tpu_custom_call.1} parent=147 // pred_check_branch
          %1658 = sbr.rel (%p1656) target = $region224
        $region223: #{tpu_custom_call.1} parent=147 // pred_region
          %1659 = dma.done %s1653, 16
        $region224: #{tpu_custom_call.1} parent=147 // pred_fallthru
          _
        %s1660 = sand.u32 %s118, 1
        %s1661 = scalar_lea.sflag [#allocation34], %s1660
        %s1662 = sand.u32 %s736, 1
        %s1663 = scalar_lea.vmem [#allocation33], %s1662
        // Predicated region
        $region225: #{tpu_custom_call.1} parent=147 // pred_check
          %p1664 = pneg %p749
        $region226: #{tpu_custom_call.1} parent=147 // pred_check_branch
          %1666 = sbr.rel (%p1664) target = $region228
        $region227: #{tpu_custom_call.1} parent=147 // pred_region
          %1667 = dma.done %s1661, 16
        $region228: #{tpu_custom_call.1} parent=147 // pred_fallthru
          _
        %s1668 = sand.u32 %s118, 1
        %s1669 = scalar_lea.sflag [#allocation34], %s1668
        %s1670 = sand.u32 %s762, 1
        %s1671 = scalar_lea.vmem [#allocation35], %s1670
        // Predicated region
        $region229: #{tpu_custom_call.1} parent=147 // pred_check
          %p1672 = pneg %p775
        $region230: #{tpu_custom_call.1} parent=147 // pred_check_branch
          %1674 = sbr.rel (%p1672) target = $region232
        $region231: #{tpu_custom_call.1} parent=147 // pred_region
          %1675 = dma.done %s1669, 16
        $region232: #{tpu_custom_call.1} parent=147 // pred_fallthru
          _
        %s1676 = sand.u32 %s118, 1
        %s1677 = scalar_lea.sflag [#allocation37], %s1676
        %s1678 = sand.u32 %s788, 1
        %s1679 = scalar_lea.vmem [#allocation36], %s1678
        // Predicated region
        $region233: #{tpu_custom_call.1} parent=147 // pred_check
          %p1680 = pneg %p801
        $region234: #{tpu_custom_call.1} parent=147 // pred_check_branch
          %1682 = sbr.rel (%p1680) target = $region236
        $region235: #{tpu_custom_call.1} parent=147 // pred_region
          %1683 = dma.done %s1677, 16
        $region236: #{tpu_custom_call.1} parent=147 // pred_fallthru
          _
        %s1684 = sand.u32 %s118, 1
        %s1685 = scalar_lea.sflag [#allocation37], %s1684
        %s1686 = sand.u32 %s814, 1
        %s1687 = smul.addr %s1686, 16
        %s1688 = scalar_lea.vmem [#allocation38], %s1687
        // Predicated region
        $region237: #{tpu_custom_call.1} parent=147 // pred_check
          %p1689 = pneg %p827
        $region238: #{tpu_custom_call.1} parent=147 // pred_check_branch
          %1691 = sbr.rel (%p1689) target = $region240
        $region239: #{tpu_custom_call.1} parent=147 // pred_region
          %1692 = dma.done %s1685, 256
        $region240: #{tpu_custom_call.1} parent=147 // pred_fallthru
          _
        %s1693 = sand.u32 %s118, 1
        %s1694 = scalar_lea.sflag [#allocation40], %s1693
        %s1695 = sand.u32 %s840, 1
        %s1696 = scalar_lea.vmem [#allocation39], %s1695
        // Predicated region
        $region241: #{tpu_custom_call.1} parent=147 // pred_check
          %p1697 = pneg %p853
        $region242: #{tpu_custom_call.1} parent=147 // pred_check_branch
          %1699 = sbr.rel (%p1697) target = $region244
        $region243: #{tpu_custom_call.1} parent=147 // pred_region
          %1700 = dma.done %s1694, 16
        $region244: #{tpu_custom_call.1} parent=147 // pred_fallthru
          _
        %s1701 = sand.u32 %s118, 1
        %s1702 = scalar_lea.sflag [#allocation40], %s1701
        %s1703 = sand.u32 %s892, 1
        %s1704 = scalar_lea.vmem [#allocation41], %s1703
        // Predicated region
        $region245: #{tpu_custom_call.1} parent=147 // pred_check
          %p1705 = pneg %p905
        $region246: #{tpu_custom_call.1} parent=147 // pred_check_branch
          %1707 = sbr.rel (%p1705) target = $region248
        $region247: #{tpu_custom_call.1} parent=147 // pred_region
          %1708 = dma.done %s1702, 16
        $region248: #{tpu_custom_call.1} parent=147 // pred_fallthru
          _
        %s1709 = sand.u32 %s138, 1
        %s1710 = scalar_lea.sflag [#allocation4], %s1709
        %s1711 = sand.u32 %s138, 1
        %s1712 = smul.addr %s1711, 8
        %s1713 = scalar_lea.vmem [#allocation3], %s1712
        %p1714 = pneg %p151
        %p1715 = pneg %p148
        %s1716 = sand.u32 %s118, 1
        %s1717 = scalar_lea.sflag [#allocation7], %s1716
        %s1718 = sand.u32 %s164, 1
        %s1719 = smul.addr %s1718, 8
        %s1720 = scalar_lea.vmem [#allocation6], %s1719
        %p1721 = pneg %p177
        %p1722 = pneg %p174
        %s1723 = sand.u32 %s118, 1
        %s1724 = scalar_lea.sflag [#allocation7], %s1723
        %s1725 = sand.u32 %s190, 1
        %s1726 = smul.addr %s1725, 8
        %s1727 = scalar_lea.vmem [#allocation8], %s1726
        %p1728 = pneg %p203
        %p1729 = pneg %p200
        %s1730 = sand.u32 %s118, 1
        %s1731 = scalar_lea.sflag [#allocation10], %s1730
        %s1732 = sand.u32 %s216, 1
        %s1733 = smul.addr %s1732, 8
        %s1734 = scalar_lea.vmem [#allocation9], %s1733
        %p1735 = pneg %p229
        %p1736 = pneg %p226
        %p1737 = scmp.lt.s32.totalorder %s123, 2
        %s1738 = scalar_select %p1737, %s123, 2
        %s1739 = smul.addr %s1738, 4
        %s1740 = smul.addr %s1739, 4
        %s1741 = scalar_lea.vmem %s9, %s1740
        %p1742 = pneg %p255
        %p1743 = pneg %p252
        %p1744 = scmp.lt.s32.totalorder %s123, 2
        %s1745 = scalar_select %p1744, %s123, 2
        %s1746 = smul.addr %s1745, 4
        %s1747 = smul.addr %s1746, 4
        %s1748 = scalar_lea.vmem %s11, %s1747
        %p1749 = pneg %p281
        %p1750 = pneg %p278
        %p1751 = scmp.lt.s32.totalorder %s123, 2
        %s1752 = scalar_select %p1751, %s123, 2
        %s1753 = smul.addr %s1752, 4
        %s1754 = smul.addr %s1753, 4
        %s1755 = scalar_lea.vmem %s13, %s1754
        %p1756 = pneg %p307
        %p1757 = pneg %p304
        %p1758 = scmp.lt.s32.totalorder %s123, 2
        %s1759 = scalar_select %p1758, %s123, 2
        %s1760 = scalar_lea.vmem %s15, %s1759
        %p1761 = pneg %p333
        %p1762 = pneg %p330
        %s1763 = sand.u32 %s118, 1
        %s1764 = scalar_lea.sflag [#allocation10], %s1763
        %s1765 = sand.u32 %s346, 1
        %s1766 = scalar_lea.vmem [#allocation11], %s1765
        %p1767 = pneg %p359
        %p1768 = pneg %p356
        %s1769 = sand.u32 %s118, 1
        %s1770 = scalar_lea.sflag [#allocation13], %s1769
        %s1771 = sand.u32 %s372, 1
        %s1772 = scalar_lea.vmem [#allocation12], %s1771
        %p1773 = pneg %p385
        %p1774 = pneg %p382
        %s1775 = sand.u32 %s118, 1
        %s1776 = scalar_lea.sflag [#allocation13], %s1775
        %s1777 = sand.u32 %s398, 1
        %s1778 = smul.addr %s1777, 16
        %s1779 = scalar_lea.vmem [#allocation14], %s1778
        %p1780 = pneg %p411
        %p1781 = pneg %p408
        %s1782 = sand.u32 %s118, 1
        %s1783 = scalar_lea.sflag [#allocation16], %s1782
        %s1784 = sand.u32 %s424, 1
        %s1785 = scalar_lea.vmem [#allocation15], %s1784
        %p1786 = pneg %p437
        %p1787 = pneg %p434
        %s1788 = sand.u32 %s118, 1
        %s1789 = scalar_lea.sflag [#allocation16], %s1788
        %s1790 = sand.u32 %s450, 1
        %s1791 = smul.addr %s1790, 16
        %s1792 = scalar_lea.vmem [#allocation17], %s1791
        %p1793 = pneg %p463
        %p1794 = pneg %p460
        %s1795 = sand.u32 %s118, 1
        %s1796 = scalar_lea.sflag [#allocation19], %s1795
        %s1797 = sand.u32 %s476, 1
        %s1798 = smul.addr %s1797, 16
        %s1799 = scalar_lea.vmem [#allocation18], %s1798
        %p1800 = pneg %p489
        %p1801 = pneg %p486
        %s1802 = sand.u32 %s118, 1
        %s1803 = scalar_lea.sflag [#allocation19], %s1802
        %s1804 = sand.u32 %s502, 1
        %s1805 = smul.addr %s1804, 16
        %s1806 = scalar_lea.vmem [#allocation20], %s1805
        %p1807 = pneg %p515
        %p1808 = pneg %p512
        %s1809 = sand.u32 %s118, 1
        %s1810 = scalar_lea.sflag [#allocation22], %s1809
        %s1811 = sand.u32 %s528, 1
        %s1812 = scalar_lea.vmem [#allocation21], %s1811
        %p1813 = pneg %p541
        %p1814 = pneg %p538
        %s1815 = sand.u32 %s118, 1
        %s1816 = scalar_lea.sflag [#allocation22], %s1815
        %s1817 = sand.u32 %s554, 1
        %s1818 = scalar_lea.vmem [#allocation23], %s1817
        %p1819 = pneg %p567
        %p1820 = pneg %p564
        %s1821 = sand.u32 %s118, 1
        %s1822 = scalar_lea.sflag [#allocation25], %s1821
        %s1823 = sand.u32 %s580, 1
        %s1824 = scalar_lea.vmem [#allocation24], %s1823
        %p1825 = pneg %p593
        %p1826 = pneg %p590
        %s1827 = sand.u32 %s118, 1
        %s1828 = scalar_lea.sflag [#allocation25], %s1827
        %s1829 = sand.u32 %s606, 1
        %s1830 = smul.addr %s1829, 16
        %s1831 = scalar_lea.vmem [#allocation26], %s1830
        %p1832 = pneg %p619
        %p1833 = pneg %p616
        %s1834 = sand.u32 %s118, 1
        %s1835 = scalar_lea.sflag [#allocation28], %s1834
        %s1836 = sand.u32 %s632, 1
        %s1837 = scalar_lea.vmem [#allocation27], %s1836
        %p1838 = pneg %p645
        %p1839 = pneg %p642
        %s1840 = sand.u32 %s118, 1
        %s1841 = scalar_lea.sflag [#allocation28], %s1840
        %s1842 = sand.u32 %s658, 1
        %s1843 = scalar_lea.vmem [#allocation29], %s1842
        %p1844 = pneg %p671
        %p1845 = pneg %p668
        %s1846 = sand.u32 %s118, 1
        %s1847 = scalar_lea.sflag [#allocation31], %s1846
        %s1848 = sand.u32 %s684, 1
        %s1849 = scalar_lea.vmem [#allocation30], %s1848
        %p1850 = pneg %p697
        %p1851 = pneg %p694
        %s1852 = sand.u32 %s118, 1
        %s1853 = scalar_lea.sflag [#allocation31], %s1852
        %s1854 = sand.u32 %s710, 1
        %s1855 = scalar_lea.vmem [#allocation32], %s1854
        %p1856 = pneg %p723
        %p1857 = pneg %p720
        %s1858 = sand.u32 %s118, 1
        %s1859 = scalar_lea.sflag [#allocation34], %s1858
        %s1860 = sand.u32 %s736, 1
        %s1861 = scalar_lea.vmem [#allocation33], %s1860
        %p1862 = pneg %p749
        %p1863 = pneg %p746
        %s1864 = sand.u32 %s118, 1
        %s1865 = scalar_lea.sflag [#allocation34], %s1864
        %s1866 = sand.u32 %s762, 1
        %s1867 = scalar_lea.vmem [#allocation35], %s1866
        %p1868 = pneg %p775
        %p1869 = pneg %p772
        %s1870 = sand.u32 %s118, 1
        %s1871 = scalar_lea.sflag [#allocation37], %s1870
        %s1872 = sand.u32 %s788, 1
        %s1873 = scalar_lea.vmem [#allocation36], %s1872
        %p1874 = pneg %p801
        %p1875 = pneg %p798
        %s1876 = sand.u32 %s118, 1
        %s1877 = scalar_lea.sflag [#allocation37], %s1876
        %s1878 = sand.u32 %s814, 1
        %s1879 = smul.addr %s1878, 16
        %s1880 = scalar_lea.vmem [#allocation38], %s1879
        %p1881 = pneg %p827
        %p1882 = pneg %p824
        %s1883 = sand.u32 %s118, 1
        %s1884 = scalar_lea.sflag [#allocation40], %s1883
        %s1885 = sand.u32 %s840, 1
        %s1886 = scalar_lea.vmem [#allocation39], %s1885
        %p1887 = pneg %p853
        %p1888 = pneg %p850
        %p1889 = scmp.lt.s32.totalorder %s123, 2
        %s1890 = scalar_select %p1889, %s123, 2
        %s1891 = smul.addr %s1890, 8
        %s1892 = smul.addr %s1891, 4
        %s1893 = scalar_lea.vmem %s57, %s1892
        %p1894 = pneg %p879
        %p1895 = pneg %p876
        %s1896 = sand.u32 %s118, 1
        %s1897 = scalar_lea.sflag [#allocation40], %s1896
        %s1898 = sand.u32 %s892, 1
        %s1899 = scalar_lea.vmem [#allocation41], %s1898
        %p1900 = pneg %p905
        %p1901 = pneg %p902
        %p1902 = pneg %p926
        %p1903 = pneg %p923
        %p1904 = pneg %p947
        %p1905 = pneg %p944
        %p1906 = pneg %p973
        %p1907 = pneg %p970
        %s1908 = sand.u32 %s960, 1
        %s1909 = scalar_lea.sflag [#allocation5], %s1908
        %s1910 = sand.u32 %s960, 1
        %s1911 = smul.addr %s1910, 8
        %s1912 = scalar_lea.vmem [#allocation42], %s1911
        %p1913 = scmp.lt.s32.totalorder %s123, 2
        %s1914 = scalar_select %p1913, %s123, 2
        %s1915 = smul.addr %s1914, 4
        %s1916 = smul.addr %s1915, 4
        %s1917 = scalar_lea.vmem %s9, %s1916
        %p1918 = scmp.lt.s32.totalorder %s123, 2
        %s1919 = scalar_select %p1918, %s123, 2
        %s1920 = smul.addr %s1919, 4
        %s1921 = smul.addr %s1920, 4
        %s1922 = scalar_lea.vmem %s11, %s1921
        %p1923 = scmp.lt.s32.totalorder %s123, 2
        %s1924 = scalar_select %p1923, %s123, 2
        %s1925 = smul.addr %s1924, 4
        %s1926 = smul.addr %s1925, 4
        %s1927 = scalar_lea.vmem %s13, %s1926
        %p1928 = scmp.lt.s32.totalorder %s123, 2
        %s1929 = scalar_select %p1928, %s123, 2
        %s1930 = scalar_lea.vmem %s15, %s1929
        %p1931 = scmp.lt.s32.totalorder %s123, 2
        %s1932 = scalar_select %p1931, %s123, 2
        %s1933 = smul.addr %s1932, 8
        %s1934 = smul.addr %s1933, 4
        %s1935 = scalar_lea.vmem %s57, %s1934
        %p1937 = scmp.eq.s32.totalorder %s123, 0
        // Predicated region
        $region249: #{tpu_custom_call.1} parent=147 // pred_check
          %p1938 = pneg %p1937
        $region250: #{tpu_custom_call.1} parent=147 // pred_check_branch
          %1940 = sbr.rel (%p1938) target = $region252
        $region251: #{tpu_custom_call.1} parent=147 // pred_region
          %v1941 = vld [vmem:[%s1503] sm:$0xff]
          %vm1942 = vcmask 261120
          %1943 = vst.msk [vmem:[#allocation2] sm:$0xff] %vm1942, %v1941
        $region252: #{tpu_custom_call.1} parent=147 // pred_fallthru
          _
        %v1944 = vld [vmem:[#allocation2] sm:$0xff]
        %v1945 = vld [vmem:[%s1512] sm:$0xf]
        %v1946 = vld [vmem:[%s1512 + $0x4] sm:$0xf]
        %v1947 = vpack.c.bf16 %v1944, %v1944
        %v1948 = vld [vmem:[%s1917] sm:$0xf]
        %v1949 = vld [vmem:[%s1917 + $0x4] sm:$0xf]
        %v1950 = vld [vmem:[%s1917 + $0x8] sm:$0xf]
        %v1951 = vld [vmem:[%s1917 + $0xc] sm:$0xf]
        %v1952 = vld [vmem:[%s1930] sm:$0x1]
        %v1954 = vlaneseq
        %v1955 = vshrl.u32 %v1954, 7
        %v1956 = vsub.s32 0, %v1955
        %v1957 = vrot.slane %v1952, %v1956
        %v1963 = vunpack.c.l.b16 %v1948
        %v1964 = vunpack.c.l.b16 %v1949
        %v1965 = vunpack.c.l.b16 %v1950
        %v1966 = vunpack.c.l.b16 %v1951
        %v1967 = vpack.c.b16 %v1964, %v1963
        %v1968 = vpack.c.b16 %v1966, %v1965
        %vm1971 = vcmask 261120
        %v1973 = vsel %vm1971, %v1947, 0
        %1975 = vmatprep.subr.bf16.mxu0 0
        %1976 = vmatpush1.bf16.msra.mxu0 0
        %1977 = vmatprep.subr.bf16.mxu0 0
        %1978 = vmatpush1.bf16.msra.mxu0 0
        %1979 = vmatprep.subr.bf16.mxu0 0
        %1980 = vmatpush1.bf16.msra.mxu0 0
        %1981 = vmatprep.subr.bf16.mxu0 0
        %1982 = vmatpush1.bf16.msra.mxu0 0
        %1983 = vmatprep.subr.bf16.mxu0 0
        %1984 = vmatpush1.bf16.msra.mxu0 0
        %1985 = vmatprep.subr.bf16.mxu0 0
        %1986 = vmatpush1.bf16.msra.mxu0 0
        %1987 = vmatprep.subr.bf16.mxu0 0
        %1988 = vmatpush1.bf16.msra.mxu0 %v1968
        %1989 = vmatprep.subr.bf16.mxu0 0
        %1990 = vmatpush1.bf16.msra.mxu0 %v1967
        %1991 = vmatprep.subr.bf16.mxu0 0
        %1992 = vmatpush2.bf16.msra.mxu0 0
        %1993 = vmatprep.subr.bf16.mxu0 0
        %1994 = vmatpush2.bf16.msra.mxu0 0
        %1995 = vmatprep.subr.bf16.mxu0 0
        %1996 = vmatpush2.bf16.msra.mxu0 0
        %1997 = vmatprep.subr.bf16.mxu0 0
        %1998 = vmatpush2.bf16.msra.mxu0 0
        %1999 = vmatprep.subr.bf16.mxu0 0
        %2000 = vmatpush2.bf16.msra.mxu0 0
        %2001 = vmatprep.subr.bf16.mxu0 0
        %2002 = vmatpush2.bf16.msra.mxu0 0
        %2003 = vmatprep.subr.bf16.mxu0 0
        %2004 = vmatpush2.bf16.msra.mxu0 0
        %2005 = vmatprep.subr.bf16.mxu0 0
        %2006 = vmatpush2.bf16.msra.mxu0 0
        %2007 = vmatprep.mubr.bf16.mxu0 0
        %2008 = vmatmul.mubr.bf16.gmra.mxu0 %v1973
        %v2009 = vpop.f32.mrf.mxu0
        %v2010 = vadd.f32 %v1957, %v2009
        %v2011 = vpop.f32.mrf.mxu0
        %v2012 = vpop.f32.mrf.mxu0
        %v2013 = vpop.f32.mrf.mxu0
        %2014 = vdwg.mxu0
        %v2015 = vld [vmem:[%s1922] sm:$0xf]
        %v2016 = vld [vmem:[%s1922 + $0x4] sm:$0xf]
        %v2017 = vld [vmem:[%s1922 + $0x8] sm:$0xf]
        %v2018 = vld [vmem:[%s1922 + $0xc] sm:$0xf]
        %v2019 = vld [vmem:[%s1538] sm:$0x1]
        %v2021 = vlaneseq
        %v2022 = vshrl.u32 %v2021, 7
        %v2023 = vsub.s32 0, %v2022
        %v2024 = vrot.slane %v2019, %v2023
        %v2030 = vunpack.c.l.b16 %v2015
        %v2031 = vunpack.c.l.b16 %v2016
        %v2032 = vunpack.c.l.b16 %v2017
        %v2033 = vunpack.c.l.b16 %v2018
        %v2034 = vpack.c.b16 %v2031, %v2030
        %v2035 = vpack.c.b16 %v2033, %v2032
        %2038 = vmatprep.subr.bf16.mxu0 0
        %2039 = vmatpush1.bf16.msra.mxu0 0
        %2040 = vmatprep.subr.bf16.mxu0 0
        %2041 = vmatpush1.bf16.msra.mxu0 0
        %2042 = vmatprep.subr.bf16.mxu0 0
        %2043 = vmatpush1.bf16.msra.mxu0 0
        %2044 = vmatprep.subr.bf16.mxu0 0
        %2045 = vmatpush1.bf16.msra.mxu0 0
        %2046 = vmatprep.subr.bf16.mxu0 0
        %2047 = vmatpush1.bf16.msra.mxu0 0
        %2048 = vmatprep.subr.bf16.mxu0 0
        %2049 = vmatpush1.bf16.msra.mxu0 0
        %2050 = vmatprep.subr.bf16.mxu0 0
        %2051 = vmatpush1.bf16.msra.mxu0 %v2035
        %2052 = vmatprep.subr.bf16.mxu0 0
        %2053 = vmatpush1.bf16.msra.mxu0 %v2034
        %2054 = vmatprep.subr.bf16.mxu0 0
        %2055 = vmatpush2.bf16.msra.mxu0 0
        %2056 = vmatprep.subr.bf16.mxu0 0
        %2057 = vmatpush2.bf16.msra.mxu0 0
        %2058 = vmatprep.subr.bf16.mxu0 0
        %2059 = vmatpush2.bf16.msra.mxu0 0
        %2060 = vmatprep.subr.bf16.mxu0 0
        %2061 = vmatpush2.bf16.msra.mxu0 0
        %2062 = vmatprep.subr.bf16.mxu0 0
        %2063 = vmatpush2.bf16.msra.mxu0 0
        %2064 = vmatprep.subr.bf16.mxu0 0
        %2065 = vmatpush2.bf16.msra.mxu0 0
        %2066 = vmatprep.subr.bf16.mxu0 0
        %2067 = vmatpush2.bf16.msra.mxu0 0
        %2068 = vmatprep.subr.bf16.mxu0 0
        %2069 = vmatpush2.bf16.msra.mxu0 0
        %2070 = vmatprep.mubr.bf16.mxu0 0
        %2071 = vmatmul.mubr.bf16.gmra.mxu0 %v1973
        %v2072 = vpop.f32.mrf.mxu0
        %v2073 = vadd.f32 %v2024, %v2072
        %v2074 = vpop.f32.mrf.mxu0
        %v2075 = vpop.f32.mrf.mxu0
        %v2076 = vpop.f32.mrf.mxu0
        %2077 = vdwg.mxu0
        %v2078 = vld [vmem:[%s1927] sm:$0xf]
        %v2079 = vld [vmem:[%s1927 + $0x4] sm:$0xf]
        %v2080 = vld [vmem:[%s1927 + $0x8] sm:$0xf]
        %v2081 = vld [vmem:[%s1927 + $0xc] sm:$0xf]
        %v2082 = vld [vmem:[%s1546] sm:$0x1]
        %v2084 = vlaneseq
        %v2085 = vshrl.u32 %v2084, 7
        %v2086 = vsub.s32 0, %v2085
        %v2087 = vrot.slane %v2082, %v2086
        %v2093 = vunpack.c.l.b16 %v2078
        %v2094 = vunpack.c.l.b16 %v2079
        %v2095 = vunpack.c.l.b16 %v2080
        %v2096 = vunpack.c.l.b16 %v2081
        %v2097 = vpack.c.b16 %v2094, %v2093
        %v2098 = vpack.c.b16 %v2096, %v2095
        %2101 = vmatprep.subr.bf16.mxu0 0
        %2102 = vmatpush1.bf16.msra.mxu0 0
        %2103 = vmatprep.subr.bf16.mxu0 0
        %2104 = vmatpush1.bf16.msra.mxu0 0
        %2105 = vmatprep.subr.bf16.mxu0 0
        %2106 = vmatpush1.bf16.msra.mxu0 0
        %2107 = vmatprep.subr.bf16.mxu0 0
        %2108 = vmatpush1.bf16.msra.mxu0 0
        %2109 = vmatprep.subr.bf16.mxu0 0
        %2110 = vmatpush1.bf16.msra.mxu0 0
        %2111 = vmatprep.subr.bf16.mxu0 0
        %2112 = vmatpush1.bf16.msra.mxu0 0
        %2113 = vmatprep.subr.bf16.mxu0 0
        %2114 = vmatpush1.bf16.msra.mxu0 %v2098
        %2115 = vmatprep.subr.bf16.mxu0 0
        %2116 = vmatpush1.bf16.msra.mxu0 %v2097
        %2117 = vmatprep.subr.bf16.mxu0 0
        %2118 = vmatpush2.bf16.msra.mxu0 0
        %2119 = vmatprep.subr.bf16.mxu0 0
        %2120 = vmatpush2.bf16.msra.mxu0 0
        %2121 = vmatprep.subr.bf16.mxu0 0
        %2122 = vmatpush2.bf16.msra.mxu0 0
        %2123 = vmatprep.subr.bf16.mxu0 0
        %2124 = vmatpush2.bf16.msra.mxu0 0
        %2125 = vmatprep.subr.bf16.mxu0 0
        %2126 = vmatpush2.bf16.msra.mxu0 0
        %2127 = vmatprep.subr.bf16.mxu0 0
        %2128 = vmatpush2.bf16.msra.mxu0 0
        %2129 = vmatprep.subr.bf16.mxu0 0
        %2130 = vmatpush2.bf16.msra.mxu0 0
        %2131 = vmatprep.subr.bf16.mxu0 0
        %2132 = vmatpush2.bf16.msra.mxu0 0
        %2133 = vmatprep.mubr.bf16.mxu0 0
        %2134 = vmatmul.mubr.bf16.gmra.mxu0 %v1973
        %v2135 = vpop.f32.mrf.mxu0
        %v2136 = vadd.f32 %v2087, %v2135
        %v2137 = vpop.f32.mrf.mxu0
        %v2138 = vpop.f32.mrf.mxu0
        %v2139 = vpop.f32.mrf.mxu0
        %2140 = vdwg.mxu0
        %v2141 = vld [vmem:[%s1521] sm:$0xff]
        %2143 = vrot.lane.b32.xlu0 %v2010, 120
        %v2144 = vpop.permute.xlu0 %2143
        %2146 = vrot.lane.b32.xlu0 %v2010, 112
        %v2147 = vpop.permute.xlu0 %2146
        %2149 = vrot.lane.b32.xlu0 %v2010, 104
        %v2150 = vpop.permute.xlu0 %2149
        %v2152 = vcombine.low %v2010, %v2147
        %v2153 = vcombine.high %v2010, %v2147
        %v2155 = vunpack.c.l.s4 1983009808
        %v2156 = vunpack.c.0.s8 %v2155
        %v2157 = vlaneseq
        %v2158 = vshrl.u32 %v2157, 7
        %v2159 = vsub.s32 %v2156, %v2158
        %v2160 = vrot.slane %v2152, %v2159
        %v2162 = vunpack.c.l.s4 1983009808
        %v2163 = vunpack.c.0.s8 %v2162
        %v2164 = vlaneseq
        %v2165 = vshrl.u32 %v2164, 7
        %v2166 = vsub.s32 %v2163, %v2165
        %v2167 = vrot.slane %v2153, %v2166
        %v2168 = vcombine.low %v2144, %v2150
        %v2169 = vcombine.high %v2144, %v2150
        %v2171 = vunpack.c.l.s4 1983009808
        %v2172 = vunpack.c.0.s8 %v2171
        %v2173 = vlaneseq
        %v2174 = vshrl.u32 %v2173, 7
        %v2175 = vsub.s32 %v2172, %v2174
        %v2176 = vrot.slane %v2168, %v2175
        %v2178 = vunpack.c.l.s4 1983009808
        %v2179 = vunpack.c.0.s8 %v2178
        %v2180 = vlaneseq
        %v2181 = vshrl.u32 %v2180, 7
        %v2182 = vsub.s32 %v2179, %v2181
        %v2183 = vrot.slane %v2169, %v2182
        %v2184 = vcombine.low %v2160, %v2176
        %v2185 = vcombine.high %v2160, %v2176
        %v2187 = vunpack.c.l.s4 1934713408
        %v2188 = vunpack.c.0.s8 %v2187
        %v2189 = vlaneseq
        %v2190 = vshrl.u32 %v2189, 7
        %v2191 = vsub.s32 %v2188, %v2190
        %v2192 = vrot.slane %v2184, %v2191
        %v2194 = vunpack.c.l.s4 1934713408
        %v2195 = vunpack.c.0.s8 %v2194
        %v2196 = vlaneseq
        %v2197 = vshrl.u32 %v2196, 7
        %v2198 = vsub.s32 %v2195, %v2197
        %v2199 = vrot.slane %v2185, %v2198
        %v2200 = vcombine.low %v2167, %v2183
        %v2201 = vcombine.high %v2167, %v2183
        %v2203 = vunpack.c.l.s4 1934713408
        %v2204 = vunpack.c.0.s8 %v2203
        %v2205 = vlaneseq
        %v2206 = vshrl.u32 %v2205, 7
        %v2207 = vsub.s32 %v2204, %v2206
        %v2208 = vrot.slane %v2200, %v2207
        %v2210 = vunpack.c.l.s4 1934713408
        %v2211 = vunpack.c.0.s8 %v2210
        %v2212 = vlaneseq
        %v2213 = vshrl.u32 %v2212, 7
        %v2214 = vsub.s32 %v2211, %v2213
        %v2215 = vrot.slane %v2201, %v2214
        %v2216 = vcombine.high %v2192, 0.0
        %v2217 = vcombine.high %v2199, 0.0
        %v2218 = vcombine.high %v2208, 0.0
        %v2219 = vcombine.high %v2215, 0.0
        %v2220 = vpack.c.bf16 %v2192, %v2192
        %v2221 = vpack.c.bf16 %v2216, %v2216
        %v2222 = vpack.c.bf16 %v2199, %v2199
        %v2223 = vpack.c.bf16 %v2217, %v2217
        %v2224 = vpack.c.bf16 %v2208, %v2208
        %v2225 = vpack.c.bf16 %v2218, %v2218
        %v2226 = vpack.c.bf16 %v2215, %v2215
        %v2227 = vpack.c.bf16 %v2219, %v2219
        %2229 = vrot.lane.b32.xlu0 %v2073, 120
        %v2230 = vpop.permute.xlu0 %2229
        %2232 = vrot.lane.b32.xlu0 %v2073, 112
        %v2233 = vpop.permute.xlu0 %2232
        %2235 = vrot.lane.b32.xlu0 %v2073, 104
        %v2236 = vpop.permute.xlu0 %2235
        %v2238 = vcombine.low %v2073, %v2233
        %v2239 = vcombine.high %v2073, %v2233
        %v2241 = vunpack.c.l.s4 1983009808
        %v2242 = vunpack.c.0.s8 %v2241
        %v2243 = vlaneseq
        %v2244 = vshrl.u32 %v2243, 7
        %v2245 = vsub.s32 %v2242, %v2244
        %v2246 = vrot.slane %v2238, %v2245
        %v2248 = vunpack.c.l.s4 1983009808
        %v2249 = vunpack.c.0.s8 %v2248
        %v2250 = vlaneseq
        %v2251 = vshrl.u32 %v2250, 7
        %v2252 = vsub.s32 %v2249, %v2251
        %v2253 = vrot.slane %v2239, %v2252
        %v2254 = vcombine.low %v2230, %v2236
        %v2255 = vcombine.high %v2230, %v2236
        %v2257 = vunpack.c.l.s4 1983009808
        %v2258 = vunpack.c.0.s8 %v2257
        %v2259 = vlaneseq
        %v2260 = vshrl.u32 %v2259, 7
        %v2261 = vsub.s32 %v2258, %v2260
        %v2262 = vrot.slane %v2254, %v2261
        %v2264 = vunpack.c.l.s4 1983009808
        %v2265 = vunpack.c.0.s8 %v2264
        %v2266 = vlaneseq
        %v2267 = vshrl.u32 %v2266, 7
        %v2268 = vsub.s32 %v2265, %v2267
        %v2269 = vrot.slane %v2255, %v2268
        %v2270 = vcombine.low %v2246, %v2262
        %v2271 = vcombine.high %v2246, %v2262
        %v2273 = vunpack.c.l.s4 1934713408
        %v2274 = vunpack.c.0.s8 %v2273
        %v2275 = vlaneseq
        %v2276 = vshrl.u32 %v2275, 7
        %v2277 = vsub.s32 %v2274, %v2276
        %v2278 = vrot.slane %v2270, %v2277
        %v2280 = vunpack.c.l.s4 1934713408
        %v2281 = vunpack.c.0.s8 %v2280
        %v2282 = vlaneseq
        %v2283 = vshrl.u32 %v2282, 7
        %v2284 = vsub.s32 %v2281, %v2283
        %v2285 = vrot.slane %v2271, %v2284
        %v2286 = vcombine.low %v2253, %v2269
        %v2287 = vcombine.high %v2253, %v2269
        %v2289 = vunpack.c.l.s4 1934713408
        %v2290 = vunpack.c.0.s8 %v2289
        %v2291 = vlaneseq
        %v2292 = vshrl.u32 %v2291, 7
        %v2293 = vsub.s32 %v2290, %v2292
        %v2294 = vrot.slane %v2286, %v2293
        %v2296 = vunpack.c.l.s4 1934713408
        %v2297 = vunpack.c.0.s8 %v2296
        %v2298 = vlaneseq
        %v2299 = vshrl.u32 %v2298, 7
        %v2300 = vsub.s32 %v2297, %v2299
        %v2301 = vrot.slane %v2287, %v2300
        %v2302 = vcombine.high %v2278, 0.0
        %v2303 = vcombine.high %v2285, 0.0
        %v2304 = vcombine.high %v2294, 0.0
        %v2305 = vcombine.high %v2301, 0.0
        %v2306 = vpack.c.bf16 %v2278, %v2278
        %v2307 = vpack.c.bf16 %v2302, %v2302
        %v2308 = vpack.c.bf16 %v2285, %v2285
        %v2309 = vpack.c.bf16 %v2303, %v2303
        %v2310 = vpack.c.bf16 %v2294, %v2294
        %v2311 = vpack.c.bf16 %v2304, %v2304
        %v2312 = vpack.c.bf16 %v2301, %v2301
        %v2313 = vpack.c.bf16 %v2305, %v2305
        %2315 = vrot.lane.b32.xlu0 %v2136, 120
        %v2316 = vpop.permute.xlu0 %2315
        %2318 = vrot.lane.b32.xlu0 %v2136, 112
        %v2319 = vpop.permute.xlu0 %2318
        %2321 = vrot.lane.b32.xlu0 %v2136, 104
        %v2322 = vpop.permute.xlu0 %2321
        %v2324 = vcombine.low %v2136, %v2319
        %v2325 = vcombine.high %v2136, %v2319
        %v2327 = vunpack.c.l.s4 1983009808
        %v2328 = vunpack.c.0.s8 %v2327
        %v2329 = vlaneseq
        %v2330 = vshrl.u32 %v2329, 7
        %v2331 = vsub.s32 %v2328, %v2330
        %v2332 = vrot.slane %v2324, %v2331
        %v2334 = vunpack.c.l.s4 1983009808
        %v2335 = vunpack.c.0.s8 %v2334
        %v2336 = vlaneseq
        %v2337 = vshrl.u32 %v2336, 7
        %v2338 = vsub.s32 %v2335, %v2337
        %v2339 = vrot.slane %v2325, %v2338
        %v2340 = vcombine.low %v2316, %v2322
        %v2341 = vcombine.high %v2316, %v2322
        %v2343 = vunpack.c.l.s4 1983009808
        %v2344 = vunpack.c.0.s8 %v2343
        %v2345 = vlaneseq
        %v2346 = vshrl.u32 %v2345, 7
        %v2347 = vsub.s32 %v2344, %v2346
        %v2348 = vrot.slane %v2340, %v2347
        %v2350 = vunpack.c.l.s4 1983009808
        %v2351 = vunpack.c.0.s8 %v2350
        %v2352 = vlaneseq
        %v2353 = vshrl.u32 %v2352, 7
        %v2354 = vsub.s32 %v2351, %v2353
        %v2355 = vrot.slane %v2341, %v2354
        %v2356 = vcombine.low %v2332, %v2348
        %v2357 = vcombine.high %v2332, %v2348
        %v2359 = vunpack.c.l.s4 1934713408
        %v2360 = vunpack.c.0.s8 %v2359
        %v2361 = vlaneseq
        %v2362 = vshrl.u32 %v2361, 7
        %v2363 = vsub.s32 %v2360, %v2362
        %v2364 = vrot.slane %v2356, %v2363
        %v2366 = vunpack.c.l.s4 1934713408
        %v2367 = vunpack.c.0.s8 %v2366
        %v2368 = vlaneseq
        %v2369 = vshrl.u32 %v2368, 7
        %v2370 = vsub.s32 %v2367, %v2369
        %v2371 = vrot.slane %v2357, %v2370
        %v2372 = vcombine.low %v2339, %v2355
        %v2373 = vcombine.high %v2339, %v2355
        %v2375 = vunpack.c.l.s4 1934713408
        %v2376 = vunpack.c.0.s8 %v2375
        %v2377 = vlaneseq
        %v2378 = vshrl.u32 %v2377, 7
        %v2379 = vsub.s32 %v2376, %v2378
        %v2380 = vrot.slane %v2372, %v2379
        %v2382 = vunpack.c.l.s4 1934713408
        %v2383 = vunpack.c.0.s8 %v2382
        %v2384 = vlaneseq
        %v2385 = vshrl.u32 %v2384, 7
        %v2386 = vsub.s32 %v2383, %v2385
        %v2387 = vrot.slane %v2373, %v2386
        %v2388 = vcombine.high %v2364, 0.0
        %v2389 = vcombine.high %v2371, 0.0
        %v2390 = vcombine.high %v2380, 0.0
        %v2391 = vcombine.high %v2387, 0.0
        %v2392 = vpack.c.bf16 %v2364, %v2364
        %v2393 = vpack.c.bf16 %v2388, %v2388
        %v2394 = vpack.c.bf16 %v2371, %v2371
        %v2395 = vpack.c.bf16 %v2389, %v2389
        %v2396 = vpack.c.bf16 %v2380, %v2380
        %v2397 = vpack.c.bf16 %v2390, %v2390
        %v2398 = vpack.c.bf16 %v2387, %v2387
        %v2399 = vpack.c.bf16 %v2391, %v2391
        %v2400 = vcombine.low %v2220, %v2224
        %v2402 = vunpack.c.l.s4 1983009808
        %v2403 = vunpack.c.0.s8 %v2402
        %v2404 = vlaneseq
        %v2405 = vshrl.u32 %v2404, 7
        %v2406 = vsub.s32 %v2403, %v2405
        %v2407 = vrot.slane %v2400, %v2406
        %v2408 = vcombine.low %v2222, %v2226
        %v2410 = vunpack.c.l.s4 1983009808
        %v2411 = vunpack.c.0.s8 %v2410
        %v2412 = vlaneseq
        %v2413 = vshrl.u32 %v2412, 7
        %v2414 = vsub.s32 %v2411, %v2413
        %v2415 = vrot.slane %v2408, %v2414
        %v2416 = vcombine.low %v2407, %v2415
        %v2418 = vunpack.c.l.s4 1934713408
        %v2419 = vunpack.c.0.s8 %v2418
        %v2420 = vlaneseq
        %v2421 = vshrl.u32 %v2420, 7
        %v2422 = vsub.s32 %v2419, %v2421
        %v2423 = vrot.slane %v2416, %v2422
        %v2424 = vcombine.high %v2423, 0
        %v2425 = vcombine.low %v2221, %v2225
        %v2427 = vunpack.c.l.s4 1983009808
        %v2428 = vunpack.c.0.s8 %v2427
        %v2429 = vlaneseq
        %v2430 = vshrl.u32 %v2429, 7
        %v2431 = vsub.s32 %v2428, %v2430
        %v2432 = vrot.slane %v2425, %v2431
        %v2433 = vcombine.low %v2223, %v2227
        %v2435 = vunpack.c.l.s4 1983009808
        %v2436 = vunpack.c.0.s8 %v2435
        %v2437 = vlaneseq
        %v2438 = vshrl.u32 %v2437, 7
        %v2439 = vsub.s32 %v2436, %v2438
        %v2440 = vrot.slane %v2433, %v2439
        %v2441 = vcombine.low %v2432, %v2440
        %v2443 = vunpack.c.l.s4 1934713408
        %v2444 = vunpack.c.0.s8 %v2443
        %v2445 = vlaneseq
        %v2446 = vshrl.u32 %v2445, 7
        %v2447 = vsub.s32 %v2444, %v2446
        %v2448 = vrot.slane %v2441, %v2447
        %v2449 = vcombine.high %v2448, 0
        %v2452 = vpack.i.b16 %v2448, %v2423
        %v2453 = vshrl.u32 %v2423, 16
        %v2454 = vshrl.u32 %v2448, 16
        %v2455 = vpack.i.b16 %v2454, %v2453
        %v2458 = vpack.i.b16 %v2449, %v2424
        %v2459 = vshrl.u32 %v2424, 16
        %v2460 = vshrl.u32 %v2449, 16
        %v2461 = vpack.i.b16 %v2460, %v2459
        %2462 = vxpose.xlu0.c.b16.start [1/8] %v2306, 128
        %2463 = vxpose.xlu0.c.b16.cont [2/8] 0, 128
        %2464 = vxpose.xlu0.c.b16.cont [3/8] 0, 128
        %2465 = vxpose.xlu0.c.b16.cont [4/8] 0, 128
        %2466 = vxpose.xlu0.c.b16.cont [5/8] 0, 128
        %2467 = vxpose.xlu0.c.b16.cont [6/8] 0, 128
        %2468 = vxpose.xlu0.c.b16.cont [7/8] 0, 128
        %2469 = vxpose.xlu0.c.b16.end [8/8] 0, 128
        %v2470 = vpop.trf.xlu0
        %v2471 = vpop.trf.xlu0
        %v2472 = vpop.trf.xlu0
        %v2473 = vpop.trf.xlu0
        %v2474 = vpop.trf.xlu0
        %v2475 = vpop.trf.xlu0
        %v2476 = vpop.trf.xlu0
        %v2477 = vpop.trf.xlu0
        %2478 = vxpose.xlu0.c.b16.start [1/8] %v2307, 128
        %2479 = vxpose.xlu0.c.b16.cont [2/8] 0, 128
        %2480 = vxpose.xlu0.c.b16.cont [3/8] 0, 128
        %2481 = vxpose.xlu0.c.b16.cont [4/8] 0, 128
        %2482 = vxpose.xlu0.c.b16.cont [5/8] 0, 128
        %2483 = vxpose.xlu0.c.b16.cont [6/8] 0, 128
        %2484 = vxpose.xlu0.c.b16.cont [7/8] 0, 128
        %2485 = vxpose.xlu0.c.b16.end [8/8] 0, 128
        %v2486 = vpop.trf.xlu0
        %v2487 = vpop.trf.xlu0
        %v2488 = vpop.trf.xlu0
        %v2489 = vpop.trf.xlu0
        %v2490 = vpop.trf.xlu0
        %v2491 = vpop.trf.xlu0
        %v2492 = vpop.trf.xlu0
        %v2493 = vpop.trf.xlu0
        %2494 = vxpose.xlu0.c.b16.start [1/8] %v2308, 128
        %2495 = vxpose.xlu0.c.b16.cont [2/8] 0, 128
        %2496 = vxpose.xlu0.c.b16.cont [3/8] 0, 128
        %2497 = vxpose.xlu0.c.b16.cont [4/8] 0, 128
        %2498 = vxpose.xlu0.c.b16.cont [5/8] 0, 128
        %2499 = vxpose.xlu0.c.b16.cont [6/8] 0, 128
        %2500 = vxpose.xlu0.c.b16.cont [7/8] 0, 128
        %2501 = vxpose.xlu0.c.b16.end [8/8] 0, 128
        %v2502 = vpop.trf.xlu0
        %v2503 = vpop.trf.xlu0
        %v2504 = vpop.trf.xlu0
        %v2505 = vpop.trf.xlu0
        %v2506 = vpop.trf.xlu0
        %v2507 = vpop.trf.xlu0
        %v2508 = vpop.trf.xlu0
        %v2509 = vpop.trf.xlu0
        %2510 = vxpose.xlu0.c.b16.start [1/8] %v2309, 128
        %2511 = vxpose.xlu0.c.b16.cont [2/8] 0, 128
        %2512 = vxpose.xlu0.c.b16.cont [3/8] 0, 128
        %2513 = vxpose.xlu0.c.b16.cont [4/8] 0, 128
        %2514 = vxpose.xlu0.c.b16.cont [5/8] 0, 128
        %2515 = vxpose.xlu0.c.b16.cont [6/8] 0, 128
        %2516 = vxpose.xlu0.c.b16.cont [7/8] 0, 128
        %2517 = vxpose.xlu0.c.b16.end [8/8] 0, 128
        %v2518 = vpop.trf.xlu0
        %v2519 = vpop.trf.xlu0
        %v2520 = vpop.trf.xlu0
        %v2521 = vpop.trf.xlu0
        %v2522 = vpop.trf.xlu0
        %v2523 = vpop.trf.xlu0
        %v2524 = vpop.trf.xlu0
        %v2525 = vpop.trf.xlu0
        %2526 = vxpose.xlu0.c.b16.start [1/8] %v2310, 128
        %2527 = vxpose.xlu0.c.b16.cont [2/8] 0, 128
        %2528 = vxpose.xlu0.c.b16.cont [3/8] 0, 128
        %2529 = vxpose.xlu0.c.b16.cont [4/8] 0, 128
        %2530 = vxpose.xlu0.c.b16.cont [5/8] 0, 128
        %2531 = vxpose.xlu0.c.b16.cont [6/8] 0, 128
        %2532 = vxpose.xlu0.c.b16.cont [7/8] 0, 128
        %2533 = vxpose.xlu0.c.b16.end [8/8] 0, 128
        %v2534 = vpop.trf.xlu0
        %v2535 = vpop.trf.xlu0
        %v2536 = vpop.trf.xlu0
        %v2537 = vpop.trf.xlu0
        %v2538 = vpop.trf.xlu0
        %v2539 = vpop.trf.xlu0
        %v2540 = vpop.trf.xlu0
        %v2541 = vpop.trf.xlu0
        %2542 = vxpose.xlu0.c.b16.start [1/8] %v2311, 128
        %2543 = vxpose.xlu0.c.b16.cont [2/8] 0, 128
        %2544 = vxpose.xlu0.c.b16.cont [3/8] 0, 128
        %2545 = vxpose.xlu0.c.b16.cont [4/8] 0, 128
        %2546 = vxpose.xlu0.c.b16.cont [5/8] 0, 128
        %2547 = vxpose.xlu0.c.b16.cont [6/8] 0, 128
        %2548 = vxpose.xlu0.c.b16.cont [7/8] 0, 128
        %2549 = vxpose.xlu0.c.b16.end [8/8] 0, 128
        %v2550 = vpop.trf.xlu0
        %v2551 = vpop.trf.xlu0
        %v2552 = vpop.trf.xlu0
        %v2553 = vpop.trf.xlu0
        %v2554 = vpop.trf.xlu0
        %v2555 = vpop.trf.xlu0
        %v2556 = vpop.trf.xlu0
        %v2557 = vpop.trf.xlu0
        %2558 = vxpose.xlu0.c.b16.start [1/8] %v2312, 128
        %2559 = vxpose.xlu0.c.b16.cont [2/8] 0, 128
        %2560 = vxpose.xlu0.c.b16.cont [3/8] 0, 128
        %2561 = vxpose.xlu0.c.b16.cont [4/8] 0, 128
        %2562 = vxpose.xlu0.c.b16.cont [5/8] 0, 128
        %2563 = vxpose.xlu0.c.b16.cont [6/8] 0, 128
        %2564 = vxpose.xlu0.c.b16.cont [7/8] 0, 128
        %2565 = vxpose.xlu0.c.b16.end [8/8] 0, 128
        %v2566 = vpop.trf.xlu0
        %v2567 = vpop.trf.xlu0
        %v2568 = vpop.trf.xlu0
        %v2569 = vpop.trf.xlu0
        %v2570 = vpop.trf.xlu0
        %v2571 = vpop.trf.xlu0
        %v2572 = vpop.trf.xlu0
        %v2573 = vpop.trf.xlu0
        %2574 = vxpose.xlu0.c.b16.start [1/8] %v2313, 128
        %2575 = vxpose.xlu0.c.b16.cont [2/8] 0, 128
        %2576 = vxpose.xlu0.c.b16.cont [3/8] 0, 128
        %2577 = vxpose.xlu0.c.b16.cont [4/8] 0, 128
        %2578 = vxpose.xlu0.c.b16.cont [5/8] 0, 128
        %2579 = vxpose.xlu0.c.b16.cont [6/8] 0, 128
        %2580 = vxpose.xlu0.c.b16.cont [7/8] 0, 128
        %2581 = vxpose.xlu0.c.b16.end [8/8] 0, 128
        %v2582 = vpop.trf.xlu0
        %v2583 = vpop.trf.xlu0
        %v2584 = vpop.trf.xlu0
        %v2585 = vpop.trf.xlu0
        %v2586 = vpop.trf.xlu0
        %v2587 = vpop.trf.xlu0
        %v2588 = vpop.trf.xlu0
        %v2589 = vpop.trf.xlu0
        %v2590 = vcombine.low %v2470, %v2534
        %v2592 = vunpack.c.l.s4 1983009808
        %v2593 = vunpack.c.0.s8 %v2592
        %v2594 = vlaneseq
        %v2595 = vshrl.u32 %v2594, 7
        %v2596 = vsub.s32 %v2593, %v2595
        %v2597 = vrot.slane %v2590, %v2596
        %v2598 = vcombine.low %v2502, %v2566
        %v2600 = vunpack.c.l.s4 1983009808
        %v2601 = vunpack.c.0.s8 %v2600
        %v2602 = vlaneseq
        %v2603 = vshrl.u32 %v2602, 7
        %v2604 = vsub.s32 %v2601, %v2603
        %v2605 = vrot.slane %v2598, %v2604
        %v2606 = vcombine.low %v2597, %v2605
        %v2607 = vcombine.high %v2597, %v2605
        %v2609 = vunpack.c.l.s4 1934713408
        %v2610 = vunpack.c.0.s8 %v2609
        %v2611 = vlaneseq
        %v2612 = vshrl.u32 %v2611, 7
        %v2613 = vsub.s32 %v2610, %v2612
        %v2614 = vrot.slane %v2606, %v2613
        %v2616 = vunpack.c.l.s4 1934713408
        %v2617 = vunpack.c.0.s8 %v2616
        %v2618 = vlaneseq
        %v2619 = vshrl.u32 %v2618, 7
        %v2620 = vsub.s32 %v2617, %v2619
        %v2621 = vrot.slane %v2607, %v2620
        %v2622 = vcombine.high %v2614, 0
        %v2623 = vcombine.high %v2621, 0
        %v2624 = vcombine.low %v2486, %v2550
        %v2626 = vunpack.c.l.s4 1983009808
        %v2627 = vunpack.c.0.s8 %v2626
        %v2628 = vlaneseq
        %v2629 = vshrl.u32 %v2628, 7
        %v2630 = vsub.s32 %v2627, %v2629
        %v2631 = vrot.slane %v2624, %v2630
        %v2632 = vcombine.low %v2518, %v2582
        %v2634 = vunpack.c.l.s4 1983009808
        %v2635 = vunpack.c.0.s8 %v2634
        %v2636 = vlaneseq
        %v2637 = vshrl.u32 %v2636, 7
        %v2638 = vsub.s32 %v2635, %v2637
        %v2639 = vrot.slane %v2632, %v2638
        %v2640 = vcombine.low %v2631, %v2639
        %v2641 = vcombine.high %v2631, %v2639
        %v2643 = vunpack.c.l.s4 1934713408
        %v2644 = vunpack.c.0.s8 %v2643
        %v2645 = vlaneseq
        %v2646 = vshrl.u32 %v2645, 7
        %v2647 = vsub.s32 %v2644, %v2646
        %v2648 = vrot.slane %v2640, %v2647
        %v2650 = vunpack.c.l.s4 1934713408
        %v2651 = vunpack.c.0.s8 %v2650
        %v2652 = vlaneseq
        %v2653 = vshrl.u32 %v2652, 7
        %v2654 = vsub.s32 %v2651, %v2653
        %v2655 = vrot.slane %v2641, %v2654
        %v2656 = vcombine.high %v2648, 0
        %v2657 = vcombine.high %v2655, 0
        %v2660 = vpack.i.b16 %v2648, %v2614
        %v2662 = vshrl.u32 %v2614, 16
        %v2663 = vshrl.u32 %v2648, 16
        %v2664 = vpack.i.b16 %v2663, %v2662
        %v2668 = vpack.i.b16 %v2656, %v2622
        %v2670 = vshrl.u32 %v2622, 16
        %v2671 = vshrl.u32 %v2656, 16
        %v2672 = vpack.i.b16 %v2671, %v2670
        %v2676 = vpack.i.b16 %v2655, %v2621
        %v2678 = vshrl.u32 %v2621, 16
        %v2679 = vshrl.u32 %v2655, 16
        %v2680 = vpack.i.b16 %v2679, %v2678
        %v2684 = vpack.i.b16 %v2657, %v2623
        %v2686 = vshrl.u32 %v2623, 16
        %v2687 = vshrl.u32 %v2657, 16
        %v2688 = vpack.i.b16 %v2687, %v2686
        %2690 = vxpose.xlu0.c.b16.start [1/8] %v2660, 128
        %2691 = vxpose.xlu0.c.b16.cont [2/8] 0, 128
        %2692 = vxpose.xlu0.c.b16.cont [3/8] 0, 128
        %2693 = vxpose.xlu0.c.b16.cont [4/8] 0, 128
        %2694 = vxpose.xlu0.c.b16.cont [5/8] 0, 128
        %2695 = vxpose.xlu0.c.b16.cont [6/8] 0, 128
        %2696 = vxpose.xlu0.c.b16.cont [7/8] 0, 128
        %2697 = vxpose.xlu0.c.b16.end [8/8] 0, 128
        %v2698 = vpop.trf.xlu0
        %v2699 = vpop.trf.xlu0
        %v2700 = vpop.trf.xlu0
        %v2701 = vpop.trf.xlu0
        %v2702 = vpop.trf.xlu0
        %v2703 = vpop.trf.xlu0
        %v2704 = vpop.trf.xlu0
        %v2705 = vpop.trf.xlu0
        %2706 = vxpose.xlu0.c.b16.start [1/8] %v2664, 128
        %2707 = vxpose.xlu0.c.b16.cont [2/8] 0, 128
        %2708 = vxpose.xlu0.c.b16.cont [3/8] 0, 128
        %2709 = vxpose.xlu0.c.b16.cont [4/8] 0, 128
        %2710 = vxpose.xlu0.c.b16.cont [5/8] 0, 128
        %2711 = vxpose.xlu0.c.b16.cont [6/8] 0, 128
        %2712 = vxpose.xlu0.c.b16.cont [7/8] 0, 128
        %2713 = vxpose.xlu0.c.b16.end [8/8] 0, 128
        %v2714 = vpop.trf.xlu0
        %v2715 = vpop.trf.xlu0
        %v2716 = vpop.trf.xlu0
        %v2717 = vpop.trf.xlu0
        %v2718 = vpop.trf.xlu0
        %v2719 = vpop.trf.xlu0
        %v2720 = vpop.trf.xlu0
        %v2721 = vpop.trf.xlu0
        %2722 = vxpose.xlu0.c.b16.start [1/8] %v2668, 128
        %2723 = vxpose.xlu0.c.b16.cont [2/8] 0, 128
        %2724 = vxpose.xlu0.c.b16.cont [3/8] 0, 128
        %2725 = vxpose.xlu0.c.b16.cont [4/8] 0, 128
        %2726 = vxpose.xlu0.c.b16.cont [5/8] 0, 128
        %2727 = vxpose.xlu0.c.b16.cont [6/8] 0, 128
        %2728 = vxpose.xlu0.c.b16.cont [7/8] 0, 128
        %2729 = vxpose.xlu0.c.b16.end [8/8] 0, 128
        %v2730 = vpop.trf.xlu0
        %v2731 = vpop.trf.xlu0
        %v2732 = vpop.trf.xlu0
        %v2733 = vpop.trf.xlu0
        %v2734 = vpop.trf.xlu0
        %v2735 = vpop.trf.xlu0
        %v2736 = vpop.trf.xlu0
        %v2737 = vpop.trf.xlu0
        %2738 = vxpose.xlu0.c.b16.start [1/8] %v2672, 128
        %2739 = vxpose.xlu0.c.b16.cont [2/8] 0, 128
        %2740 = vxpose.xlu0.c.b16.cont [3/8] 0, 128
        %2741 = vxpose.xlu0.c.b16.cont [4/8] 0, 128
        %2742 = vxpose.xlu0.c.b16.cont [5/8] 0, 128
        %2743 = vxpose.xlu0.c.b16.cont [6/8] 0, 128
        %2744 = vxpose.xlu0.c.b16.cont [7/8] 0, 128
        %2745 = vxpose.xlu0.c.b16.end [8/8] 0, 128
        %v2746 = vpop.trf.xlu0
        %v2747 = vpop.trf.xlu0
        %v2748 = vpop.trf.xlu0
        %v2749 = vpop.trf.xlu0
        %v2750 = vpop.trf.xlu0
        %v2751 = vpop.trf.xlu0
        %v2752 = vpop.trf.xlu0
        %v2753 = vpop.trf.xlu0
        %2754 = vxpose.xlu0.c.b16.start [1/8] %v2676, 128
        %2755 = vxpose.xlu0.c.b16.cont [2/8] 0, 128
        %2756 = vxpose.xlu0.c.b16.cont [3/8] 0, 128
        %2757 = vxpose.xlu0.c.b16.cont [4/8] 0, 128
        %2758 = vxpose.xlu0.c.b16.cont [5/8] 0, 128
        %2759 = vxpose.xlu0.c.b16.cont [6/8] 0, 128
        %2760 = vxpose.xlu0.c.b16.cont [7/8] 0, 128
        %2761 = vxpose.xlu0.c.b16.end [8/8] 0, 128
        %v2762 = vpop.trf.xlu0
        %v2763 = vpop.trf.xlu0
        %v2764 = vpop.trf.xlu0
        %v2765 = vpop.trf.xlu0
        %v2766 = vpop.trf.xlu0
        %v2767 = vpop.trf.xlu0
        %v2768 = vpop.trf.xlu0
        %v2769 = vpop.trf.xlu0
        %2770 = vxpose.xlu0.c.b16.start [1/8] %v2680, 128
        %2771 = vxpose.xlu0.c.b16.cont [2/8] 0, 128
        %2772 = vxpose.xlu0.c.b16.cont [3/8] 0, 128
        %2773 = vxpose.xlu0.c.b16.cont [4/8] 0, 128
        %2774 = vxpose.xlu0.c.b16.cont [5/8] 0, 128
        %2775 = vxpose.xlu0.c.b16.cont [6/8] 0, 128
        %2776 = vxpose.xlu0.c.b16.cont [7/8] 0, 128
        %2777 = vxpose.xlu0.c.b16.end [8/8] 0, 128
        %v2778 = vpop.trf.xlu0
        %v2779 = vpop.trf.xlu0
        %v2780 = vpop.trf.xlu0
        %v2781 = vpop.trf.xlu0
        %v2782 = vpop.trf.xlu0
        %v2783 = vpop.trf.xlu0
        %v2784 = vpop.trf.xlu0
        %v2785 = vpop.trf.xlu0
        %2786 = vxpose.xlu0.c.b16.start [1/8] %v2684, 128
        %2787 = vxpose.xlu0.c.b16.cont [2/8] 0, 128
        %2788 = vxpose.xlu0.c.b16.cont [3/8] 0, 128
        %2789 = vxpose.xlu0.c.b16.cont [4/8] 0, 128
        %2790 = vxpose.xlu0.c.b16.cont [5/8] 0, 128
        %2791 = vxpose.xlu0.c.b16.cont [6/8] 0, 128
        %2792 = vxpose.xlu0.c.b16.cont [7/8] 0, 128
        %2793 = vxpose.xlu0.c.b16.end [8/8] 0, 128
        %v2794 = vpop.trf.xlu0
        %v2795 = vpop.trf.xlu0
        %v2796 = vpop.trf.xlu0
        %v2797 = vpop.trf.xlu0
        %v2798 = vpop.trf.xlu0
        %v2799 = vpop.trf.xlu0
        %v2800 = vpop.trf.xlu0
        %v2801 = vpop.trf.xlu0
        %2802 = vxpose.xlu0.c.b16.start [1/8] %v2688, 128
        %2803 = vxpose.xlu0.c.b16.cont [2/8] 0, 128
        %2804 = vxpose.xlu0.c.b16.cont [3/8] 0, 128
        %2805 = vxpose.xlu0.c.b16.cont [4/8] 0, 128
        %2806 = vxpose.xlu0.c.b16.cont [5/8] 0, 128
        %2807 = vxpose.xlu0.c.b16.cont [6/8] 0, 128
        %2808 = vxpose.xlu0.c.b16.cont [7/8] 0, 128
        %2809 = vxpose.xlu0.c.b16.end [8/8] 0, 128
        %v2810 = vpop.trf.xlu0
        %v2811 = vpop.trf.xlu0
        %v2812 = vpop.trf.xlu0
        %v2813 = vpop.trf.xlu0
        %v2814 = vpop.trf.xlu0
        %v2815 = vpop.trf.xlu0
        %v2816 = vpop.trf.xlu0
        %v2817 = vpop.trf.xlu0
        %v2818 = vcombine.low %v2698, %v2762
        %v2820 = vunpack.c.l.s4 1983009808
        %v2821 = vunpack.c.0.s8 %v2820
        %v2822 = vlaneseq
        %v2823 = vshrl.u32 %v2822, 7
        %v2824 = vsub.s32 %v2821, %v2823
        %v2825 = vrot.slane %v2818, %v2824
        %v2826 = vcombine.low %v2730, %v2794
        %v2828 = vunpack.c.l.s4 1983009808
        %v2829 = vunpack.c.0.s8 %v2828
        %v2830 = vlaneseq
        %v2831 = vshrl.u32 %v2830, 7
        %v2832 = vsub.s32 %v2829, %v2831
        %v2833 = vrot.slane %v2826, %v2832
        %v2834 = vcombine.low %v2825, %v2833
        %v2836 = vunpack.c.l.s4 1934713408
        %v2837 = vunpack.c.0.s8 %v2836
        %v2838 = vlaneseq
        %v2839 = vshrl.u32 %v2838, 7
        %v2840 = vsub.s32 %v2837, %v2839
        %v2841 = vrot.slane %v2834, %v2840
        %v2842 = vcombine.high %v2841, 0
        %v2843 = vcombine.low %v2714, %v2778
        %v2845 = vunpack.c.l.s4 1983009808
        %v2846 = vunpack.c.0.s8 %v2845
        %v2847 = vlaneseq
        %v2848 = vshrl.u32 %v2847, 7
        %v2849 = vsub.s32 %v2846, %v2848
        %v2850 = vrot.slane %v2843, %v2849
        %v2851 = vcombine.low %v2746, %v2810
        %v2853 = vunpack.c.l.s4 1983009808
        %v2854 = vunpack.c.0.s8 %v2853
        %v2855 = vlaneseq
        %v2856 = vshrl.u32 %v2855, 7
        %v2857 = vsub.s32 %v2854, %v2856
        %v2858 = vrot.slane %v2851, %v2857
        %v2859 = vcombine.low %v2850, %v2858
        %v2861 = vunpack.c.l.s4 1934713408
        %v2862 = vunpack.c.0.s8 %v2861
        %v2863 = vlaneseq
        %v2864 = vshrl.u32 %v2863, 7
        %v2865 = vsub.s32 %v2862, %v2864
        %v2866 = vrot.slane %v2859, %v2865
        %v2867 = vcombine.high %v2866, 0
        %v2870 = vpack.i.b16 %v2866, %v2841
        %v2871 = vshrl.u32 %v2841, 16
        %v2872 = vshrl.u32 %v2866, 16
        %v2873 = vpack.i.b16 %v2872, %v2871
        %v2876 = vpack.i.b16 %v2867, %v2842
        %v2877 = vshrl.u32 %v2842, 16
        %v2878 = vshrl.u32 %v2867, 16
        %v2879 = vpack.i.b16 %v2878, %v2877
        %vm2880 = vcmask 64512
        %v2882 = vsel %vm2880, %v2452, 0
        %vm2884 = vcmask 1043456
        %v2886 = vsel %vm2884, %v2870, 0
        %2888 = vmatprep.subr.bf16.mxu0 0
        %2889 = vmatpush1.bf16.msra.mxu0 0
        %2890 = vmatprep.subr.bf16.mxu0 0
        %2891 = vmatpush1.bf16.msra.mxu0 0
        %2892 = vmatprep.subr.bf16.mxu0 0
        %2893 = vmatpush1.bf16.msra.mxu0 0
        %2894 = vmatprep.subr.bf16.mxu0 0
        %2895 = vmatpush1.bf16.msra.mxu0 0
        %2896 = vmatprep.subr.bf16.mxu0 0
        %2897 = vmatpush1.bf16.msra.mxu0 0
        %2898 = vmatprep.subr.bf16.mxu0 0
        %2899 = vmatpush1.bf16.msra.mxu0 0
        %2900 = vmatprep.subr.bf16.mxu0 0
        %2901 = vmatpush1.bf16.msra.mxu0 0
        %2902 = vmatprep.subr.bf16.mxu0 0
        %2903 = vmatpush1.bf16.msra.mxu0 %v2886
        %2904 = vmatprep.subr.bf16.mxu0 0
        %2905 = vmatpush2.bf16.msra.mxu0 0
        %2906 = vmatprep.subr.bf16.mxu0 0
        %2907 = vmatpush2.bf16.msra.mxu0 0
        %2908 = vmatprep.subr.bf16.mxu0 0
        %2909 = vmatpush2.bf16.msra.mxu0 0
        %2910 = vmatprep.subr.bf16.mxu0 0
        %2911 = vmatpush2.bf16.msra.mxu0 0
        %2912 = vmatprep.subr.bf16.mxu0 0
        %2913 = vmatpush2.bf16.msra.mxu0 0
        %2914 = vmatprep.subr.bf16.mxu0 0
        %2915 = vmatpush2.bf16.msra.mxu0 0
        %2916 = vmatprep.subr.bf16.mxu0 0
        %2917 = vmatpush2.bf16.msra.mxu0 0
        %2918 = vmatprep.subr.bf16.mxu0 0
        %2919 = vmatpush2.bf16.msra.mxu0 0
        %2920 = vmatprep.mubr.bf16.mxu0 0
        %2921 = vmatmul.mubr.bf16.gmra.mxu0 %v2882
        %v2922 = vpop.f32.mrf.mxu0
        %v2923 = vadd.f32 %v2141, %v2922
        %v2924 = vpop.f32.mrf.mxu0
        %v2925 = vpop.f32.mrf.mxu0
        %v2926 = vpop.f32.mrf.mxu0
        %2927 = vdwg.mxu0
        %v2929 = vsel %vm2880, %v2455, 0
        %v2932 = vsel %vm2884, %v2873, 0
        %2934 = vmatprep.subr.bf16.mxu0 0
        %2935 = vmatpush1.bf16.msra.mxu0 0
        %2936 = vmatprep.subr.bf16.mxu0 0
        %2937 = vmatpush1.bf16.msra.mxu0 0
        %2938 = vmatprep.subr.bf16.mxu0 0
        %2939 = vmatpush1.bf16.msra.mxu0 0
        %2940 = vmatprep.subr.bf16.mxu0 0
        %2941 = vmatpush1.bf16.msra.mxu0 0
        %2942 = vmatprep.subr.bf16.mxu0 0
        %2943 = vmatpush1.bf16.msra.mxu0 0
        %2944 = vmatprep.subr.bf16.mxu0 0
        %2945 = vmatpush1.bf16.msra.mxu0 0
        %2946 = vmatprep.subr.bf16.mxu0 0
        %2947 = vmatpush1.bf16.msra.mxu0 0
        %2948 = vmatprep.subr.bf16.mxu0 0
        %2949 = vmatpush1.bf16.msra.mxu0 %v2932
        %2950 = vmatprep.subr.bf16.mxu0 0
        %2951 = vmatpush2.bf16.msra.mxu0 0
        %2952 = vmatprep.subr.bf16.mxu0 0
        %2953 = vmatpush2.bf16.msra.mxu0 0
        %2954 = vmatprep.subr.bf16.mxu0 0
        %2955 = vmatpush2.bf16.msra.mxu0 0
        %2956 = vmatprep.subr.bf16.mxu0 0
        %2957 = vmatpush2.bf16.msra.mxu0 0
        %2958 = vmatprep.subr.bf16.mxu0 0
        %2959 = vmatpush2.bf16.msra.mxu0 0
        %2960 = vmatprep.subr.bf16.mxu0 0
        %2961 = vmatpush2.bf16.msra.mxu0 0
        %2962 = vmatprep.subr.bf16.mxu0 0
        %2963 = vmatpush2.bf16.msra.mxu0 0
        %2964 = vmatprep.subr.bf16.mxu0 0
        %2965 = vmatpush2.bf16.msra.mxu0 0
        %2966 = vmatprep.mubr.bf16.mxu0 0
        %2967 = vmatmul.mubr.bf16.gmra.mxu0 %v2929
        %v2968 = vpop.f32.mrf.mxu0
        %v2969 = vadd.f32 %v2141, %v2968
        %v2970 = vpop.f32.mrf.mxu0
        %v2971 = vpop.f32.mrf.mxu0
        %v2972 = vpop.f32.mrf.mxu0
        %2973 = vdwg.mxu0
        %v2975 = vsel %vm2880, %v2458, 0
        %v2978 = vsel %vm2884, %v2876, 0
        %2980 = vmatprep.subr.bf16.mxu0 0
        %2981 = vmatpush1.bf16.msra.mxu0 0
        %2982 = vmatprep.subr.bf16.mxu0 0
        %2983 = vmatpush1.bf16.msra.mxu0 0
        %2984 = vmatprep.subr.bf16.mxu0 0
        %2985 = vmatpush1.bf16.msra.mxu0 0
        %2986 = vmatprep.subr.bf16.mxu0 0
        %2987 = vmatpush1.bf16.msra.mxu0 0
        %2988 = vmatprep.subr.bf16.mxu0 0
        %2989 = vmatpush1.bf16.msra.mxu0 0
        %2990 = vmatprep.subr.bf16.mxu0 0
        %2991 = vmatpush1.bf16.msra.mxu0 0
        %2992 = vmatprep.subr.bf16.mxu0 0
        %2993 = vmatpush1.bf16.msra.mxu0 0
        %2994 = vmatprep.subr.bf16.mxu0 0
        %2995 = vmatpush1.bf16.msra.mxu0 %v2978
        %2996 = vmatprep.subr.bf16.mxu0 0
        %2997 = vmatpush2.bf16.msra.mxu0 0
        %2998 = vmatprep.subr.bf16.mxu0 0
        %2999 = vmatpush2.bf16.msra.mxu0 0
        %3000 = vmatprep.subr.bf16.mxu0 0
        %3001 = vmatpush2.bf16.msra.mxu0 0
        %3002 = vmatprep.subr.bf16.mxu0 0
        %3003 = vmatpush2.bf16.msra.mxu0 0
        %3004 = vmatprep.subr.bf16.mxu0 0
        %3005 = vmatpush2.bf16.msra.mxu0 0
        %3006 = vmatprep.subr.bf16.mxu0 0
        %3007 = vmatpush2.bf16.msra.mxu0 0
        %3008 = vmatprep.subr.bf16.mxu0 0
        %3009 = vmatpush2.bf16.msra.mxu0 0
        %3010 = vmatprep.subr.bf16.mxu0 0
        %3011 = vmatpush2.bf16.msra.mxu0 0
        %3012 = vmatprep.mubr.bf16.mxu0 0
        %3013 = vmatmul.mubr.bf16.gmra.mxu0 %v2975
        %v3014 = vpop.f32.mrf.mxu0
        %v3015 = vadd.f32 %v2141, %v3014
        %v3016 = vpop.f32.mrf.mxu0
        %v3017 = vpop.f32.mrf.mxu0
        %v3018 = vpop.f32.mrf.mxu0
        %3019 = vdwg.mxu0
        %v3021 = vsel %vm2880, %v2461, 0
        %v3024 = vsel %vm2884, %v2879, 0
        %3026 = vmatprep.subr.bf16.mxu0 0
        %3027 = vmatpush1.bf16.msra.mxu0 0
        %3028 = vmatprep.subr.bf16.mxu0 0
        %3029 = vmatpush1.bf16.msra.mxu0 0
        %3030 = vmatprep.subr.bf16.mxu0 0
        %3031 = vmatpush1.bf16.msra.mxu0 0
        %3032 = vmatprep.subr.bf16.mxu0 0
        %3033 = vmatpush1.bf16.msra.mxu0 0
        %3034 = vmatprep.subr.bf16.mxu0 0
        %3035 = vmatpush1.bf16.msra.mxu0 0
        %3036 = vmatprep.subr.bf16.mxu0 0
        %3037 = vmatpush1.bf16.msra.mxu0 0
        %3038 = vmatprep.subr.bf16.mxu0 0
        %3039 = vmatpush1.bf16.msra.mxu0 0
        %3040 = vmatprep.subr.bf16.mxu0 0
        %3041 = vmatpush1.bf16.msra.mxu0 %v3024
        %3042 = vmatprep.subr.bf16.mxu0 0
        %3043 = vmatpush2.bf16.msra.mxu0 0
        %3044 = vmatprep.subr.bf16.mxu0 0
        %3045 = vmatpush2.bf16.msra.mxu0 0
        %3046 = vmatprep.subr.bf16.mxu0 0
        %3047 = vmatpush2.bf16.msra.mxu0 0
        %3048 = vmatprep.subr.bf16.mxu0 0
        %3049 = vmatpush2.bf16.msra.mxu0 0
        %3050 = vmatprep.subr.bf16.mxu0 0
        %3051 = vmatpush2.bf16.msra.mxu0 0
        %3052 = vmatprep.subr.bf16.mxu0 0
        %3053 = vmatpush2.bf16.msra.mxu0 0
        %3054 = vmatprep.subr.bf16.mxu0 0
        %3055 = vmatpush2.bf16.msra.mxu0 0
        %3056 = vmatprep.subr.bf16.mxu0 0
        %3057 = vmatpush2.bf16.msra.mxu0 0
        %3058 = vmatprep.mubr.bf16.mxu0 0
        %3059 = vmatmul.mubr.bf16.gmra.mxu0 %v3021
        %v3060 = vpop.f32.mrf.mxu0
        %v3061 = vadd.f32 %v2141, %v3060
        %v3062 = vpop.f32.mrf.mxu0
        %v3063 = vpop.f32.mrf.mxu0
        %v3064 = vpop.f32.mrf.mxu0
        %3065 = vdwg.mxu0
        %v3066 = vsel %vm2880, %v2923, -inf
        %3067 = vmax.xlane.f32.xlu0 %v3066
        %v3068 = vpop.xlane.xlu0 %3067
        %v3069 = vsel %vm2880, %v2969, -inf
        %3070 = vmax.xlane.f32.xlu0 %v3069
        %v3071 = vpop.xlane.xlu0 %3070
        %v3072 = vsel %vm2880, %v3015, -inf
        %3073 = vmax.xlane.f32.xlu0 %v3072
        %v3074 = vpop.xlane.xlu0 %3073
        %v3075 = vsel %vm2880, %v3061, -inf
        %3076 = vmax.xlane.f32.xlu0 %v3075
        %v3077 = vpop.xlane.xlu0 %3076
        %v3078 = vsub.f32 %v2923, %v3068
        %v3079 = vsub.f32 %v2969, %v3071
        %v3080 = vsub.f32 %v3015, %v3074
        %v3081 = vsub.f32 %v3061, %v3077
        %v3082 = vmul.f32 %v3078, 1.442695
        %v3083 = vpow.pop %v3082
        %v3084 = vmul.f32 %v3079, 1.442695
        %v3085 = vpow.pop %v3084
        %v3086 = vmul.f32 %v3080, 1.442695
        %v3087 = vpow.pop %v3086
        %v3088 = vmul.f32 %v3081, 1.442695
        %v3089 = vpow.pop %v3088
        %v3090 = vsel %vm2880, %v3083, 0.0
        %3091 = vadd.xlane.f32.xlu0 %v3090
        %v3092 = vpop.xlane.xlu0 %3091
        %v3093 = vsel %vm2880, %v3085, 0.0
        %3094 = vadd.xlane.f32.xlu0 %v3093
        %v3095 = vpop.xlane.xlu0 %3094
        %v3096 = vsel %vm2880, %v3087, 0.0
        %3097 = vadd.xlane.f32.xlu0 %v3096
        %v3098 = vpop.xlane.xlu0 %3097
        %v3099 = vsel %vm2880, %v3089, 0.0
        %3100 = vadd.xlane.f32.xlu0 %v3099
        %v3101 = vpop.xlane.xlu0 %3100
        %v3102 = vrcp.pop %v3092
        %v3103 = vrcp.pop %v3095
        %v3104 = vrcp.pop %v3098
        %v3105 = vrcp.pop %v3101
        %v3106 = vmul.f32 %v3083, %v3102
        %v3107 = vmul.f32 %v3085, %v3103
        %v3108 = vmul.f32 %v3087, %v3104
        %v3109 = vmul.f32 %v3089, %v3105
        %v3110 = vpack.c.bf16 %v3106, %v3106
        %v3111 = vpack.c.bf16 %v3107, %v3107
        %v3112 = vpack.c.bf16 %v3108, %v3108
        %v3113 = vpack.c.bf16 %v3109, %v3109
        %3114 = vxpose.xlu0.c.b16.start [1/8] %v2392, 128
        %3115 = vxpose.xlu0.c.b16.cont [2/8] 0, 128
        %3116 = vxpose.xlu0.c.b16.cont [3/8] 0, 128
        %3117 = vxpose.xlu0.c.b16.cont [4/8] 0, 128
        %3118 = vxpose.xlu0.c.b16.cont [5/8] 0, 128
        %3119 = vxpose.xlu0.c.b16.cont [6/8] 0, 128
        %3120 = vxpose.xlu0.c.b16.cont [7/8] 0, 128
        %3121 = vxpose.xlu0.c.b16.end [8/8] 0, 128
        %v3122 = vpop.trf.xlu0
        %v3123 = vpop.trf.xlu0
        %v3124 = vpop.trf.xlu0
        %v3125 = vpop.trf.xlu0
        %v3126 = vpop.trf.xlu0
        %v3127 = vpop.trf.xlu0
        %v3128 = vpop.trf.xlu0
        %v3129 = vpop.trf.xlu0
        %3130 = vxpose.xlu0.c.b16.start [1/8] %v2393, 128
        %3131 = vxpose.xlu0.c.b16.cont [2/8] 0, 128
        %3132 = vxpose.xlu0.c.b16.cont [3/8] 0, 128
        %3133 = vxpose.xlu0.c.b16.cont [4/8] 0, 128
        %3134 = vxpose.xlu0.c.b16.cont [5/8] 0, 128
        %3135 = vxpose.xlu0.c.b16.cont [6/8] 0, 128
        %3136 = vxpose.xlu0.c.b16.cont [7/8] 0, 128
        %3137 = vxpose.xlu0.c.b16.end [8/8] 0, 128
        %v3138 = vpop.trf.xlu0
        %v3139 = vpop.trf.xlu0
        %v3140 = vpop.trf.xlu0
        %v3141 = vpop.trf.xlu0
        %v3142 = vpop.trf.xlu0
        %v3143 = vpop.trf.xlu0
        %v3144 = vpop.trf.xlu0
        %v3145 = vpop.trf.xlu0
        %3146 = vxpose.xlu0.c.b16.start [1/8] %v2394, 128
        %3147 = vxpose.xlu0.c.b16.cont [2/8] 0, 128
        %3148 = vxpose.xlu0.c.b16.cont [3/8] 0, 128
        %3149 = vxpose.xlu0.c.b16.cont [4/8] 0, 128
        %3150 = vxpose.xlu0.c.b16.cont [5/8] 0, 128
        %3151 = vxpose.xlu0.c.b16.cont [6/8] 0, 128
        %3152 = vxpose.xlu0.c.b16.cont [7/8] 0, 128
        %3153 = vxpose.xlu0.c.b16.end [8/8] 0, 128
        %v3154 = vpop.trf.xlu0
        %v3155 = vpop.trf.xlu0
        %v3156 = vpop.trf.xlu0
        %v3157 = vpop.trf.xlu0
        %v3158 = vpop.trf.xlu0
        %v3159 = vpop.trf.xlu0
        %v3160 = vpop.trf.xlu0
        %v3161 = vpop.trf.xlu0
        %3162 = vxpose.xlu0.c.b16.start [1/8] %v2395, 128
        %3163 = vxpose.xlu0.c.b16.cont [2/8] 0, 128
        %3164 = vxpose.xlu0.c.b16.cont [3/8] 0, 128
        %3165 = vxpose.xlu0.c.b16.cont [4/8] 0, 128
        %3166 = vxpose.xlu0.c.b16.cont [5/8] 0, 128
        %3167 = vxpose.xlu0.c.b16.cont [6/8] 0, 128
        %3168 = vxpose.xlu0.c.b16.cont [7/8] 0, 128
        %3169 = vxpose.xlu0.c.b16.end [8/8] 0, 128
        %v3170 = vpop.trf.xlu0
        %v3171 = vpop.trf.xlu0
        %v3172 = vpop.trf.xlu0
        %v3173 = vpop.trf.xlu0
        %v3174 = vpop.trf.xlu0
        %v3175 = vpop.trf.xlu0
        %v3176 = vpop.trf.xlu0
        %v3177 = vpop.trf.xlu0
        %3178 = vxpose.xlu0.c.b16.start [1/8] %v2396, 128
        %3179 = vxpose.xlu0.c.b16.cont [2/8] 0, 128
        %3180 = vxpose.xlu0.c.b16.cont [3/8] 0, 128
        %3181 = vxpose.xlu0.c.b16.cont [4/8] 0, 128
        %3182 = vxpose.xlu0.c.b16.cont [5/8] 0, 128
        %3183 = vxpose.xlu0.c.b16.cont [6/8] 0, 128
        %3184 = vxpose.xlu0.c.b16.cont [7/8] 0, 128
        %3185 = vxpose.xlu0.c.b16.end [8/8] 0, 128
        %v3186 = vpop.trf.xlu0
        %v3187 = vpop.trf.xlu0
        %v3188 = vpop.trf.xlu0
        %v3189 = vpop.trf.xlu0
        %v3190 = vpop.trf.xlu0
        %v3191 = vpop.trf.xlu0
        %v3192 = vpop.trf.xlu0
        %v3193 = vpop.trf.xlu0
        %3194 = vxpose.xlu0.c.b16.start [1/8] %v2397, 128
        %3195 = vxpose.xlu0.c.b16.cont [2/8] 0, 128
        %3196 = vxpose.xlu0.c.b16.cont [3/8] 0, 128
        %3197 = vxpose.xlu0.c.b16.cont [4/8] 0, 128
        %3198 = vxpose.xlu0.c.b16.cont [5/8] 0, 128
        %3199 = vxpose.xlu0.c.b16.cont [6/8] 0, 128
        %3200 = vxpose.xlu0.c.b16.cont [7/8] 0, 128
        %3201 = vxpose.xlu0.c.b16.end [8/8] 0, 128
        %v3202 = vpop.trf.xlu0
        %v3203 = vpop.trf.xlu0
        %v3204 = vpop.trf.xlu0
        %v3205 = vpop.trf.xlu0
        %v3206 = vpop.trf.xlu0
        %v3207 = vpop.trf.xlu0
        %v3208 = vpop.trf.xlu0
        %v3209 = vpop.trf.xlu0
        %3210 = vxpose.xlu0.c.b16.start [1/8] %v2398, 128
        %3211 = vxpose.xlu0.c.b16.cont [2/8] 0, 128
        %3212 = vxpose.xlu0.c.b16.cont [3/8] 0, 128
        %3213 = vxpose.xlu0.c.b16.cont [4/8] 0, 128
        %3214 = vxpose.xlu0.c.b16.cont [5/8] 0, 128
        %3215 = vxpose.xlu0.c.b16.cont [6/8] 0, 128
        %3216 = vxpose.xlu0.c.b16.cont [7/8] 0, 128
        %3217 = vxpose.xlu0.c.b16.end [8/8] 0, 128
        %v3218 = vpop.trf.xlu0
        %v3219 = vpop.trf.xlu0
        %v3220 = vpop.trf.xlu0
        %v3221 = vpop.trf.xlu0
        %v3222 = vpop.trf.xlu0
        %v3223 = vpop.trf.xlu0
        %v3224 = vpop.trf.xlu0
        %v3225 = vpop.trf.xlu0
        %3226 = vxpose.xlu0.c.b16.start [1/8] %v2399, 128
        %3227 = vxpose.xlu0.c.b16.cont [2/8] 0, 128
        %3228 = vxpose.xlu0.c.b16.cont [3/8] 0, 128
        %3229 = vxpose.xlu0.c.b16.cont [4/8] 0, 128
        %3230 = vxpose.xlu0.c.b16.cont [5/8] 0, 128
        %3231 = vxpose.xlu0.c.b16.cont [6/8] 0, 128
        %3232 = vxpose.xlu0.c.b16.cont [7/8] 0, 128
        %3233 = vxpose.xlu0.c.b16.end [8/8] 0, 128
        %v3234 = vpop.trf.xlu0
        %v3235 = vpop.trf.xlu0
        %v3236 = vpop.trf.xlu0
        %v3237 = vpop.trf.xlu0
        %v3238 = vpop.trf.xlu0
        %v3239 = vpop.trf.xlu0
        %v3240 = vpop.trf.xlu0
        %v3241 = vpop.trf.xlu0
        %v3242 = vcombine.low %v3122, %v3186
        %v3244 = vunpack.c.l.s4 1983009808
        %v3245 = vunpack.c.0.s8 %v3244
        %v3246 = vlaneseq
        %v3247 = vshrl.u32 %v3246, 7
        %v3248 = vsub.s32 %v3245, %v3247
        %v3249 = vrot.slane %v3242, %v3248
        %v3250 = vcombine.low %v3154, %v3218
        %v3252 = vunpack.c.l.s4 1983009808
        %v3253 = vunpack.c.0.s8 %v3252
        %v3254 = vlaneseq
        %v3255 = vshrl.u32 %v3254, 7
        %v3256 = vsub.s32 %v3253, %v3255
        %v3257 = vrot.slane %v3250, %v3256
        %v3258 = vcombine.low %v3249, %v3257
        %v3259 = vcombine.high %v3249, %v3257
        %v3261 = vunpack.c.l.s4 1934713408
        %v3262 = vunpack.c.0.s8 %v3261
        %v3263 = vlaneseq
        %v3264 = vshrl.u32 %v3263, 7
        %v3265 = vsub.s32 %v3262, %v3264
        %v3266 = vrot.slane %v3258, %v3265
        %v3268 = vunpack.c.l.s4 1934713408
        %v3269 = vunpack.c.0.s8 %v3268
        %v3270 = vlaneseq
        %v3271 = vshrl.u32 %v3270, 7
        %v3272 = vsub.s32 %v3269, %v3271
        %v3273 = vrot.slane %v3259, %v3272
        %v3274 = vcombine.high %v3266, 0
        %v3275 = vcombine.high %v3273, 0
        %v3276 = vcombine.low %v3138, %v3202
        %v3278 = vunpack.c.l.s4 1983009808
        %v3279 = vunpack.c.0.s8 %v3278
        %v3280 = vlaneseq
        %v3281 = vshrl.u32 %v3280, 7
        %v3282 = vsub.s32 %v3279, %v3281
        %v3283 = vrot.slane %v3276, %v3282
        %v3284 = vcombine.low %v3170, %v3234
        %v3286 = vunpack.c.l.s4 1983009808
        %v3287 = vunpack.c.0.s8 %v3286
        %v3288 = vlaneseq
        %v3289 = vshrl.u32 %v3288, 7
        %v3290 = vsub.s32 %v3287, %v3289
        %v3291 = vrot.slane %v3284, %v3290
        %v3292 = vcombine.low %v3283, %v3291
        %v3293 = vcombine.high %v3283, %v3291
        %v3295 = vunpack.c.l.s4 1934713408
        %v3296 = vunpack.c.0.s8 %v3295
        %v3297 = vlaneseq
        %v3298 = vshrl.u32 %v3297, 7
        %v3299 = vsub.s32 %v3296, %v3298
        %v3300 = vrot.slane %v3292, %v3299
        %v3302 = vunpack.c.l.s4 1934713408
        %v3303 = vunpack.c.0.s8 %v3302
        %v3304 = vlaneseq
        %v3305 = vshrl.u32 %v3304, 7
        %v3306 = vsub.s32 %v3303, %v3305
        %v3307 = vrot.slane %v3293, %v3306
        %v3308 = vcombine.high %v3300, 0
        %v3309 = vcombine.high %v3307, 0
        %v3312 = vpack.i.b16 %v3300, %v3266
        %v3314 = vshrl.u32 %v3266, 16
        %v3315 = vshrl.u32 %v3300, 16
        %v3316 = vpack.i.b16 %v3315, %v3314
        %v3320 = vpack.i.b16 %v3308, %v3274
        %v3322 = vshrl.u32 %v3274, 16
        %v3323 = vshrl.u32 %v3308, 16
        %v3324 = vpack.i.b16 %v3323, %v3322
        %v3328 = vpack.i.b16 %v3307, %v3273
        %v3330 = vshrl.u32 %v3273, 16
        %v3331 = vshrl.u32 %v3307, 16
        %v3332 = vpack.i.b16 %v3331, %v3330
        %v3336 = vpack.i.b16 %v3309, %v3275
        %v3338 = vshrl.u32 %v3275, 16
        %v3339 = vshrl.u32 %v3309, 16
        %v3340 = vpack.i.b16 %v3339, %v3338
        %3342 = vxpose.xlu0.c.b16.start [1/8] %v3312, 128
        %3343 = vxpose.xlu0.c.b16.cont [2/8] 0, 128
        %3344 = vxpose.xlu0.c.b16.cont [3/8] 0, 128
        %3345 = vxpose.xlu0.c.b16.cont [4/8] 0, 128
        %3346 = vxpose.xlu0.c.b16.cont [5/8] 0, 128
        %3347 = vxpose.xlu0.c.b16.cont [6/8] 0, 128
        %3348 = vxpose.xlu0.c.b16.cont [7/8] 0, 128
        %3349 = vxpose.xlu0.c.b16.end [8/8] 0, 128
        %v3350 = vpop.trf.xlu0
        %v3351 = vpop.trf.xlu0
        %v3352 = vpop.trf.xlu0
        %v3353 = vpop.trf.xlu0
        %v3354 = vpop.trf.xlu0
        %v3355 = vpop.trf.xlu0
        %v3356 = vpop.trf.xlu0
        %v3357 = vpop.trf.xlu0
        %3358 = vxpose.xlu0.c.b16.start [1/8] %v3316, 128
        %3359 = vxpose.xlu0.c.b16.cont [2/8] 0, 128
        %3360 = vxpose.xlu0.c.b16.cont [3/8] 0, 128
        %3361 = vxpose.xlu0.c.b16.cont [4/8] 0, 128
        %3362 = vxpose.xlu0.c.b16.cont [5/8] 0, 128
        %3363 = vxpose.xlu0.c.b16.cont [6/8] 0, 128
        %3364 = vxpose.xlu0.c.b16.cont [7/8] 0, 128
        %3365 = vxpose.xlu0.c.b16.end [8/8] 0, 128
        %v3366 = vpop.trf.xlu0
        %v3367 = vpop.trf.xlu0
        %v3368 = vpop.trf.xlu0
        %v3369 = vpop.trf.xlu0
        %v3370 = vpop.trf.xlu0
        %v3371 = vpop.trf.xlu0
        %v3372 = vpop.trf.xlu0
        %v3373 = vpop.trf.xlu0
        %3374 = vxpose.xlu0.c.b16.start [1/8] %v3320, 128
        %3375 = vxpose.xlu0.c.b16.cont [2/8] 0, 128
        %3376 = vxpose.xlu0.c.b16.cont [3/8] 0, 128
        %3377 = vxpose.xlu0.c.b16.cont [4/8] 0, 128
        %3378 = vxpose.xlu0.c.b16.cont [5/8] 0, 128
        %3379 = vxpose.xlu0.c.b16.cont [6/8] 0, 128
        %3380 = vxpose.xlu0.c.b16.cont [7/8] 0, 128
        %3381 = vxpose.xlu0.c.b16.end [8/8] 0, 128
        %v3382 = vpop.trf.xlu0
        %v3383 = vpop.trf.xlu0
        %v3384 = vpop.trf.xlu0
        %v3385 = vpop.trf.xlu0
        %v3386 = vpop.trf.xlu0
        %v3387 = vpop.trf.xlu0
        %v3388 = vpop.trf.xlu0
        %v3389 = vpop.trf.xlu0
        %3390 = vxpose.xlu0.c.b16.start [1/8] %v3324, 128
        %3391 = vxpose.xlu0.c.b16.cont [2/8] 0, 128
        %3392 = vxpose.xlu0.c.b16.cont [3/8] 0, 128
        %3393 = vxpose.xlu0.c.b16.cont [4/8] 0, 128
        %3394 = vxpose.xlu0.c.b16.cont [5/8] 0, 128
        %3395 = vxpose.xlu0.c.b16.cont [6/8] 0, 128
        %3396 = vxpose.xlu0.c.b16.cont [7/8] 0, 128
        %3397 = vxpose.xlu0.c.b16.end [8/8] 0, 128
        %v3398 = vpop.trf.xlu0
        %v3399 = vpop.trf.xlu0
        %v3400 = vpop.trf.xlu0
        %v3401 = vpop.trf.xlu0
        %v3402 = vpop.trf.xlu0
        %v3403 = vpop.trf.xlu0
        %v3404 = vpop.trf.xlu0
        %v3405 = vpop.trf.xlu0
        %3406 = vxpose.xlu0.c.b16.start [1/8] %v3328, 128
        %3407 = vxpose.xlu0.c.b16.cont [2/8] 0, 128
        %3408 = vxpose.xlu0.c.b16.cont [3/8] 0, 128
        %3409 = vxpose.xlu0.c.b16.cont [4/8] 0, 128
        %3410 = vxpose.xlu0.c.b16.cont [5/8] 0, 128
        %3411 = vxpose.xlu0.c.b16.cont [6/8] 0, 128
        %3412 = vxpose.xlu0.c.b16.cont [7/8] 0, 128
        %3413 = vxpose.xlu0.c.b16.end [8/8] 0, 128
        %v3414 = vpop.trf.xlu0
        %v3415 = vpop.trf.xlu0
        %v3416 = vpop.trf.xlu0
        %v3417 = vpop.trf.xlu0
        %v3418 = vpop.trf.xlu0
        %v3419 = vpop.trf.xlu0
        %v3420 = vpop.trf.xlu0
        %v3421 = vpop.trf.xlu0
        %3422 = vxpose.xlu0.c.b16.start [1/8] %v3332, 128
        %3423 = vxpose.xlu0.c.b16.cont [2/8] 0, 128
        %3424 = vxpose.xlu0.c.b16.cont [3/8] 0, 128
        %3425 = vxpose.xlu0.c.b16.cont [4/8] 0, 128
        %3426 = vxpose.xlu0.c.b16.cont [5/8] 0, 128
        %3427 = vxpose.xlu0.c.b16.cont [6/8] 0, 128
        %3428 = vxpose.xlu0.c.b16.cont [7/8] 0, 128
        %3429 = vxpose.xlu0.c.b16.end [8/8] 0, 128
        %v3430 = vpop.trf.xlu0
        %v3431 = vpop.trf.xlu0
        %v3432 = vpop.trf.xlu0
        %v3433 = vpop.trf.xlu0
        %v3434 = vpop.trf.xlu0
        %v3435 = vpop.trf.xlu0
        %v3436 = vpop.trf.xlu0
        %v3437 = vpop.trf.xlu0
        %3438 = vxpose.xlu0.c.b16.start [1/8] %v3336, 128
        %3439 = vxpose.xlu0.c.b16.cont [2/8] 0, 128
        %3440 = vxpose.xlu0.c.b16.cont [3/8] 0, 128
        %3441 = vxpose.xlu0.c.b16.cont [4/8] 0, 128
        %3442 = vxpose.xlu0.c.b16.cont [5/8] 0, 128
        %3443 = vxpose.xlu0.c.b16.cont [6/8] 0, 128
        %3444 = vxpose.xlu0.c.b16.cont [7/8] 0, 128
        %3445 = vxpose.xlu0.c.b16.end [8/8] 0, 128
        %v3446 = vpop.trf.xlu0
        %v3447 = vpop.trf.xlu0
        %v3448 = vpop.trf.xlu0
        %v3449 = vpop.trf.xlu0
        %v3450 = vpop.trf.xlu0
        %v3451 = vpop.trf.xlu0
        %v3452 = vpop.trf.xlu0
        %v3453 = vpop.trf.xlu0
        %3454 = vxpose.xlu0.c.b16.start [1/8] %v3340, 128
        %3455 = vxpose.xlu0.c.b16.cont [2/8] 0, 128
        %3456 = vxpose.xlu0.c.b16.cont [3/8] 0, 128
        %3457 = vxpose.xlu0.c.b16.cont [4/8] 0, 128
        %3458 = vxpose.xlu0.c.b16.cont [5/8] 0, 128
        %3459 = vxpose.xlu0.c.b16.cont [6/8] 0, 128
        %3460 = vxpose.xlu0.c.b16.cont [7/8] 0, 128
        %3461 = vxpose.xlu0.c.b16.end [8/8] 0, 128
        %v3462 = vpop.trf.xlu0
        %v3463 = vpop.trf.xlu0
        %v3464 = vpop.trf.xlu0
        %v3465 = vpop.trf.xlu0
        %v3466 = vpop.trf.xlu0
        %v3467 = vpop.trf.xlu0
        %v3468 = vpop.trf.xlu0
        %v3469 = vpop.trf.xlu0
        %v3470 = vcombine.low %v3350, %v3414
        %v3472 = vunpack.c.l.s4 1983009808
        %v3473 = vunpack.c.0.s8 %v3472
        %v3474 = vlaneseq
        %v3475 = vshrl.u32 %v3474, 7
        %v3476 = vsub.s32 %v3473, %v3475
        %v3477 = vrot.slane %v3470, %v3476
        %v3478 = vcombine.low %v3382, %v3446
        %v3480 = vunpack.c.l.s4 1983009808
        %v3481 = vunpack.c.0.s8 %v3480
        %v3482 = vlaneseq
        %v3483 = vshrl.u32 %v3482, 7
        %v3484 = vsub.s32 %v3481, %v3483
        %v3485 = vrot.slane %v3478, %v3484
        %v3486 = vcombine.low %v3477, %v3485
        %v3488 = vunpack.c.l.s4 1934713408
        %v3489 = vunpack.c.0.s8 %v3488
        %v3490 = vlaneseq
        %v3491 = vshrl.u32 %v3490, 7
        %v3492 = vsub.s32 %v3489, %v3491
        %v3493 = vrot.slane %v3486, %v3492
        %v3494 = vcombine.high %v3493, 0
        %v3495 = vcombine.low %v3366, %v3430
        %v3497 = vunpack.c.l.s4 1983009808
        %v3498 = vunpack.c.0.s8 %v3497
        %v3499 = vlaneseq
        %v3500 = vshrl.u32 %v3499, 7
        %v3501 = vsub.s32 %v3498, %v3500
        %v3502 = vrot.slane %v3495, %v3501
        %v3503 = vcombine.low %v3398, %v3462
        %v3505 = vunpack.c.l.s4 1983009808
        %v3506 = vunpack.c.0.s8 %v3505
        %v3507 = vlaneseq
        %v3508 = vshrl.u32 %v3507, 7
        %v3509 = vsub.s32 %v3506, %v3508
        %v3510 = vrot.slane %v3503, %v3509
        %v3511 = vcombine.low %v3502, %v3510
        %v3513 = vunpack.c.l.s4 1934713408
        %v3514 = vunpack.c.0.s8 %v3513
        %v3515 = vlaneseq
        %v3516 = vshrl.u32 %v3515, 7
        %v3517 = vsub.s32 %v3514, %v3516
        %v3518 = vrot.slane %v3511, %v3517
        %v3519 = vcombine.high %v3518, 0
        %v3522 = vpack.i.b16 %v3518, %v3493
        %v3523 = vshrl.u32 %v3493, 16
        %v3524 = vshrl.u32 %v3518, 16
        %v3525 = vpack.i.b16 %v3524, %v3523
        %v3528 = vpack.i.b16 %v3519, %v3494
        %v3529 = vshrl.u32 %v3494, 16
        %v3530 = vshrl.u32 %v3519, 16
        %v3531 = vpack.i.b16 %v3530, %v3529
        %v3533 = vsel %vm2880, %v3522, 0
        %v3536 = vsel %vm2880, %v3110, 0
        %3538 = vmatprep.subr.bf16.mxu0 0
        %3539 = vmatpush1.bf16.xpose.msra.mxu0 0
        %3540 = vmatprep.subr.bf16.mxu0 0
        %3541 = vmatpush1.bf16.xpose.msra.mxu0 0
        %3542 = vmatprep.subr.bf16.mxu0 0
        %3543 = vmatpush1.bf16.xpose.msra.mxu0 0
        %3544 = vmatprep.subr.bf16.mxu0 0
        %3545 = vmatpush1.bf16.xpose.msra.mxu0 0
        %3546 = vmatprep.subr.bf16.mxu0 0
        %3547 = vmatpush1.bf16.xpose.msra.mxu0 0
        %3548 = vmatprep.subr.bf16.mxu0 0
        %3549 = vmatpush1.bf16.xpose.msra.mxu0 0
        %3550 = vmatprep.subr.bf16.mxu0 0
        %3551 = vmatpush1.bf16.xpose.msra.mxu0 0
        %3552 = vmatprep.subr.bf16.mxu0 0
        %3553 = vmatpush1.bf16.xpose.msra.mxu0 %v3536
        %3554 = vmatprep.subr.bf16.mxu0 0
        %3555 = vmatpush2.bf16.xpose.msra.mxu0 0
        %3556 = vmatprep.subr.bf16.mxu0 0
        %3557 = vmatpush2.bf16.xpose.msra.mxu0 0
        %3558 = vmatprep.subr.bf16.mxu0 0
        %3559 = vmatpush2.bf16.xpose.msra.mxu0 0
        %3560 = vmatprep.subr.bf16.mxu0 0
        %3561 = vmatpush2.bf16.xpose.msra.mxu0 0
        %3562 = vmatprep.subr.bf16.mxu0 0
        %3563 = vmatpush2.bf16.xpose.msra.mxu0 0
        %3564 = vmatprep.subr.bf16.mxu0 0
        %3565 = vmatpush2.bf16.xpose.msra.mxu0 0
        %3566 = vmatprep.subr.bf16.mxu0 0
        %3567 = vmatpush2.bf16.xpose.msra.mxu0 0
        %3568 = vmatprep.subr.bf16.mxu0 0
        %3569 = vmatpush2.bf16.xpose.msra.mxu0 0
        %3570 = vmatprep.mubr.bf16.mxu0 0
        %3571 = vmatmul.mubr.bf16.gmra.mxu0 %v3533
        %v3572 = vpop.f32.mrf.mxu0
        %v3573 = vadd.f32 0.0, %v3572
        %v3574 = vpop.f32.mrf.mxu0
        %v3575 = vpop.f32.mrf.mxu0
        %v3576 = vpop.f32.mrf.mxu0
        %3577 = vdwg.mxu0
        %v3579 = vsel %vm2880, %v3525, 0
        %v3582 = vsel %vm2880, %v3111, 0
        %3584 = vmatprep.subr.bf16.mxu0 0
        %3585 = vmatpush1.bf16.xpose.msra.mxu0 0
        %3586 = vmatprep.subr.bf16.mxu0 0
        %3587 = vmatpush1.bf16.xpose.msra.mxu0 0
        %3588 = vmatprep.subr.bf16.mxu0 0
        %3589 = vmatpush1.bf16.xpose.msra.mxu0 0
        %3590 = vmatprep.subr.bf16.mxu0 0
        %3591 = vmatpush1.bf16.xpose.msra.mxu0 0
        %3592 = vmatprep.subr.bf16.mxu0 0
        %3593 = vmatpush1.bf16.xpose.msra.mxu0 0
        %3594 = vmatprep.subr.bf16.mxu0 0
        %3595 = vmatpush1.bf16.xpose.msra.mxu0 0
        %3596 = vmatprep.subr.bf16.mxu0 0
        %3597 = vmatpush1.bf16.xpose.msra.mxu0 0
        %3598 = vmatprep.subr.bf16.mxu0 0
        %3599 = vmatpush1.bf16.xpose.msra.mxu0 %v3582
        %3600 = vmatprep.subr.bf16.mxu0 0
        %3601 = vmatpush2.bf16.xpose.msra.mxu0 0
        %3602 = vmatprep.subr.bf16.mxu0 0
        %3603 = vmatpush2.bf16.xpose.msra.mxu0 0
        %3604 = vmatprep.subr.bf16.mxu0 0
        %3605 = vmatpush2.bf16.xpose.msra.mxu0 0
        %3606 = vmatprep.subr.bf16.mxu0 0
        %3607 = vmatpush2.bf16.xpose.msra.mxu0 0
        %3608 = vmatprep.subr.bf16.mxu0 0
        %3609 = vmatpush2.bf16.xpose.msra.mxu0 0
        %3610 = vmatprep.subr.bf16.mxu0 0
        %3611 = vmatpush2.bf16.xpose.msra.mxu0 0
        %3612 = vmatprep.subr.bf16.mxu0 0
        %3613 = vmatpush2.bf16.xpose.msra.mxu0 0
        %3614 = vmatprep.subr.bf16.mxu0 0
        %3615 = vmatpush2.bf16.xpose.msra.mxu0 0
        %3616 = vmatprep.mubr.bf16.mxu0 0
        %3617 = vmatmul.mubr.bf16.gmra.mxu0 %v3579
        %v3618 = vpop.f32.mrf.mxu0
        %v3619 = vadd.f32 0.0, %v3618
        %v3620 = vpop.f32.mrf.mxu0
        %v3621 = vpop.f32.mrf.mxu0
        %v3622 = vpop.f32.mrf.mxu0
        %3623 = vdwg.mxu0
        %v3625 = vsel %vm2880, %v3528, 0
        %v3628 = vsel %vm2880, %v3112, 0
        %3630 = vmatprep.subr.bf16.mxu0 0
        %3631 = vmatpush1.bf16.xpose.msra.mxu0 0
        %3632 = vmatprep.subr.bf16.mxu0 0
        %3633 = vmatpush1.bf16.xpose.msra.mxu0 0
        %3634 = vmatprep.subr.bf16.mxu0 0
        %3635 = vmatpush1.bf16.xpose.msra.mxu0 0
        %3636 = vmatprep.subr.bf16.mxu0 0
        %3637 = vmatpush1.bf16.xpose.msra.mxu0 0
        %3638 = vmatprep.subr.bf16.mxu0 0
        %3639 = vmatpush1.bf16.xpose.msra.mxu0 0
        %3640 = vmatprep.subr.bf16.mxu0 0
        %3641 = vmatpush1.bf16.xpose.msra.mxu0 0
        %3642 = vmatprep.subr.bf16.mxu0 0
        %3643 = vmatpush1.bf16.xpose.msra.mxu0 0
        %3644 = vmatprep.subr.bf16.mxu0 0
        %3645 = vmatpush1.bf16.xpose.msra.mxu0 %v3628
        %3646 = vmatprep.subr.bf16.mxu0 0
        %3647 = vmatpush2.bf16.xpose.msra.mxu0 0
        %3648 = vmatprep.subr.bf16.mxu0 0
        %3649 = vmatpush2.bf16.xpose.msra.mxu0 0
        %3650 = vmatprep.subr.bf16.mxu0 0
        %3651 = vmatpush2.bf16.xpose.msra.mxu0 0
        %3652 = vmatprep.subr.bf16.mxu0 0
        %3653 = vmatpush2.bf16.xpose.msra.mxu0 0
        %3654 = vmatprep.subr.bf16.mxu0 0
        %3655 = vmatpush2.bf16.xpose.msra.mxu0 0
        %3656 = vmatprep.subr.bf16.mxu0 0
        %3657 = vmatpush2.bf16.xpose.msra.mxu0 0
        %3658 = vmatprep.subr.bf16.mxu0 0
        %3659 = vmatpush2.bf16.xpose.msra.mxu0 0
        %3660 = vmatprep.subr.bf16.mxu0 0
        %3661 = vmatpush2.bf16.xpose.msra.mxu0 0
        %3662 = vmatprep.mubr.bf16.mxu0 0
        %3663 = vmatmul.mubr.bf16.gmra.mxu0 %v3625
        %v3664 = vpop.f32.mrf.mxu0
        %v3665 = vadd.f32 0.0, %v3664
        %v3666 = vpop.f32.mrf.mxu0
        %v3667 = vpop.f32.mrf.mxu0
        %v3668 = vpop.f32.mrf.mxu0
        %3669 = vdwg.mxu0
        %v3671 = vsel %vm2880, %v3531, 0
        %v3674 = vsel %vm2880, %v3113, 0
        %3676 = vmatprep.subr.bf16.mxu0 0
        %3677 = vmatpush1.bf16.xpose.msra.mxu0 0
        %3678 = vmatprep.subr.bf16.mxu0 0
        %3679 = vmatpush1.bf16.xpose.msra.mxu0 0
        %3680 = vmatprep.subr.bf16.mxu0 0
        %3681 = vmatpush1.bf16.xpose.msra.mxu0 0
        %3682 = vmatprep.subr.bf16.mxu0 0
        %3683 = vmatpush1.bf16.xpose.msra.mxu0 0
        %3684 = vmatprep.subr.bf16.mxu0 0
        %3685 = vmatpush1.bf16.xpose.msra.mxu0 0
        %3686 = vmatprep.subr.bf16.mxu0 0
        %3687 = vmatpush1.bf16.xpose.msra.mxu0 0
        %3688 = vmatprep.subr.bf16.mxu0 0
        %3689 = vmatpush1.bf16.xpose.msra.mxu0 0
        %3690 = vmatprep.subr.bf16.mxu0 0
        %3691 = vmatpush1.bf16.xpose.msra.mxu0 %v3674
        %3692 = vmatprep.subr.bf16.mxu0 0
        %3693 = vmatpush2.bf16.xpose.msra.mxu0 0
        %3694 = vmatprep.subr.bf16.mxu0 0
        %3695 = vmatpush2.bf16.xpose.msra.mxu0 0
        %3696 = vmatprep.subr.bf16.mxu0 0
        %3697 = vmatpush2.bf16.xpose.msra.mxu0 0
        %3698 = vmatprep.subr.bf16.mxu0 0
        %3699 = vmatpush2.bf16.xpose.msra.mxu0 0
        %3700 = vmatprep.subr.bf16.mxu0 0
        %3701 = vmatpush2.bf16.xpose.msra.mxu0 0
        %3702 = vmatprep.subr.bf16.mxu0 0
        %3703 = vmatpush2.bf16.xpose.msra.mxu0 0
        %3704 = vmatprep.subr.bf16.mxu0 0
        %3705 = vmatpush2.bf16.xpose.msra.mxu0 0
        %3706 = vmatprep.subr.bf16.mxu0 0
        %3707 = vmatpush2.bf16.xpose.msra.mxu0 0
        %3708 = vmatprep.mubr.bf16.mxu0 0
        %3709 = vmatmul.mubr.bf16.gmra.mxu0 %v3671
        %v3710 = vpop.f32.mrf.mxu0
        %v3711 = vadd.f32 0.0, %v3710
        %v3712 = vpop.f32.mrf.mxu0
        %v3713 = vpop.f32.mrf.mxu0
        %v3714 = vpop.f32.mrf.mxu0
        %3715 = vdwg.mxu0
        %3716 = vxpose.xlu0.b32.start [1/16] %v3573, 128
        %3717 = vxpose.xlu0.b32.cont [2/16] 0.0, 128
        %3718 = vxpose.xlu0.b32.cont [3/16] 0.0, 128
        %3719 = vxpose.xlu0.b32.cont [4/16] 0.0, 128
        %3720 = vxpose.xlu0.b32.cont [5/16] 0.0, 128
        %3721 = vxpose.xlu0.b32.cont [6/16] 0.0, 128
        %3722 = vxpose.xlu0.b32.cont [7/16] 0.0, 128
        %3723 = vxpose.xlu0.b32.cont [8/16] 0.0, 128
        %3724 = vxpose.xlu0.b32.cont [9/16] 0.0, 128
        %3725 = vxpose.xlu0.b32.cont [10/16] 0.0, 128
        %3726 = vxpose.xlu0.b32.cont [11/16] 0.0, 128
        %3727 = vxpose.xlu0.b32.cont [12/16] 0.0, 128
        %3728 = vxpose.xlu0.b32.cont [13/16] 0.0, 128
        %3729 = vxpose.xlu0.b32.cont [14/16] 0.0, 128
        %3730 = vxpose.xlu0.b32.cont [15/16] 0.0, 128
        %3731 = vxpose.xlu0.b32.end [16/16] 0.0, 128
        %v3732 = vpop.trf.xlu0
        %v3733 = vpop.trf.xlu0
        %v3734 = vpop.trf.xlu0
        %v3735 = vpop.trf.xlu0
        %v3736 = vpop.trf.xlu0
        %v3737 = vpop.trf.xlu0
        %v3738 = vpop.trf.xlu0
        %v3739 = vpop.trf.xlu0
        %v3740 = vpop.trf.xlu0
        %v3741 = vpop.trf.xlu0
        %v3742 = vpop.trf.xlu0
        %v3743 = vpop.trf.xlu0
        %v3744 = vpop.trf.xlu0
        %v3745 = vpop.trf.xlu0
        %v3746 = vpop.trf.xlu0
        %v3747 = vpop.trf.xlu0
        %3748 = vxpose.xlu0.b32.start [1/16] %v3619, 128
        %3749 = vxpose.xlu0.b32.cont [2/16] 0.0, 128
        %3750 = vxpose.xlu0.b32.cont [3/16] 0.0, 128
        %3751 = vxpose.xlu0.b32.cont [4/16] 0.0, 128
        %3752 = vxpose.xlu0.b32.cont [5/16] 0.0, 128
        %3753 = vxpose.xlu0.b32.cont [6/16] 0.0, 128
        %3754 = vxpose.xlu0.b32.cont [7/16] 0.0, 128
        %3755 = vxpose.xlu0.b32.cont [8/16] 0.0, 128
        %3756 = vxpose.xlu0.b32.cont [9/16] 0.0, 128
        %3757 = vxpose.xlu0.b32.cont [10/16] 0.0, 128
        %3758 = vxpose.xlu0.b32.cont [11/16] 0.0, 128
        %3759 = vxpose.xlu0.b32.cont [12/16] 0.0, 128
        %3760 = vxpose.xlu0.b32.cont [13/16] 0.0, 128
        %3761 = vxpose.xlu0.b32.cont [14/16] 0.0, 128
        %3762 = vxpose.xlu0.b32.cont [15/16] 0.0, 128
        %3763 = vxpose.xlu0.b32.end [16/16] 0.0, 128
        %v3764 = vpop.trf.xlu0
        %v3765 = vpop.trf.xlu0
        %v3766 = vpop.trf.xlu0
        %v3767 = vpop.trf.xlu0
        %v3768 = vpop.trf.xlu0
        %v3769 = vpop.trf.xlu0
        %v3770 = vpop.trf.xlu0
        %v3771 = vpop.trf.xlu0
        %v3772 = vpop.trf.xlu0
        %v3773 = vpop.trf.xlu0
        %v3774 = vpop.trf.xlu0
        %v3775 = vpop.trf.xlu0
        %v3776 = vpop.trf.xlu0
        %v3777 = vpop.trf.xlu0
        %v3778 = vpop.trf.xlu0
        %v3779 = vpop.trf.xlu0
        %3780 = vxpose.xlu0.b32.start [1/16] %v3665, 128
        %3781 = vxpose.xlu0.b32.cont [2/16] 0.0, 128
        %3782 = vxpose.xlu0.b32.cont [3/16] 0.0, 128
        %3783 = vxpose.xlu0.b32.cont [4/16] 0.0, 128
        %3784 = vxpose.xlu0.b32.cont [5/16] 0.0, 128
        %3785 = vxpose.xlu0.b32.cont [6/16] 0.0, 128
        %3786 = vxpose.xlu0.b32.cont [7/16] 0.0, 128
        %3787 = vxpose.xlu0.b32.cont [8/16] 0.0, 128
        %3788 = vxpose.xlu0.b32.cont [9/16] 0.0, 128
        %3789 = vxpose.xlu0.b32.cont [10/16] 0.0, 128
        %3790 = vxpose.xlu0.b32.cont [11/16] 0.0, 128
        %3791 = vxpose.xlu0.b32.cont [12/16] 0.0, 128
        %3792 = vxpose.xlu0.b32.cont [13/16] 0.0, 128
        %3793 = vxpose.xlu0.b32.cont [14/16] 0.0, 128
        %3794 = vxpose.xlu0.b32.cont [15/16] 0.0, 128
        %3795 = vxpose.xlu0.b32.end [16/16] 0.0, 128
        %v3796 = vpop.trf.xlu0
        %v3797 = vpop.trf.xlu0
        %v3798 = vpop.trf.xlu0
        %v3799 = vpop.trf.xlu0
        %v3800 = vpop.trf.xlu0
        %v3801 = vpop.trf.xlu0
        %v3802 = vpop.trf.xlu0
        %v3803 = vpop.trf.xlu0
        %v3804 = vpop.trf.xlu0
        %v3805 = vpop.trf.xlu0
        %v3806 = vpop.trf.xlu0
        %v3807 = vpop.trf.xlu0
        %v3808 = vpop.trf.xlu0
        %v3809 = vpop.trf.xlu0
        %v3810 = vpop.trf.xlu0
        %v3811 = vpop.trf.xlu0
        %3812 = vxpose.xlu0.b32.start [1/16] %v3711, 128
        %3813 = vxpose.xlu0.b32.cont [2/16] 0.0, 128
        %3814 = vxpose.xlu0.b32.cont [3/16] 0.0, 128
        %3815 = vxpose.xlu0.b32.cont [4/16] 0.0, 128
        %3816 = vxpose.xlu0.b32.cont [5/16] 0.0, 128
        %3817 = vxpose.xlu0.b32.cont [6/16] 0.0, 128
        %3818 = vxpose.xlu0.b32.cont [7/16] 0.0, 128
        %3819 = vxpose.xlu0.b32.cont [8/16] 0.0, 128
        %3820 = vxpose.xlu0.b32.cont [9/16] 0.0, 128
        %3821 = vxpose.xlu0.b32.cont [10/16] 0.0, 128
        %3822 = vxpose.xlu0.b32.cont [11/16] 0.0, 128
        %3823 = vxpose.xlu0.b32.cont [12/16] 0.0, 128
        %3824 = vxpose.xlu0.b32.cont [13/16] 0.0, 128
        %3825 = vxpose.xlu0.b32.cont [14/16] 0.0, 128
        %3826 = vxpose.xlu0.b32.cont [15/16] 0.0, 128
        %3827 = vxpose.xlu0.b32.end [16/16] 0.0, 128
        %v3828 = vpop.trf.xlu0
        %v3829 = vpop.trf.xlu0
        %v3830 = vpop.trf.xlu0
        %v3831 = vpop.trf.xlu0
        %v3832 = vpop.trf.xlu0
        %v3833 = vpop.trf.xlu0
        %v3834 = vpop.trf.xlu0
        %v3835 = vpop.trf.xlu0
        %v3836 = vpop.trf.xlu0
        %v3837 = vpop.trf.xlu0
        %v3838 = vpop.trf.xlu0
        %v3839 = vpop.trf.xlu0
        %v3840 = vpop.trf.xlu0
        %v3841 = vpop.trf.xlu0
        %v3842 = vpop.trf.xlu0
        %v3843 = vpop.trf.xlu0
        %v3844 = vcombine.low %v3732, %v3796
        %v3845 = vcombine.high %v3732, %v3796
        %v3847 = vunpack.c.l.s4 1983009808
        %v3848 = vunpack.c.0.s8 %v3847
        %v3849 = vlaneseq
        %v3850 = vshrl.u32 %v3849, 7
        %v3851 = vsub.s32 %v3848, %v3850
        %v3852 = vrot.slane %v3844, %v3851
        %v3854 = vunpack.c.l.s4 1983009808
        %v3855 = vunpack.c.0.s8 %v3854
        %v3856 = vlaneseq
        %v3857 = vshrl.u32 %v3856, 7
        %v3858 = vsub.s32 %v3855, %v3857
        %v3859 = vrot.slane %v3845, %v3858
        %v3860 = vcombine.low %v3764, %v3828
        %v3861 = vcombine.high %v3764, %v3828
        %v3863 = vunpack.c.l.s4 1983009808
        %v3864 = vunpack.c.0.s8 %v3863
        %v3865 = vlaneseq
        %v3866 = vshrl.u32 %v3865, 7
        %v3867 = vsub.s32 %v3864, %v3866
        %v3868 = vrot.slane %v3860, %v3867
        %v3870 = vunpack.c.l.s4 1983009808
        %v3871 = vunpack.c.0.s8 %v3870
        %v3872 = vlaneseq
        %v3873 = vshrl.u32 %v3872, 7
        %v3874 = vsub.s32 %v3871, %v3873
        %v3875 = vrot.slane %v3861, %v3874
        %v3876 = vcombine.low %v3852, %v3868
        %v3877 = vcombine.high %v3852, %v3868
        %v3879 = vunpack.c.l.s4 1934713408
        %v3880 = vunpack.c.0.s8 %v3879
        %v3881 = vlaneseq
        %v3882 = vshrl.u32 %v3881, 7
        %v3883 = vsub.s32 %v3880, %v3882
        %v3884 = vrot.slane %v3876, %v3883
        %v3886 = vunpack.c.l.s4 1934713408
        %v3887 = vunpack.c.0.s8 %v3886
        %v3888 = vlaneseq
        %v3889 = vshrl.u32 %v3888, 7
        %v3890 = vsub.s32 %v3887, %v3889
        %v3891 = vrot.slane %v3877, %v3890
        %v3892 = vcombine.low %v3859, %v3875
        %v3893 = vcombine.high %v3859, %v3875
        %v3895 = vunpack.c.l.s4 1934713408
        %v3896 = vunpack.c.0.s8 %v3895
        %v3897 = vlaneseq
        %v3898 = vshrl.u32 %v3897, 7
        %v3899 = vsub.s32 %v3896, %v3898
        %v3900 = vrot.slane %v3892, %v3899
        %v3902 = vunpack.c.l.s4 1934713408
        %v3903 = vunpack.c.0.s8 %v3902
        %v3904 = vlaneseq
        %v3905 = vshrl.u32 %v3904, 7
        %v3906 = vsub.s32 %v3903, %v3905
        %v3907 = vrot.slane %v3893, %v3906
        %v3908 = vcombine.high %v3884, 0.0
        %v3909 = vcombine.high %v3891, 0.0
        %v3910 = vcombine.high %v3900, 0.0
        %v3911 = vcombine.high %v3907, 0.0
        %v3912 = vcombine.low %v3884, %v3891
        %v3914 = vunpack.c.l.s4 1983009808
        %v3915 = vunpack.c.0.s8 %v3914
        %v3916 = vlaneseq
        %v3917 = vshrl.u32 %v3916, 7
        %v3918 = vsub.s32 %v3915, %v3917
        %v3919 = vrot.slane %v3912, %v3918
        %v3920 = vcombine.low %v3908, %v3909
        %v3922 = vunpack.c.l.s4 1983009808
        %v3923 = vunpack.c.0.s8 %v3922
        %v3924 = vlaneseq
        %v3925 = vshrl.u32 %v3924, 7
        %v3926 = vsub.s32 %v3923, %v3925
        %v3927 = vrot.slane %v3920, %v3926
        %v3928 = vcombine.low %v3900, %v3907
        %v3930 = vunpack.c.l.s4 1983009808
        %v3931 = vunpack.c.0.s8 %v3930
        %v3932 = vlaneseq
        %v3933 = vshrl.u32 %v3932, 7
        %v3934 = vsub.s32 %v3931, %v3933
        %v3935 = vrot.slane %v3928, %v3934
        %v3936 = vcombine.low %v3910, %v3911
        %v3938 = vunpack.c.l.s4 1983009808
        %v3939 = vunpack.c.0.s8 %v3938
        %v3940 = vlaneseq
        %v3941 = vshrl.u32 %v3940, 7
        %v3942 = vsub.s32 %v3939, %v3941
        %v3943 = vrot.slane %v3936, %v3942
        %v3944 = vcombine.low %v3919, %v3927
        %v3945 = vcombine.high %v3919, %v3927
        %v3947 = vunpack.c.l.s4 1934713408
        %v3948 = vunpack.c.0.s8 %v3947
        %v3949 = vlaneseq
        %v3950 = vshrl.u32 %v3949, 7
        %v3951 = vsub.s32 %v3948, %v3950
        %v3952 = vrot.slane %v3944, %v3951
        %v3954 = vunpack.c.l.s4 1934713408
        %v3955 = vunpack.c.0.s8 %v3954
        %v3956 = vlaneseq
        %v3957 = vshrl.u32 %v3956, 7
        %v3958 = vsub.s32 %v3955, %v3957
        %v3959 = vrot.slane %v3945, %v3958
        %v3960 = vcombine.low %v3935, %v3943
        %v3961 = vcombine.high %v3935, %v3943
        %v3963 = vunpack.c.l.s4 1934713408
        %v3964 = vunpack.c.0.s8 %v3963
        %v3965 = vlaneseq
        %v3966 = vshrl.u32 %v3965, 7
        %v3967 = vsub.s32 %v3964, %v3966
        %v3968 = vrot.slane %v3960, %v3967
        %v3970 = vunpack.c.l.s4 1934713408
        %v3971 = vunpack.c.0.s8 %v3970
        %v3972 = vlaneseq
        %v3973 = vshrl.u32 %v3972, 7
        %v3974 = vsub.s32 %v3971, %v3973
        %v3975 = vrot.slane %v3961, %v3974
        %v3976 = vcombine.low %v3952, %v3968
        %v3977 = vcombine.high %v3952, %v3968
        %v3978 = vcombine.low %v3959, %v3975
        %v3979 = vcombine.high %v3959, %v3975
        %3981 = vrot.lane.b32.xlu0 %v3977, 8
        %v3982 = vpop.permute.xlu0 %3981
        %3985 = vrot.lane.b32.xlu0 %v3978, 16
        %v3986 = vpop.permute.xlu0 %3985
        %3989 = vrot.lane.b32.xlu0 %v3979, 24
        %v3990 = vpop.permute.xlu0 %3989
        %v3992 = vsel %vm2880, %v3976, %v3982
        %vm3993 = vcmask 130048
        %v3994 = vsel %vm3993, %v3992, %v3986
        %vm3995 = vcmask 195584
        %v3996 = vsel %vm3995, %v3994, %v3990
        %v3997 = vpack.c.bf16 %v3996, %v3996
        %v3998 = vld [vmem:[%s1555] sm:$0xf]
        %v3999 = vld [vmem:[%s1555 + $0x4] sm:$0xf]
        %v4000 = vld [vmem:[%s1555 + $0x8] sm:$0xf]
        %v4001 = vld [vmem:[%s1555 + $0xc] sm:$0xf]
        %v4002 = vld [vmem:[%s1563] sm:$0x1]
        %v4004 = vlaneseq
        %v4005 = vshrl.u32 %v4004, 7
        %v4006 = vsub.s32 0, %v4005
        %v4007 = vrot.slane %v4002, %v4006
        %v4013 = vunpack.c.l.b16 %v3998
        %v4014 = vunpack.c.l.b16 %v3999
        %v4015 = vunpack.c.l.b16 %v4000
        %v4016 = vunpack.c.l.b16 %v4001
        %v4017 = vpack.c.b16 %v4014, %v4013
        %v4018 = vpack.c.b16 %v4016, %v4015
        %v4022 = vsel %vm1971, %v3997, 0
        %4024 = vmatprep.subr.bf16.mxu0 0
        %4025 = vmatpush1.bf16.msra.mxu0 0
        %4026 = vmatprep.subr.bf16.mxu0 0
        %4027 = vmatpush1.bf16.msra.mxu0 0
        %4028 = vmatprep.subr.bf16.mxu0 0
        %4029 = vmatpush1.bf16.msra.mxu0 0
        %4030 = vmatprep.subr.bf16.mxu0 0
        %4031 = vmatpush1.bf16.msra.mxu0 0
        %4032 = vmatprep.subr.bf16.mxu0 0
        %4033 = vmatpush1.bf16.msra.mxu0 0
        %4034 = vmatprep.subr.bf16.mxu0 0
        %4035 = vmatpush1.bf16.msra.mxu0 0
        %4036 = vmatprep.subr.bf16.mxu0 0
        %4037 = vmatpush1.bf16.msra.mxu0 %v4018
        %4038 = vmatprep.subr.bf16.mxu0 0
        %4039 = vmatpush1.bf16.msra.mxu0 %v4017
        %4040 = vmatprep.subr.bf16.mxu0 0
        %4041 = vmatpush2.bf16.msra.mxu0 0
        %4042 = vmatprep.subr.bf16.mxu0 0
        %4043 = vmatpush2.bf16.msra.mxu0 0
        %4044 = vmatprep.subr.bf16.mxu0 0
        %4045 = vmatpush2.bf16.msra.mxu0 0
        %4046 = vmatprep.subr.bf16.mxu0 0
        %4047 = vmatpush2.bf16.msra.mxu0 0
        %4048 = vmatprep.subr.bf16.mxu0 0
        %4049 = vmatpush2.bf16.msra.mxu0 0
        %4050 = vmatprep.subr.bf16.mxu0 0
        %4051 = vmatpush2.bf16.msra.mxu0 0
        %4052 = vmatprep.subr.bf16.mxu0 0
        %4053 = vmatpush2.bf16.msra.mxu0 0
        %4054 = vmatprep.subr.bf16.mxu0 0
        %4055 = vmatpush2.bf16.msra.mxu0 0
        %4056 = vmatprep.mubr.bf16.mxu0 0
        %4057 = vmatmul.mubr.bf16.gmra.mxu0 %v4022
        %v4058 = vpop.f32.mrf.mxu0
        %v4059 = vadd.f32 %v4007, %v4058
        %v4060 = vpop.f32.mrf.mxu0
        %v4061 = vpop.f32.mrf.mxu0
        %v4062 = vpop.f32.mrf.mxu0
        %4063 = vdwg.mxu0
        %v4064 = vadd.f32 %v1944, %v4059
        %v4065 = vsel %vm1971, %v4064, 0.0
        %4066 = vadd.xlane.f32.xlu0 %v4065
        %v4067 = vpop.xlane.xlu0 %4066
        %v4068 = vrcp.pop 32.0
        %v4069 = vmul.f32 %v4067, %v4068
        %v4070 = vsub.f32 %v4064, %v4069
        %v4071 = vmul.f32 %v4070, %v4070
        %v4072 = vsel %vm1971, %v4071, 0.0
        %4073 = vadd.xlane.f32.xlu0 %v4072
        %v4074 = vpop.xlane.xlu0 %4073
        %v4075 = vmul.f32 %v4074, %v4068
        %v4076 = vadd.f32 %v4075, 1e-05
        %v4077 = vrsqrt.pop %v4076
        %v4078 = vmul.f32 %v4070, %v4077
        %v4079 = vld [vmem:[%s1639] sm:$0x1]
        %v4081 = vlaneseq
        %v4082 = vshrl.u32 %v4081, 7
        %v4083 = vsub.s32 0, %v4082
        %v4084 = vrot.slane %v4079, %v4083
        %v4086 = vmul.f32 %v4078, %v4084
        %v4087 = vld [vmem:[%s1647] sm:$0x1]
        %v4089 = vlaneseq
        %v4090 = vshrl.u32 %v4089, 7
        %v4091 = vsub.s32 0, %v4090
        %v4092 = vrot.slane %v4087, %v4091
        %v4094 = vadd.f32 %v4086, %v4092
        %v4095 = vpack.c.bf16 %v4094, %v4094
        %v4096 = vld [vmem:[%s1572] sm:$0xf]
        %v4097 = vld [vmem:[%s1572 + $0x4] sm:$0xf]
        %v4098 = vld [vmem:[%s1572 + $0x8] sm:$0xf]
        %v4099 = vld [vmem:[%s1572 + $0xc] sm:$0xf]
        %v4100 = vld [vmem:[%s1598] sm:$0x1]
        %v4102 = vlaneseq
        %v4103 = vshrl.u32 %v4102, 7
        %v4104 = vsub.s32 0, %v4103
        %v4105 = vrot.slane %v4100, %v4104
        %v4111 = vunpack.c.l.b16 %v4096
        %v4112 = vunpack.c.l.b16 %v4097
        %v4113 = vunpack.c.l.b16 %v4098
        %v4114 = vunpack.c.l.b16 %v4099
        %v4115 = vpack.c.b16 %v4112, %v4111
        %v4116 = vpack.c.b16 %v4114, %v4113
        %v4120 = vsel %vm1971, %v4095, 0
        %4122 = vmatprep.subr.bf16.mxu0 0
        %4123 = vmatpush1.bf16.msra.mxu0 0
        %4124 = vmatprep.subr.bf16.mxu0 0
        %4125 = vmatpush1.bf16.msra.mxu0 0
        %4126 = vmatprep.subr.bf16.mxu0 0
        %4127 = vmatpush1.bf16.msra.mxu0 0
        %4128 = vmatprep.subr.bf16.mxu0 0
        %4129 = vmatpush1.bf16.msra.mxu0 0
        %4130 = vmatprep.subr.bf16.mxu0 0
        %4131 = vmatpush1.bf16.msra.mxu0 0
        %4132 = vmatprep.subr.bf16.mxu0 0
        %4133 = vmatpush1.bf16.msra.mxu0 0
        %4134 = vmatprep.subr.bf16.mxu0 0
        %4135 = vmatpush1.bf16.msra.mxu0 %v4116
        %4136 = vmatprep.subr.bf16.mxu0 0
        %4137 = vmatpush1.bf16.msra.mxu0 %v4115
        %4138 = vmatprep.subr.bf16.mxu0 0
        %4139 = vmatpush2.bf16.msra.mxu0 0
        %4140 = vmatprep.subr.bf16.mxu0 0
        %4141 = vmatpush2.bf16.msra.mxu0 0
        %4142 = vmatprep.subr.bf16.mxu0 0
        %4143 = vmatpush2.bf16.msra.mxu0 0
        %4144 = vmatprep.subr.bf16.mxu0 0
        %4145 = vmatpush2.bf16.msra.mxu0 0
        %4146 = vmatprep.subr.bf16.mxu0 0
        %4147 = vmatpush2.bf16.msra.mxu0 0
        %4148 = vmatprep.subr.bf16.mxu0 0
        %4149 = vmatpush2.bf16.msra.mxu0 0
        %4150 = vmatprep.subr.bf16.mxu0 0
        %4151 = vmatpush2.bf16.msra.mxu0 0
        %4152 = vmatprep.subr.bf16.mxu0 0
        %4153 = vmatpush2.bf16.msra.mxu0 0
        %4154 = vmatprep.mubr.bf16.mxu0 0
        %4155 = vmatmul.mubr.bf16.gmra.mxu0 %v4120
        %v4156 = vpop.f32.mrf.mxu0
        %v4157 = vadd.f32 %v4105, %v4156
        %v4158 = vpop.f32.mrf.mxu0
        %v4159 = vpop.f32.mrf.mxu0
        %v4160 = vpop.f32.mrf.mxu0
        %4161 = vdwg.mxu0
        %v4162 = vld [vmem:[%s1581] sm:$0xf]
        %v4163 = vld [vmem:[%s1581 + $0x4] sm:$0xf]
        %v4164 = vld [vmem:[%s1581 + $0x8] sm:$0xf]
        %v4165 = vld [vmem:[%s1581 + $0xc] sm:$0xf]
        %v4166 = vld [vmem:[%s1606] sm:$0x1]
        %v4168 = vlaneseq
        %v4169 = vshrl.u32 %v4168, 7
        %v4170 = vsub.s32 0, %v4169
        %v4171 = vrot.slane %v4166, %v4170
        %v4175 = vunpack.c.l.b16 %v1945
        %v4176 = vunpack.c.l.b16 %v1946
        %v4177 = vpack.c.b16 %v4176, %v4175
        %v4182 = vunpack.c.l.b16 %v4162
        %v4183 = vunpack.c.l.b16 %v4163
        %v4184 = vunpack.c.l.b16 %v4164
        %v4185 = vunpack.c.l.b16 %v4165
        %v4186 = vpack.c.b16 %v4183, %v4182
        %v4187 = vpack.c.b16 %v4185, %v4184
        %v4191 = vsel %vm1971, %v4177, 0
        %4193 = vmatprep.subr.bf16.mxu0 0
        %4194 = vmatpush1.bf16.msra.mxu0 0
        %4195 = vmatprep.subr.bf16.mxu0 0
        %4196 = vmatpush1.bf16.msra.mxu0 0
        %4197 = vmatprep.subr.bf16.mxu0 0
        %4198 = vmatpush1.bf16.msra.mxu0 0
        %4199 = vmatprep.subr.bf16.mxu0 0
        %4200 = vmatpush1.bf16.msra.mxu0 0
        %4201 = vmatprep.subr.bf16.mxu0 0
        %4202 = vmatpush1.bf16.msra.mxu0 0
        %4203 = vmatprep.subr.bf16.mxu0 0
        %4204 = vmatpush1.bf16.msra.mxu0 0
        %4205 = vmatprep.subr.bf16.mxu0 0
        %4206 = vmatpush1.bf16.msra.mxu0 %v4187
        %4207 = vmatprep.subr.bf16.mxu0 0
        %4208 = vmatpush1.bf16.msra.mxu0 %v4186
        %4209 = vmatprep.subr.bf16.mxu0 0
        %4210 = vmatpush2.bf16.msra.mxu0 0
        %4211 = vmatprep.subr.bf16.mxu0 0
        %4212 = vmatpush2.bf16.msra.mxu0 0
        %4213 = vmatprep.subr.bf16.mxu0 0
        %4214 = vmatpush2.bf16.msra.mxu0 0
        %4215 = vmatprep.subr.bf16.mxu0 0
        %4216 = vmatpush2.bf16.msra.mxu0 0
        %4217 = vmatprep.subr.bf16.mxu0 0
        %4218 = vmatpush2.bf16.msra.mxu0 0
        %4219 = vmatprep.subr.bf16.mxu0 0
        %4220 = vmatpush2.bf16.msra.mxu0 0
        %4221 = vmatprep.subr.bf16.mxu0 0
        %4222 = vmatpush2.bf16.msra.mxu0 0
        %4223 = vmatprep.subr.bf16.mxu0 0
        %4224 = vmatpush2.bf16.msra.mxu0 0
        %4225 = vmatprep.mubr.bf16.mxu0 0
        %4226 = vmatmul.mubr.bf16.gmra.mxu0 %v4191
        %v4227 = vpop.f32.mrf.mxu0
        %v4228 = vadd.f32 %v4171, %v4227
        %v4229 = vpop.f32.mrf.mxu0
        %v4230 = vpop.f32.mrf.mxu0
        %v4231 = vadd.f32 %v4171, %v4230
        %v4232 = vpop.f32.mrf.mxu0
        %4233 = vdwg.mxu0
        %v4234 = vld [vmem:[%s1590] sm:$0xf]
        %v4235 = vld [vmem:[%s1590 + $0x4] sm:$0xf]
        %v4236 = vld [vmem:[%s1590 + $0x8] sm:$0xf]
        %v4237 = vld [vmem:[%s1590 + $0xc] sm:$0xf]
        %v4238 = vld [vmem:[%s1614] sm:$0x1]
        %v4240 = vlaneseq
        %v4241 = vshrl.u32 %v4240, 7
        %v4242 = vsub.s32 0, %v4241
        %v4243 = vrot.slane %v4238, %v4242
        %v4249 = vunpack.c.l.b16 %v4234
        %v4250 = vunpack.c.l.b16 %v4235
        %v4251 = vunpack.c.l.b16 %v4236
        %v4252 = vunpack.c.l.b16 %v4237
        %v4253 = vpack.c.b16 %v4250, %v4249
        %v4254 = vpack.c.b16 %v4252, %v4251
        %4257 = vmatprep.subr.bf16.mxu0 0
        %4258 = vmatpush1.bf16.msra.mxu0 0
        %4259 = vmatprep.subr.bf16.mxu0 0
        %4260 = vmatpush1.bf16.msra.mxu0 0
        %4261 = vmatprep.subr.bf16.mxu0 0
        %4262 = vmatpush1.bf16.msra.mxu0 0
        %4263 = vmatprep.subr.bf16.mxu0 0
        %4264 = vmatpush1.bf16.msra.mxu0 0
        %4265 = vmatprep.subr.bf16.mxu0 0
        %4266 = vmatpush1.bf16.msra.mxu0 0
        %4267 = vmatprep.subr.bf16.mxu0 0
        %4268 = vmatpush1.bf16.msra.mxu0 0
        %4269 = vmatprep.subr.bf16.mxu0 0
        %4270 = vmatpush1.bf16.msra.mxu0 %v4254
        %4271 = vmatprep.subr.bf16.mxu0 0
        %4272 = vmatpush1.bf16.msra.mxu0 %v4253
        %4273 = vmatprep.subr.bf16.mxu0 0
        %4274 = vmatpush2.bf16.msra.mxu0 0
        %4275 = vmatprep.subr.bf16.mxu0 0
        %4276 = vmatpush2.bf16.msra.mxu0 0
        %4277 = vmatprep.subr.bf16.mxu0 0
        %4278 = vmatpush2.bf16.msra.mxu0 0
        %4279 = vmatprep.subr.bf16.mxu0 0
        %4280 = vmatpush2.bf16.msra.mxu0 0
        %4281 = vmatprep.subr.bf16.mxu0 0
        %4282 = vmatpush2.bf16.msra.mxu0 0
        %4283 = vmatprep.subr.bf16.mxu0 0
        %4284 = vmatpush2.bf16.msra.mxu0 0
        %4285 = vmatprep.subr.bf16.mxu0 0
        %4286 = vmatpush2.bf16.msra.mxu0 0
        %4287 = vmatprep.subr.bf16.mxu0 0
        %4288 = vmatpush2.bf16.msra.mxu0 0
        %4289 = vmatprep.mubr.bf16.mxu0 0
        %4290 = vmatmul.mubr.bf16.gmra.mxu0 %v4191
        %v4291 = vpop.f32.mrf.mxu0
        %v4292 = vadd.f32 %v4243, %v4291
        %v4293 = vpop.f32.mrf.mxu0
        %v4294 = vpop.f32.mrf.mxu0
        %v4295 = vadd.f32 %v4243, %v4294
        %v4296 = vpop.f32.mrf.mxu0
        %4297 = vdwg.mxu0
        %v4298 = vld [vmem:[%s1530] sm:$0xff]
        %4300 = vrot.lane.b32.xlu0 %v4157, 120
        %v4301 = vpop.permute.xlu0 %4300
        %4303 = vrot.lane.b32.xlu0 %v4157, 112
        %v4304 = vpop.permute.xlu0 %4303
        %4306 = vrot.lane.b32.xlu0 %v4157, 104
        %v4307 = vpop.permute.xlu0 %4306
        %v4309 = vcombine.low %v4157, %v4304
        %v4310 = vcombine.high %v4157, %v4304
        %v4312 = vunpack.c.l.s4 1983009808
        %v4313 = vunpack.c.0.s8 %v4312
        %v4314 = vlaneseq
        %v4315 = vshrl.u32 %v4314, 7
        %v4316 = vsub.s32 %v4313, %v4315
        %v4317 = vrot.slane %v4309, %v4316
        %v4319 = vunpack.c.l.s4 1983009808
        %v4320 = vunpack.c.0.s8 %v4319
        %v4321 = vlaneseq
        %v4322 = vshrl.u32 %v4321, 7
        %v4323 = vsub.s32 %v4320, %v4322
        %v4324 = vrot.slane %v4310, %v4323
        %v4325 = vcombine.low %v4301, %v4307
        %v4326 = vcombine.high %v4301, %v4307
        %v4328 = vunpack.c.l.s4 1983009808
        %v4329 = vunpack.c.0.s8 %v4328
        %v4330 = vlaneseq
        %v4331 = vshrl.u32 %v4330, 7
        %v4332 = vsub.s32 %v4329, %v4331
        %v4333 = vrot.slane %v4325, %v4332
        %v4335 = vunpack.c.l.s4 1983009808
        %v4336 = vunpack.c.0.s8 %v4335
        %v4337 = vlaneseq
        %v4338 = vshrl.u32 %v4337, 7
        %v4339 = vsub.s32 %v4336, %v4338
        %v4340 = vrot.slane %v4326, %v4339
        %v4341 = vcombine.low %v4317, %v4333
        %v4342 = vcombine.high %v4317, %v4333
        %v4344 = vunpack.c.l.s4 1934713408
        %v4345 = vunpack.c.0.s8 %v4344
        %v4346 = vlaneseq
        %v4347 = vshrl.u32 %v4346, 7
        %v4348 = vsub.s32 %v4345, %v4347
        %v4349 = vrot.slane %v4341, %v4348
        %v4351 = vunpack.c.l.s4 1934713408
        %v4352 = vunpack.c.0.s8 %v4351
        %v4353 = vlaneseq
        %v4354 = vshrl.u32 %v4353, 7
        %v4355 = vsub.s32 %v4352, %v4354
        %v4356 = vrot.slane %v4342, %v4355
        %v4357 = vcombine.low %v4324, %v4340
        %v4358 = vcombine.high %v4324, %v4340
        %v4360 = vunpack.c.l.s4 1934713408
        %v4361 = vunpack.c.0.s8 %v4360
        %v4362 = vlaneseq
        %v4363 = vshrl.u32 %v4362, 7
        %v4364 = vsub.s32 %v4361, %v4363
        %v4365 = vrot.slane %v4357, %v4364
        %v4367 = vunpack.c.l.s4 1934713408
        %v4368 = vunpack.c.0.s8 %v4367
        %v4369 = vlaneseq
        %v4370 = vshrl.u32 %v4369, 7
        %v4371 = vsub.s32 %v4368, %v4370
        %v4372 = vrot.slane %v4358, %v4371
        %v4373 = vcombine.high %v4349, 0.0
        %v4374 = vcombine.high %v4356, 0.0
        %v4375 = vcombine.high %v4365, 0.0
        %v4376 = vcombine.high %v4372, 0.0
        %v4377 = vpack.c.bf16 %v4349, %v4349
        %v4378 = vpack.c.bf16 %v4373, %v4373
        %v4379 = vpack.c.bf16 %v4356, %v4356
        %v4380 = vpack.c.bf16 %v4374, %v4374
        %v4381 = vpack.c.bf16 %v4365, %v4365
        %v4382 = vpack.c.bf16 %v4375, %v4375
        %v4383 = vpack.c.bf16 %v4372, %v4372
        %v4384 = vpack.c.bf16 %v4376, %v4376
        %4387 = vrot.lane.b32.xlu0 %v4228, 120
        %v4388 = vpop.permute.xlu0 %4387
        %4389 = vrot.lane.b32.xlu0 %v4231, 120
        %v4390 = vpop.permute.xlu0 %4389
        %4393 = vrot.lane.b32.xlu0 %v4228, 112
        %v4394 = vpop.permute.xlu0 %4393
        %4395 = vrot.lane.b32.xlu0 %v4231, 112
        %v4396 = vpop.permute.xlu0 %4395
        %4399 = vrot.lane.b32.xlu0 %v4228, 104
        %v4400 = vpop.permute.xlu0 %4399
        %4401 = vrot.lane.b32.xlu0 %v4231, 104
        %v4402 = vpop.permute.xlu0 %4401
        %v4405 = vcombine.low %v4228, %v4394
        %v4406 = vcombine.high %v4228, %v4394
        %v4408 = vunpack.c.l.s4 1983009808
        %v4409 = vunpack.c.0.s8 %v4408
        %v4410 = vlaneseq
        %v4411 = vshrl.u32 %v4410, 7
        %v4412 = vsub.s32 %v4409, %v4411
        %v4413 = vrot.slane %v4405, %v4412
        %v4415 = vunpack.c.l.s4 1983009808
        %v4416 = vunpack.c.0.s8 %v4415
        %v4417 = vlaneseq
        %v4418 = vshrl.u32 %v4417, 7
        %v4419 = vsub.s32 %v4416, %v4418
        %v4420 = vrot.slane %v4406, %v4419
        %v4421 = vcombine.low %v4388, %v4400
        %v4422 = vcombine.high %v4388, %v4400
        %v4424 = vunpack.c.l.s4 1983009808
        %v4425 = vunpack.c.0.s8 %v4424
        %v4426 = vlaneseq
        %v4427 = vshrl.u32 %v4426, 7
        %v4428 = vsub.s32 %v4425, %v4427
        %v4429 = vrot.slane %v4421, %v4428
        %v4431 = vunpack.c.l.s4 1983009808
        %v4432 = vunpack.c.0.s8 %v4431
        %v4433 = vlaneseq
        %v4434 = vshrl.u32 %v4433, 7
        %v4435 = vsub.s32 %v4432, %v4434
        %v4436 = vrot.slane %v4422, %v4435
        %v4437 = vcombine.low %v4413, %v4429
        %v4438 = vcombine.high %v4413, %v4429
        %v4440 = vunpack.c.l.s4 1934713408
        %v4441 = vunpack.c.0.s8 %v4440
        %v4442 = vlaneseq
        %v4443 = vshrl.u32 %v4442, 7
        %v4444 = vsub.s32 %v4441, %v4443
        %v4445 = vrot.slane %v4437, %v4444
        %v4447 = vunpack.c.l.s4 1934713408
        %v4448 = vunpack.c.0.s8 %v4447
        %v4449 = vlaneseq
        %v4450 = vshrl.u32 %v4449, 7
        %v4451 = vsub.s32 %v4448, %v4450
        %v4452 = vrot.slane %v4438, %v4451
        %v4453 = vcombine.low %v4420, %v4436
        %v4454 = vcombine.high %v4420, %v4436
        %v4456 = vunpack.c.l.s4 1934713408
        %v4457 = vunpack.c.0.s8 %v4456
        %v4458 = vlaneseq
        %v4459 = vshrl.u32 %v4458, 7
        %v4460 = vsub.s32 %v4457, %v4459
        %v4461 = vrot.slane %v4453, %v4460
        %v4463 = vunpack.c.l.s4 1934713408
        %v4464 = vunpack.c.0.s8 %v4463
        %v4465 = vlaneseq
        %v4466 = vshrl.u32 %v4465, 7
        %v4467 = vsub.s32 %v4464, %v4466
        %v4468 = vrot.slane %v4454, %v4467
        %v4469 = vcombine.high %v4445, 0.0
        %v4470 = vcombine.high %v4452, 0.0
        %v4471 = vcombine.high %v4461, 0.0
        %v4472 = vcombine.high %v4468, 0.0
        %v4473 = vcombine.low %v4231, %v4396
        %v4474 = vcombine.high %v4231, %v4396
        %v4476 = vunpack.c.l.s4 1983009808
        %v4477 = vunpack.c.0.s8 %v4476
        %v4478 = vlaneseq
        %v4479 = vshrl.u32 %v4478, 7
        %v4480 = vsub.s32 %v4477, %v4479
        %v4481 = vrot.slane %v4473, %v4480
        %v4483 = vunpack.c.l.s4 1983009808
        %v4484 = vunpack.c.0.s8 %v4483
        %v4485 = vlaneseq
        %v4486 = vshrl.u32 %v4485, 7
        %v4487 = vsub.s32 %v4484, %v4486
        %v4488 = vrot.slane %v4474, %v4487
        %v4489 = vcombine.low %v4390, %v4402
        %v4490 = vcombine.high %v4390, %v4402
        %v4492 = vunpack.c.l.s4 1983009808
        %v4493 = vunpack.c.0.s8 %v4492
        %v4494 = vlaneseq
        %v4495 = vshrl.u32 %v4494, 7
        %v4496 = vsub.s32 %v4493, %v4495
        %v4497 = vrot.slane %v4489, %v4496
        %v4499 = vunpack.c.l.s4 1983009808
        %v4500 = vunpack.c.0.s8 %v4499
        %v4501 = vlaneseq
        %v4502 = vshrl.u32 %v4501, 7
        %v4503 = vsub.s32 %v4500, %v4502
        %v4504 = vrot.slane %v4490, %v4503
        %v4505 = vcombine.low %v4481, %v4497
        %v4506 = vcombine.high %v4481, %v4497
        %v4508 = vunpack.c.l.s4 1934713408
        %v4509 = vunpack.c.0.s8 %v4508
        %v4510 = vlaneseq
        %v4511 = vshrl.u32 %v4510, 7
        %v4512 = vsub.s32 %v4509, %v4511
        %v4513 = vrot.slane %v4505, %v4512
        %v4515 = vunpack.c.l.s4 1934713408
        %v4516 = vunpack.c.0.s8 %v4515
        %v4517 = vlaneseq
        %v4518 = vshrl.u32 %v4517, 7
        %v4519 = vsub.s32 %v4516, %v4518
        %v4520 = vrot.slane %v4506, %v4519
        %v4521 = vcombine.low %v4488, %v4504
        %v4522 = vcombine.high %v4488, %v4504
        %v4524 = vunpack.c.l.s4 1934713408
        %v4525 = vunpack.c.0.s8 %v4524
        %v4526 = vlaneseq
        %v4527 = vshrl.u32 %v4526, 7
        %v4528 = vsub.s32 %v4525, %v4527
        %v4529 = vrot.slane %v4521, %v4528
        %v4531 = vunpack.c.l.s4 1934713408
        %v4532 = vunpack.c.0.s8 %v4531
        %v4533 = vlaneseq
        %v4534 = vshrl.u32 %v4533, 7
        %v4535 = vsub.s32 %v4532, %v4534
        %v4536 = vrot.slane %v4522, %v4535
        %v4537 = vcombine.high %v4513, 0.0
        %v4538 = vcombine.high %v4520, 0.0
        %v4539 = vcombine.high %v4529, 0.0
        %v4540 = vcombine.high %v4536, 0.0
        %v4541 = vpack.c.bf16 %v4445, %v4445
        %v4542 = vpack.c.bf16 %v4469, %v4469
        %v4543 = vpack.c.bf16 %v4452, %v4452
        %v4544 = vpack.c.bf16 %v4470, %v4470
        %v4545 = vpack.c.bf16 %v4461, %v4461
        %v4546 = vpack.c.bf16 %v4471, %v4471
        %v4547 = vpack.c.bf16 %v4468, %v4468
        %v4548 = vpack.c.bf16 %v4472, %v4472
        %v4549 = vpack.c.bf16 %v4513, %v4513
        %v4550 = vpack.c.bf16 %v4537, %v4537
        %v4551 = vpack.c.bf16 %v4520, %v4520
        %v4552 = vpack.c.bf16 %v4538, %v4538
        %v4553 = vpack.c.bf16 %v4529, %v4529
        %v4554 = vpack.c.bf16 %v4539, %v4539
        %v4555 = vpack.c.bf16 %v4536, %v4536
        %v4556 = vpack.c.bf16 %v4540, %v4540
        %4559 = vrot.lane.b32.xlu0 %v4292, 120
        %v4560 = vpop.permute.xlu0 %4559
        %4561 = vrot.lane.b32.xlu0 %v4295, 120
        %v4562 = vpop.permute.xlu0 %4561
        %4565 = vrot.lane.b32.xlu0 %v4292, 112
        %v4566 = vpop.permute.xlu0 %4565
        %4567 = vrot.lane.b32.xlu0 %v4295, 112
        %v4568 = vpop.permute.xlu0 %4567
        %4571 = vrot.lane.b32.xlu0 %v4292, 104
        %v4572 = vpop.permute.xlu0 %4571
        %4573 = vrot.lane.b32.xlu0 %v4295, 104
        %v4574 = vpop.permute.xlu0 %4573
        %v4577 = vcombine.low %v4292, %v4566
        %v4578 = vcombine.high %v4292, %v4566
        %v4580 = vunpack.c.l.s4 1983009808
        %v4581 = vunpack.c.0.s8 %v4580
        %v4582 = vlaneseq
        %v4583 = vshrl.u32 %v4582, 7
        %v4584 = vsub.s32 %v4581, %v4583
        %v4585 = vrot.slane %v4577, %v4584
        %v4587 = vunpack.c.l.s4 1983009808
        %v4588 = vunpack.c.0.s8 %v4587
        %v4589 = vlaneseq
        %v4590 = vshrl.u32 %v4589, 7
        %v4591 = vsub.s32 %v4588, %v4590
        %v4592 = vrot.slane %v4578, %v4591
        %v4593 = vcombine.low %v4560, %v4572
        %v4594 = vcombine.high %v4560, %v4572
        %v4596 = vunpack.c.l.s4 1983009808
        %v4597 = vunpack.c.0.s8 %v4596
        %v4598 = vlaneseq
        %v4599 = vshrl.u32 %v4598, 7
        %v4600 = vsub.s32 %v4597, %v4599
        %v4601 = vrot.slane %v4593, %v4600
        %v4603 = vunpack.c.l.s4 1983009808
        %v4604 = vunpack.c.0.s8 %v4603
        %v4605 = vlaneseq
        %v4606 = vshrl.u32 %v4605, 7
        %v4607 = vsub.s32 %v4604, %v4606
        %v4608 = vrot.slane %v4594, %v4607
        %v4609 = vcombine.low %v4585, %v4601
        %v4610 = vcombine.high %v4585, %v4601
        %v4612 = vunpack.c.l.s4 1934713408
        %v4613 = vunpack.c.0.s8 %v4612
        %v4614 = vlaneseq
        %v4615 = vshrl.u32 %v4614, 7
        %v4616 = vsub.s32 %v4613, %v4615
        %v4617 = vrot.slane %v4609, %v4616
        %v4619 = vunpack.c.l.s4 1934713408
        %v4620 = vunpack.c.0.s8 %v4619
        %v4621 = vlaneseq
        %v4622 = vshrl.u32 %v4621, 7
        %v4623 = vsub.s32 %v4620, %v4622
        %v4624 = vrot.slane %v4610, %v4623
        %v4625 = vcombine.low %v4592, %v4608
        %v4626 = vcombine.high %v4592, %v4608
        %v4628 = vunpack.c.l.s4 1934713408
        %v4629 = vunpack.c.0.s8 %v4628
        %v4630 = vlaneseq
        %v4631 = vshrl.u32 %v4630, 7
        %v4632 = vsub.s32 %v4629, %v4631
        %v4633 = vrot.slane %v4625, %v4632
        %v4635 = vunpack.c.l.s4 1934713408
        %v4636 = vunpack.c.0.s8 %v4635
        %v4637 = vlaneseq
        %v4638 = vshrl.u32 %v4637, 7
        %v4639 = vsub.s32 %v4636, %v4638
        %v4640 = vrot.slane %v4626, %v4639
        %v4641 = vcombine.high %v4617, 0.0
        %v4642 = vcombine.high %v4624, 0.0
        %v4643 = vcombine.high %v4633, 0.0
        %v4644 = vcombine.high %v4640, 0.0
        %v4645 = vcombine.low %v4295, %v4568
        %v4646 = vcombine.high %v4295, %v4568
        %v4648 = vunpack.c.l.s4 1983009808
        %v4649 = vunpack.c.0.s8 %v4648
        %v4650 = vlaneseq
        %v4651 = vshrl.u32 %v4650, 7
        %v4652 = vsub.s32 %v4649, %v4651
        %v4653 = vrot.slane %v4645, %v4652
        %v4655 = vunpack.c.l.s4 1983009808
        %v4656 = vunpack.c.0.s8 %v4655
        %v4657 = vlaneseq
        %v4658 = vshrl.u32 %v4657, 7
        %v4659 = vsub.s32 %v4656, %v4658
        %v4660 = vrot.slane %v4646, %v4659
        %v4661 = vcombine.low %v4562, %v4574
        %v4662 = vcombine.high %v4562, %v4574
        %v4664 = vunpack.c.l.s4 1983009808
        %v4665 = vunpack.c.0.s8 %v4664
        %v4666 = vlaneseq
        %v4667 = vshrl.u32 %v4666, 7
        %v4668 = vsub.s32 %v4665, %v4667
        %v4669 = vrot.slane %v4661, %v4668
        %v4671 = vunpack.c.l.s4 1983009808
        %v4672 = vunpack.c.0.s8 %v4671
        %v4673 = vlaneseq
        %v4674 = vshrl.u32 %v4673, 7
        %v4675 = vsub.s32 %v4672, %v4674
        %v4676 = vrot.slane %v4662, %v4675
        %v4677 = vcombine.low %v4653, %v4669
        %v4678 = vcombine.high %v4653, %v4669
        %v4680 = vunpack.c.l.s4 1934713408
        %v4681 = vunpack.c.0.s8 %v4680
        %v4682 = vlaneseq
        %v4683 = vshrl.u32 %v4682, 7
        %v4684 = vsub.s32 %v4681, %v4683
        %v4685 = vrot.slane %v4677, %v4684
        %v4687 = vunpack.c.l.s4 1934713408
        %v4688 = vunpack.c.0.s8 %v4687
        %v4689 = vlaneseq
        %v4690 = vshrl.u32 %v4689, 7
        %v4691 = vsub.s32 %v4688, %v4690
        %v4692 = vrot.slane %v4678, %v4691
        %v4693 = vcombine.low %v4660, %v4676
        %v4694 = vcombine.high %v4660, %v4676
        %v4696 = vunpack.c.l.s4 1934713408
        %v4697 = vunpack.c.0.s8 %v4696
        %v4698 = vlaneseq
        %v4699 = vshrl.u32 %v4698, 7
        %v4700 = vsub.s32 %v4697, %v4699
        %v4701 = vrot.slane %v4693, %v4700
        %v4703 = vunpack.c.l.s4 1934713408
        %v4704 = vunpack.c.0.s8 %v4703
        %v4705 = vlaneseq
        %v4706 = vshrl.u32 %v4705, 7
        %v4707 = vsub.s32 %v4704, %v4706
        %v4708 = vrot.slane %v4694, %v4707
        %v4709 = vcombine.high %v4685, 0.0
        %v4710 = vcombine.high %v4692, 0.0
        %v4711 = vcombine.high %v4701, 0.0
        %v4712 = vcombine.high %v4708, 0.0
        %v4713 = vpack.c.bf16 %v4617, %v4617
        %v4714 = vpack.c.bf16 %v4641, %v4641
        %v4715 = vpack.c.bf16 %v4624, %v4624
        %v4716 = vpack.c.bf16 %v4642, %v4642
        %v4717 = vpack.c.bf16 %v4633, %v4633
        %v4718 = vpack.c.bf16 %v4643, %v4643
        %v4719 = vpack.c.bf16 %v4640, %v4640
        %v4720 = vpack.c.bf16 %v4644, %v4644
        %v4721 = vpack.c.bf16 %v4685, %v4685
        %v4722 = vpack.c.bf16 %v4709, %v4709
        %v4723 = vpack.c.bf16 %v4692, %v4692
        %v4724 = vpack.c.bf16 %v4710, %v4710
        %v4725 = vpack.c.bf16 %v4701, %v4701
        %v4726 = vpack.c.bf16 %v4711, %v4711
        %v4727 = vpack.c.bf16 %v4708, %v4708
        %v4728 = vpack.c.bf16 %v4712, %v4712
        %v4729 = vcombine.low %v4377, %v4381
        %v4731 = vunpack.c.l.s4 1983009808
        %v4732 = vunpack.c.0.s8 %v4731
        %v4733 = vlaneseq
        %v4734 = vshrl.u32 %v4733, 7
        %v4735 = vsub.s32 %v4732, %v4734
        %v4736 = vrot.slane %v4729, %v4735
        %v4737 = vcombine.low %v4379, %v4383
        %v4739 = vunpack.c.l.s4 1983009808
        %v4740 = vunpack.c.0.s8 %v4739
        %v4741 = vlaneseq
        %v4742 = vshrl.u32 %v4741, 7
        %v4743 = vsub.s32 %v4740, %v4742
        %v4744 = vrot.slane %v4737, %v4743
        %v4745 = vcombine.low %v4736, %v4744
        %v4747 = vunpack.c.l.s4 1934713408
        %v4748 = vunpack.c.0.s8 %v4747
        %v4749 = vlaneseq
        %v4750 = vshrl.u32 %v4749, 7
        %v4751 = vsub.s32 %v4748, %v4750
        %v4752 = vrot.slane %v4745, %v4751
        %v4753 = vcombine.high %v4752, 0
        %v4754 = vcombine.low %v4378, %v4382
        %v4756 = vunpack.c.l.s4 1983009808
        %v4757 = vunpack.c.0.s8 %v4756
        %v4758 = vlaneseq
        %v4759 = vshrl.u32 %v4758, 7
        %v4760 = vsub.s32 %v4757, %v4759
        %v4761 = vrot.slane %v4754, %v4760
        %v4762 = vcombine.low %v4380, %v4384
        %v4764 = vunpack.c.l.s4 1983009808
        %v4765 = vunpack.c.0.s8 %v4764
        %v4766 = vlaneseq
        %v4767 = vshrl.u32 %v4766, 7
        %v4768 = vsub.s32 %v4765, %v4767
        %v4769 = vrot.slane %v4762, %v4768
        %v4770 = vcombine.low %v4761, %v4769
        %v4772 = vunpack.c.l.s4 1934713408
        %v4773 = vunpack.c.0.s8 %v4772
        %v4774 = vlaneseq
        %v4775 = vshrl.u32 %v4774, 7
        %v4776 = vsub.s32 %v4773, %v4775
        %v4777 = vrot.slane %v4770, %v4776
        %v4778 = vcombine.high %v4777, 0
        %v4781 = vpack.i.b16 %v4777, %v4752
        %v4782 = vshrl.u32 %v4752, 16
        %v4783 = vshrl.u32 %v4777, 16
        %v4784 = vpack.i.b16 %v4783, %v4782
        %v4787 = vpack.i.b16 %v4778, %v4753
        %v4788 = vshrl.u32 %v4753, 16
        %v4789 = vshrl.u32 %v4778, 16
        %v4790 = vpack.i.b16 %v4789, %v4788
        %4791 = vxpose.xlu0.c.b16.start [1/8] %v4541, 128
        %4792 = vxpose.xlu0.c.b16.cont [2/8] 0, 128
        %4793 = vxpose.xlu0.c.b16.cont [3/8] 0, 128
        %4794 = vxpose.xlu0.c.b16.cont [4/8] 0, 128
        %4795 = vxpose.xlu0.c.b16.cont [5/8] 0, 128
        %4796 = vxpose.xlu0.c.b16.cont [6/8] 0, 128
        %4797 = vxpose.xlu0.c.b16.cont [7/8] 0, 128
        %4798 = vxpose.xlu0.c.b16.end [8/8] 0, 128
        %v4799 = vpop.trf.xlu0
        %v4800 = vpop.trf.xlu0
        %v4801 = vpop.trf.xlu0
        %v4802 = vpop.trf.xlu0
        %v4803 = vpop.trf.xlu0
        %v4804 = vpop.trf.xlu0
        %v4805 = vpop.trf.xlu0
        %v4806 = vpop.trf.xlu0
        %4807 = vxpose.xlu0.c.b16.start [1/8] %v4542, 128
        %4808 = vxpose.xlu0.c.b16.cont [2/8] 0, 128
        %4809 = vxpose.xlu0.c.b16.cont [3/8] 0, 128
        %4810 = vxpose.xlu0.c.b16.cont [4/8] 0, 128
        %4811 = vxpose.xlu0.c.b16.cont [5/8] 0, 128
        %4812 = vxpose.xlu0.c.b16.cont [6/8] 0, 128
        %4813 = vxpose.xlu0.c.b16.cont [7/8] 0, 128
        %4814 = vxpose.xlu0.c.b16.end [8/8] 0, 128
        %v4815 = vpop.trf.xlu0
        %v4816 = vpop.trf.xlu0
        %v4817 = vpop.trf.xlu0
        %v4818 = vpop.trf.xlu0
        %v4819 = vpop.trf.xlu0
        %v4820 = vpop.trf.xlu0
        %v4821 = vpop.trf.xlu0
        %v4822 = vpop.trf.xlu0
        %4823 = vxpose.xlu0.c.b16.start [1/8] %v4543, 128
        %4824 = vxpose.xlu0.c.b16.cont [2/8] 0, 128
        %4825 = vxpose.xlu0.c.b16.cont [3/8] 0, 128
        %4826 = vxpose.xlu0.c.b16.cont [4/8] 0, 128
        %4827 = vxpose.xlu0.c.b16.cont [5/8] 0, 128
        %4828 = vxpose.xlu0.c.b16.cont [6/8] 0, 128
        %4829 = vxpose.xlu0.c.b16.cont [7/8] 0, 128
        %4830 = vxpose.xlu0.c.b16.end [8/8] 0, 128
        %v4831 = vpop.trf.xlu0
        %v4832 = vpop.trf.xlu0
        %v4833 = vpop.trf.xlu0
        %v4834 = vpop.trf.xlu0
        %v4835 = vpop.trf.xlu0
        %v4836 = vpop.trf.xlu0
        %v4837 = vpop.trf.xlu0
        %v4838 = vpop.trf.xlu0
        %4839 = vxpose.xlu0.c.b16.start [1/8] %v4544, 128
        %4840 = vxpose.xlu0.c.b16.cont [2/8] 0, 128
        %4841 = vxpose.xlu0.c.b16.cont [3/8] 0, 128
        %4842 = vxpose.xlu0.c.b16.cont [4/8] 0, 128
        %4843 = vxpose.xlu0.c.b16.cont [5/8] 0, 128
        %4844 = vxpose.xlu0.c.b16.cont [6/8] 0, 128
        %4845 = vxpose.xlu0.c.b16.cont [7/8] 0, 128
        %4846 = vxpose.xlu0.c.b16.end [8/8] 0, 128
        %v4847 = vpop.trf.xlu0
        %v4848 = vpop.trf.xlu0
        %v4849 = vpop.trf.xlu0
        %v4850 = vpop.trf.xlu0
        %v4851 = vpop.trf.xlu0
        %v4852 = vpop.trf.xlu0
        %v4853 = vpop.trf.xlu0
        %v4854 = vpop.trf.xlu0
        %4855 = vxpose.xlu0.c.b16.start [1/8] %v4545, 128
        %4856 = vxpose.xlu0.c.b16.cont [2/8] 0, 128
        %4857 = vxpose.xlu0.c.b16.cont [3/8] 0, 128
        %4858 = vxpose.xlu0.c.b16.cont [4/8] 0, 128
        %4859 = vxpose.xlu0.c.b16.cont [5/8] 0, 128
        %4860 = vxpose.xlu0.c.b16.cont [6/8] 0, 128
        %4861 = vxpose.xlu0.c.b16.cont [7/8] 0, 128
        %4862 = vxpose.xlu0.c.b16.end [8/8] 0, 128
        %v4863 = vpop.trf.xlu0
        %v4864 = vpop.trf.xlu0
        %v4865 = vpop.trf.xlu0
        %v4866 = vpop.trf.xlu0
        %v4867 = vpop.trf.xlu0
        %v4868 = vpop.trf.xlu0
        %v4869 = vpop.trf.xlu0
        %v4870 = vpop.trf.xlu0
        %4871 = vxpose.xlu0.c.b16.start [1/8] %v4546, 128
        %4872 = vxpose.xlu0.c.b16.cont [2/8] 0, 128
        %4873 = vxpose.xlu0.c.b16.cont [3/8] 0, 128
        %4874 = vxpose.xlu0.c.b16.cont [4/8] 0, 128
        %4875 = vxpose.xlu0.c.b16.cont [5/8] 0, 128
        %4876 = vxpose.xlu0.c.b16.cont [6/8] 0, 128
        %4877 = vxpose.xlu0.c.b16.cont [7/8] 0, 128
        %4878 = vxpose.xlu0.c.b16.end [8/8] 0, 128
        %v4879 = vpop.trf.xlu0
        %v4880 = vpop.trf.xlu0
        %v4881 = vpop.trf.xlu0
        %v4882 = vpop.trf.xlu0
        %v4883 = vpop.trf.xlu0
        %v4884 = vpop.trf.xlu0
        %v4885 = vpop.trf.xlu0
        %v4886 = vpop.trf.xlu0
        %4887 = vxpose.xlu0.c.b16.start [1/8] %v4547, 128
        %4888 = vxpose.xlu0.c.b16.cont [2/8] 0, 128
        %4889 = vxpose.xlu0.c.b16.cont [3/8] 0, 128
        %4890 = vxpose.xlu0.c.b16.cont [4/8] 0, 128
        %4891 = vxpose.xlu0.c.b16.cont [5/8] 0, 128
        %4892 = vxpose.xlu0.c.b16.cont [6/8] 0, 128
        %4893 = vxpose.xlu0.c.b16.cont [7/8] 0, 128
        %4894 = vxpose.xlu0.c.b16.end [8/8] 0, 128
        %v4895 = vpop.trf.xlu0
        %v4896 = vpop.trf.xlu0
        %v4897 = vpop.trf.xlu0
        %v4898 = vpop.trf.xlu0
        %v4899 = vpop.trf.xlu0
        %v4900 = vpop.trf.xlu0
        %v4901 = vpop.trf.xlu0
        %v4902 = vpop.trf.xlu0
        %4903 = vxpose.xlu0.c.b16.start [1/8] %v4548, 128
        %4904 = vxpose.xlu0.c.b16.cont [2/8] 0, 128
        %4905 = vxpose.xlu0.c.b16.cont [3/8] 0, 128
        %4906 = vxpose.xlu0.c.b16.cont [4/8] 0, 128
        %4907 = vxpose.xlu0.c.b16.cont [5/8] 0, 128
        %4908 = vxpose.xlu0.c.b16.cont [6/8] 0, 128
        %4909 = vxpose.xlu0.c.b16.cont [7/8] 0, 128
        %4910 = vxpose.xlu0.c.b16.end [8/8] 0, 128
        %v4911 = vpop.trf.xlu0
        %v4912 = vpop.trf.xlu0
        %v4913 = vpop.trf.xlu0
        %v4914 = vpop.trf.xlu0
        %v4915 = vpop.trf.xlu0
        %v4916 = vpop.trf.xlu0
        %v4917 = vpop.trf.xlu0
        %v4918 = vpop.trf.xlu0
        %4919 = vxpose.xlu0.c.b16.start [1/8] %v4549, 128
        %4920 = vxpose.xlu0.c.b16.cont [2/8] 0, 128
        %4921 = vxpose.xlu0.c.b16.cont [3/8] 0, 128
        %4922 = vxpose.xlu0.c.b16.cont [4/8] 0, 128
        %4923 = vxpose.xlu0.c.b16.cont [5/8] 0, 128
        %4924 = vxpose.xlu0.c.b16.cont [6/8] 0, 128
        %4925 = vxpose.xlu0.c.b16.cont [7/8] 0, 128
        %4926 = vxpose.xlu0.c.b16.end [8/8] 0, 128
        %v4927 = vpop.trf.xlu0
        %v4928 = vpop.trf.xlu0
        %v4929 = vpop.trf.xlu0
        %v4930 = vpop.trf.xlu0
        %v4931 = vpop.trf.xlu0
        %v4932 = vpop.trf.xlu0
        %v4933 = vpop.trf.xlu0
        %v4934 = vpop.trf.xlu0
        %4935 = vxpose.xlu0.c.b16.start [1/8] %v4550, 128
        %4936 = vxpose.xlu0.c.b16.cont [2/8] 0, 128
        %4937 = vxpose.xlu0.c.b16.cont [3/8] 0, 128
        %4938 = vxpose.xlu0.c.b16.cont [4/8] 0, 128
        %4939 = vxpose.xlu0.c.b16.cont [5/8] 0, 128
        %4940 = vxpose.xlu0.c.b16.cont [6/8] 0, 128
        %4941 = vxpose.xlu0.c.b16.cont [7/8] 0, 128
        %4942 = vxpose.xlu0.c.b16.end [8/8] 0, 128
        %v4943 = vpop.trf.xlu0
        %v4944 = vpop.trf.xlu0
        %v4945 = vpop.trf.xlu0
        %v4946 = vpop.trf.xlu0
        %v4947 = vpop.trf.xlu0
        %v4948 = vpop.trf.xlu0
        %v4949 = vpop.trf.xlu0
        %v4950 = vpop.trf.xlu0
        %4951 = vxpose.xlu0.c.b16.start [1/8] %v4551, 128
        %4952 = vxpose.xlu0.c.b16.cont [2/8] 0, 128
        %4953 = vxpose.xlu0.c.b16.cont [3/8] 0, 128
        %4954 = vxpose.xlu0.c.b16.cont [4/8] 0, 128
        %4955 = vxpose.xlu0.c.b16.cont [5/8] 0, 128
        %4956 = vxpose.xlu0.c.b16.cont [6/8] 0, 128
        %4957 = vxpose.xlu0.c.b16.cont [7/8] 0, 128
        %4958 = vxpose.xlu0.c.b16.end [8/8] 0, 128
        %v4959 = vpop.trf.xlu0
        %v4960 = vpop.trf.xlu0
        %v4961 = vpop.trf.xlu0
        %v4962 = vpop.trf.xlu0
        %v4963 = vpop.trf.xlu0
        %v4964 = vpop.trf.xlu0
        %v4965 = vpop.trf.xlu0
        %v4966 = vpop.trf.xlu0
        %4967 = vxpose.xlu0.c.b16.start [1/8] %v4552, 128
        %4968 = vxpose.xlu0.c.b16.cont [2/8] 0, 128
        %4969 = vxpose.xlu0.c.b16.cont [3/8] 0, 128
        %4970 = vxpose.xlu0.c.b16.cont [4/8] 0, 128
        %4971 = vxpose.xlu0.c.b16.cont [5/8] 0, 128
        %4972 = vxpose.xlu0.c.b16.cont [6/8] 0, 128
        %4973 = vxpose.xlu0.c.b16.cont [7/8] 0, 128
        %4974 = vxpose.xlu0.c.b16.end [8/8] 0, 128
        %v4975 = vpop.trf.xlu0
        %v4976 = vpop.trf.xlu0
        %v4977 = vpop.trf.xlu0
        %v4978 = vpop.trf.xlu0
        %v4979 = vpop.trf.xlu0
        %v4980 = vpop.trf.xlu0
        %v4981 = vpop.trf.xlu0
        %v4982 = vpop.trf.xlu0
        %4983 = vxpose.xlu0.c.b16.start [1/8] %v4553, 128
        %4984 = vxpose.xlu0.c.b16.cont [2/8] 0, 128
        %4985 = vxpose.xlu0.c.b16.cont [3/8] 0, 128
        %4986 = vxpose.xlu0.c.b16.cont [4/8] 0, 128
        %4987 = vxpose.xlu0.c.b16.cont [5/8] 0, 128
        %4988 = vxpose.xlu0.c.b16.cont [6/8] 0, 128
        %4989 = vxpose.xlu0.c.b16.cont [7/8] 0, 128
        %4990 = vxpose.xlu0.c.b16.end [8/8] 0, 128
        %v4991 = vpop.trf.xlu0
        %v4992 = vpop.trf.xlu0
        %v4993 = vpop.trf.xlu0
        %v4994 = vpop.trf.xlu0
        %v4995 = vpop.trf.xlu0
        %v4996 = vpop.trf.xlu0
        %v4997 = vpop.trf.xlu0
        %v4998 = vpop.trf.xlu0
        %4999 = vxpose.xlu0.c.b16.start [1/8] %v4554, 128
        %5000 = vxpose.xlu0.c.b16.cont [2/8] 0, 128
        %5001 = vxpose.xlu0.c.b16.cont [3/8] 0, 128
        %5002 = vxpose.xlu0.c.b16.cont [4/8] 0, 128
        %5003 = vxpose.xlu0.c.b16.cont [5/8] 0, 128
        %5004 = vxpose.xlu0.c.b16.cont [6/8] 0, 128
        %5005 = vxpose.xlu0.c.b16.cont [7/8] 0, 128
        %5006 = vxpose.xlu0.c.b16.end [8/8] 0, 128
        %v5007 = vpop.trf.xlu0
        %v5008 = vpop.trf.xlu0
        %v5009 = vpop.trf.xlu0
        %v5010 = vpop.trf.xlu0
        %v5011 = vpop.trf.xlu0
        %v5012 = vpop.trf.xlu0
        %v5013 = vpop.trf.xlu0
        %v5014 = vpop.trf.xlu0
        %5015 = vxpose.xlu0.c.b16.start [1/8] %v4555, 128
        %5016 = vxpose.xlu0.c.b16.cont [2/8] 0, 128
        %5017 = vxpose.xlu0.c.b16.cont [3/8] 0, 128
        %5018 = vxpose.xlu0.c.b16.cont [4/8] 0, 128
        %5019 = vxpose.xlu0.c.b16.cont [5/8] 0, 128
        %5020 = vxpose.xlu0.c.b16.cont [6/8] 0, 128
        %5021 = vxpose.xlu0.c.b16.cont [7/8] 0, 128
        %5022 = vxpose.xlu0.c.b16.end [8/8] 0, 128
        %v5023 = vpop.trf.xlu0
        %v5024 = vpop.trf.xlu0
        %v5025 = vpop.trf.xlu0
        %v5026 = vpop.trf.xlu0
        %v5027 = vpop.trf.xlu0
        %v5028 = vpop.trf.xlu0
        %v5029 = vpop.trf.xlu0
        %v5030 = vpop.trf.xlu0
        %5031 = vxpose.xlu0.c.b16.start [1/8] %v4556, 128
        %5032 = vxpose.xlu0.c.b16.cont [2/8] 0, 128
        %5033 = vxpose.xlu0.c.b16.cont [3/8] 0, 128
        %5034 = vxpose.xlu0.c.b16.cont [4/8] 0, 128
        %5035 = vxpose.xlu0.c.b16.cont [5/8] 0, 128
        %5036 = vxpose.xlu0.c.b16.cont [6/8] 0, 128
        %5037 = vxpose.xlu0.c.b16.cont [7/8] 0, 128
        %5038 = vxpose.xlu0.c.b16.end [8/8] 0, 128
        %v5039 = vpop.trf.xlu0
        %v5040 = vpop.trf.xlu0
        %v5041 = vpop.trf.xlu0
        %v5042 = vpop.trf.xlu0
        %v5043 = vpop.trf.xlu0
        %v5044 = vpop.trf.xlu0
        %v5045 = vpop.trf.xlu0
        %v5046 = vpop.trf.xlu0
        %v5047 = vcombine.low %v4799, %v4863
        %v5049 = vunpack.c.l.s4 1983009808
        %v5050 = vunpack.c.0.s8 %v5049
        %v5051 = vlaneseq
        %v5052 = vshrl.u32 %v5051, 7
        %v5053 = vsub.s32 %v5050, %v5052
        %v5054 = vrot.slane %v5047, %v5053
        %v5055 = vcombine.low %v4831, %v4895
        %v5057 = vunpack.c.l.s4 1983009808
        %v5058 = vunpack.c.0.s8 %v5057
        %v5059 = vlaneseq
        %v5060 = vshrl.u32 %v5059, 7
        %v5061 = vsub.s32 %v5058, %v5060
        %v5062 = vrot.slane %v5055, %v5061
        %v5063 = vcombine.low %v4927, %v4991
        %v5065 = vunpack.c.l.s4 1983009808
        %v5066 = vunpack.c.0.s8 %v5065
        %v5067 = vlaneseq
        %v5068 = vshrl.u32 %v5067, 7
        %v5069 = vsub.s32 %v5066, %v5068
        %v5070 = vrot.slane %v5063, %v5069
        %v5071 = vcombine.low %v4959, %v5023
        %v5073 = vunpack.c.l.s4 1983009808
        %v5074 = vunpack.c.0.s8 %v5073
        %v5075 = vlaneseq
        %v5076 = vshrl.u32 %v5075, 7
        %v5077 = vsub.s32 %v5074, %v5076
        %v5078 = vrot.slane %v5071, %v5077
        %v5079 = vcombine.low %v5054, %v5062
        %v5080 = vcombine.high %v5054, %v5062
        %v5082 = vunpack.c.l.s4 1934713408
        %v5083 = vunpack.c.0.s8 %v5082
        %v5084 = vlaneseq
        %v5085 = vshrl.u32 %v5084, 7
        %v5086 = vsub.s32 %v5083, %v5085
        %v5087 = vrot.slane %v5079, %v5086
        %v5089 = vunpack.c.l.s4 1934713408
        %v5090 = vunpack.c.0.s8 %v5089
        %v5091 = vlaneseq
        %v5092 = vshrl.u32 %v5091, 7
        %v5093 = vsub.s32 %v5090, %v5092
        %v5094 = vrot.slane %v5080, %v5093
        %v5095 = vcombine.low %v5070, %v5078
        %v5096 = vcombine.high %v5070, %v5078
        %v5098 = vunpack.c.l.s4 1934713408
        %v5099 = vunpack.c.0.s8 %v5098
        %v5100 = vlaneseq
        %v5101 = vshrl.u32 %v5100, 7
        %v5102 = vsub.s32 %v5099, %v5101
        %v5103 = vrot.slane %v5095, %v5102
        %v5105 = vunpack.c.l.s4 1934713408
        %v5106 = vunpack.c.0.s8 %v5105
        %v5107 = vlaneseq
        %v5108 = vshrl.u32 %v5107, 7
        %v5109 = vsub.s32 %v5106, %v5108
        %v5110 = vrot.slane %v5096, %v5109
        %v5111 = vcombine.low %v5087, %v5103
        %v5112 = vcombine.high %v5087, %v5103
        %v5113 = vcombine.low %v5094, %v5110
        %v5114 = vcombine.high %v5094, %v5110
        %v5115 = vcombine.low %v4815, %v4879
        %v5117 = vunpack.c.l.s4 1983009808
        %v5118 = vunpack.c.0.s8 %v5117
        %v5119 = vlaneseq
        %v5120 = vshrl.u32 %v5119, 7
        %v5121 = vsub.s32 %v5118, %v5120
        %v5122 = vrot.slane %v5115, %v5121
        %v5123 = vcombine.low %v4847, %v4911
        %v5125 = vunpack.c.l.s4 1983009808
        %v5126 = vunpack.c.0.s8 %v5125
        %v5127 = vlaneseq
        %v5128 = vshrl.u32 %v5127, 7
        %v5129 = vsub.s32 %v5126, %v5128
        %v5130 = vrot.slane %v5123, %v5129
        %v5131 = vcombine.low %v4943, %v5007
        %v5133 = vunpack.c.l.s4 1983009808
        %v5134 = vunpack.c.0.s8 %v5133
        %v5135 = vlaneseq
        %v5136 = vshrl.u32 %v5135, 7
        %v5137 = vsub.s32 %v5134, %v5136
        %v5138 = vrot.slane %v5131, %v5137
        %v5139 = vcombine.low %v4975, %v5039
        %v5141 = vunpack.c.l.s4 1983009808
        %v5142 = vunpack.c.0.s8 %v5141
        %v5143 = vlaneseq
        %v5144 = vshrl.u32 %v5143, 7
        %v5145 = vsub.s32 %v5142, %v5144
        %v5146 = vrot.slane %v5139, %v5145
        %v5147 = vcombine.low %v5122, %v5130
        %v5148 = vcombine.high %v5122, %v5130
        %v5150 = vunpack.c.l.s4 1934713408
        %v5151 = vunpack.c.0.s8 %v5150
        %v5152 = vlaneseq
        %v5153 = vshrl.u32 %v5152, 7
        %v5154 = vsub.s32 %v5151, %v5153
        %v5155 = vrot.slane %v5147, %v5154
        %v5157 = vunpack.c.l.s4 1934713408
        %v5158 = vunpack.c.0.s8 %v5157
        %v5159 = vlaneseq
        %v5160 = vshrl.u32 %v5159, 7
        %v5161 = vsub.s32 %v5158, %v5160
        %v5162 = vrot.slane %v5148, %v5161
        %v5163 = vcombine.low %v5138, %v5146
        %v5164 = vcombine.high %v5138, %v5146
        %v5166 = vunpack.c.l.s4 1934713408
        %v5167 = vunpack.c.0.s8 %v5166
        %v5168 = vlaneseq
        %v5169 = vshrl.u32 %v5168, 7
        %v5170 = vsub.s32 %v5167, %v5169
        %v5171 = vrot.slane %v5163, %v5170
        %v5173 = vunpack.c.l.s4 1934713408
        %v5174 = vunpack.c.0.s8 %v5173
        %v5175 = vlaneseq
        %v5176 = vshrl.u32 %v5175, 7
        %v5177 = vsub.s32 %v5174, %v5176
        %v5178 = vrot.slane %v5164, %v5177
        %v5179 = vcombine.low %v5155, %v5171
        %v5180 = vcombine.high %v5155, %v5171
        %v5181 = vcombine.low %v5162, %v5178
        %v5182 = vcombine.high %v5162, %v5178
        %v5185 = vpack.i.b16 %v5179, %v5111
        %v5187 = vshrl.u32 %v5111, 16
        %v5188 = vshrl.u32 %v5179, 16
        %v5189 = vpack.i.b16 %v5188, %v5187
        %v5193 = vpack.i.b16 %v5180, %v5112
        %v5195 = vshrl.u32 %v5112, 16
        %v5196 = vshrl.u32 %v5180, 16
        %v5197 = vpack.i.b16 %v5196, %v5195
        %v5201 = vpack.i.b16 %v5181, %v5113
        %v5203 = vshrl.u32 %v5113, 16
        %v5204 = vshrl.u32 %v5181, 16
        %v5205 = vpack.i.b16 %v5204, %v5203
        %v5209 = vpack.i.b16 %v5182, %v5114
        %v5211 = vshrl.u32 %v5114, 16
        %v5212 = vshrl.u32 %v5182, 16
        %v5213 = vpack.i.b16 %v5212, %v5211
        %5215 = vxpose.xlu0.c.b16.start [1/8] %v5185, 128
        %5216 = vxpose.xlu0.c.b16.cont [2/8] 0, 128
        %5217 = vxpose.xlu0.c.b16.cont [3/8] 0, 128
        %5218 = vxpose.xlu0.c.b16.cont [4/8] 0, 128
        %5219 = vxpose.xlu0.c.b16.cont [5/8] 0, 128
        %5220 = vxpose.xlu0.c.b16.cont [6/8] 0, 128
        %5221 = vxpose.xlu0.c.b16.cont [7/8] 0, 128
        %5222 = vxpose.xlu0.c.b16.end [8/8] 0, 128
        %v5223 = vpop.trf.xlu0
        %v5224 = vpop.trf.xlu0
        %v5225 = vpop.trf.xlu0
        %v5226 = vpop.trf.xlu0
        %v5227 = vpop.trf.xlu0
        %v5228 = vpop.trf.xlu0
        %v5229 = vpop.trf.xlu0
        %v5230 = vpop.trf.xlu0
        %5231 = vxpose.xlu0.c.b16.start [1/8] %v5189, 128
        %5232 = vxpose.xlu0.c.b16.cont [2/8] 0, 128
        %5233 = vxpose.xlu0.c.b16.cont [3/8] 0, 128
        %5234 = vxpose.xlu0.c.b16.cont [4/8] 0, 128
        %5235 = vxpose.xlu0.c.b16.cont [5/8] 0, 128
        %5236 = vxpose.xlu0.c.b16.cont [6/8] 0, 128
        %5237 = vxpose.xlu0.c.b16.cont [7/8] 0, 128
        %5238 = vxpose.xlu0.c.b16.end [8/8] 0, 128
        %v5239 = vpop.trf.xlu0
        %v5240 = vpop.trf.xlu0
        %v5241 = vpop.trf.xlu0
        %v5242 = vpop.trf.xlu0
        %v5243 = vpop.trf.xlu0
        %v5244 = vpop.trf.xlu0
        %v5245 = vpop.trf.xlu0
        %v5246 = vpop.trf.xlu0
        %5247 = vxpose.xlu0.c.b16.start [1/8] %v5193, 128
        %5248 = vxpose.xlu0.c.b16.cont [2/8] 0, 128
        %5249 = vxpose.xlu0.c.b16.cont [3/8] 0, 128
        %5250 = vxpose.xlu0.c.b16.cont [4/8] 0, 128
        %5251 = vxpose.xlu0.c.b16.cont [5/8] 0, 128
        %5252 = vxpose.xlu0.c.b16.cont [6/8] 0, 128
        %5253 = vxpose.xlu0.c.b16.cont [7/8] 0, 128
        %5254 = vxpose.xlu0.c.b16.end [8/8] 0, 128
        %v5255 = vpop.trf.xlu0
        %v5256 = vpop.trf.xlu0
        %v5257 = vpop.trf.xlu0
        %v5258 = vpop.trf.xlu0
        %v5259 = vpop.trf.xlu0
        %v5260 = vpop.trf.xlu0
        %v5261 = vpop.trf.xlu0
        %v5262 = vpop.trf.xlu0
        %5263 = vxpose.xlu0.c.b16.start [1/8] %v5197, 128
        %5264 = vxpose.xlu0.c.b16.cont [2/8] 0, 128
        %5265 = vxpose.xlu0.c.b16.cont [3/8] 0, 128
        %5266 = vxpose.xlu0.c.b16.cont [4/8] 0, 128
        %5267 = vxpose.xlu0.c.b16.cont [5/8] 0, 128
        %5268 = vxpose.xlu0.c.b16.cont [6/8] 0, 128
        %5269 = vxpose.xlu0.c.b16.cont [7/8] 0, 128
        %5270 = vxpose.xlu0.c.b16.end [8/8] 0, 128
        %v5271 = vpop.trf.xlu0
        %v5272 = vpop.trf.xlu0
        %v5273 = vpop.trf.xlu0
        %v5274 = vpop.trf.xlu0
        %v5275 = vpop.trf.xlu0
        %v5276 = vpop.trf.xlu0
        %v5277 = vpop.trf.xlu0
        %v5278 = vpop.trf.xlu0
        %5279 = vxpose.xlu0.c.b16.start [1/8] %v5201, 128
        %5280 = vxpose.xlu0.c.b16.cont [2/8] 0, 128
        %5281 = vxpose.xlu0.c.b16.cont [3/8] 0, 128
        %5282 = vxpose.xlu0.c.b16.cont [4/8] 0, 128
        %5283 = vxpose.xlu0.c.b16.cont [5/8] 0, 128
        %5284 = vxpose.xlu0.c.b16.cont [6/8] 0, 128
        %5285 = vxpose.xlu0.c.b16.cont [7/8] 0, 128
        %5286 = vxpose.xlu0.c.b16.end [8/8] 0, 128
        %v5287 = vpop.trf.xlu0
        %v5288 = vpop.trf.xlu0
        %v5289 = vpop.trf.xlu0
        %v5290 = vpop.trf.xlu0
        %v5291 = vpop.trf.xlu0
        %v5292 = vpop.trf.xlu0
        %v5293 = vpop.trf.xlu0
        %v5294 = vpop.trf.xlu0
        %5295 = vxpose.xlu0.c.b16.start [1/8] %v5205, 128
        %5296 = vxpose.xlu0.c.b16.cont [2/8] 0, 128
        %5297 = vxpose.xlu0.c.b16.cont [3/8] 0, 128
        %5298 = vxpose.xlu0.c.b16.cont [4/8] 0, 128
        %5299 = vxpose.xlu0.c.b16.cont [5/8] 0, 128
        %5300 = vxpose.xlu0.c.b16.cont [6/8] 0, 128
        %5301 = vxpose.xlu0.c.b16.cont [7/8] 0, 128
        %5302 = vxpose.xlu0.c.b16.end [8/8] 0, 128
        %v5303 = vpop.trf.xlu0
        %v5304 = vpop.trf.xlu0
        %v5305 = vpop.trf.xlu0
        %v5306 = vpop.trf.xlu0
        %v5307 = vpop.trf.xlu0
        %v5308 = vpop.trf.xlu0
        %v5309 = vpop.trf.xlu0
        %v5310 = vpop.trf.xlu0
        %5311 = vxpose.xlu0.c.b16.start [1/8] %v5209, 128
        %5312 = vxpose.xlu0.c.b16.cont [2/8] 0, 128
        %5313 = vxpose.xlu0.c.b16.cont [3/8] 0, 128
        %5314 = vxpose.xlu0.c.b16.cont [4/8] 0, 128
        %5315 = vxpose.xlu0.c.b16.cont [5/8] 0, 128
        %5316 = vxpose.xlu0.c.b16.cont [6/8] 0, 128
        %5317 = vxpose.xlu0.c.b16.cont [7/8] 0, 128
        %5318 = vxpose.xlu0.c.b16.end [8/8] 0, 128
        %v5319 = vpop.trf.xlu0
        %v5320 = vpop.trf.xlu0
        %v5321 = vpop.trf.xlu0
        %v5322 = vpop.trf.xlu0
        %v5323 = vpop.trf.xlu0
        %v5324 = vpop.trf.xlu0
        %v5325 = vpop.trf.xlu0
        %v5326 = vpop.trf.xlu0
        %5327 = vxpose.xlu0.c.b16.start [1/8] %v5213, 128
        %5328 = vxpose.xlu0.c.b16.cont [2/8] 0, 128
        %5329 = vxpose.xlu0.c.b16.cont [3/8] 0, 128
        %5330 = vxpose.xlu0.c.b16.cont [4/8] 0, 128
        %5331 = vxpose.xlu0.c.b16.cont [5/8] 0, 128
        %5332 = vxpose.xlu0.c.b16.cont [6/8] 0, 128
        %5333 = vxpose.xlu0.c.b16.cont [7/8] 0, 128
        %5334 = vxpose.xlu0.c.b16.end [8/8] 0, 128
        %v5335 = vpop.trf.xlu0
        %v5336 = vpop.trf.xlu0
        %v5337 = vpop.trf.xlu0
        %v5338 = vpop.trf.xlu0
        %v5339 = vpop.trf.xlu0
        %v5340 = vpop.trf.xlu0
        %v5341 = vpop.trf.xlu0
        %v5342 = vpop.trf.xlu0
        %v5343 = vcombine.low %v5223, %v5287
        %v5345 = vunpack.c.l.s4 1983009808
        %v5346 = vunpack.c.0.s8 %v5345
        %v5347 = vlaneseq
        %v5348 = vshrl.u32 %v5347, 7
        %v5349 = vsub.s32 %v5346, %v5348
        %v5350 = vrot.slane %v5343, %v5349
        %v5351 = vcombine.low %v5255, %v5319
        %v5353 = vunpack.c.l.s4 1983009808
        %v5354 = vunpack.c.0.s8 %v5353
        %v5355 = vlaneseq
        %v5356 = vshrl.u32 %v5355, 7
        %v5357 = vsub.s32 %v5354, %v5356
        %v5358 = vrot.slane %v5351, %v5357
        %v5359 = vcombine.low %v5350, %v5358
        %v5361 = vunpack.c.l.s4 1934713408
        %v5362 = vunpack.c.0.s8 %v5361
        %v5363 = vlaneseq
        %v5364 = vshrl.u32 %v5363, 7
        %v5365 = vsub.s32 %v5362, %v5364
        %v5366 = vrot.slane %v5359, %v5365
        %v5367 = vcombine.high %v5366, 0
        %v5368 = vcombine.low %v5239, %v5303
        %v5370 = vunpack.c.l.s4 1983009808
        %v5371 = vunpack.c.0.s8 %v5370
        %v5372 = vlaneseq
        %v5373 = vshrl.u32 %v5372, 7
        %v5374 = vsub.s32 %v5371, %v5373
        %v5375 = vrot.slane %v5368, %v5374
        %v5376 = vcombine.low %v5271, %v5335
        %v5378 = vunpack.c.l.s4 1983009808
        %v5379 = vunpack.c.0.s8 %v5378
        %v5380 = vlaneseq
        %v5381 = vshrl.u32 %v5380, 7
        %v5382 = vsub.s32 %v5379, %v5381
        %v5383 = vrot.slane %v5376, %v5382
        %v5384 = vcombine.low %v5375, %v5383
        %v5386 = vunpack.c.l.s4 1934713408
        %v5387 = vunpack.c.0.s8 %v5386
        %v5388 = vlaneseq
        %v5389 = vshrl.u32 %v5388, 7
        %v5390 = vsub.s32 %v5387, %v5389
        %v5391 = vrot.slane %v5384, %v5390
        %v5392 = vcombine.high %v5391, 0
        %v5395 = vpack.i.b16 %v5391, %v5366
        %v5396 = vshrl.u32 %v5366, 16
        %v5397 = vshrl.u32 %v5391, 16
        %v5398 = vpack.i.b16 %v5397, %v5396
        %v5401 = vpack.i.b16 %v5392, %v5367
        %v5402 = vshrl.u32 %v5367, 16
        %v5403 = vshrl.u32 %v5392, 16
        %v5404 = vpack.i.b16 %v5403, %v5402
        %v5406 = vsel %vm2880, %v4781, 0
        %v5409 = vsel %vm2884, %v5395, 0
        %5411 = vmatprep.subr.bf16.mxu0 0
        %5412 = vmatpush1.bf16.msra.mxu0 0
        %5413 = vmatprep.subr.bf16.mxu0 0
        %5414 = vmatpush1.bf16.msra.mxu0 0
        %5415 = vmatprep.subr.bf16.mxu0 0
        %5416 = vmatpush1.bf16.msra.mxu0 0
        %5417 = vmatprep.subr.bf16.mxu0 0
        %5418 = vmatpush1.bf16.msra.mxu0 0
        %5419 = vmatprep.subr.bf16.mxu0 0
        %5420 = vmatpush1.bf16.msra.mxu0 0
        %5421 = vmatprep.subr.bf16.mxu0 0
        %5422 = vmatpush1.bf16.msra.mxu0 0
        %5423 = vmatprep.subr.bf16.mxu0 0
        %5424 = vmatpush1.bf16.msra.mxu0 0
        %5425 = vmatprep.subr.bf16.mxu0 0
        %5426 = vmatpush1.bf16.msra.mxu0 %v5409
        %5427 = vmatprep.subr.bf16.mxu0 0
        %5428 = vmatpush2.bf16.msra.mxu0 0
        %5429 = vmatprep.subr.bf16.mxu0 0
        %5430 = vmatpush2.bf16.msra.mxu0 0
        %5431 = vmatprep.subr.bf16.mxu0 0
        %5432 = vmatpush2.bf16.msra.mxu0 0
        %5433 = vmatprep.subr.bf16.mxu0 0
        %5434 = vmatpush2.bf16.msra.mxu0 0
        %5435 = vmatprep.subr.bf16.mxu0 0
        %5436 = vmatpush2.bf16.msra.mxu0 0
        %5437 = vmatprep.subr.bf16.mxu0 0
        %5438 = vmatpush2.bf16.msra.mxu0 0
        %5439 = vmatprep.subr.bf16.mxu0 0
        %5440 = vmatpush2.bf16.msra.mxu0 0
        %5441 = vmatprep.subr.bf16.mxu0 0
        %5442 = vmatpush2.bf16.msra.mxu0 0
        %5443 = vmatprep.mubr.bf16.mxu0 0
        %5444 = vmatmul.mubr.bf16.gmra.mxu0 %v5406
        %v5445 = vpop.f32.mrf.mxu0
        %v5446 = vadd.f32 %v4298, %v5445
        %v5447 = vpop.f32.mrf.mxu0
        %v5448 = vpop.f32.mrf.mxu0
        %v5449 = vpop.f32.mrf.mxu0
        %5450 = vdwg.mxu0
        %v5452 = vsel %vm2880, %v4784, 0
        %v5455 = vsel %vm2884, %v5398, 0
        %5457 = vmatprep.subr.bf16.mxu0 0
        %5458 = vmatpush1.bf16.msra.mxu0 0
        %5459 = vmatprep.subr.bf16.mxu0 0
        %5460 = vmatpush1.bf16.msra.mxu0 0
        %5461 = vmatprep.subr.bf16.mxu0 0
        %5462 = vmatpush1.bf16.msra.mxu0 0
        %5463 = vmatprep.subr.bf16.mxu0 0
        %5464 = vmatpush1.bf16.msra.mxu0 0
        %5465 = vmatprep.subr.bf16.mxu0 0
        %5466 = vmatpush1.bf16.msra.mxu0 0
        %5467 = vmatprep.subr.bf16.mxu0 0
        %5468 = vmatpush1.bf16.msra.mxu0 0
        %5469 = vmatprep.subr.bf16.mxu0 0
        %5470 = vmatpush1.bf16.msra.mxu0 0
        %5471 = vmatprep.subr.bf16.mxu0 0
        %5472 = vmatpush1.bf16.msra.mxu0 %v5455
        %5473 = vmatprep.subr.bf16.mxu0 0
        %5474 = vmatpush2.bf16.msra.mxu0 0
        %5475 = vmatprep.subr.bf16.mxu0 0
        %5476 = vmatpush2.bf16.msra.mxu0 0
        %5477 = vmatprep.subr.bf16.mxu0 0
        %5478 = vmatpush2.bf16.msra.mxu0 0
        %5479 = vmatprep.subr.bf16.mxu0 0
        %5480 = vmatpush2.bf16.msra.mxu0 0
        %5481 = vmatprep.subr.bf16.mxu0 0
        %5482 = vmatpush2.bf16.msra.mxu0 0
        %5483 = vmatprep.subr.bf16.mxu0 0
        %5484 = vmatpush2.bf16.msra.mxu0 0
        %5485 = vmatprep.subr.bf16.mxu0 0
        %5486 = vmatpush2.bf16.msra.mxu0 0
        %5487 = vmatprep.subr.bf16.mxu0 0
        %5488 = vmatpush2.bf16.msra.mxu0 0
        %5489 = vmatprep.mubr.bf16.mxu0 0
        %5490 = vmatmul.mubr.bf16.gmra.mxu0 %v5452
        %v5491 = vpop.f32.mrf.mxu0
        %v5492 = vadd.f32 %v4298, %v5491
        %v5493 = vpop.f32.mrf.mxu0
        %v5494 = vpop.f32.mrf.mxu0
        %v5495 = vpop.f32.mrf.mxu0
        %5496 = vdwg.mxu0
        %v5498 = vsel %vm2880, %v4787, 0
        %v5501 = vsel %vm2884, %v5401, 0
        %5503 = vmatprep.subr.bf16.mxu0 0
        %5504 = vmatpush1.bf16.msra.mxu0 0
        %5505 = vmatprep.subr.bf16.mxu0 0
        %5506 = vmatpush1.bf16.msra.mxu0 0
        %5507 = vmatprep.subr.bf16.mxu0 0
        %5508 = vmatpush1.bf16.msra.mxu0 0
        %5509 = vmatprep.subr.bf16.mxu0 0
        %5510 = vmatpush1.bf16.msra.mxu0 0
        %5511 = vmatprep.subr.bf16.mxu0 0
        %5512 = vmatpush1.bf16.msra.mxu0 0
        %5513 = vmatprep.subr.bf16.mxu0 0
        %5514 = vmatpush1.bf16.msra.mxu0 0
        %5515 = vmatprep.subr.bf16.mxu0 0
        %5516 = vmatpush1.bf16.msra.mxu0 0
        %5517 = vmatprep.subr.bf16.mxu0 0
        %5518 = vmatpush1.bf16.msra.mxu0 %v5501
        %5519 = vmatprep.subr.bf16.mxu0 0
        %5520 = vmatpush2.bf16.msra.mxu0 0
        %5521 = vmatprep.subr.bf16.mxu0 0
        %5522 = vmatpush2.bf16.msra.mxu0 0
        %5523 = vmatprep.subr.bf16.mxu0 0
        %5524 = vmatpush2.bf16.msra.mxu0 0
        %5525 = vmatprep.subr.bf16.mxu0 0
        %5526 = vmatpush2.bf16.msra.mxu0 0
        %5527 = vmatprep.subr.bf16.mxu0 0
        %5528 = vmatpush2.bf16.msra.mxu0 0
        %5529 = vmatprep.subr.bf16.mxu0 0
        %5530 = vmatpush2.bf16.msra.mxu0 0
        %5531 = vmatprep.subr.bf16.mxu0 0
        %5532 = vmatpush2.bf16.msra.mxu0 0
        %5533 = vmatprep.subr.bf16.mxu0 0
        %5534 = vmatpush2.bf16.msra.mxu0 0
        %5535 = vmatprep.mubr.bf16.mxu0 0
        %5536 = vmatmul.mubr.bf16.gmra.mxu0 %v5498
        %v5537 = vpop.f32.mrf.mxu0
        %v5538 = vadd.f32 %v4298, %v5537
        %v5539 = vpop.f32.mrf.mxu0
        %v5540 = vpop.f32.mrf.mxu0
        %v5541 = vpop.f32.mrf.mxu0
        %5542 = vdwg.mxu0
        %v5544 = vsel %vm2880, %v4790, 0
        %v5547 = vsel %vm2884, %v5404, 0
        %5549 = vmatprep.subr.bf16.mxu0 0
        %5550 = vmatpush1.bf16.msra.mxu0 0
        %5551 = vmatprep.subr.bf16.mxu0 0
        %5552 = vmatpush1.bf16.msra.mxu0 0
        %5553 = vmatprep.subr.bf16.mxu0 0
        %5554 = vmatpush1.bf16.msra.mxu0 0
        %5555 = vmatprep.subr.bf16.mxu0 0
        %5556 = vmatpush1.bf16.msra.mxu0 0
        %5557 = vmatprep.subr.bf16.mxu0 0
        %5558 = vmatpush1.bf16.msra.mxu0 0
        %5559 = vmatprep.subr.bf16.mxu0 0
        %5560 = vmatpush1.bf16.msra.mxu0 0
        %5561 = vmatprep.subr.bf16.mxu0 0
        %5562 = vmatpush1.bf16.msra.mxu0 0
        %5563 = vmatprep.subr.bf16.mxu0 0
        %5564 = vmatpush1.bf16.msra.mxu0 %v5547
        %5565 = vmatprep.subr.bf16.mxu0 0
        %5566 = vmatpush2.bf16.msra.mxu0 0
        %5567 = vmatprep.subr.bf16.mxu0 0
        %5568 = vmatpush2.bf16.msra.mxu0 0
        %5569 = vmatprep.subr.bf16.mxu0 0
        %5570 = vmatpush2.bf16.msra.mxu0 0
        %5571 = vmatprep.subr.bf16.mxu0 0
        %5572 = vmatpush2.bf16.msra.mxu0 0
        %5573 = vmatprep.subr.bf16.mxu0 0
        %5574 = vmatpush2.bf16.msra.mxu0 0
        %5575 = vmatprep.subr.bf16.mxu0 0
        %5576 = vmatpush2.bf16.msra.mxu0 0
        %5577 = vmatprep.subr.bf16.mxu0 0
        %5578 = vmatpush2.bf16.msra.mxu0 0
        %5579 = vmatprep.subr.bf16.mxu0 0
        %5580 = vmatpush2.bf16.msra.mxu0 0
        %5581 = vmatprep.mubr.bf16.mxu0 0
        %5582 = vmatmul.mubr.bf16.gmra.mxu0 %v5544
        %v5583 = vpop.f32.mrf.mxu0
        %v5584 = vadd.f32 %v4298, %v5583
        %v5585 = vpop.f32.mrf.mxu0
        %v5586 = vpop.f32.mrf.mxu0
        %v5587 = vpop.f32.mrf.mxu0
        %5588 = vdwg.mxu0
        %v5589 = vsel %vm3993, %v5446, -inf
        %5590 = vmax.xlane.f32.xlu0 %v5589
        %v5591 = vpop.xlane.xlu0 %5590
        %v5592 = vsel %vm3993, %v5492, -inf
        %5593 = vmax.xlane.f32.xlu0 %v5592
        %v5594 = vpop.xlane.xlu0 %5593
        %v5595 = vsel %vm3993, %v5538, -inf
        %5596 = vmax.xlane.f32.xlu0 %v5595
        %v5597 = vpop.xlane.xlu0 %5596
        %v5598 = vsel %vm3993, %v5584, -inf
        %5599 = vmax.xlane.f32.xlu0 %v5598
        %v5600 = vpop.xlane.xlu0 %5599
        %v5601 = vsub.f32 %v5446, %v5591
        %v5602 = vsub.f32 %v5492, %v5594
        %v5603 = vsub.f32 %v5538, %v5597
        %v5604 = vsub.f32 %v5584, %v5600
        %v5605 = vmul.f32 %v5601, 1.442695
        %v5606 = vpow.pop %v5605
        %v5607 = vmul.f32 %v5602, 1.442695
        %v5608 = vpow.pop %v5607
        %v5609 = vmul.f32 %v5603, 1.442695
        %v5610 = vpow.pop %v5609
        %v5611 = vmul.f32 %v5604, 1.442695
        %v5612 = vpow.pop %v5611
        %v5613 = vsel %vm3993, %v5606, 0.0
        %5614 = vadd.xlane.f32.xlu0 %v5613
        %v5615 = vpop.xlane.xlu0 %5614
        %v5616 = vsel %vm3993, %v5608, 0.0
        %5617 = vadd.xlane.f32.xlu0 %v5616
        %v5618 = vpop.xlane.xlu0 %5617
        %v5619 = vsel %vm3993, %v5610, 0.0
        %5620 = vadd.xlane.f32.xlu0 %v5619
        %v5621 = vpop.xlane.xlu0 %5620
        %v5622 = vsel %vm3993, %v5612, 0.0
        %5623 = vadd.xlane.f32.xlu0 %v5622
        %v5624 = vpop.xlane.xlu0 %5623
        %v5625 = vrcp.pop %v5615
        %v5626 = vrcp.pop %v5618
        %v5627 = vrcp.pop %v5621
        %v5628 = vrcp.pop %v5624
        %v5629 = vmul.f32 %v5606, %v5625
        %v5630 = vmul.f32 %v5608, %v5626
        %v5631 = vmul.f32 %v5610, %v5627
        %v5632 = vmul.f32 %v5612, %v5628
        %v5633 = vpack.c.bf16 %v5629, %v5629
        %v5634 = vpack.c.bf16 %v5630, %v5630
        %v5635 = vpack.c.bf16 %v5631, %v5631
        %v5636 = vpack.c.bf16 %v5632, %v5632
        %5637 = vxpose.xlu0.c.b16.start [1/8] %v4713, 128
        %5638 = vxpose.xlu0.c.b16.cont [2/8] 0, 128
        %5639 = vxpose.xlu0.c.b16.cont [3/8] 0, 128
        %5640 = vxpose.xlu0.c.b16.cont [4/8] 0, 128
        %5641 = vxpose.xlu0.c.b16.cont [5/8] 0, 128
        %5642 = vxpose.xlu0.c.b16.cont [6/8] 0, 128
        %5643 = vxpose.xlu0.c.b16.cont [7/8] 0, 128
        %5644 = vxpose.xlu0.c.b16.end [8/8] 0, 128
        %v5645 = vpop.trf.xlu0
        %v5646 = vpop.trf.xlu0
        %v5647 = vpop.trf.xlu0
        %v5648 = vpop.trf.xlu0
        %v5649 = vpop.trf.xlu0
        %v5650 = vpop.trf.xlu0
        %v5651 = vpop.trf.xlu0
        %v5652 = vpop.trf.xlu0
        %5653 = vxpose.xlu0.c.b16.start [1/8] %v4714, 128
        %5654 = vxpose.xlu0.c.b16.cont [2/8] 0, 128
        %5655 = vxpose.xlu0.c.b16.cont [3/8] 0, 128
        %5656 = vxpose.xlu0.c.b16.cont [4/8] 0, 128
        %5657 = vxpose.xlu0.c.b16.cont [5/8] 0, 128
        %5658 = vxpose.xlu0.c.b16.cont [6/8] 0, 128
        %5659 = vxpose.xlu0.c.b16.cont [7/8] 0, 128
        %5660 = vxpose.xlu0.c.b16.end [8/8] 0, 128
        %v5661 = vpop.trf.xlu0
        %v5662 = vpop.trf.xlu0
        %v5663 = vpop.trf.xlu0
        %v5664 = vpop.trf.xlu0
        %v5665 = vpop.trf.xlu0
        %v5666 = vpop.trf.xlu0
        %v5667 = vpop.trf.xlu0
        %v5668 = vpop.trf.xlu0
        %5669 = vxpose.xlu0.c.b16.start [1/8] %v4715, 128
        %5670 = vxpose.xlu0.c.b16.cont [2/8] 0, 128
        %5671 = vxpose.xlu0.c.b16.cont [3/8] 0, 128
        %5672 = vxpose.xlu0.c.b16.cont [4/8] 0, 128
        %5673 = vxpose.xlu0.c.b16.cont [5/8] 0, 128
        %5674 = vxpose.xlu0.c.b16.cont [6/8] 0, 128
        %5675 = vxpose.xlu0.c.b16.cont [7/8] 0, 128
        %5676 = vxpose.xlu0.c.b16.end [8/8] 0, 128
        %v5677 = vpop.trf.xlu0
        %v5678 = vpop.trf.xlu0
        %v5679 = vpop.trf.xlu0
        %v5680 = vpop.trf.xlu0
        %v5681 = vpop.trf.xlu0
        %v5682 = vpop.trf.xlu0
        %v5683 = vpop.trf.xlu0
        %v5684 = vpop.trf.xlu0
        %5685 = vxpose.xlu0.c.b16.start [1/8] %v4716, 128
        %5686 = vxpose.xlu0.c.b16.cont [2/8] 0, 128
        %5687 = vxpose.xlu0.c.b16.cont [3/8] 0, 128
        %5688 = vxpose.xlu0.c.b16.cont [4/8] 0, 128
        %5689 = vxpose.xlu0.c.b16.cont [5/8] 0, 128
        %5690 = vxpose.xlu0.c.b16.cont [6/8] 0, 128
        %5691 = vxpose.xlu0.c.b16.cont [7/8] 0, 128
        %5692 = vxpose.xlu0.c.b16.end [8/8] 0, 128
        %v5693 = vpop.trf.xlu0
        %v5694 = vpop.trf.xlu0
        %v5695 = vpop.trf.xlu0
        %v5696 = vpop.trf.xlu0
        %v5697 = vpop.trf.xlu0
        %v5698 = vpop.trf.xlu0
        %v5699 = vpop.trf.xlu0
        %v5700 = vpop.trf.xlu0
        %5701 = vxpose.xlu0.c.b16.start [1/8] %v4717, 128
        %5702 = vxpose.xlu0.c.b16.cont [2/8] 0, 128
        %5703 = vxpose.xlu0.c.b16.cont [3/8] 0, 128
        %5704 = vxpose.xlu0.c.b16.cont [4/8] 0, 128
        %5705 = vxpose.xlu0.c.b16.cont [5/8] 0, 128
        %5706 = vxpose.xlu0.c.b16.cont [6/8] 0, 128
        %5707 = vxpose.xlu0.c.b16.cont [7/8] 0, 128
        %5708 = vxpose.xlu0.c.b16.end [8/8] 0, 128
        %v5709 = vpop.trf.xlu0
        %v5710 = vpop.trf.xlu0
        %v5711 = vpop.trf.xlu0
        %v5712 = vpop.trf.xlu0
        %v5713 = vpop.trf.xlu0
        %v5714 = vpop.trf.xlu0
        %v5715 = vpop.trf.xlu0
        %v5716 = vpop.trf.xlu0
        %5717 = vxpose.xlu0.c.b16.start [1/8] %v4718, 128
        %5718 = vxpose.xlu0.c.b16.cont [2/8] 0, 128
        %5719 = vxpose.xlu0.c.b16.cont [3/8] 0, 128
        %5720 = vxpose.xlu0.c.b16.cont [4/8] 0, 128
        %5721 = vxpose.xlu0.c.b16.cont [5/8] 0, 128
        %5722 = vxpose.xlu0.c.b16.cont [6/8] 0, 128
        %5723 = vxpose.xlu0.c.b16.cont [7/8] 0, 128
        %5724 = vxpose.xlu0.c.b16.end [8/8] 0, 128
        %v5725 = vpop.trf.xlu0
        %v5726 = vpop.trf.xlu0
        %v5727 = vpop.trf.xlu0
        %v5728 = vpop.trf.xlu0
        %v5729 = vpop.trf.xlu0
        %v5730 = vpop.trf.xlu0
        %v5731 = vpop.trf.xlu0
        %v5732 = vpop.trf.xlu0
        %5733 = vxpose.xlu0.c.b16.start [1/8] %v4719, 128
        %5734 = vxpose.xlu0.c.b16.cont [2/8] 0, 128
        %5735 = vxpose.xlu0.c.b16.cont [3/8] 0, 128
        %5736 = vxpose.xlu0.c.b16.cont [4/8] 0, 128
        %5737 = vxpose.xlu0.c.b16.cont [5/8] 0, 128
        %5738 = vxpose.xlu0.c.b16.cont [6/8] 0, 128
        %5739 = vxpose.xlu0.c.b16.cont [7/8] 0, 128
        %5740 = vxpose.xlu0.c.b16.end [8/8] 0, 128
        %v5741 = vpop.trf.xlu0
        %v5742 = vpop.trf.xlu0
        %v5743 = vpop.trf.xlu0
        %v5744 = vpop.trf.xlu0
        %v5745 = vpop.trf.xlu0
        %v5746 = vpop.trf.xlu0
        %v5747 = vpop.trf.xlu0
        %v5748 = vpop.trf.xlu0
        %5749 = vxpose.xlu0.c.b16.start [1/8] %v4720, 128
        %5750 = vxpose.xlu0.c.b16.cont [2/8] 0, 128
        %5751 = vxpose.xlu0.c.b16.cont [3/8] 0, 128
        %5752 = vxpose.xlu0.c.b16.cont [4/8] 0, 128
        %5753 = vxpose.xlu0.c.b16.cont [5/8] 0, 128
        %5754 = vxpose.xlu0.c.b16.cont [6/8] 0, 128
        %5755 = vxpose.xlu0.c.b16.cont [7/8] 0, 128
        %5756 = vxpose.xlu0.c.b16.end [8/8] 0, 128
        %v5757 = vpop.trf.xlu0
        %v5758 = vpop.trf.xlu0
        %v5759 = vpop.trf.xlu0
        %v5760 = vpop.trf.xlu0
        %v5761 = vpop.trf.xlu0
        %v5762 = vpop.trf.xlu0
        %v5763 = vpop.trf.xlu0
        %v5764 = vpop.trf.xlu0
        %5765 = vxpose.xlu0.c.b16.start [1/8] %v4721, 128
        %5766 = vxpose.xlu0.c.b16.cont [2/8] 0, 128
        %5767 = vxpose.xlu0.c.b16.cont [3/8] 0, 128
        %5768 = vxpose.xlu0.c.b16.cont [4/8] 0, 128
        %5769 = vxpose.xlu0.c.b16.cont [5/8] 0, 128
        %5770 = vxpose.xlu0.c.b16.cont [6/8] 0, 128
        %5771 = vxpose.xlu0.c.b16.cont [7/8] 0, 128
        %5772 = vxpose.xlu0.c.b16.end [8/8] 0, 128
        %v5773 = vpop.trf.xlu0
        %v5774 = vpop.trf.xlu0
        %v5775 = vpop.trf.xlu0
        %v5776 = vpop.trf.xlu0
        %v5777 = vpop.trf.xlu0
        %v5778 = vpop.trf.xlu0
        %v5779 = vpop.trf.xlu0
        %v5780 = vpop.trf.xlu0
        %5781 = vxpose.xlu0.c.b16.start [1/8] %v4722, 128
        %5782 = vxpose.xlu0.c.b16.cont [2/8] 0, 128
        %5783 = vxpose.xlu0.c.b16.cont [3/8] 0, 128
        %5784 = vxpose.xlu0.c.b16.cont [4/8] 0, 128
        %5785 = vxpose.xlu0.c.b16.cont [5/8] 0, 128
        %5786 = vxpose.xlu0.c.b16.cont [6/8] 0, 128
        %5787 = vxpose.xlu0.c.b16.cont [7/8] 0, 128
        %5788 = vxpose.xlu0.c.b16.end [8/8] 0, 128
        %v5789 = vpop.trf.xlu0
        %v5790 = vpop.trf.xlu0
        %v5791 = vpop.trf.xlu0
        %v5792 = vpop.trf.xlu0
        %v5793 = vpop.trf.xlu0
        %v5794 = vpop.trf.xlu0
        %v5795 = vpop.trf.xlu0
        %v5796 = vpop.trf.xlu0
        %5797 = vxpose.xlu0.c.b16.start [1/8] %v4723, 128
        %5798 = vxpose.xlu0.c.b16.cont [2/8] 0, 128
        %5799 = vxpose.xlu0.c.b16.cont [3/8] 0, 128
        %5800 = vxpose.xlu0.c.b16.cont [4/8] 0, 128
        %5801 = vxpose.xlu0.c.b16.cont [5/8] 0, 128
        %5802 = vxpose.xlu0.c.b16.cont [6/8] 0, 128
        %5803 = vxpose.xlu0.c.b16.cont [7/8] 0, 128
        %5804 = vxpose.xlu0.c.b16.end [8/8] 0, 128
        %v5805 = vpop.trf.xlu0
        %v5806 = vpop.trf.xlu0
        %v5807 = vpop.trf.xlu0
        %v5808 = vpop.trf.xlu0
        %v5809 = vpop.trf.xlu0
        %v5810 = vpop.trf.xlu0
        %v5811 = vpop.trf.xlu0
        %v5812 = vpop.trf.xlu0
        %5813 = vxpose.xlu0.c.b16.start [1/8] %v4724, 128
        %5814 = vxpose.xlu0.c.b16.cont [2/8] 0, 128
        %5815 = vxpose.xlu0.c.b16.cont [3/8] 0, 128
        %5816 = vxpose.xlu0.c.b16.cont [4/8] 0, 128
        %5817 = vxpose.xlu0.c.b16.cont [5/8] 0, 128
        %5818 = vxpose.xlu0.c.b16.cont [6/8] 0, 128
        %5819 = vxpose.xlu0.c.b16.cont [7/8] 0, 128
        %5820 = vxpose.xlu0.c.b16.end [8/8] 0, 128
        %v5821 = vpop.trf.xlu0
        %v5822 = vpop.trf.xlu0
        %v5823 = vpop.trf.xlu0
        %v5824 = vpop.trf.xlu0
        %v5825 = vpop.trf.xlu0
        %v5826 = vpop.trf.xlu0
        %v5827 = vpop.trf.xlu0
        %v5828 = vpop.trf.xlu0
        %5829 = vxpose.xlu0.c.b16.start [1/8] %v4725, 128
        %5830 = vxpose.xlu0.c.b16.cont [2/8] 0, 128
        %5831 = vxpose.xlu0.c.b16.cont [3/8] 0, 128
        %5832 = vxpose.xlu0.c.b16.cont [4/8] 0, 128
        %5833 = vxpose.xlu0.c.b16.cont [5/8] 0, 128
        %5834 = vxpose.xlu0.c.b16.cont [6/8] 0, 128
        %5835 = vxpose.xlu0.c.b16.cont [7/8] 0, 128
        %5836 = vxpose.xlu0.c.b16.end [8/8] 0, 128
        %v5837 = vpop.trf.xlu0
        %v5838 = vpop.trf.xlu0
        %v5839 = vpop.trf.xlu0
        %v5840 = vpop.trf.xlu0
        %v5841 = vpop.trf.xlu0
        %v5842 = vpop.trf.xlu0
        %v5843 = vpop.trf.xlu0
        %v5844 = vpop.trf.xlu0
        %5845 = vxpose.xlu0.c.b16.start [1/8] %v4726, 128
        %5846 = vxpose.xlu0.c.b16.cont [2/8] 0, 128
        %5847 = vxpose.xlu0.c.b16.cont [3/8] 0, 128
        %5848 = vxpose.xlu0.c.b16.cont [4/8] 0, 128
        %5849 = vxpose.xlu0.c.b16.cont [5/8] 0, 128
        %5850 = vxpose.xlu0.c.b16.cont [6/8] 0, 128
        %5851 = vxpose.xlu0.c.b16.cont [7/8] 0, 128
        %5852 = vxpose.xlu0.c.b16.end [8/8] 0, 128
        %v5853 = vpop.trf.xlu0
        %v5854 = vpop.trf.xlu0
        %v5855 = vpop.trf.xlu0
        %v5856 = vpop.trf.xlu0
        %v5857 = vpop.trf.xlu0
        %v5858 = vpop.trf.xlu0
        %v5859 = vpop.trf.xlu0
        %v5860 = vpop.trf.xlu0
        %5861 = vxpose.xlu0.c.b16.start [1/8] %v4727, 128
        %5862 = vxpose.xlu0.c.b16.cont [2/8] 0, 128
        %5863 = vxpose.xlu0.c.b16.cont [3/8] 0, 128
        %5864 = vxpose.xlu0.c.b16.cont [4/8] 0, 128
        %5865 = vxpose.xlu0.c.b16.cont [5/8] 0, 128
        %5866 = vxpose.xlu0.c.b16.cont [6/8] 0, 128
        %5867 = vxpose.xlu0.c.b16.cont [7/8] 0, 128
        %5868 = vxpose.xlu0.c.b16.end [8/8] 0, 128
        %v5869 = vpop.trf.xlu0
        %v5870 = vpop.trf.xlu0
        %v5871 = vpop.trf.xlu0
        %v5872 = vpop.trf.xlu0
        %v5873 = vpop.trf.xlu0
        %v5874 = vpop.trf.xlu0
        %v5875 = vpop.trf.xlu0
        %v5876 = vpop.trf.xlu0
        %5877 = vxpose.xlu0.c.b16.start [1/8] %v4728, 128
        %5878 = vxpose.xlu0.c.b16.cont [2/8] 0, 128
        %5879 = vxpose.xlu0.c.b16.cont [3/8] 0, 128
        %5880 = vxpose.xlu0.c.b16.cont [4/8] 0, 128
        %5881 = vxpose.xlu0.c.b16.cont [5/8] 0, 128
        %5882 = vxpose.xlu0.c.b16.cont [6/8] 0, 128
        %5883 = vxpose.xlu0.c.b16.cont [7/8] 0, 128
        %5884 = vxpose.xlu0.c.b16.end [8/8] 0, 128
        %v5885 = vpop.trf.xlu0
        %v5886 = vpop.trf.xlu0
        %v5887 = vpop.trf.xlu0
        %v5888 = vpop.trf.xlu0
        %v5889 = vpop.trf.xlu0
        %v5890 = vpop.trf.xlu0
        %v5891 = vpop.trf.xlu0
        %v5892 = vpop.trf.xlu0
        %v5893 = vcombine.low %v5645, %v5709
        %v5895 = vunpack.c.l.s4 1983009808
        %v5896 = vunpack.c.0.s8 %v5895
        %v5897 = vlaneseq
        %v5898 = vshrl.u32 %v5897, 7
        %v5899 = vsub.s32 %v5896, %v5898
        %v5900 = vrot.slane %v5893, %v5899
        %v5901 = vcombine.low %v5677, %v5741
        %v5903 = vunpack.c.l.s4 1983009808
        %v5904 = vunpack.c.0.s8 %v5903
        %v5905 = vlaneseq
        %v5906 = vshrl.u32 %v5905, 7
        %v5907 = vsub.s32 %v5904, %v5906
        %v5908 = vrot.slane %v5901, %v5907
        %v5909 = vcombine.low %v5773, %v5837
        %v5911 = vunpack.c.l.s4 1983009808
        %v5912 = vunpack.c.0.s8 %v5911
        %v5913 = vlaneseq
        %v5914 = vshrl.u32 %v5913, 7
        %v5915 = vsub.s32 %v5912, %v5914
        %v5916 = vrot.slane %v5909, %v5915
        %v5917 = vcombine.low %v5805, %v5869
        %v5919 = vunpack.c.l.s4 1983009808
        %v5920 = vunpack.c.0.s8 %v5919
        %v5921 = vlaneseq
        %v5922 = vshrl.u32 %v5921, 7
        %v5923 = vsub.s32 %v5920, %v5922
        %v5924 = vrot.slane %v5917, %v5923
        %v5925 = vcombine.low %v5900, %v5908
        %v5926 = vcombine.high %v5900, %v5908
        %v5928 = vunpack.c.l.s4 1934713408
        %v5929 = vunpack.c.0.s8 %v5928
        %v5930 = vlaneseq
        %v5931 = vshrl.u32 %v5930, 7
        %v5932 = vsub.s32 %v5929, %v5931
        %v5933 = vrot.slane %v5925, %v5932
        %v5935 = vunpack.c.l.s4 1934713408
        %v5936 = vunpack.c.0.s8 %v5935
        %v5937 = vlaneseq
        %v5938 = vshrl.u32 %v5937, 7
        %v5939 = vsub.s32 %v5936, %v5938
        %v5940 = vrot.slane %v5926, %v5939
        %v5941 = vcombine.low %v5916, %v5924
        %v5942 = vcombine.high %v5916, %v5924
        %v5944 = vunpack.c.l.s4 1934713408
        %v5945 = vunpack.c.0.s8 %v5944
        %v5946 = vlaneseq
        %v5947 = vshrl.u32 %v5946, 7
        %v5948 = vsub.s32 %v5945, %v5947
        %v5949 = vrot.slane %v5941, %v5948
        %v5951 = vunpack.c.l.s4 1934713408
        %v5952 = vunpack.c.0.s8 %v5951
        %v5953 = vlaneseq
        %v5954 = vshrl.u32 %v5953, 7
        %v5955 = vsub.s32 %v5952, %v5954
        %v5956 = vrot.slane %v5942, %v5955
        %v5957 = vcombine.low %v5933, %v5949
        %v5958 = vcombine.high %v5933, %v5949
        %v5959 = vcombine.low %v5940, %v5956
        %v5960 = vcombine.high %v5940, %v5956
        %v5961 = vcombine.low %v5661, %v5725
        %v5963 = vunpack.c.l.s4 1983009808
        %v5964 = vunpack.c.0.s8 %v5963
        %v5965 = vlaneseq
        %v5966 = vshrl.u32 %v5965, 7
        %v5967 = vsub.s32 %v5964, %v5966
        %v5968 = vrot.slane %v5961, %v5967
        %v5969 = vcombine.low %v5693, %v5757
        %v5971 = vunpack.c.l.s4 1983009808
        %v5972 = vunpack.c.0.s8 %v5971
        %v5973 = vlaneseq
        %v5974 = vshrl.u32 %v5973, 7
        %v5975 = vsub.s32 %v5972, %v5974
        %v5976 = vrot.slane %v5969, %v5975
        %v5977 = vcombine.low %v5789, %v5853
        %v5979 = vunpack.c.l.s4 1983009808
        %v5980 = vunpack.c.0.s8 %v5979
        %v5981 = vlaneseq
        %v5982 = vshrl.u32 %v5981, 7
        %v5983 = vsub.s32 %v5980, %v5982
        %v5984 = vrot.slane %v5977, %v5983
        %v5985 = vcombine.low %v5821, %v5885
        %v5987 = vunpack.c.l.s4 1983009808
        %v5988 = vunpack.c.0.s8 %v5987
        %v5989 = vlaneseq
        %v5990 = vshrl.u32 %v5989, 7
        %v5991 = vsub.s32 %v5988, %v5990
        %v5992 = vrot.slane %v5985, %v5991
        %v5993 = vcombine.low %v5968, %v5976
        %v5994 = vcombine.high %v5968, %v5976
        %v5996 = vunpack.c.l.s4 1934713408
        %v5997 = vunpack.c.0.s8 %v5996
        %v5998 = vlaneseq
        %v5999 = vshrl.u32 %v5998, 7
        %v6000 = vsub.s32 %v5997, %v5999
        %v6001 = vrot.slane %v5993, %v6000
        %v6003 = vunpack.c.l.s4 1934713408
        %v6004 = vunpack.c.0.s8 %v6003
        %v6005 = vlaneseq
        %v6006 = vshrl.u32 %v6005, 7
        %v6007 = vsub.s32 %v6004, %v6006
        %v6008 = vrot.slane %v5994, %v6007
        %v6009 = vcombine.low %v5984, %v5992
        %v6010 = vcombine.high %v5984, %v5992
        %v6012 = vunpack.c.l.s4 1934713408
        %v6013 = vunpack.c.0.s8 %v6012
        %v6014 = vlaneseq
        %v6015 = vshrl.u32 %v6014, 7
        %v6016 = vsub.s32 %v6013, %v6015
        %v6017 = vrot.slane %v6009, %v6016
        %v6019 = vunpack.c.l.s4 1934713408
        %v6020 = vunpack.c.0.s8 %v6019
        %v6021 = vlaneseq
        %v6022 = vshrl.u32 %v6021, 7
        %v6023 = vsub.s32 %v6020, %v6022
        %v6024 = vrot.slane %v6010, %v6023
        %v6025 = vcombine.low %v6001, %v6017
        %v6026 = vcombine.high %v6001, %v6017
        %v6027 = vcombine.low %v6008, %v6024
        %v6028 = vcombine.high %v6008, %v6024
        %v6031 = vpack.i.b16 %v6025, %v5957
        %v6033 = vshrl.u32 %v5957, 16
        %v6034 = vshrl.u32 %v6025, 16
        %v6035 = vpack.i.b16 %v6034, %v6033
        %v6039 = vpack.i.b16 %v6026, %v5958
        %v6041 = vshrl.u32 %v5958, 16
        %v6042 = vshrl.u32 %v6026, 16
        %v6043 = vpack.i.b16 %v6042, %v6041
        %v6047 = vpack.i.b16 %v6027, %v5959
        %v6049 = vshrl.u32 %v5959, 16
        %v6050 = vshrl.u32 %v6027, 16
        %v6051 = vpack.i.b16 %v6050, %v6049
        %v6055 = vpack.i.b16 %v6028, %v5960
        %v6057 = vshrl.u32 %v5960, 16
        %v6058 = vshrl.u32 %v6028, 16
        %v6059 = vpack.i.b16 %v6058, %v6057
        %6061 = vxpose.xlu0.c.b16.start [1/8] %v6031, 128
        %6062 = vxpose.xlu0.c.b16.cont [2/8] 0, 128
        %6063 = vxpose.xlu0.c.b16.cont [3/8] 0, 128
        %6064 = vxpose.xlu0.c.b16.cont [4/8] 0, 128
        %6065 = vxpose.xlu0.c.b16.cont [5/8] 0, 128
        %6066 = vxpose.xlu0.c.b16.cont [6/8] 0, 128
        %6067 = vxpose.xlu0.c.b16.cont [7/8] 0, 128
        %6068 = vxpose.xlu0.c.b16.end [8/8] 0, 128
        %v6069 = vpop.trf.xlu0
        %v6070 = vpop.trf.xlu0
        %v6071 = vpop.trf.xlu0
        %v6072 = vpop.trf.xlu0
        %v6073 = vpop.trf.xlu0
        %v6074 = vpop.trf.xlu0
        %v6075 = vpop.trf.xlu0
        %v6076 = vpop.trf.xlu0
        %6077 = vxpose.xlu0.c.b16.start [1/8] %v6035, 128
        %6078 = vxpose.xlu0.c.b16.cont [2/8] 0, 128
        %6079 = vxpose.xlu0.c.b16.cont [3/8] 0, 128
        %6080 = vxpose.xlu0.c.b16.cont [4/8] 0, 128
        %6081 = vxpose.xlu0.c.b16.cont [5/8] 0, 128
        %6082 = vxpose.xlu0.c.b16.cont [6/8] 0, 128
        %6083 = vxpose.xlu0.c.b16.cont [7/8] 0, 128
        %6084 = vxpose.xlu0.c.b16.end [8/8] 0, 128
        %v6085 = vpop.trf.xlu0
        %v6086 = vpop.trf.xlu0
        %v6087 = vpop.trf.xlu0
        %v6088 = vpop.trf.xlu0
        %v6089 = vpop.trf.xlu0
        %v6090 = vpop.trf.xlu0
        %v6091 = vpop.trf.xlu0
        %v6092 = vpop.trf.xlu0
        %6093 = vxpose.xlu0.c.b16.start [1/8] %v6039, 128
        %6094 = vxpose.xlu0.c.b16.cont [2/8] 0, 128
        %6095 = vxpose.xlu0.c.b16.cont [3/8] 0, 128
        %6096 = vxpose.xlu0.c.b16.cont [4/8] 0, 128
        %6097 = vxpose.xlu0.c.b16.cont [5/8] 0, 128
        %6098 = vxpose.xlu0.c.b16.cont [6/8] 0, 128
        %6099 = vxpose.xlu0.c.b16.cont [7/8] 0, 128
        %6100 = vxpose.xlu0.c.b16.end [8/8] 0, 128
        %v6101 = vpop.trf.xlu0
        %v6102 = vpop.trf.xlu0
        %v6103 = vpop.trf.xlu0
        %v6104 = vpop.trf.xlu0
        %v6105 = vpop.trf.xlu0
        %v6106 = vpop.trf.xlu0
        %v6107 = vpop.trf.xlu0
        %v6108 = vpop.trf.xlu0
        %6109 = vxpose.xlu0.c.b16.start [1/8] %v6043, 128
        %6110 = vxpose.xlu0.c.b16.cont [2/8] 0, 128
        %6111 = vxpose.xlu0.c.b16.cont [3/8] 0, 128
        %6112 = vxpose.xlu0.c.b16.cont [4/8] 0, 128
        %6113 = vxpose.xlu0.c.b16.cont [5/8] 0, 128
        %6114 = vxpose.xlu0.c.b16.cont [6/8] 0, 128
        %6115 = vxpose.xlu0.c.b16.cont [7/8] 0, 128
        %6116 = vxpose.xlu0.c.b16.end [8/8] 0, 128
        %v6117 = vpop.trf.xlu0
        %v6118 = vpop.trf.xlu0
        %v6119 = vpop.trf.xlu0
        %v6120 = vpop.trf.xlu0
        %v6121 = vpop.trf.xlu0
        %v6122 = vpop.trf.xlu0
        %v6123 = vpop.trf.xlu0
        %v6124 = vpop.trf.xlu0
        %6125 = vxpose.xlu0.c.b16.start [1/8] %v6047, 128
        %6126 = vxpose.xlu0.c.b16.cont [2/8] 0, 128
        %6127 = vxpose.xlu0.c.b16.cont [3/8] 0, 128
        %6128 = vxpose.xlu0.c.b16.cont [4/8] 0, 128
        %6129 = vxpose.xlu0.c.b16.cont [5/8] 0, 128
        %6130 = vxpose.xlu0.c.b16.cont [6/8] 0, 128
        %6131 = vxpose.xlu0.c.b16.cont [7/8] 0, 128
        %6132 = vxpose.xlu0.c.b16.end [8/8] 0, 128
        %v6133 = vpop.trf.xlu0
        %v6134 = vpop.trf.xlu0
        %v6135 = vpop.trf.xlu0
        %v6136 = vpop.trf.xlu0
        %v6137 = vpop.trf.xlu0
        %v6138 = vpop.trf.xlu0
        %v6139 = vpop.trf.xlu0
        %v6140 = vpop.trf.xlu0
        %6141 = vxpose.xlu0.c.b16.start [1/8] %v6051, 128
        %6142 = vxpose.xlu0.c.b16.cont [2/8] 0, 128
        %6143 = vxpose.xlu0.c.b16.cont [3/8] 0, 128
        %6144 = vxpose.xlu0.c.b16.cont [4/8] 0, 128
        %6145 = vxpose.xlu0.c.b16.cont [5/8] 0, 128
        %6146 = vxpose.xlu0.c.b16.cont [6/8] 0, 128
        %6147 = vxpose.xlu0.c.b16.cont [7/8] 0, 128
        %6148 = vxpose.xlu0.c.b16.end [8/8] 0, 128
        %v6149 = vpop.trf.xlu0
        %v6150 = vpop.trf.xlu0
        %v6151 = vpop.trf.xlu0
        %v6152 = vpop.trf.xlu0
        %v6153 = vpop.trf.xlu0
        %v6154 = vpop.trf.xlu0
        %v6155 = vpop.trf.xlu0
        %v6156 = vpop.trf.xlu0
        %6157 = vxpose.xlu0.c.b16.start [1/8] %v6055, 128
        %6158 = vxpose.xlu0.c.b16.cont [2/8] 0, 128
        %6159 = vxpose.xlu0.c.b16.cont [3/8] 0, 128
        %6160 = vxpose.xlu0.c.b16.cont [4/8] 0, 128
        %6161 = vxpose.xlu0.c.b16.cont [5/8] 0, 128
        %6162 = vxpose.xlu0.c.b16.cont [6/8] 0, 128
        %6163 = vxpose.xlu0.c.b16.cont [7/8] 0, 128
        %6164 = vxpose.xlu0.c.b16.end [8/8] 0, 128
        %v6165 = vpop.trf.xlu0
        %v6166 = vpop.trf.xlu0
        %v6167 = vpop.trf.xlu0
        %v6168 = vpop.trf.xlu0
        %v6169 = vpop.trf.xlu0
        %v6170 = vpop.trf.xlu0
        %v6171 = vpop.trf.xlu0
        %v6172 = vpop.trf.xlu0
        %6173 = vxpose.xlu0.c.b16.start [1/8] %v6059, 128
        %6174 = vxpose.xlu0.c.b16.cont [2/8] 0, 128
        %6175 = vxpose.xlu0.c.b16.cont [3/8] 0, 128
        %6176 = vxpose.xlu0.c.b16.cont [4/8] 0, 128
        %6177 = vxpose.xlu0.c.b16.cont [5/8] 0, 128
        %6178 = vxpose.xlu0.c.b16.cont [6/8] 0, 128
        %6179 = vxpose.xlu0.c.b16.cont [7/8] 0, 128
        %6180 = vxpose.xlu0.c.b16.end [8/8] 0, 128
        %v6181 = vpop.trf.xlu0
        %v6182 = vpop.trf.xlu0
        %v6183 = vpop.trf.xlu0
        %v6184 = vpop.trf.xlu0
        %v6185 = vpop.trf.xlu0
        %v6186 = vpop.trf.xlu0
        %v6187 = vpop.trf.xlu0
        %v6188 = vpop.trf.xlu0
        %v6189 = vcombine.low %v6069, %v6133
        %v6191 = vunpack.c.l.s4 1983009808
        %v6192 = vunpack.c.0.s8 %v6191
        %v6193 = vlaneseq
        %v6194 = vshrl.u32 %v6193, 7
        %v6195 = vsub.s32 %v6192, %v6194
        %v6196 = vrot.slane %v6189, %v6195
        %v6197 = vcombine.low %v6101, %v6165
        %v6199 = vunpack.c.l.s4 1983009808
        %v6200 = vunpack.c.0.s8 %v6199
        %v6201 = vlaneseq
        %v6202 = vshrl.u32 %v6201, 7
        %v6203 = vsub.s32 %v6200, %v6202
        %v6204 = vrot.slane %v6197, %v6203
        %v6205 = vcombine.low %v6196, %v6204
        %v6207 = vunpack.c.l.s4 1934713408
        %v6208 = vunpack.c.0.s8 %v6207
        %v6209 = vlaneseq
        %v6210 = vshrl.u32 %v6209, 7
        %v6211 = vsub.s32 %v6208, %v6210
        %v6212 = vrot.slane %v6205, %v6211
        %v6213 = vcombine.high %v6212, 0
        %v6214 = vcombine.low %v6085, %v6149
        %v6216 = vunpack.c.l.s4 1983009808
        %v6217 = vunpack.c.0.s8 %v6216
        %v6218 = vlaneseq
        %v6219 = vshrl.u32 %v6218, 7
        %v6220 = vsub.s32 %v6217, %v6219
        %v6221 = vrot.slane %v6214, %v6220
        %v6222 = vcombine.low %v6117, %v6181
        %v6224 = vunpack.c.l.s4 1983009808
        %v6225 = vunpack.c.0.s8 %v6224
        %v6226 = vlaneseq
        %v6227 = vshrl.u32 %v6226, 7
        %v6228 = vsub.s32 %v6225, %v6227
        %v6229 = vrot.slane %v6222, %v6228
        %v6230 = vcombine.low %v6221, %v6229
        %v6232 = vunpack.c.l.s4 1934713408
        %v6233 = vunpack.c.0.s8 %v6232
        %v6234 = vlaneseq
        %v6235 = vshrl.u32 %v6234, 7
        %v6236 = vsub.s32 %v6233, %v6235
        %v6237 = vrot.slane %v6230, %v6236
        %v6238 = vcombine.high %v6237, 0
        %v6241 = vpack.i.b16 %v6237, %v6212
        %v6242 = vshrl.u32 %v6212, 16
        %v6243 = vshrl.u32 %v6237, 16
        %v6244 = vpack.i.b16 %v6243, %v6242
        %v6247 = vpack.i.b16 %v6238, %v6213
        %v6248 = vshrl.u32 %v6213, 16
        %v6249 = vshrl.u32 %v6238, 16
        %v6250 = vpack.i.b16 %v6249, %v6248
        %v6252 = vsel %vm3993, %v6241, 0
        %v6255 = vsel %vm3993, %v5633, 0
        %6257 = vmatprep.subr.bf16.mxu0 0
        %6258 = vmatpush1.bf16.xpose.msra.mxu0 0
        %6259 = vmatprep.subr.bf16.mxu0 0
        %6260 = vmatpush1.bf16.xpose.msra.mxu0 0
        %6261 = vmatprep.subr.bf16.mxu0 0
        %6262 = vmatpush1.bf16.xpose.msra.mxu0 0
        %6263 = vmatprep.subr.bf16.mxu0 0
        %6264 = vmatpush1.bf16.xpose.msra.mxu0 0
        %6265 = vmatprep.subr.bf16.mxu0 0
        %6266 = vmatpush1.bf16.xpose.msra.mxu0 0
        %6267 = vmatprep.subr.bf16.mxu0 0
        %6268 = vmatpush1.bf16.xpose.msra.mxu0 0
        %6269 = vmatprep.subr.bf16.mxu0 0
        %6270 = vmatpush1.bf16.xpose.msra.mxu0 0
        %6271 = vmatprep.subr.bf16.mxu0 0
        %6272 = vmatpush1.bf16.xpose.msra.mxu0 %v6255
        %6273 = vmatprep.subr.bf16.mxu0 0
        %6274 = vmatpush2.bf16.xpose.msra.mxu0 0
        %6275 = vmatprep.subr.bf16.mxu0 0
        %6276 = vmatpush2.bf16.xpose.msra.mxu0 0
        %6277 = vmatprep.subr.bf16.mxu0 0
        %6278 = vmatpush2.bf16.xpose.msra.mxu0 0
        %6279 = vmatprep.subr.bf16.mxu0 0
        %6280 = vmatpush2.bf16.xpose.msra.mxu0 0
        %6281 = vmatprep.subr.bf16.mxu0 0
        %6282 = vmatpush2.bf16.xpose.msra.mxu0 0
        %6283 = vmatprep.subr.bf16.mxu0 0
        %6284 = vmatpush2.bf16.xpose.msra.mxu0 0
        %6285 = vmatprep.subr.bf16.mxu0 0
        %6286 = vmatpush2.bf16.xpose.msra.mxu0 0
        %6287 = vmatprep.subr.bf16.mxu0 0
        %6288 = vmatpush2.bf16.xpose.msra.mxu0 0
        %6289 = vmatprep.mubr.bf16.mxu0 0
        %6290 = vmatmul.mubr.bf16.gmra.mxu0 %v6252
        %v6291 = vpop.f32.mrf.mxu0
        %v6292 = vadd.f32 0.0, %v6291
        %v6293 = vpop.f32.mrf.mxu0
        %v6294 = vpop.f32.mrf.mxu0
        %v6295 = vpop.f32.mrf.mxu0
        %6296 = vdwg.mxu0
        %v6298 = vsel %vm3993, %v6244, 0
        %v6301 = vsel %vm3993, %v5634, 0
        %6303 = vmatprep.subr.bf16.mxu0 0
        %6304 = vmatpush1.bf16.xpose.msra.mxu0 0
        %6305 = vmatprep.subr.bf16.mxu0 0
        %6306 = vmatpush1.bf16.xpose.msra.mxu0 0
        %6307 = vmatprep.subr.bf16.mxu0 0
        %6308 = vmatpush1.bf16.xpose.msra.mxu0 0
        %6309 = vmatprep.subr.bf16.mxu0 0
        %6310 = vmatpush1.bf16.xpose.msra.mxu0 0
        %6311 = vmatprep.subr.bf16.mxu0 0
        %6312 = vmatpush1.bf16.xpose.msra.mxu0 0
        %6313 = vmatprep.subr.bf16.mxu0 0
        %6314 = vmatpush1.bf16.xpose.msra.mxu0 0
        %6315 = vmatprep.subr.bf16.mxu0 0
        %6316 = vmatpush1.bf16.xpose.msra.mxu0 0
        %6317 = vmatprep.subr.bf16.mxu0 0
        %6318 = vmatpush1.bf16.xpose.msra.mxu0 %v6301
        %6319 = vmatprep.subr.bf16.mxu0 0
        %6320 = vmatpush2.bf16.xpose.msra.mxu0 0
        %6321 = vmatprep.subr.bf16.mxu0 0
        %6322 = vmatpush2.bf16.xpose.msra.mxu0 0
        %6323 = vmatprep.subr.bf16.mxu0 0
        %6324 = vmatpush2.bf16.xpose.msra.mxu0 0
        %6325 = vmatprep.subr.bf16.mxu0 0
        %6326 = vmatpush2.bf16.xpose.msra.mxu0 0
        %6327 = vmatprep.subr.bf16.mxu0 0
        %6328 = vmatpush2.bf16.xpose.msra.mxu0 0
        %6329 = vmatprep.subr.bf16.mxu0 0
        %6330 = vmatpush2.bf16.xpose.msra.mxu0 0
        %6331 = vmatprep.subr.bf16.mxu0 0
        %6332 = vmatpush2.bf16.xpose.msra.mxu0 0
        %6333 = vmatprep.subr.bf16.mxu0 0
        %6334 = vmatpush2.bf16.xpose.msra.mxu0 0
        %6335 = vmatprep.mubr.bf16.mxu0 0
        %6336 = vmatmul.mubr.bf16.gmra.mxu0 %v6298
        %v6337 = vpop.f32.mrf.mxu0
        %v6338 = vadd.f32 0.0, %v6337
        %v6339 = vpop.f32.mrf.mxu0
        %v6340 = vpop.f32.mrf.mxu0
        %v6341 = vpop.f32.mrf.mxu0
        %6342 = vdwg.mxu0
        %v6344 = vsel %vm3993, %v6247, 0
        %v6347 = vsel %vm3993, %v5635, 0
        %6349 = vmatprep.subr.bf16.mxu0 0
        %6350 = vmatpush1.bf16.xpose.msra.mxu0 0
        %6351 = vmatprep.subr.bf16.mxu0 0
        %6352 = vmatpush1.bf16.xpose.msra.mxu0 0
        %6353 = vmatprep.subr.bf16.mxu0 0
        %6354 = vmatpush1.bf16.xpose.msra.mxu0 0
        %6355 = vmatprep.subr.bf16.mxu0 0
        %6356 = vmatpush1.bf16.xpose.msra.mxu0 0
        %6357 = vmatprep.subr.bf16.mxu0 0
        %6358 = vmatpush1.bf16.xpose.msra.mxu0 0
        %6359 = vmatprep.subr.bf16.mxu0 0
        %6360 = vmatpush1.bf16.xpose.msra.mxu0 0
        %6361 = vmatprep.subr.bf16.mxu0 0
        %6362 = vmatpush1.bf16.xpose.msra.mxu0 0
        %6363 = vmatprep.subr.bf16.mxu0 0
        %6364 = vmatpush1.bf16.xpose.msra.mxu0 %v6347
        %6365 = vmatprep.subr.bf16.mxu0 0
        %6366 = vmatpush2.bf16.xpose.msra.mxu0 0
        %6367 = vmatprep.subr.bf16.mxu0 0
        %6368 = vmatpush2.bf16.xpose.msra.mxu0 0
        %6369 = vmatprep.subr.bf16.mxu0 0
        %6370 = vmatpush2.bf16.xpose.msra.mxu0 0
        %6371 = vmatprep.subr.bf16.mxu0 0
        %6372 = vmatpush2.bf16.xpose.msra.mxu0 0
        %6373 = vmatprep.subr.bf16.mxu0 0
        %6374 = vmatpush2.bf16.xpose.msra.mxu0 0
        %6375 = vmatprep.subr.bf16.mxu0 0
        %6376 = vmatpush2.bf16.xpose.msra.mxu0 0
        %6377 = vmatprep.subr.bf16.mxu0 0
        %6378 = vmatpush2.bf16.xpose.msra.mxu0 0
        %6379 = vmatprep.subr.bf16.mxu0 0
        %6380 = vmatpush2.bf16.xpose.msra.mxu0 0
        %6381 = vmatprep.mubr.bf16.mxu0 0
        %6382 = vmatmul.mubr.bf16.gmra.mxu0 %v6344
        %v6383 = vpop.f32.mrf.mxu0
        %v6384 = vadd.f32 0.0, %v6383
        %v6385 = vpop.f32.mrf.mxu0
        %v6386 = vpop.f32.mrf.mxu0
        %v6387 = vpop.f32.mrf.mxu0
        %6388 = vdwg.mxu0
        %v6390 = vsel %vm3993, %v6250, 0
        %v6393 = vsel %vm3993, %v5636, 0
        %6395 = vmatprep.subr.bf16.mxu0 0
        %6396 = vmatpush1.bf16.xpose.msra.mxu0 0
        %6397 = vmatprep.subr.bf16.mxu0 0
        %6398 = vmatpush1.bf16.xpose.msra.mxu0 0
        %6399 = vmatprep.subr.bf16.mxu0 0
        %6400 = vmatpush1.bf16.xpose.msra.mxu0 0
        %6401 = vmatprep.subr.bf16.mxu0 0
        %6402 = vmatpush1.bf16.xpose.msra.mxu0 0
        %6403 = vmatprep.subr.bf16.mxu0 0
        %6404 = vmatpush1.bf16.xpose.msra.mxu0 0
        %6405 = vmatprep.subr.bf16.mxu0 0
        %6406 = vmatpush1.bf16.xpose.msra.mxu0 0
        %6407 = vmatprep.subr.bf16.mxu0 0
        %6408 = vmatpush1.bf16.xpose.msra.mxu0 0
        %6409 = vmatprep.subr.bf16.mxu0 0
        %6410 = vmatpush1.bf16.xpose.msra.mxu0 %v6393
        %6411 = vmatprep.subr.bf16.mxu0 0
        %6412 = vmatpush2.bf16.xpose.msra.mxu0 0
        %6413 = vmatprep.subr.bf16.mxu0 0
        %6414 = vmatpush2.bf16.xpose.msra.mxu0 0
        %6415 = vmatprep.subr.bf16.mxu0 0
        %6416 = vmatpush2.bf16.xpose.msra.mxu0 0
        %6417 = vmatprep.subr.bf16.mxu0 0
        %6418 = vmatpush2.bf16.xpose.msra.mxu0 0
        %6419 = vmatprep.subr.bf16.mxu0 0
        %6420 = vmatpush2.bf16.xpose.msra.mxu0 0
        %6421 = vmatprep.subr.bf16.mxu0 0
        %6422 = vmatpush2.bf16.xpose.msra.mxu0 0
        %6423 = vmatprep.subr.bf16.mxu0 0
        %6424 = vmatpush2.bf16.xpose.msra.mxu0 0
        %6425 = vmatprep.subr.bf16.mxu0 0
        %6426 = vmatpush2.bf16.xpose.msra.mxu0 0
        %6427 = vmatprep.mubr.bf16.mxu0 0
        %6428 = vmatmul.mubr.bf16.gmra.mxu0 %v6390
        %v6429 = vpop.f32.mrf.mxu0
        %v6430 = vadd.f32 0.0, %v6429
        %v6431 = vpop.f32.mrf.mxu0
        %v6432 = vpop.f32.mrf.mxu0
        %v6433 = vpop.f32.mrf.mxu0
        %6434 = vdwg.mxu0
        %6435 = vxpose.xlu0.b32.start [1/16] %v6292, 128
        %6436 = vxpose.xlu0.b32.cont [2/16] 0.0, 128
        %6437 = vxpose.xlu0.b32.cont [3/16] 0.0, 128
        %6438 = vxpose.xlu0.b32.cont [4/16] 0.0, 128
        %6439 = vxpose.xlu0.b32.cont [5/16] 0.0, 128
        %6440 = vxpose.xlu0.b32.cont [6/16] 0.0, 128
        %6441 = vxpose.xlu0.b32.cont [7/16] 0.0, 128
        %6442 = vxpose.xlu0.b32.cont [8/16] 0.0, 128
        %6443 = vxpose.xlu0.b32.cont [9/16] 0.0, 128
        %6444 = vxpose.xlu0.b32.cont [10/16] 0.0, 128
        %6445 = vxpose.xlu0.b32.cont [11/16] 0.0, 128
        %6446 = vxpose.xlu0.b32.cont [12/16] 0.0, 128
        %6447 = vxpose.xlu0.b32.cont [13/16] 0.0, 128
        %6448 = vxpose.xlu0.b32.cont [14/16] 0.0, 128
        %6449 = vxpose.xlu0.b32.cont [15/16] 0.0, 128
        %6450 = vxpose.xlu0.b32.end [16/16] 0.0, 128
        %v6451 = vpop.trf.xlu0
        %v6452 = vpop.trf.xlu0
        %v6453 = vpop.trf.xlu0
        %v6454 = vpop.trf.xlu0
        %v6455 = vpop.trf.xlu0
        %v6456 = vpop.trf.xlu0
        %v6457 = vpop.trf.xlu0
        %v6458 = vpop.trf.xlu0
        %v6459 = vpop.trf.xlu0
        %v6460 = vpop.trf.xlu0
        %v6461 = vpop.trf.xlu0
        %v6462 = vpop.trf.xlu0
        %v6463 = vpop.trf.xlu0
        %v6464 = vpop.trf.xlu0
        %v6465 = vpop.trf.xlu0
        %v6466 = vpop.trf.xlu0
        %6467 = vxpose.xlu0.b32.start [1/16] %v6338, 128
        %6468 = vxpose.xlu0.b32.cont [2/16] 0.0, 128
        %6469 = vxpose.xlu0.b32.cont [3/16] 0.0, 128
        %6470 = vxpose.xlu0.b32.cont [4/16] 0.0, 128
        %6471 = vxpose.xlu0.b32.cont [5/16] 0.0, 128
        %6472 = vxpose.xlu0.b32.cont [6/16] 0.0, 128
        %6473 = vxpose.xlu0.b32.cont [7/16] 0.0, 128
        %6474 = vxpose.xlu0.b32.cont [8/16] 0.0, 128
        %6475 = vxpose.xlu0.b32.cont [9/16] 0.0, 128
        %6476 = vxpose.xlu0.b32.cont [10/16] 0.0, 128
        %6477 = vxpose.xlu0.b32.cont [11/16] 0.0, 128
        %6478 = vxpose.xlu0.b32.cont [12/16] 0.0, 128
        %6479 = vxpose.xlu0.b32.cont [13/16] 0.0, 128
        %6480 = vxpose.xlu0.b32.cont [14/16] 0.0, 128
        %6481 = vxpose.xlu0.b32.cont [15/16] 0.0, 128
        %6482 = vxpose.xlu0.b32.end [16/16] 0.0, 128
        %v6483 = vpop.trf.xlu0
        %v6484 = vpop.trf.xlu0
        %v6485 = vpop.trf.xlu0
        %v6486 = vpop.trf.xlu0
        %v6487 = vpop.trf.xlu0
        %v6488 = vpop.trf.xlu0
        %v6489 = vpop.trf.xlu0
        %v6490 = vpop.trf.xlu0
        %v6491 = vpop.trf.xlu0
        %v6492 = vpop.trf.xlu0
        %v6493 = vpop.trf.xlu0
        %v6494 = vpop.trf.xlu0
        %v6495 = vpop.trf.xlu0
        %v6496 = vpop.trf.xlu0
        %v6497 = vpop.trf.xlu0
        %v6498 = vpop.trf.xlu0
        %6499 = vxpose.xlu0.b32.start [1/16] %v6384, 128
        %6500 = vxpose.xlu0.b32.cont [2/16] 0.0, 128
        %6501 = vxpose.xlu0.b32.cont [3/16] 0.0, 128
        %6502 = vxpose.xlu0.b32.cont [4/16] 0.0, 128
        %6503 = vxpose.xlu0.b32.cont [5/16] 0.0, 128
        %6504 = vxpose.xlu0.b32.cont [6/16] 0.0, 128
        %6505 = vxpose.xlu0.b32.cont [7/16] 0.0, 128
        %6506 = vxpose.xlu0.b32.cont [8/16] 0.0, 128
        %6507 = vxpose.xlu0.b32.cont [9/16] 0.0, 128
        %6508 = vxpose.xlu0.b32.cont [10/16] 0.0, 128
        %6509 = vxpose.xlu0.b32.cont [11/16] 0.0, 128
        %6510 = vxpose.xlu0.b32.cont [12/16] 0.0, 128
        %6511 = vxpose.xlu0.b32.cont [13/16] 0.0, 128
        %6512 = vxpose.xlu0.b32.cont [14/16] 0.0, 128
        %6513 = vxpose.xlu0.b32.cont [15/16] 0.0, 128
        %6514 = vxpose.xlu0.b32.end [16/16] 0.0, 128
        %v6515 = vpop.trf.xlu0
        %v6516 = vpop.trf.xlu0
        %v6517 = vpop.trf.xlu0
        %v6518 = vpop.trf.xlu0
        %v6519 = vpop.trf.xlu0
        %v6520 = vpop.trf.xlu0
        %v6521 = vpop.trf.xlu0
        %v6522 = vpop.trf.xlu0
        %v6523 = vpop.trf.xlu0
        %v6524 = vpop.trf.xlu0
        %v6525 = vpop.trf.xlu0
        %v6526 = vpop.trf.xlu0
        %v6527 = vpop.trf.xlu0
        %v6528 = vpop.trf.xlu0
        %v6529 = vpop.trf.xlu0
        %v6530 = vpop.trf.xlu0
        %6531 = vxpose.xlu0.b32.start [1/16] %v6430, 128
        %6532 = vxpose.xlu0.b32.cont [2/16] 0.0, 128
        %6533 = vxpose.xlu0.b32.cont [3/16] 0.0, 128
        %6534 = vxpose.xlu0.b32.cont [4/16] 0.0, 128
        %6535 = vxpose.xlu0.b32.cont [5/16] 0.0, 128
        %6536 = vxpose.xlu0.b32.cont [6/16] 0.0, 128
        %6537 = vxpose.xlu0.b32.cont [7/16] 0.0, 128
        %6538 = vxpose.xlu0.b32.cont [8/16] 0.0, 128
        %6539 = vxpose.xlu0.b32.cont [9/16] 0.0, 128
        %6540 = vxpose.xlu0.b32.cont [10/16] 0.0, 128
        %6541 = vxpose.xlu0.b32.cont [11/16] 0.0, 128
        %6542 = vxpose.xlu0.b32.cont [12/16] 0.0, 128
        %6543 = vxpose.xlu0.b32.cont [13/16] 0.0, 128
        %6544 = vxpose.xlu0.b32.cont [14/16] 0.0, 128
        %6545 = vxpose.xlu0.b32.cont [15/16] 0.0, 128
        %6546 = vxpose.xlu0.b32.end [16/16] 0.0, 128
        %v6547 = vpop.trf.xlu0
        %v6548 = vpop.trf.xlu0
        %v6549 = vpop.trf.xlu0
        %v6550 = vpop.trf.xlu0
        %v6551 = vpop.trf.xlu0
        %v6552 = vpop.trf.xlu0
        %v6553 = vpop.trf.xlu0
        %v6554 = vpop.trf.xlu0
        %v6555 = vpop.trf.xlu0
        %v6556 = vpop.trf.xlu0
        %v6557 = vpop.trf.xlu0
        %v6558 = vpop.trf.xlu0
        %v6559 = vpop.trf.xlu0
        %v6560 = vpop.trf.xlu0
        %v6561 = vpop.trf.xlu0
        %v6562 = vpop.trf.xlu0
        %v6563 = vcombine.low %v6451, %v6515
        %v6564 = vcombine.high %v6451, %v6515
        %v6566 = vunpack.c.l.s4 1983009808
        %v6567 = vunpack.c.0.s8 %v6566
        %v6568 = vlaneseq
        %v6569 = vshrl.u32 %v6568, 7
        %v6570 = vsub.s32 %v6567, %v6569
        %v6571 = vrot.slane %v6563, %v6570
        %v6573 = vunpack.c.l.s4 1983009808
        %v6574 = vunpack.c.0.s8 %v6573
        %v6575 = vlaneseq
        %v6576 = vshrl.u32 %v6575, 7
        %v6577 = vsub.s32 %v6574, %v6576
        %v6578 = vrot.slane %v6564, %v6577
        %v6579 = vcombine.low %v6483, %v6547
        %v6580 = vcombine.high %v6483, %v6547
        %v6582 = vunpack.c.l.s4 1983009808
        %v6583 = vunpack.c.0.s8 %v6582
        %v6584 = vlaneseq
        %v6585 = vshrl.u32 %v6584, 7
        %v6586 = vsub.s32 %v6583, %v6585
        %v6587 = vrot.slane %v6579, %v6586
        %v6589 = vunpack.c.l.s4 1983009808
        %v6590 = vunpack.c.0.s8 %v6589
        %v6591 = vlaneseq
        %v6592 = vshrl.u32 %v6591, 7
        %v6593 = vsub.s32 %v6590, %v6592
        %v6594 = vrot.slane %v6580, %v6593
        %v6595 = vcombine.low %v6571, %v6587
        %v6596 = vcombine.high %v6571, %v6587
        %v6598 = vunpack.c.l.s4 1934713408
        %v6599 = vunpack.c.0.s8 %v6598
        %v6600 = vlaneseq
        %v6601 = vshrl.u32 %v6600, 7
        %v6602 = vsub.s32 %v6599, %v6601
        %v6603 = vrot.slane %v6595, %v6602
        %v6605 = vunpack.c.l.s4 1934713408
        %v6606 = vunpack.c.0.s8 %v6605
        %v6607 = vlaneseq
        %v6608 = vshrl.u32 %v6607, 7
        %v6609 = vsub.s32 %v6606, %v6608
        %v6610 = vrot.slane %v6596, %v6609
        %v6611 = vcombine.low %v6578, %v6594
        %v6612 = vcombine.high %v6578, %v6594
        %v6614 = vunpack.c.l.s4 1934713408
        %v6615 = vunpack.c.0.s8 %v6614
        %v6616 = vlaneseq
        %v6617 = vshrl.u32 %v6616, 7
        %v6618 = vsub.s32 %v6615, %v6617
        %v6619 = vrot.slane %v6611, %v6618
        %v6621 = vunpack.c.l.s4 1934713408
        %v6622 = vunpack.c.0.s8 %v6621
        %v6623 = vlaneseq
        %v6624 = vshrl.u32 %v6623, 7
        %v6625 = vsub.s32 %v6622, %v6624
        %v6626 = vrot.slane %v6612, %v6625
        %v6627 = vcombine.high %v6603, 0.0
        %v6628 = vcombine.high %v6610, 0.0
        %v6629 = vcombine.high %v6619, 0.0
        %v6630 = vcombine.high %v6626, 0.0
        %v6631 = vcombine.low %v6603, %v6610
        %v6633 = vunpack.c.l.s4 1983009808
        %v6634 = vunpack.c.0.s8 %v6633
        %v6635 = vlaneseq
        %v6636 = vshrl.u32 %v6635, 7
        %v6637 = vsub.s32 %v6634, %v6636
        %v6638 = vrot.slane %v6631, %v6637
        %v6639 = vcombine.low %v6627, %v6628
        %v6641 = vunpack.c.l.s4 1983009808
        %v6642 = vunpack.c.0.s8 %v6641
        %v6643 = vlaneseq
        %v6644 = vshrl.u32 %v6643, 7
        %v6645 = vsub.s32 %v6642, %v6644
        %v6646 = vrot.slane %v6639, %v6645
        %v6647 = vcombine.low %v6619, %v6626
        %v6649 = vunpack.c.l.s4 1983009808
        %v6650 = vunpack.c.0.s8 %v6649
        %v6651 = vlaneseq
        %v6652 = vshrl.u32 %v6651, 7
        %v6653 = vsub.s32 %v6650, %v6652
        %v6654 = vrot.slane %v6647, %v6653
        %v6655 = vcombine.low %v6629, %v6630
        %v6657 = vunpack.c.l.s4 1983009808
        %v6658 = vunpack.c.0.s8 %v6657
        %v6659 = vlaneseq
        %v6660 = vshrl.u32 %v6659, 7
        %v6661 = vsub.s32 %v6658, %v6660
        %v6662 = vrot.slane %v6655, %v6661
        %v6663 = vcombine.low %v6638, %v6646
        %v6664 = vcombine.high %v6638, %v6646
        %v6666 = vunpack.c.l.s4 1934713408
        %v6667 = vunpack.c.0.s8 %v6666
        %v6668 = vlaneseq
        %v6669 = vshrl.u32 %v6668, 7
        %v6670 = vsub.s32 %v6667, %v6669
        %v6671 = vrot.slane %v6663, %v6670
        %v6673 = vunpack.c.l.s4 1934713408
        %v6674 = vunpack.c.0.s8 %v6673
        %v6675 = vlaneseq
        %v6676 = vshrl.u32 %v6675, 7
        %v6677 = vsub.s32 %v6674, %v6676
        %v6678 = vrot.slane %v6664, %v6677
        %v6679 = vcombine.low %v6654, %v6662
        %v6680 = vcombine.high %v6654, %v6662
        %v6682 = vunpack.c.l.s4 1934713408
        %v6683 = vunpack.c.0.s8 %v6682
        %v6684 = vlaneseq
        %v6685 = vshrl.u32 %v6684, 7
        %v6686 = vsub.s32 %v6683, %v6685
        %v6687 = vrot.slane %v6679, %v6686
        %v6689 = vunpack.c.l.s4 1934713408
        %v6690 = vunpack.c.0.s8 %v6689
        %v6691 = vlaneseq
        %v6692 = vshrl.u32 %v6691, 7
        %v6693 = vsub.s32 %v6690, %v6692
        %v6694 = vrot.slane %v6680, %v6693
        %v6695 = vcombine.low %v6671, %v6687
        %v6696 = vcombine.high %v6671, %v6687
        %v6697 = vcombine.low %v6678, %v6694
        %v6698 = vcombine.high %v6678, %v6694
        %6700 = vrot.lane.b32.xlu0 %v6696, 8
        %v6701 = vpop.permute.xlu0 %6700
        %6704 = vrot.lane.b32.xlu0 %v6697, 16
        %v6705 = vpop.permute.xlu0 %6704
        %6708 = vrot.lane.b32.xlu0 %v6698, 24
        %v6709 = vpop.permute.xlu0 %6708
        %v6711 = vsel %vm2880, %v6695, %v6701
        %v6712 = vsel %vm3993, %v6711, %v6705
        %v6713 = vsel %vm3995, %v6712, %v6709
        %v6714 = vpack.c.bf16 %v6713, %v6713
        %v6715 = vld [vmem:[%s1623] sm:$0xf]
        %v6716 = vld [vmem:[%s1623 + $0x4] sm:$0xf]
        %v6717 = vld [vmem:[%s1623 + $0x8] sm:$0xf]
        %v6718 = vld [vmem:[%s1623 + $0xc] sm:$0xf]
        %v6719 = vld [vmem:[%s1631] sm:$0x1]
        %v6721 = vlaneseq
        %v6722 = vshrl.u32 %v6721, 7
        %v6723 = vsub.s32 0, %v6722
        %v6724 = vrot.slane %v6719, %v6723
        %v6730 = vunpack.c.l.b16 %v6715
        %v6731 = vunpack.c.l.b16 %v6716
        %v6732 = vunpack.c.l.b16 %v6717
        %v6733 = vunpack.c.l.b16 %v6718
        %v6734 = vpack.c.b16 %v6731, %v6730
        %v6735 = vpack.c.b16 %v6733, %v6732
        %v6739 = vsel %vm1971, %v6714, 0
        %6741 = vmatprep.subr.bf16.mxu0 0
        %6742 = vmatpush1.bf16.msra.mxu0 0
        %6743 = vmatprep.subr.bf16.mxu0 0
        %6744 = vmatpush1.bf16.msra.mxu0 0
        %6745 = vmatprep.subr.bf16.mxu0 0
        %6746 = vmatpush1.bf16.msra.mxu0 0
        %6747 = vmatprep.subr.bf16.mxu0 0
        %6748 = vmatpush1.bf16.msra.mxu0 0
        %6749 = vmatprep.subr.bf16.mxu0 0
        %6750 = vmatpush1.bf16.msra.mxu0 0
        %6751 = vmatprep.subr.bf16.mxu0 0
        %6752 = vmatpush1.bf16.msra.mxu0 0
        %6753 = vmatprep.subr.bf16.mxu0 0
        %6754 = vmatpush1.bf16.msra.mxu0 %v6735
        %6755 = vmatprep.subr.bf16.mxu0 0
        %6756 = vmatpush1.bf16.msra.mxu0 %v6734
        %6757 = vmatprep.subr.bf16.mxu0 0
        %6758 = vmatpush2.bf16.msra.mxu0 0
        %6759 = vmatprep.subr.bf16.mxu0 0
        %6760 = vmatpush2.bf16.msra.mxu0 0
        %6761 = vmatprep.subr.bf16.mxu0 0
        %6762 = vmatpush2.bf16.msra.mxu0 0
        %6763 = vmatprep.subr.bf16.mxu0 0
        %6764 = vmatpush2.bf16.msra.mxu0 0
        %6765 = vmatprep.subr.bf16.mxu0 0
        %6766 = vmatpush2.bf16.msra.mxu0 0
        %6767 = vmatprep.subr.bf16.mxu0 0
        %6768 = vmatpush2.bf16.msra.mxu0 0
        %6769 = vmatprep.subr.bf16.mxu0 0
        %6770 = vmatpush2.bf16.msra.mxu0 0
        %6771 = vmatprep.subr.bf16.mxu0 0
        %6772 = vmatpush2.bf16.msra.mxu0 0
        %6773 = vmatprep.mubr.bf16.mxu0 0
        %6774 = vmatmul.mubr.bf16.gmra.mxu0 %v6739
        %v6775 = vpop.f32.mrf.mxu0
        %v6776 = vadd.f32 %v6724, %v6775
        %v6777 = vpop.f32.mrf.mxu0
        %v6778 = vpop.f32.mrf.mxu0
        %v6779 = vpop.f32.mrf.mxu0
        %6780 = vdwg.mxu0
        %v6781 = vadd.f32 %v4094, %v6776
        %v6782 = vsel %vm1971, %v6781, 0.0
        %6783 = vadd.xlane.f32.xlu0 %v6782
        %v6784 = vpop.xlane.xlu0 %6783
        %v6785 = vmul.f32 %v6784, %v4068
        %v6786 = vsub.f32 %v6781, %v6785
        %v6787 = vmul.f32 %v6786, %v6786
        %v6788 = vsel %vm1971, %v6787, 0.0
        %6789 = vadd.xlane.f32.xlu0 %v6788
        %v6790 = vpop.xlane.xlu0 %6789
        %v6791 = vmul.f32 %v6790, %v4068
        %v6792 = vadd.f32 %v6791, 1e-05
        %v6793 = vrsqrt.pop %v6792
        %v6794 = vmul.f32 %v6786, %v6793
        %v6795 = vld [vmem:[%s1655] sm:$0x1]
        %v6797 = vlaneseq
        %v6798 = vshrl.u32 %v6797, 7
        %v6799 = vsub.s32 0, %v6798
        %v6800 = vrot.slane %v6795, %v6799
        %v6802 = vmul.f32 %v6794, %v6800
        %v6803 = vld [vmem:[%s1663] sm:$0x1]
        %v6805 = vlaneseq
        %v6806 = vshrl.u32 %v6805, 7
        %v6807 = vsub.s32 0, %v6806
        %v6808 = vrot.slane %v6803, %v6807
        %v6810 = vadd.f32 %v6802, %v6808
        %v6811 = vpack.c.bf16 %v6810, %v6810
        %v6812 = vld [vmem:[%s1688] sm:$0xf]
        %v6813 = vld [vmem:[%s1688 + $0x4] sm:$0xf]
        %v6814 = vld [vmem:[%s1688 + $0x8] sm:$0xf]
        %v6815 = vld [vmem:[%s1688 + $0xc] sm:$0xf]
        %v6816 = vld [vmem:[%s1696] sm:$0x1]
        %v6818 = vlaneseq
        %v6819 = vshrl.u32 %v6818, 7
        %v6820 = vsub.s32 0, %v6819
        %v6821 = vrot.slane %v6816, %v6820
        %v6827 = vunpack.c.l.b16 %v6812
        %v6828 = vunpack.c.l.b16 %v6813
        %v6829 = vunpack.c.l.b16 %v6814
        %v6830 = vunpack.c.l.b16 %v6815
        %v6831 = vpack.c.b16 %v6828, %v6827
        %v6832 = vpack.c.b16 %v6830, %v6829
        %v6836 = vsel %vm1971, %v6811, 0
        %6838 = vmatprep.subr.bf16.mxu0 0
        %6839 = vmatpush1.bf16.msra.mxu0 0
        %6840 = vmatprep.subr.bf16.mxu0 0
        %6841 = vmatpush1.bf16.msra.mxu0 0
        %6842 = vmatprep.subr.bf16.mxu0 0
        %6843 = vmatpush1.bf16.msra.mxu0 0
        %6844 = vmatprep.subr.bf16.mxu0 0
        %6845 = vmatpush1.bf16.msra.mxu0 0
        %6846 = vmatprep.subr.bf16.mxu0 0
        %6847 = vmatpush1.bf16.msra.mxu0 0
        %6848 = vmatprep.subr.bf16.mxu0 0
        %6849 = vmatpush1.bf16.msra.mxu0 0
        %6850 = vmatprep.subr.bf16.mxu0 0
        %6851 = vmatpush1.bf16.msra.mxu0 %v6832
        %6852 = vmatprep.subr.bf16.mxu0 0
        %6853 = vmatpush1.bf16.msra.mxu0 %v6831
        %6854 = vmatprep.subr.bf16.mxu0 0
        %6855 = vmatpush2.bf16.msra.mxu0 0
        %6856 = vmatprep.subr.bf16.mxu0 0
        %6857 = vmatpush2.bf16.msra.mxu0 0
        %6858 = vmatprep.subr.bf16.mxu0 0
        %6859 = vmatpush2.bf16.msra.mxu0 0
        %6860 = vmatprep.subr.bf16.mxu0 0
        %6861 = vmatpush2.bf16.msra.mxu0 0
        %6862 = vmatprep.subr.bf16.mxu0 0
        %6863 = vmatpush2.bf16.msra.mxu0 0
        %6864 = vmatprep.subr.bf16.mxu0 0
        %6865 = vmatpush2.bf16.msra.mxu0 0
        %6866 = vmatprep.subr.bf16.mxu0 0
        %6867 = vmatpush2.bf16.msra.mxu0 0
        %6868 = vmatprep.subr.bf16.mxu0 0
        %6869 = vmatpush2.bf16.msra.mxu0 0
        %6870 = vmatprep.mubr.bf16.mxu0 0
        %6871 = vmatmul.mubr.bf16.gmra.mxu0 %v6836
        %v6872 = vpop.f32.mrf.mxu0
        %v6873 = vadd.f32 %v6821, %v6872
        %v6874 = vpop.f32.mrf.mxu0
        %v6875 = vpop.f32.mrf.mxu0
        %v6876 = vpop.f32.mrf.mxu0
        %6877 = vdwg.mxu0
        %v6878 = vmax.f32 %v6873, 0.0
        %v6879 = vpack.c.bf16 %v6878, %v6878
        %v6880 = vld [vmem:[%s1935] sm:$0xf]
        %v6881 = vld [vmem:[%s1935 + $0x4] sm:$0xf]
        %v6882 = vld [vmem:[%s1935 + $0x8] sm:$0xf]
        %v6883 = vld [vmem:[%s1935 + $0xc] sm:$0xf]
        %v6884 = vld [vmem:[%s1935 + $0x10] sm:$0xf]
        %v6885 = vld [vmem:[%s1935 + $0x14] sm:$0xf]
        %v6886 = vld [vmem:[%s1935 + $0x18] sm:$0xf]
        %v6887 = vld [vmem:[%s1935 + $0x1c] sm:$0xf]
        %v6888 = vld [vmem:[%s1704] sm:$0x1]
        %v6890 = vlaneseq
        %v6891 = vshrl.u32 %v6890, 7
        %v6892 = vsub.s32 0, %v6891
        %v6893 = vrot.slane %v6888, %v6892
        %v6903 = vunpack.c.l.b16 %v6880
        %v6904 = vunpack.c.l.b16 %v6881
        %v6905 = vunpack.c.l.b16 %v6882
        %v6906 = vunpack.c.l.b16 %v6883
        %v6907 = vunpack.c.l.b16 %v6884
        %v6908 = vunpack.c.l.b16 %v6885
        %v6909 = vunpack.c.l.b16 %v6886
        %v6910 = vunpack.c.l.b16 %v6887
        %v6911 = vpack.c.b16 %v6904, %v6903
        %v6912 = vpack.c.b16 %v6906, %v6905
        %v6913 = vpack.c.b16 %v6908, %v6907
        %v6914 = vpack.c.b16 %v6910, %v6909
        %vm6919 = vcmask 523264
        %v6921 = vsel %vm6919, %v6879, 0
        %6923 = vmatprep.subr.bf16.mxu0 0
        %6924 = vmatpush1.bf16.msra.mxu0 0
        %6925 = vmatprep.subr.bf16.mxu0 0
        %6926 = vmatpush1.bf16.msra.mxu0 0
        %6927 = vmatprep.subr.bf16.mxu0 0
        %6928 = vmatpush1.bf16.msra.mxu0 0
        %6929 = vmatprep.subr.bf16.mxu0 0
        %6930 = vmatpush1.bf16.msra.mxu0 0
        %6931 = vmatprep.subr.bf16.mxu0 0
        %6932 = vmatpush1.bf16.msra.mxu0 %v6914
        %6933 = vmatprep.subr.bf16.mxu0 0
        %6934 = vmatpush1.bf16.msra.mxu0 %v6913
        %6935 = vmatprep.subr.bf16.mxu0 0
        %6936 = vmatpush1.bf16.msra.mxu0 %v6912
        %6937 = vmatprep.subr.bf16.mxu0 0
        %6938 = vmatpush1.bf16.msra.mxu0 %v6911
        %6939 = vmatprep.subr.bf16.mxu0 0
        %6940 = vmatpush2.bf16.msra.mxu0 0
        %6941 = vmatprep.subr.bf16.mxu0 0
        %6942 = vmatpush2.bf16.msra.mxu0 0
        %6943 = vmatprep.subr.bf16.mxu0 0
        %6944 = vmatpush2.bf16.msra.mxu0 0
        %6945 = vmatprep.subr.bf16.mxu0 0
        %6946 = vmatpush2.bf16.msra.mxu0 0
        %6947 = vmatprep.subr.bf16.mxu0 0
        %6948 = vmatpush2.bf16.msra.mxu0 0
        %6949 = vmatprep.subr.bf16.mxu0 0
        %6950 = vmatpush2.bf16.msra.mxu0 0
        %6951 = vmatprep.subr.bf16.mxu0 0
        %6952 = vmatpush2.bf16.msra.mxu0 0
        %6953 = vmatprep.subr.bf16.mxu0 0
        %6954 = vmatpush2.bf16.msra.mxu0 0
        %6955 = vmatprep.mubr.bf16.mxu0 0
        %6956 = vmatmul.mubr.bf16.gmra.mxu0 %v6921
        %v6957 = vpop.f32.mrf.mxu0
        %v6958 = vadd.f32 %v6893, %v6957
        %v6959 = vpop.f32.mrf.mxu0
        %v6960 = vpop.f32.mrf.mxu0
        %v6961 = vpop.f32.mrf.mxu0
        %6962 = vdwg.mxu0
        %v6963 = vadd.f32 %v6810, %v6958
        %v6964 = vsel %vm1971, %v6963, 0.0
        %6965 = vadd.xlane.f32.xlu0 %v6964
        %v6966 = vpop.xlane.xlu0 %6965
        %v6967 = vmul.f32 %v6966, %v4068
        %v6968 = vsub.f32 %v6963, %v6967
        %v6969 = vmul.f32 %v6968, %v6968
        %v6970 = vsel %vm1971, %v6969, 0.0
        %6971 = vadd.xlane.f32.xlu0 %v6970
        %v6972 = vpop.xlane.xlu0 %6971
        %v6973 = vmul.f32 %v6972, %v4068
        %v6974 = vadd.f32 %v6973, 1e-05
        %v6975 = vrsqrt.pop %v6974
        %v6976 = vmul.f32 %v6968, %v6975
        %v6977 = vld [vmem:[%s1671] sm:$0x1]
        %v6979 = vlaneseq
        %v6980 = vshrl.u32 %v6979, 7
        %v6981 = vsub.s32 0, %v6980
        %v6982 = vrot.slane %v6977, %v6981
        %v6984 = vmul.f32 %v6976, %v6982
        %v6985 = vld [vmem:[%s1679] sm:$0x1]
        %v6987 = vlaneseq
        %v6988 = vshrl.u32 %v6987, 7
        %v6989 = vsub.s32 0, %v6988
        %v6990 = vrot.slane %v6985, %v6989
        %v6992 = vadd.f32 %v6984, %v6990
        %6993 = vst.msk [vmem:[#allocation2] sm:$0xff] %vm1971, %v6992
        %p6994 = scmp.eq.s32.totalorder %s123, 2
        // Predicated region
        $region253: #{tpu_custom_call.1} parent=147 // pred_check
          %p6995 = pneg %p6994
        $region254: #{tpu_custom_call.1} parent=147 // pred_check_branch
          %6997 = sbr.rel (%p6995) target = $region256
        $region255: #{tpu_custom_call.1} parent=147 // pred_region
          %v6998 = vsel %vm1971, %v6992, 0.0
          %6999 = vadd.xlane.f32.xlu0 %v6998
          %v7000 = vpop.xlane.xlu0 %6999
          %v7001 = vmul.f32 %v7000, %v4068
          %v7002 = vsub.f32 %v6992, %v7001
          %v7003 = vmul.f32 %v7002, %v7002
          %v7004 = vsel %vm1971, %v7003, 0.0
          %7005 = vadd.xlane.f32.xlu0 %v7004
          %v7006 = vpop.xlane.xlu0 %7005
          %v7007 = vmul.f32 %v7006, %v4068
          %v7008 = vadd.f32 %v7007, 1e-05
          %v7009 = vrsqrt.pop %v7008
          %v7010 = vmul.f32 %v7002, %v7009
          %v7011 = vld [vmem:[%s61] sm:$0x1]
          %v7013 = vlaneseq
          %v7014 = vshrl.u32 %v7013, 7
          %v7015 = vsub.s32 0, %v7014
          %v7016 = vrot.slane %v7011, %v7015
          %v7018 = vmul.f32 %v7010, %v7016
          %v7019 = vld [vmem:[%s63] sm:$0x1]
          %v7021 = vlaneseq
          %v7022 = vshrl.u32 %v7021, 7
          %v7023 = vsub.s32 0, %v7022
          %v7024 = vrot.slane %v7019, %v7023
          %v7026 = vadd.f32 %v7018, %v7024
          %7027 = vst.msk [vmem:[%s1912] sm:$0xff] %vm1971, %v7026
        $region256: #{tpu_custom_call.1} parent=147 // pred_fallthru
          _
        %s7028 = sand.u32 %s960, 1
        %s7029 = scalar_lea.sflag [#allocation5], %s7028
        %s7030 = sand.u32 %s960, 1
        %s7031 = smul.addr %s7030, 8
        %s7032 = scalar_lea.vmem [#allocation42], %s7031
        // Predicated region
        $region257: #{tpu_custom_call.1} parent=147 // pred_check
          %p7033 = pneg %p970
        $region258: #{tpu_custom_call.1} parent=147 // pred_check_branch
          %7035 = sbr.rel (%p7033) target = $region260
        $region259: #{tpu_custom_call.1} parent=147 // pred_region
          %s7037 = ssub.s32 128, 128
          %7038 = vsyncadd %s7029, %s7037
          %s7039 = smul.addr %s122, 128
          %s7040 = scalar_lea.hbm %s65, %s7039
          %s7042 = sshll.u32 %s7032, 4
          %s7043 = int_to_ptr.vmem [resolvable:$true] %s7042
          %7045 = dma.vmem_to_hbm [thread:$0]  %s7043, 128, %s7040, %s7029
        $region260: #{tpu_custom_call.1} parent=147 // pred_fallthru
          _
      $region148: #{tpu_custom_call.1} parent=5 // pred_fallthru
        _
      %p7046 = scmp.le.s32.totalorder 2, %s113
      // Predicated region
      $region261: #{tpu_custom_call.1} parent=5 // pred_check
        %p7047 = pneg %p7046
      $region262: #{tpu_custom_call.1} parent=5 // pred_check_branch
        %7049 = sbr.rel (%p7047) target = $region264
      $region263: #{tpu_custom_call.1} parent=5 // pred_region
        %s7050 = ssub.s32 %s113, 2
        // Predicated region
        $region265: #{tpu_custom_call.1} parent=263 // pred_check
          %p7051 = pneg %p976
        $region266: #{tpu_custom_call.1} parent=263 // pred_check_branch
          %7053 = sbr.rel (%p7051) target = $region268
        $region267: #{tpu_custom_call.1} parent=263 // pred_region
          %s7054 = sand.u32 %s961, 1
          %s7055 = scalar_lea.sflag [#allocation5], %s7054
          %s7056 = sand.u32 %s961, 1
          %s7057 = smul.addr %s7056, 8
          %s7058 = scalar_lea.vmem [#allocation42], %s7057
          %7059 = dma.done %s7055, 128
        $region268: #{tpu_custom_call.1} parent=263 // pred_fallthru
          _
      $region264: #{tpu_custom_call.1} parent=5 // pred_fallthru
        _
    $region6: #{tpu_custom_call.1} parent=1 // loop_footer
      %s117 = sadd.s32 1, %s113
    $region7: #{tpu_custom_call.1} parent=1 // loop_footer_branch
      %112 = sbr.rel target = $region3
    $region8: #{tpu_custom_call.1} parent=1 // loop_exit
      _
    %7060 = vsyncpa [#allocation4], 1
    %s7061 = scalar_lea.sflag [#allocation4], 1
    %7062 = vsyncpa %s7061, 1
    %7063 = vsyncpa [#allocation7], 1
    %s7064 = scalar_lea.sflag [#allocation7], 1
    %7065 = vsyncpa %s7064, 1
    %7066 = vsyncpa [#allocation10], 1
    %s7067 = scalar_lea.sflag [#allocation10], 1
    %7068 = vsyncpa %s7067, 1
    %7069 = vsyncpa [#allocation13], 1
    %s7070 = scalar_lea.sflag [#allocation13], 1
    %7071 = vsyncpa %s7070, 1
    %7072 = vsyncpa [#allocation16], 1
    %s7073 = scalar_lea.sflag [#allocation16], 1
    %7074 = vsyncpa %s7073, 1
    %7075 = vsyncpa [#allocation19], 1
    %s7076 = scalar_lea.sflag [#allocation19], 1
    %7077 = vsyncpa %s7076, 1
    %7078 = vsyncpa [#allocation22], 1
    %s7079 = scalar_lea.sflag [#allocation22], 1
    %7080 = vsyncpa %s7079, 1
    %7081 = vsyncpa [#allocation25], 1
    %s7082 = scalar_lea.sflag [#allocation25], 1
    %7083 = vsyncpa %s7082, 1
    %7084 = vsyncpa [#allocation28], 1
    %s7085 = scalar_lea.sflag [#allocation28], 1
    %7086 = vsyncpa %s7085, 1
    %7087 = vsyncpa [#allocation31], 1
    %s7088 = scalar_lea.sflag [#allocation31], 1
    %7089 = vsyncpa %s7088, 1
    %7090 = vsyncpa [#allocation34], 1
    %s7091 = scalar_lea.sflag [#allocation34], 1
    %7092 = vsyncpa %s7091, 1
    %7093 = vsyncpa [#allocation37], 1
    %s7094 = scalar_lea.sflag [#allocation37], 1
    %7095 = vsyncpa %s7094, 1
    %7096 = vsyncpa [#allocation40], 1
    %s7097 = scalar_lea.sflag [#allocation40], 1
    %7098 = vsyncpa %s7097, 1
    %7099 = vsyncpa [#allocation5], 1
    %s7100 = scalar_lea.sflag [#allocation5], 1
    %7101 = vsyncpa %s7100, 1

</llo_original>
